<compile_context>
chip_gen: v6e
topology: v6e:2x2x1
jax: 0.10.0
libtpu: 0.0.40
codegen_flags: <defaults>
</compile_context>

<pallas_src>
import functools

import numpy as np

import jax
import jax.numpy as jnp
from jax.experimental import pallas as pl
from jax.experimental.pallas import tpu as pltpu

LATENT = 10


# ============================================================================
# the single fused kernel
# ============================================================================
def _generator_kernel(x1_ref, eps_ref,
                      w1_ref, w2_ref, bn2_ref, w3_ref, bn3_ref, w4_ref,
                      wfc_ref, bfc_ref, wu1_ref, wu2_ref, ubn2_ref,
                      wu3_ref, ubn3_ref, wu4_ref,
                      t2_ref, t3_ref, tu2_ref, tu3_ref, col_ref, qb_ref,
                      img_ref, mulv_ref, *, B, C, F, L):
    f32 = jnp.float32

    def leaky(v):
        return jnp.where(v > 0, v, 0.2 * v)

    def bn_relu(v, bn_ref):
        # training-mode BatchNorm2d over the full (N, H, W) batch; centered
        # (two-pass) biased variance; f32 epilogue (v5e-safe).
        g = bn_ref[0:1, :]
        b = bn_ref[1:2, :]
        mean = jnp.mean(v, axis=0, keepdims=True)
        var = jnp.mean(jnp.square(v - mean), axis=0, keepdims=True)
        return jnp.maximum((v - mean) * jax.lax.rsqrt(var + 1e-5) * g + b, 0.0)

    # ----------------------------- down path -------------------------------
    # conv1 (C->F, k=2,s=2,p=1) + LeakyReLU; taps arrive pre-packed (k == s,
    # so zero duplication).  Output (B*15*15, F) never leaves VMEM.
    h1 = leaky(jnp.dot(x1_ref[...], w1_ref[...], preferred_element_type=f32))

    # conv2 (F->2F, k=2,s=2,p=1) + BN + ReLU: 15x15 -> 8x8.  The 0/1 operator
    # gathers the four stride-2 taps (zero rows == padding).
    s2 = B * 64
    g2 = jnp.dot(t2_ref[...].astype(f32), h1, preferred_element_type=f32)
    x2 = jnp.concatenate([g2[k * s2:(k + 1) * s2, :] for k in range(4)], axis=1)
    h2 = bn_relu(jnp.dot(x2, w2_ref[...], preferred_element_type=f32), bn2_ref)

    # conv3 (2F->4F, k=2,s=2,p=1) + BN + ReLU: 8x8 -> 5x5
    s3 = B * 25
    g3 = jnp.dot(t3_ref[...].astype(f32), h2, preferred_element_type=f32)
    x3 = jnp.concatenate([g3[k * s3:(k + 1) * s3, :] for k in range(4)], axis=1)
    h3 = bn_relu(jnp.dot(x3, w3_ref[...], preferred_element_type=f32), bn3_ref)

    # conv4 (4F->8F, k=4,s=2,p=0) on the 5x5 map == GEMM over its top-left
    # 4x4 patch (static row slices -> (B, 16*4F), no activation afterwards).
    c3 = 4 * F
    rows = []
    for b in range(B):
        cols = [h3[b * 25 + i * 5 + j: b * 25 + i * 5 + j + 1, :]
                for i in range(4) for j in range(4)]
        rows.append(jnp.concatenate(cols, axis=1))                  # (1, 16*4F)
    h4in = jnp.concatenate(rows, axis=0)                            # (B, 16*4F)
    h4 = jnp.dot(h4in, w4_ref[...], preferred_element_type=f32)     # (B, 8F)

    # ----------------------------- bottleneck ------------------------------
    # fc1 || fc2 merged into one GEMM; mu||logvar emitted as one buffer.
    mulv = jnp.dot(h4, wfc_ref[...], preferred_element_type=f32) + bfc_ref[...]
    mulv_ref[...] = mulv
    mu = mulv[:, :L]
    logvar = mulv[:, L:]
    z = mu + jnp.exp(0.5 * logvar) * eps_ref[...]                   # (B, L)

    # ------------------------------- up path -------------------------------
    # ConvT1 (L->4F, k=4,s=2,p=0) on the 1x1 map == plain GEMM + LeakyReLU.
    u1flat = leaky(jnp.dot(z, wu1_ref[...], preferred_element_type=f32))
    # relayout to rows=(b, 4x4 position), cols=channels for the next ConvT
    ublocks = []
    for b in range(B):
        row = u1flat[b:b + 1, :]                                    # (1, 16*4F)
        ublocks.append(jnp.concatenate(
            [row[:, p * c3:(p + 1) * c3] for p in range(16)], axis=0))
    u1rows = jnp.concatenate(ublocks, axis=0)                       # (B*16, 4F)

    # upconv2: ConvT(4F->2F, k=2,s=2,p=1), 4x4 -> 6x6.  One GEMM against the
    # parity-class weight, then the 0/1 operator assembles the dense 6x6 map
    # in VMEM; BN/ReLU run on the assembled map (exact full-map statistics).
    c2u = 2 * F
    y2 = jnp.dot(u1rows, wu2_ref[...], preferred_element_type=f32)  # (B*16, 4*2F)
    tu2 = tu2_ref[...].astype(f32)
    r6 = B * 36
    h6 = jnp.dot(tu2[0:r6, :], y2[:, 0:c2u], preferred_element_type=f32)
    for k in range(1, 4):
        h6 = h6 + jnp.dot(tu2[k * r6:(k + 1) * r6, :],
                          y2[:, k * c2u:(k + 1) * c2u],
                          preferred_element_type=f32)               # (B*36, 2F)
    h6 = bn_relu(h6, ubn2_ref)

    # upconv3: ConvT(2F->F, k=2,s=2,p=1), 6x6 -> 10x10
    y3 = jnp.dot(h6, wu3_ref[...], preferred_element_type=f32)      # (B*36, 4*F)
    tu3 = tu3_ref[...].astype(f32)
    r10 = B * 100
    h10 = jnp.dot(tu3[0:r10, :], y3[:, 0:F], preferred_element_type=f32)
    for k in range(1, 4):
        h10 = h10 + jnp.dot(tu3[k * r10:(k + 1) * r10, :],
                            y3[:, k * F:(k + 1) * F],
                            preferred_element_type=f32)             # (B*100, F)
    h10 = bn_relu(h10, ubn3_ref)

    # final ConvT(F->C, k=1, s=3, p=0): per-pixel projection + stride-3 zero
    # upsample, emitted lane-dense as NCHW-flat (B, C*28*28) in one pass.
    # (No activation after this layer in the reference module.)
    proj = jnp.dot(h10, wu4_ref[...], preferred_element_type=f32)   # (B*100, C)
    colm = col_ref[...].astype(f32)                                 # (B*100, 784)
    qb = qb_ref[...]                                                # (B, B*100)
    for c in range(C):
        oc = jnp.dot(qb, proj[:, c:c + 1] * colm, preferred_element_type=f32)
        img_ref[:, c * 784:(c + 1) * 784] = oc


# ============================================================================
# one-time packing: weights -> GEMM layouts, 0/1 gather operators (numpy)
# ============================================================================
def _down_gather_op(B, hi, wi, ho, wo):
    """Row (k,b,oy,ox) <- input pixel (2oy-1+ky, 2ox-1+kx) of batch b
    (zero row == padding); k = ky*2+kx.  Shape (4*B*ho*wo, B*hi*wi)."""
    t = np.zeros((4 * B * ho * wo, B * hi * wi), np.float32)
    for ky in range(2):
        for kx in range(2):
            k = ky * 2 + kx
            for b in range(B):
                for oy in range(ho):
                    for ox in range(wo):
                        iy, ix = 2 * oy - 1 + ky, 2 * ox - 1 + kx
                        if 0 <= iy < hi and 0 <= ix < wi:
                            t[((k * B + b) * ho + oy) * wo + ox,
                              (b * hi + iy) * wi + ix] = 1.0
    return t


def _up_interleave_op(B, hi, wi):
    """Assemble the dense ConvT(k=2,s=2,p=1) output map from the 4 parity
    class blocks (class order (1,1),(1,0),(0,1),(0,0)); ho = 2*hi - 2."""
    ho, wo = 2 * hi - 2, 2 * wi - 2
    classes = [(1, 1), (1, 0), (0, 1), (0, 0)]
    t = np.zeros((4 * B * ho * wo, B * hi * wi), np.float32)
    for k, (ky, kx) in enumerate(classes):
        for b in range(B):
            for oy in range(ho):
                for ox in range(wo):
                    if (1 - oy % 2, 1 - ox % 2) != (ky, kx):
                        continue
                    iy, ix = oy // 2 + oy % 2, ox // 2 + ox % 2
                    t[((k * B + b) * ho + oy) * wo + ox,
                      (b * hi + iy) * wi + ix] = 1.0
    return t


def _upsample3_op(B, hi, wi, hout, wout):
    """col[(b,y,x), 3y*wout+3x] = 1 (stride-3 zero upsample positions);
    qb[b, rows of batch b] = 1 (batch selector)."""
    col = np.zeros((B * hi * wi, hout * wout), np.float32)
    qb = np.zeros((B, B * hi * wi), np.float32)
    for b in range(B):
        qb[b, b * hi * wi:(b + 1) * hi * wi] = 1.0
        for y in range(hi):
            for x in range(wi):
                col[(b * hi + y) * wi + x, (3 * y) * wout + 3 * x] = 1.0
    return col, qb


def pack_params(params, batch, channels_img, features_g):
    """One-time pack (outside the jitted forward): weight layouts + gather
    operators.  Operators hold only 0/1 so bf16 storage is exact; they are
    upcast to f32 inside the kernel before the GEMMs."""
    B, F, L = batch, features_g, LATENT

    def conv_mat(w):                      # (O, Cin, kh, kw) -> (kh*kw*Cin, O)
        o, ci, kh, kw = w.shape
        return jnp.transpose(w, (2, 3, 1, 0)).reshape(kh * kw * ci, o)

    def convt_parity(w):                  # (Cin, Cout, 2, 2) -> (Cin, 4*Cout)
        return jnp.concatenate(
            [w[:, :, 1, 1], w[:, :, 1, 0], w[:, :, 0, 1], w[:, :, 0, 0]], axis=1)

    col, qb = _upsample3_op(B, 10, 10, 28, 28)
    return {
        "w1": conv_mat(params["dw1"]),
        "w2": conv_mat(params["dw2"]),
        "bn2": jnp.concatenate([params["dg2"], params["db2"]], axis=0),
        "w3": conv_mat(params["dw3"]),
        "bn3": jnp.concatenate([params["dg3"], params["db3"]], axis=0),
        "w4": conv_mat(params["dw4"]),
        "wfc": jnp.concatenate([params["fc1w"], params["fc2w"]], axis=1),
        "bfc": jnp.concatenate([params["fc1b"], params["fc2b"]], axis=1),
        "wu1": jnp.transpose(params["uw1"], (0, 2, 3, 1)).reshape(L, 16 * 4 * F),
        "wu2": convt_parity(params["uw2"]),
        "ubn2": jnp.concatenate([params["ug2"], params["ub2"]], axis=0),
        "wu3": convt_parity(params["uw3"]),
        "ubn3": jnp.concatenate([params["ug3"], params["ub3"]], axis=0),
        "wu4": params["uw4"][:, :, 0, 0],
        "t2": jnp.asarray(_down_gather_op(B, 15, 15, 8, 8), jnp.bfloat16),
        "t3": jnp.asarray(_down_gather_op(B, 8, 8, 5, 5), jnp.bfloat16),
        "tu2": jnp.asarray(_up_interleave_op(B, 4, 4), jnp.bfloat16),
        "tu3": jnp.asarray(_up_interleave_op(B, 6, 6), jnp.bfloat16),
        "col": jnp.asarray(col, jnp.bfloat16),
        "qb": jnp.asarray(qb, jnp.float32),
    }


# ============================================================================
# forward
# ============================================================================
def generator_forward(packed, x, eps):
    """Returns (image NCHW, mu, logvar) with one fused Pallas call."""
    B, C, H, W = x.shape
    assert H == 28 and W == 28, "the down stack requires 28x28 inputs"
    F = packed["w1"].shape[1]
    L = LATENT

    # Only wrapper-side data movement: pack the first conv's stride-2 taps of
    # the raw input (k == s -> a pure space-to-depth, zero duplication).
    xh = jnp.transpose(x, (0, 2, 3, 1))
    xp = jnp.pad(xh, ((0, 0), (1, 1), (1, 1), (0, 0)))
    x1 = (xp.reshape(B, 15, 2, 15, 2, C)
            .transpose(0, 1, 3, 2, 4, 5)
            .reshape(B * 225, 4 * C))

    operands = [x1, eps,
                packed["w1"], packed["w2"], packed["bn2"], packed["w3"],
                packed["bn3"], packed["w4"], packed["wfc"], packed["bfc"],
                packed["wu1"], packed["wu2"], packed["ubn2"], packed["wu3"],
                packed["ubn3"], packed["wu4"], packed["t2"], packed["t3"],
                packed["tu2"], packed["tu3"], packed["col"], packed["qb"]]
    in_specs = [pl.BlockSpec(op.shape, lambda i: (0, 0)) for op in operands]

    flops = 2 * (B * 225 * 4 * C * F + 4 * B * 64 * B * 225 * F
                 + B * 64 * 4 * F * 2 * F + 4 * B * 25 * B * 64 * 2 * F
                 + B * 25 * 8 * F * 4 * F + B * 64 * F * 8 * F
                 + B * 8 * F * 2 * L + B * L * 64 * F
                 + B * 16 * 4 * F * 8 * F + 4 * B * 36 * B * 16 * 2 * F
                 + B * 36 * 2 * F * 4 * F + 4 * B * 100 * B * 36 * F
                 + B * 100 * F * C + C * B * B * 100 * 784)
    bytes_accessed = (sum(int(np.prod(op.shape)) * op.dtype.itemsize
                          for op in operands)
                      + B * C * 784 * 4 + B * 2 * L * 4)

    kernel = functools.partial(_generator_kernel, B=B, C=C, F=F, L=L)
    img_flat, mulv = pl.pallas_call(
        kernel,
        out_shape=(jax.ShapeDtypeStruct((B, C * 784), jnp.float32),
                   jax.ShapeDtypeStruct((B, 2 * L), jnp.float32)),
        grid=(1,),
        in_specs=in_specs,
        out_specs=(pl.BlockSpec((B, C * 784), lambda i: (0, 0)),
                   pl.BlockSpec((B, 2 * L), lambda i: (0, 0))),
        compiler_params=pltpu.CompilerParams(
            dimension_semantics=("arbitrary",)),
        cost_estimate=pl.CostEstimate(flops=int(flops),
                                      transcendentals=int(B * L + 9 * F),
                                      bytes_accessed=int(bytes_accessed)),
    )(*operands)

    img = img_flat.reshape(B, C, 28, 28)     # NCHW-flat columns -> NCHW (free)
    return img, mulv[:, :L], mulv[:, L:]


def init_params(key, channels_img, features_g):
    F = features_g
    ks = jax.random.split(key, 12)

    def w(k, shape, scale=0.1):
        return (scale * jax.random.normal(k, shape)).astype(jnp.float32)

    return {
        # down convs (O, Cin, kh, kw)
        "dw1": w(ks[0], (F, channels_img, 2, 2)),
        "dw2": w(ks[1], (2 * F, F, 2, 2)),
        "dg2": jnp.ones((1, 2 * F), jnp.float32),
        "db2": jnp.zeros((1, 2 * F), jnp.float32),
        "dw3": w(ks[2], (4 * F, 2 * F, 2, 2)),
        "dg3": jnp.ones((1, 4 * F), jnp.float32),
        "db3": jnp.zeros((1, 4 * F), jnp.float32),
        "dw4": w(ks[3], (8 * F, 4 * F, 4, 4)),
        # fc (stored pre-transposed: (in, out))
        "fc1w": w(ks[4], (8 * F, LATENT)),
        "fc1b": w(ks[5], (1, LATENT)),
        "fc2w": w(ks[6], (8 * F, LATENT)),
        "fc2b": w(ks[7], (1, LATENT)),
        # up conv-transposes (Cin, Cout, kh, kw)
        "uw1": w(ks[8], (LATENT, 4 * F, 4, 4)),
        "uw2": w(ks[9], (4 * F, 2 * F, 2, 2)),
        "ug2": jnp.ones((1, 2 * F), jnp.float32),
        "ub2": jnp.zeros((1, 2 * F), jnp.float32),
        "uw3": w(ks[10], (2 * F, F, 2, 2)),
        "ug3": jnp.ones((1, F), jnp.float32),
        "ub3": jnp.zeros((1, F), jnp.float32),
        "uw4": w(ks[11], (F, channels_img, 1, 1)),
    }


if __name__ == "__main__":
    channels_img = 1
    features_g = 8
    batch = 2
    H = W = 28   # required so the down-stack reaches 1x1 before the fc layers

    key = jax.random.PRNGKey(0)
    k_par, k_x, k_eps = jax.random.split(key, 3)

    params = init_params(k_par, channels_img, features_g)
    packed = pack_params(params, batch, channels_img, features_g)  # one-time pack

    x = jax.random.normal(k_x, (batch, channels_img, H, W), jnp.float32)
    # TODO(synk): torch.randn inside reparameterize has no in-kernel torch RNG
    # equivalent; deterministic JAX noise is passed in as an explicit input.
    eps = jax.random.normal(k_eps, (batch, LATENT), jnp.float32)

    fwd = jax.jit(generator_forward)
    img, mu, logvar = fwd(packed, x, eps)
    jax.block_until_ready((img, mu, logvar))

    assert img.shape == (batch, channels_img, 28, 28), img.shape
    assert mu.shape == (batch, LATENT), mu.shape
    assert logvar.shape == (batch, LATENT), logvar.shape
    assert bool(jnp.all(jnp.isfinite(img))) and bool(jnp.all(jnp.isfinite(mu)))

    print("KERNEL_OK")
</pallas_src>

<mosaic_0001>
module attributes {stable_mosaic.version = 11 : i64} {
  func.func @_generator_kernel(%arg0: i32, %arg1: memref<450x4xf32, #tpu.memory_space<vmem>>, %arg2: memref<2x10xf32, #tpu.memory_space<vmem>>, %arg3: memref<4x8xf32, #tpu.memory_space<vmem>>, %arg4: memref<32x16xf32, #tpu.memory_space<vmem>>, %arg5: memref<2x16xf32, #tpu.memory_space<vmem>>, %arg6: memref<64x32xf32, #tpu.memory_space<vmem>>, %arg7: memref<2x32xf32, #tpu.memory_space<vmem>>, %arg8: memref<512x64xf32, #tpu.memory_space<vmem>>, %arg9: memref<64x20xf32, #tpu.memory_space<vmem>>, %arg10: memref<1x20xf32, #tpu.memory_space<vmem>>, %arg11: memref<10x512xf32, #tpu.memory_space<vmem>>, %arg12: memref<32x64xf32, #tpu.memory_space<vmem>>, %arg13: memref<2x16xf32, #tpu.memory_space<vmem>>, %arg14: memref<16x32xf32, #tpu.memory_space<vmem>>, %arg15: memref<2x8xf32, #tpu.memory_space<vmem>>, %arg16: memref<8x1xf32, #tpu.memory_space<vmem>>, %arg17: memref<512x450xbf16, #tpu.memory_space<vmem>>, %arg18: memref<200x128xbf16, #tpu.memory_space<vmem>>, %arg19: memref<288x32xbf16, #tpu.memory_space<vmem>>, %arg20: memref<800x72xbf16, #tpu.memory_space<vmem>>, %arg21: memref<200x784xbf16, #tpu.memory_space<vmem>>, %arg22: memref<2x200xf32, #tpu.memory_space<vmem>>, %arg23: memref<2x784xf32, #tpu.memory_space<vmem>>, %arg24: memref<2x20xf32, #tpu.memory_space<vmem>>) attributes {dimension_semantics = [#tpu.dimension_semantics<arbitrary>], iteration_bounds = array<i64: 1>, scalar_prefetch = 0 : i64, scratch_operands = 0 : i64, tpu.core_type = #tpu.core_type<tc>, window_params = [{pipeline_mode = #tpu.pipeline_mode<synchronous>, transform_indices = @transform_0, window_bounds = array<i64: 450, 4>}, {pipeline_mode = #tpu.pipeline_mode<synchronous>, transform_indices = @transform_1, window_bounds = array<i64: 2, 10>}, {pipeline_mode = #tpu.pipeline_mode<synchronous>, transform_indices = @transform_2, window_bounds = array<i64: 4, 8>}, {pipeline_mode = #tpu.pipeline_mode<synchronous>, transform_indices = @transform_3, window_bounds = array<i64: 32, 16>}, {pipeline_mode = #tpu.pipeline_mode<synchronous>, transform_indices = @transform_4, window_bounds = array<i64: 2, 16>}, {pipeline_mode = #tpu.pipeline_mode<synchronous>, transform_indices = @transform_5, window_bounds = array<i64: 64, 32>}, {pipeline_mode = #tpu.pipeline_mode<synchronous>, transform_indices = @transform_6, window_bounds = array<i64: 2, 32>}, {pipeline_mode = #tpu.pipeline_mode<synchronous>, transform_indices = @transform_7, window_bounds = array<i64: 512, 64>}, {pipeline_mode = #tpu.pipeline_mode<synchronous>, transform_indices = @transform_8, window_bounds = array<i64: 64, 20>}, {pipeline_mode = #tpu.pipeline_mode<synchronous>, transform_indices = @transform_9, window_bounds = array<i64: 1, 20>}, {pipeline_mode = #tpu.pipeline_mode<synchronous>, transform_indices = @transform_10, window_bounds = array<i64: 10, 512>}, {pipeline_mode = #tpu.pipeline_mode<synchronous>, transform_indices = @transform_11, window_bounds = array<i64: 32, 64>}, {pipeline_mode = #tpu.pipeline_mode<synchronous>, transform_indices = @transform_12, window_bounds = array<i64: 2, 16>}, {pipeline_mode = #tpu.pipeline_mode<synchronous>, transform_indices = @transform_13, window_bounds = array<i64: 16, 32>}, {pipeline_mode = #tpu.pipeline_mode<synchronous>, transform_indices = @transform_14, window_bounds = array<i64: 2, 8>}, {pipeline_mode = #tpu.pipeline_mode<synchronous>, transform_indices = @transform_15, window_bounds = array<i64: 8, 1>}, {pipeline_mode = #tpu.pipeline_mode<synchronous>, transform_indices = @transform_16, window_bounds = array<i64: 512, 450>}, {pipeline_mode = #tpu.pipeline_mode<synchronous>, transform_indices = @transform_17, window_bounds = array<i64: 200, 128>}, {pipeline_mode = #tpu.pipeline_mode<synchronous>, transform_indices = @transform_18, window_bounds = array<i64: 288, 32>}, {pipeline_mode = #tpu.pipeline_mode<synchronous>, transform_indices = @transform_19, window_bounds = array<i64: 800, 72>}, {pipeline_mode = #tpu.pipeline_mode<synchronous>, transform_indices = @transform_20, window_bounds = array<i64: 200, 784>}, {pipeline_mode = #tpu.pipeline_mode<synchronous>, transform_indices = @transform_21, window_bounds = array<i64: 2, 200>}, {pipeline_mode = #tpu.pipeline_mode<synchronous>, transform_indices = @transform_22, window_bounds = array<i64: 2, 784>}, {pipeline_mode = #tpu.pipeline_mode<synchronous>, transform_indices = @transform_23, window_bounds = array<i64: 2, 20>}]} {
    %c0 = arith.constant 0 : index
    %c0_0 = arith.constant 0 : index
    %0 = vector.load %arg1[%c0, %c0_0] : memref<450x4xf32, #tpu.memory_space<vmem>>, vector<450x4xf32>
    %c0_1 = arith.constant 0 : index
    %c0_2 = arith.constant 0 : index
    %1 = vector.load %arg3[%c0_1, %c0_2] : memref<4x8xf32, #tpu.memory_space<vmem>>, vector<4x8xf32>
    %cst = arith.constant dense<0.000000e+00> : vector<450x8xf32>
    %2 = tpu.matmul %0, %1, %cst {dimension_numbers = #tpu.dot_dimension_numbers<[1], [0], [0], [1], [0, 0, 1, 1], [], []>} : vector<450x4xf32>, vector<4x8xf32>, vector<450x8xf32> -> vector<450x8xf32>
    %cst_3 = arith.constant 0.000000e+00 : f32
    %3 = vector.broadcast %cst_3 : f32 to vector<450x8xf32>
    %4 = arith.cmpf ogt, %2, %3 : vector<450x8xf32>
    %cst_4 = arith.constant 2.000000e-01 : f32
    %5 = vector.broadcast %cst_4 : f32 to vector<450x8xf32>
    %6 = arith.mulf %5, %2 : vector<450x8xf32>
    %7 = arith.select %4, %2, %6 : vector<450x8xi1>, vector<450x8xf32>
    %c0_5 = arith.constant 0 : index
    %c0_6 = arith.constant 0 : index
    %8 = vector.load %arg17[%c0_5, %c0_6] : memref<512x450xbf16, #tpu.memory_space<vmem>>, vector<512x450xbf16>
    %9 = arith.extf %8 : vector<512x450xbf16> to vector<512x450xf32>
    %cst_7 = arith.constant dense<0.000000e+00> : vector<512x8xf32>
    %10 = tpu.matmul %9, %7, %cst_7 {dimension_numbers = #tpu.dot_dimension_numbers<[1], [0], [0], [1], [0, 0, 1, 1], [], []>} : vector<512x450xf32>, vector<450x8xf32>, vector<512x8xf32> -> vector<512x8xf32>
    %11 = vector.extract_strided_slice %10 {offsets = [0, 0], sizes = [128, 8], strides = [1, 1]} : vector<512x8xf32> to vector<128x8xf32>
    %12 = vector.extract_strided_slice %10 {offsets = [128, 0], sizes = [128, 8], strides = [1, 1]} : vector<512x8xf32> to vector<128x8xf32>
    %13 = vector.extract_strided_slice %10 {offsets = [256, 0], sizes = [128, 8], strides = [1, 1]} : vector<512x8xf32> to vector<128x8xf32>
    %14 = vector.extract_strided_slice %10 {offsets = [384, 0], sizes = [128, 8], strides = [1, 1]} : vector<512x8xf32> to vector<128x8xf32>
    %15 = tpu.concatenate %11, %12, %13, %14 in 1 : vector<128x8xf32>, vector<128x8xf32>, vector<128x8xf32>, vector<128x8xf32> -> vector<128x32xf32>
    %c0_8 = arith.constant 0 : index
    %c0_9 = arith.constant 0 : index
    %16 = vector.load %arg4[%c0_8, %c0_9] : memref<32x16xf32, #tpu.memory_space<vmem>>, vector<32x16xf32>
    %cst_10 = arith.constant dense<0.000000e+00> : vector<128x16xf32>
    %17 = tpu.matmul %15, %16, %cst_10 {dimension_numbers = #tpu.dot_dimension_numbers<[1], [0], [0], [1], [0, 0, 1, 1], [], []>} : vector<128x32xf32>, vector<32x16xf32>, vector<128x16xf32> -> vector<128x16xf32>
    %c0_11 = arith.constant 0 : index
    %c0_12 = arith.constant 0 : index
    %18 = vector.load %arg5[%c0_11, %c0_12] : memref<2x16xf32, #tpu.memory_space<vmem>>, vector<1x16xf32>
    %c1 = arith.constant 1 : index
    %c0_13 = arith.constant 0 : index
    %19 = vector.load %arg5[%c1, %c0_13] : memref<2x16xf32, #tpu.memory_space<vmem>>, vector<1x16xf32>
    %cst_14 = arith.constant dense<0.000000e+00> : vector<16xf32>
    %20 = vector.multi_reduction <add>, %17, %cst_14 [0] : vector<128x16xf32> to vector<16xf32>
    %21 = vector.shape_cast %20 : vector<16xf32> to vector<1x16xf32>
    %cst_15 = arith.constant 1.280000e+02 : f32
    %22 = vector.broadcast %cst_15 : f32 to vector<1x16xf32>
    %23 = arith.divf %21, %22 : vector<1x16xf32>
    %24 = vector.broadcast %23 : vector<1x16xf32> to vector<128x16xf32>
    %25 = arith.subf %17, %24 : vector<128x16xf32>
    %26 = arith.mulf %25, %25 : vector<128x16xf32>
    %cst_16 = arith.constant dense<0.000000e+00> : vector<16xf32>
    %27 = vector.multi_reduction <add>, %26, %cst_16 [0] : vector<128x16xf32> to vector<16xf32>
    %28 = vector.shape_cast %27 : vector<16xf32> to vector<1x16xf32>
    %cst_17 = arith.constant 1.280000e+02 : f32
    %29 = vector.broadcast %cst_17 : f32 to vector<1x16xf32>
    %30 = arith.divf %28, %29 : vector<1x16xf32>
    %31 = vector.broadcast %23 : vector<1x16xf32> to vector<128x16xf32>
    %32 = arith.subf %17, %31 : vector<128x16xf32>
    %cst_18 = arith.constant 9.99999974E-6 : f32
    %33 = vector.broadcast %cst_18 : f32 to vector<1x16xf32>
    %34 = arith.addf %30, %33 : vector<1x16xf32>
    %35 = math.rsqrt %34 : vector<1x16xf32>
    %36 = vector.broadcast %35 : vector<1x16xf32> to vector<128x16xf32>
    %37 = arith.mulf %32, %36 : vector<128x16xf32>
    %38 = vector.broadcast %18 : vector<1x16xf32> to vector<128x16xf32>
    %39 = arith.mulf %37, %38 : vector<128x16xf32>
    %40 = vector.broadcast %19 : vector<1x16xf32> to vector<128x16xf32>
    %41 = arith.addf %39, %40 : vector<128x16xf32>
    %cst_19 = arith.constant 0.000000e+00 : f32
    %42 = vector.broadcast %cst_19 : f32 to vector<128x16xf32>
    %43 = arith.maximumf %41, %42 : vector<128x16xf32>
    %c0_20 = arith.constant 0 : index
    %c0_21 = arith.constant 0 : index
    %44 = vector.load %arg18[%c0_20, %c0_21] : memref<200x128xbf16, #tpu.memory_space<vmem>>, vector<200x128xbf16>
    %45 = arith.extf %44 : vector<200x128xbf16> to vector<200x128xf32>
    %cst_22 = arith.constant dense<0.000000e+00> : vector<200x16xf32>
    %46 = tpu.matmul %45, %43, %cst_22 {dimension_numbers = #tpu.dot_dimension_numbers<[1], [0], [0], [1], [0, 0, 1, 1], [], []>} : vector<200x128xf32>, vector<128x16xf32>, vector<200x16xf32> -> vector<200x16xf32>
    %47 = vector.extract_strided_slice %46 {offsets = [0, 0], sizes = [50, 16], strides = [1, 1]} : vector<200x16xf32> to vector<50x16xf32>
    %48 = vector.extract_strided_slice %46 {offsets = [50, 0], sizes = [50, 16], strides = [1, 1]} : vector<200x16xf32> to vector<50x16xf32>
    %49 = vector.extract_strided_slice %46 {offsets = [100, 0], sizes = [50, 16], strides = [1, 1]} : vector<200x16xf32> to vector<50x16xf32>
    %50 = vector.extract_strided_slice %46 {offsets = [150, 0], sizes = [50, 16], strides = [1, 1]} : vector<200x16xf32> to vector<50x16xf32>
    %51 = tpu.concatenate %47, %48, %49, %50 in 1 : vector<50x16xf32>, vector<50x16xf32>, vector<50x16xf32>, vector<50x16xf32> -> vector<50x64xf32>
    %c0_23 = arith.constant 0 : index
    %c0_24 = arith.constant 0 : index
    %52 = vector.load %arg6[%c0_23, %c0_24] : memref<64x32xf32, #tpu.memory_space<vmem>>, vector<64x32xf32>
    %cst_25 = arith.constant dense<0.000000e+00> : vector<50x32xf32>
    %53 = tpu.matmul %51, %52, %cst_25 {dimension_numbers = #tpu.dot_dimension_numbers<[1], [0], [0], [1], [0, 0, 1, 1], [], []>} : vector<50x64xf32>, vector<64x32xf32>, vector<50x32xf32> -> vector<50x32xf32>
    %c0_26 = arith.constant 0 : index
    %c0_27 = arith.constant 0 : index
    %54 = vector.load %arg7[%c0_26, %c0_27] : memref<2x32xf32, #tpu.memory_space<vmem>>, vector<1x32xf32>
    %c1_28 = arith.constant 1 : index
    %c0_29 = arith.constant 0 : index
    %55 = vector.load %arg7[%c1_28, %c0_29] : memref<2x32xf32, #tpu.memory_space<vmem>>, vector<1x32xf32>
    %cst_30 = arith.constant dense<0.000000e+00> : vector<32xf32>
    %56 = vector.multi_reduction <add>, %53, %cst_30 [0] : vector<50x32xf32> to vector<32xf32>
    %57 = vector.shape_cast %56 : vector<32xf32> to vector<1x32xf32>
    %cst_31 = arith.constant 5.000000e+01 : f32
    %58 = vector.broadcast %cst_31 : f32 to vector<1x32xf32>
    %59 = arith.divf %57, %58 : vector<1x32xf32>
    %60 = vector.broadcast %59 : vector<1x32xf32> to vector<50x32xf32>
    %61 = arith.subf %53, %60 : vector<50x32xf32>
    %62 = arith.mulf %61, %61 : vector<50x32xf32>
    %cst_32 = arith.constant dense<0.000000e+00> : vector<32xf32>
    %63 = vector.multi_reduction <add>, %62, %cst_32 [0] : vector<50x32xf32> to vector<32xf32>
    %64 = vector.shape_cast %63 : vector<32xf32> to vector<1x32xf32>
    %cst_33 = arith.constant 5.000000e+01 : f32
    %65 = vector.broadcast %cst_33 : f32 to vector<1x32xf32>
    %66 = arith.divf %64, %65 : vector<1x32xf32>
    %67 = vector.broadcast %59 : vector<1x32xf32> to vector<50x32xf32>
    %68 = arith.subf %53, %67 : vector<50x32xf32>
    %cst_34 = arith.constant 9.99999974E-6 : f32
    %69 = vector.broadcast %cst_34 : f32 to vector<1x32xf32>
    %70 = arith.addf %66, %69 : vector<1x32xf32>
    %71 = math.rsqrt %70 : vector<1x32xf32>
    %72 = vector.broadcast %71 : vector<1x32xf32> to vector<50x32xf32>
    %73 = arith.mulf %68, %72 : vector<50x32xf32>
    %74 = vector.broadcast %54 : vector<1x32xf32> to vector<50x32xf32>
    %75 = arith.mulf %73, %74 : vector<50x32xf32>
    %76 = vector.broadcast %55 : vector<1x32xf32> to vector<50x32xf32>
    %77 = arith.addf %75, %76 : vector<50x32xf32>
    %cst_35 = arith.constant 0.000000e+00 : f32
    %78 = vector.broadcast %cst_35 : f32 to vector<50x32xf32>
    %79 = arith.maximumf %77, %78 : vector<50x32xf32>
    %80 = vector.extract_strided_slice %79 {offsets = [0, 0], sizes = [1, 32], strides = [1, 1]} : vector<50x32xf32> to vector<1x32xf32>
    %81 = vector.extract_strided_slice %79 {offsets = [1, 0], sizes = [1, 32], strides = [1, 1]} : vector<50x32xf32> to vector<1x32xf32>
    %82 = vector.extract_strided_slice %79 {offsets = [2, 0], sizes = [1, 32], strides = [1, 1]} : vector<50x32xf32> to vector<1x32xf32>
    %83 = vector.extract_strided_slice %79 {offsets = [3, 0], sizes = [1, 32], strides = [1, 1]} : vector<50x32xf32> to vector<1x32xf32>
    %84 = vector.extract_strided_slice %79 {offsets = [5, 0], sizes = [1, 32], strides = [1, 1]} : vector<50x32xf32> to vector<1x32xf32>
    %85 = vector.extract_strided_slice %79 {offsets = [6, 0], sizes = [1, 32], strides = [1, 1]} : vector<50x32xf32> to vector<1x32xf32>
    %86 = vector.extract_strided_slice %79 {offsets = [7, 0], sizes = [1, 32], strides = [1, 1]} : vector<50x32xf32> to vector<1x32xf32>
    %87 = vector.extract_strided_slice %79 {offsets = [8, 0], sizes = [1, 32], strides = [1, 1]} : vector<50x32xf32> to vector<1x32xf32>
    %88 = vector.extract_strided_slice %79 {offsets = [10, 0], sizes = [1, 32], strides = [1, 1]} : vector<50x32xf32> to vector<1x32xf32>
    %89 = vector.extract_strided_slice %79 {offsets = [11, 0], sizes = [1, 32], strides = [1, 1]} : vector<50x32xf32> to vector<1x32xf32>
    %90 = vector.extract_strided_slice %79 {offsets = [12, 0], sizes = [1, 32], strides = [1, 1]} : vector<50x32xf32> to vector<1x32xf32>
    %91 = vector.extract_strided_slice %79 {offsets = [13, 0], sizes = [1, 32], strides = [1, 1]} : vector<50x32xf32> to vector<1x32xf32>
    %92 = vector.extract_strided_slice %79 {offsets = [15, 0], sizes = [1, 32], strides = [1, 1]} : vector<50x32xf32> to vector<1x32xf32>
    %93 = vector.extract_strided_slice %79 {offsets = [16, 0], sizes = [1, 32], strides = [1, 1]} : vector<50x32xf32> to vector<1x32xf32>
    %94 = vector.extract_strided_slice %79 {offsets = [17, 0], sizes = [1, 32], strides = [1, 1]} : vector<50x32xf32> to vector<1x32xf32>
    %95 = vector.extract_strided_slice %79 {offsets = [18, 0], sizes = [1, 32], strides = [1, 1]} : vector<50x32xf32> to vector<1x32xf32>
    %96 = tpu.concatenate %80, %81, %82, %83, %84, %85, %86, %87, %88, %89, %90, %91, %92, %93, %94, %95 in 1 : vector<1x32xf32>, vector<1x32xf32>, vector<1x32xf32>, vector<1x32xf32>, vector<1x32xf32>, vector<1x32xf32>, vector<1x32xf32>, vector<1x32xf32>, vector<1x32xf32>, vector<1x32xf32>, vector<1x32xf32>, vector<1x32xf32>, vector<1x32xf32>, vector<1x32xf32>, vector<1x32xf32>, vector<1x32xf32> -> vector<1x512xf32>
    %97 = vector.extract_strided_slice %79 {offsets = [25, 0], sizes = [1, 32], strides = [1, 1]} : vector<50x32xf32> to vector<1x32xf32>
    %98 = vector.extract_strided_slice %79 {offsets = [26, 0], sizes = [1, 32], strides = [1, 1]} : vector<50x32xf32> to vector<1x32xf32>
    %99 = vector.extract_strided_slice %79 {offsets = [27, 0], sizes = [1, 32], strides = [1, 1]} : vector<50x32xf32> to vector<1x32xf32>
    %100 = vector.extract_strided_slice %79 {offsets = [28, 0], sizes = [1, 32], strides = [1, 1]} : vector<50x32xf32> to vector<1x32xf32>
    %101 = vector.extract_strided_slice %79 {offsets = [30, 0], sizes = [1, 32], strides = [1, 1]} : vector<50x32xf32> to vector<1x32xf32>
    %102 = vector.extract_strided_slice %79 {offsets = [31, 0], sizes = [1, 32], strides = [1, 1]} : vector<50x32xf32> to vector<1x32xf32>
    %103 = vector.extract_strided_slice %79 {offsets = [32, 0], sizes = [1, 32], strides = [1, 1]} : vector<50x32xf32> to vector<1x32xf32>
    %104 = vector.extract_strided_slice %79 {offsets = [33, 0], sizes = [1, 32], strides = [1, 1]} : vector<50x32xf32> to vector<1x32xf32>
    %105 = vector.extract_strided_slice %79 {offsets = [35, 0], sizes = [1, 32], strides = [1, 1]} : vector<50x32xf32> to vector<1x32xf32>
    %106 = vector.extract_strided_slice %79 {offsets = [36, 0], sizes = [1, 32], strides = [1, 1]} : vector<50x32xf32> to vector<1x32xf32>
    %107 = vector.extract_strided_slice %79 {offsets = [37, 0], sizes = [1, 32], strides = [1, 1]} : vector<50x32xf32> to vector<1x32xf32>
    %108 = vector.extract_strided_slice %79 {offsets = [38, 0], sizes = [1, 32], strides = [1, 1]} : vector<50x32xf32> to vector<1x32xf32>
    %109 = vector.extract_strided_slice %79 {offsets = [40, 0], sizes = [1, 32], strides = [1, 1]} : vector<50x32xf32> to vector<1x32xf32>
    %110 = vector.extract_strided_slice %79 {offsets = [41, 0], sizes = [1, 32], strides = [1, 1]} : vector<50x32xf32> to vector<1x32xf32>
    %111 = vector.extract_strided_slice %79 {offsets = [42, 0], sizes = [1, 32], strides = [1, 1]} : vector<50x32xf32> to vector<1x32xf32>
    %112 = vector.extract_strided_slice %79 {offsets = [43, 0], sizes = [1, 32], strides = [1, 1]} : vector<50x32xf32> to vector<1x32xf32>
    %113 = tpu.concatenate %97, %98, %99, %100, %101, %102, %103, %104, %105, %106, %107, %108, %109, %110, %111, %112 in 1 : vector<1x32xf32>, vector<1x32xf32>, vector<1x32xf32>, vector<1x32xf32>, vector<1x32xf32>, vector<1x32xf32>, vector<1x32xf32>, vector<1x32xf32>, vector<1x32xf32>, vector<1x32xf32>, vector<1x32xf32>, vector<1x32xf32>, vector<1x32xf32>, vector<1x32xf32>, vector<1x32xf32>, vector<1x32xf32> -> vector<1x512xf32>
    %114 = tpu.concatenate %96, %113 in 0 : vector<1x512xf32>, vector<1x512xf32> -> vector<2x512xf32>
    %c0_36 = arith.constant 0 : index
    %c0_37 = arith.constant 0 : index
    %115 = vector.load %arg8[%c0_36, %c0_37] : memref<512x64xf32, #tpu.memory_space<vmem>>, vector<512x64xf32>
    %cst_38 = arith.constant dense<0.000000e+00> : vector<2x64xf32>
    %116 = tpu.matmul %114, %115, %cst_38 {dimension_numbers = #tpu.dot_dimension_numbers<[1], [0], [0], [1], [0, 0, 1, 1], [], []>} : vector<2x512xf32>, vector<512x64xf32>, vector<2x64xf32> -> vector<2x64xf32>
    %c0_39 = arith.constant 0 : index
    %c0_40 = arith.constant 0 : index
    %117 = vector.load %arg9[%c0_39, %c0_40] : memref<64x20xf32, #tpu.memory_space<vmem>>, vector<64x20xf32>
    %cst_41 = arith.constant dense<0.000000e+00> : vector<2x20xf32>
    %118 = tpu.matmul %116, %117, %cst_41 {dimension_numbers = #tpu.dot_dimension_numbers<[1], [0], [0], [1], [0, 0, 1, 1], [], []>} : vector<2x64xf32>, vector<64x20xf32>, vector<2x20xf32> -> vector<2x20xf32>
    %c0_42 = arith.constant 0 : index
    %c0_43 = arith.constant 0 : index
    %119 = vector.load %arg10[%c0_42, %c0_43] : memref<1x20xf32, #tpu.memory_space<vmem>>, vector<1x20xf32>
    %120 = vector.broadcast %119 : vector<1x20xf32> to vector<2x20xf32>
    %121 = arith.addf %118, %120 : vector<2x20xf32>
    %c0_44 = arith.constant 0 : index
    %c0_45 = arith.constant 0 : index
    %122 = vector.load %arg24[%c0_44, %c0_45] : memref<2x20xf32, #tpu.memory_space<vmem>>, vector<2x20xf32>
    tpu.vector_store %arg24[%c0_44, %c0_45], %121 {strides = array<i32>} : memref<2x20xf32, #tpu.memory_space<vmem>>, vector<2x20xf32>,
    %123 = vector.extract_strided_slice %121 {offsets = [0, 0], sizes = [2, 10], strides = [1, 1]} : vector<2x20xf32> to vector<2x10xf32>
    %124 = vector.extract_strided_slice %121 {offsets = [0, 10], sizes = [2, 10], strides = [1, 1]} : vector<2x20xf32> to vector<2x10xf32>
    %cst_46 = arith.constant 5.000000e-01 : f32
    %125 = vector.broadcast %cst_46 : f32 to vector<2x10xf32>
    %126 = arith.mulf %125, %124 : vector<2x10xf32>
    %127 = math.exp %126 : vector<2x10xf32>
    %c0_47 = arith.constant 0 : index
    %c0_48 = arith.constant 0 : index
    %128 = vector.load %arg2[%c0_47, %c0_48] : memref<2x10xf32, #tpu.memory_space<vmem>>, vector<2x10xf32>
    %129 = arith.mulf %127, %128 : vector<2x10xf32>
    %130 = arith.addf %123, %129 : vector<2x10xf32>
    %c0_49 = arith.constant 0 : index
    %c0_50 = arith.constant 0 : index
    %131 = vector.load %arg11[%c0_49, %c0_50] : memref<10x512xf32, #tpu.memory_space<vmem>>, vector<10x512xf32>
    %cst_51 = arith.constant dense<0.000000e+00> : vector<2x512xf32>
    %132 = tpu.matmul %130, %131, %cst_51 {dimension_numbers = #tpu.dot_dimension_numbers<[1], [0], [0], [1], [0, 0, 1, 1], [], []>} : vector<2x10xf32>, vector<10x512xf32>, vector<2x512xf32> -> vector<2x512xf32>
    %cst_52 = arith.constant 0.000000e+00 : f32
    %133 = vector.broadcast %cst_52 : f32 to vector<2x512xf32>
    %134 = arith.cmpf ogt, %132, %133 : vector<2x512xf32>
    %cst_53 = arith.constant 2.000000e-01 : f32
    %135 = vector.broadcast %cst_53 : f32 to vector<2x512xf32>
    %136 = arith.mulf %135, %132 : vector<2x512xf32>
    %137 = arith.select %134, %132, %136 : vector<2x512xi1>, vector<2x512xf32>
    %138 = vector.extract_strided_slice %137 {offsets = [0, 0], sizes = [1, 512], strides = [1, 1]} : vector<2x512xf32> to vector<1x512xf32>
    %139 = vector.extract_strided_slice %138 {offsets = [0, 0], sizes = [1, 32], strides = [1, 1]} : vector<1x512xf32> to vector<1x32xf32>
    %140 = vector.extract_strided_slice %138 {offsets = [0, 32], sizes = [1, 32], strides = [1, 1]} : vector<1x512xf32> to vector<1x32xf32>
    %141 = vector.extract_strided_slice %138 {offsets = [0, 64], sizes = [1, 32], strides = [1, 1]} : vector<1x512xf32> to vector<1x32xf32>
    %142 = vector.extract_strided_slice %138 {offsets = [0, 96], sizes = [1, 32], strides = [1, 1]} : vector<1x512xf32> to vector<1x32xf32>
    %143 = vector.extract_strided_slice %138 {offsets = [0, 128], sizes = [1, 32], strides = [1, 1]} : vector<1x512xf32> to vector<1x32xf32>
    %144 = vector.extract_strided_slice %138 {offsets = [0, 160], sizes = [1, 32], strides = [1, 1]} : vector<1x512xf32> to vector<1x32xf32>
    %145 = vector.extract_strided_slice %138 {offsets = [0, 192], sizes = [1, 32], strides = [1, 1]} : vector<1x512xf32> to vector<1x32xf32>
    %146 = vector.extract_strided_slice %138 {offsets = [0, 224], sizes = [1, 32], strides = [1, 1]} : vector<1x512xf32> to vector<1x32xf32>
    %147 = vector.extract_strided_slice %138 {offsets = [0, 256], sizes = [1, 32], strides = [1, 1]} : vector<1x512xf32> to vector<1x32xf32>
    %148 = vector.extract_strided_slice %138 {offsets = [0, 288], sizes = [1, 32], strides = [1, 1]} : vector<1x512xf32> to vector<1x32xf32>
    %149 = vector.extract_strided_slice %138 {offsets = [0, 320], sizes = [1, 32], strides = [1, 1]} : vector<1x512xf32> to vector<1x32xf32>
    %150 = vector.extract_strided_slice %138 {offsets = [0, 352], sizes = [1, 32], strides = [1, 1]} : vector<1x512xf32> to vector<1x32xf32>
    %151 = vector.extract_strided_slice %138 {offsets = [0, 384], sizes = [1, 32], strides = [1, 1]} : vector<1x512xf32> to vector<1x32xf32>
    %152 = vector.extract_strided_slice %138 {offsets = [0, 416], sizes = [1, 32], strides = [1, 1]} : vector<1x512xf32> to vector<1x32xf32>
    %153 = vector.extract_strided_slice %138 {offsets = [0, 448], sizes = [1, 32], strides = [1, 1]} : vector<1x512xf32> to vector<1x32xf32>
    %154 = vector.extract_strided_slice %138 {offsets = [0, 480], sizes = [1, 32], strides = [1, 1]} : vector<1x512xf32> to vector<1x32xf32>
    %155 = tpu.concatenate %139, %140, %141, %142, %143, %144, %145, %146, %147, %148, %149, %150, %151, %152, %153, %154 in 0 : vector<1x32xf32>, vector<1x32xf32>, vector<1x32xf32>, vector<1x32xf32>, vector<1x32xf32>, vector<1x32xf32>, vector<1x32xf32>, vector<1x32xf32>, vector<1x32xf32>, vector<1x32xf32>, vector<1x32xf32>, vector<1x32xf32>, vector<1x32xf32>, vector<1x32xf32>, vector<1x32xf32>, vector<1x32xf32> -> vector<16x32xf32>
    %156 = vector.extract_strided_slice %137 {offsets = [1, 0], sizes = [1, 512], strides = [1, 1]} : vector<2x512xf32> to vector<1x512xf32>
    %157 = vector.extract_strided_slice %156 {offsets = [0, 0], sizes = [1, 32], strides = [1, 1]} : vector<1x512xf32> to vector<1x32xf32>
    %158 = vector.extract_strided_slice %156 {offsets = [0, 32], sizes = [1, 32], strides = [1, 1]} : vector<1x512xf32> to vector<1x32xf32>
    %159 = vector.extract_strided_slice %156 {offsets = [0, 64], sizes = [1, 32], strides = [1, 1]} : vector<1x512xf32> to vector<1x32xf32>
    %160 = vector.extract_strided_slice %156 {offsets = [0, 96], sizes = [1, 32], strides = [1, 1]} : vector<1x512xf32> to vector<1x32xf32>
    %161 = vector.extract_strided_slice %156 {offsets = [0, 128], sizes = [1, 32], strides = [1, 1]} : vector<1x512xf32> to vector<1x32xf32>
    %162 = vector.extract_strided_slice %156 {offsets = [0, 160], sizes = [1, 32], strides = [1, 1]} : vector<1x512xf32> to vector<1x32xf32>
    %163 = vector.extract_strided_slice %156 {offsets = [0, 192], sizes = [1, 32], strides = [1, 1]} : vector<1x512xf32> to vector<1x32xf32>
    %164 = vector.extract_strided_slice %156 {offsets = [0, 224], sizes = [1, 32], strides = [1, 1]} : vector<1x512xf32> to vector<1x32xf32>
    %165 = vector.extract_strided_slice %156 {offsets = [0, 256], sizes = [1, 32], strides = [1, 1]} : vector<1x512xf32> to vector<1x32xf32>
    %166 = vector.extract_strided_slice %156 {offsets = [0, 288], sizes = [1, 32], strides = [1, 1]} : vector<1x512xf32> to vector<1x32xf32>
    %167 = vector.extract_strided_slice %156 {offsets = [0, 320], sizes = [1, 32], strides = [1, 1]} : vector<1x512xf32> to vector<1x32xf32>
    %168 = vector.extract_strided_slice %156 {offsets = [0, 352], sizes = [1, 32], strides = [1, 1]} : vector<1x512xf32> to vector<1x32xf32>
    %169 = vector.extract_strided_slice %156 {offsets = [0, 384], sizes = [1, 32], strides = [1, 1]} : vector<1x512xf32> to vector<1x32xf32>
    %170 = vector.extract_strided_slice %156 {offsets = [0, 416], sizes = [1, 32], strides = [1, 1]} : vector<1x512xf32> to vector<1x32xf32>
    %171 = vector.extract_strided_slice %156 {offsets = [0, 448], sizes = [1, 32], strides = [1, 1]} : vector<1x512xf32> to vector<1x32xf32>
    %172 = vector.extract_strided_slice %156 {offsets = [0, 480], sizes = [1, 32], strides = [1, 1]} : vector<1x512xf32> to vector<1x32xf32>
    %173 = tpu.concatenate %157, %158, %159, %160, %161, %162, %163, %164, %165, %166, %167, %168, %169, %170, %171, %172 in 0 : vector<1x32xf32>, vector<1x32xf32>, vector<1x32xf32>, vector<1x32xf32>, vector<1x32xf32>, vector<1x32xf32>, vector<1x32xf32>, vector<1x32xf32>, vector<1x32xf32>, vector<1x32xf32>, vector<1x32xf32>, vector<1x32xf32>, vector<1x32xf32>, vector<1x32xf32>, vector<1x32xf32>, vector<1x32xf32> -> vector<16x32xf32>
    %174 = tpu.concatenate %155, %173 in 0 : vector<16x32xf32>, vector<16x32xf32> -> vector<32x32xf32>
    %c0_54 = arith.constant 0 : index
    %c0_55 = arith.constant 0 : index
    %175 = vector.load %arg12[%c0_54, %c0_55] : memref<32x64xf32, #tpu.memory_space<vmem>>, vector<32x64xf32>
    %cst_56 = arith.constant dense<0.000000e+00> : vector<32x64xf32>
    %176 = tpu.matmul %174, %175, %cst_56 {dimension_numbers = #tpu.dot_dimension_numbers<[1], [0], [0], [1], [0, 0, 1, 1], [], []>} : vector<32x32xf32>, vector<32x64xf32>, vector<32x64xf32> -> vector<32x64xf32>
    %c0_57 = arith.constant 0 : index
    %c0_58 = arith.constant 0 : index
    %177 = vector.load %arg19[%c0_57, %c0_58] : memref<288x32xbf16, #tpu.memory_space<vmem>>, vector<288x32xbf16>
    %178 = arith.extf %177 : vector<288x32xbf16> to vector<288x32xf32>
    %179 = vector.extract_strided_slice %178 {offsets = [0, 0], sizes = [72, 32], strides = [1, 1]} : vector<288x32xf32> to vector<72x32xf32>
    %180 = vector.extract_strided_slice %176 {offsets = [0, 0], sizes = [32, 16], strides = [1, 1]} : vector<32x64xf32> to vector<32x16xf32>
    %cst_59 = arith.constant dense<0.000000e+00> : vector<72x16xf32>
    %181 = tpu.matmul %179, %180, %cst_59 {dimension_numbers = #tpu.dot_dimension_numbers<[1], [0], [0], [1], [0, 0, 1, 1], [], []>} : vector<72x32xf32>, vector<32x16xf32>, vector<72x16xf32> -> vector<72x16xf32>
    %182 = vector.extract_strided_slice %178 {offsets = [72, 0], sizes = [72, 32], strides = [1, 1]} : vector<288x32xf32> to vector<72x32xf32>
    %183 = vector.extract_strided_slice %176 {offsets = [0, 16], sizes = [32, 16], strides = [1, 1]} : vector<32x64xf32> to vector<32x16xf32>
    %cst_60 = arith.constant dense<0.000000e+00> : vector<72x16xf32>
    %184 = tpu.matmul %182, %183, %cst_60 {dimension_numbers = #tpu.dot_dimension_numbers<[1], [0], [0], [1], [0, 0, 1, 1], [], []>} : vector<72x32xf32>, vector<32x16xf32>, vector<72x16xf32> -> vector<72x16xf32>
    %185 = arith.addf %181, %184 : vector<72x16xf32>
    %186 = vector.extract_strided_slice %178 {offsets = [144, 0], sizes = [72, 32], strides = [1, 1]} : vector<288x32xf32> to vector<72x32xf32>
    %187 = vector.extract_strided_slice %176 {offsets = [0, 32], sizes = [32, 16], strides = [1, 1]} : vector<32x64xf32> to vector<32x16xf32>
    %cst_61 = arith.constant dense<0.000000e+00> : vector<72x16xf32>
    %188 = tpu.matmul %186, %187, %cst_61 {dimension_numbers = #tpu.dot_dimension_numbers<[1], [0], [0], [1], [0, 0, 1, 1], [], []>} : vector<72x32xf32>, vector<32x16xf32>, vector<72x16xf32> -> vector<72x16xf32>
    %189 = arith.addf %185, %188 : vector<72x16xf32>
    %190 = vector.extract_strided_slice %178 {offsets = [216, 0], sizes = [72, 32], strides = [1, 1]} : vector<288x32xf32> to vector<72x32xf32>
    %191 = vector.extract_strided_slice %176 {offsets = [0, 48], sizes = [32, 16], strides = [1, 1]} : vector<32x64xf32> to vector<32x16xf32>
    %cst_62 = arith.constant dense<0.000000e+00> : vector<72x16xf32>
    %192 = tpu.matmul %190, %191, %cst_62 {dimension_numbers = #tpu.dot_dimension_numbers<[1], [0], [0], [1], [0, 0, 1, 1], [], []>} : vector<72x32xf32>, vector<32x16xf32>, vector<72x16xf32> -> vector<72x16xf32>
    %193 = arith.addf %189, %192 : vector<72x16xf32>
    %c0_63 = arith.constant 0 : index
    %c0_64 = arith.constant 0 : index
    %194 = vector.load %arg13[%c0_63, %c0_64] : memref<2x16xf32, #tpu.memory_space<vmem>>, vector<1x16xf32>
    %c1_65 = arith.constant 1 : index
    %c0_66 = arith.constant 0 : index
    %195 = vector.load %arg13[%c1_65, %c0_66] : memref<2x16xf32, #tpu.memory_space<vmem>>, vector<1x16xf32>
    %cst_67 = arith.constant dense<0.000000e+00> : vector<16xf32>
    %196 = vector.multi_reduction <add>, %193, %cst_67 [0] : vector<72x16xf32> to vector<16xf32>
    %197 = vector.shape_cast %196 : vector<16xf32> to vector<1x16xf32>
    %cst_68 = arith.constant 7.200000e+01 : f32
    %198 = vector.broadcast %cst_68 : f32 to vector<1x16xf32>
    %199 = arith.divf %197, %198 : vector<1x16xf32>
    %200 = vector.broadcast %199 : vector<1x16xf32> to vector<72x16xf32>
    %201 = arith.subf %193, %200 : vector<72x16xf32>
    %202 = arith.mulf %201, %201 : vector<72x16xf32>
    %cst_69 = arith.constant dense<0.000000e+00> : vector<16xf32>
    %203 = vector.multi_reduction <add>, %202, %cst_69 [0] : vector<72x16xf32> to vector<16xf32>
    %204 = vector.shape_cast %203 : vector<16xf32> to vector<1x16xf32>
    %cst_70 = arith.constant 7.200000e+01 : f32
    %205 = vector.broadcast %cst_70 : f32 to vector<1x16xf32>
    %206 = arith.divf %204, %205 : vector<1x16xf32>
    %207 = vector.broadcast %199 : vector<1x16xf32> to vector<72x16xf32>
    %208 = arith.subf %193, %207 : vector<72x16xf32>
    %cst_71 = arith.constant 9.99999974E-6 : f32
    %209 = vector.broadcast %cst_71 : f32 to vector<1x16xf32>
    %210 = arith.addf %206, %209 : vector<1x16xf32>
    %211 = math.rsqrt %210 : vector<1x16xf32>
    %212 = vector.broadcast %211 : vector<1x16xf32> to vector<72x16xf32>
    %213 = arith.mulf %208, %212 : vector<72x16xf32>
    %214 = vector.broadcast %194 : vector<1x16xf32> to vector<72x16xf32>
    %215 = arith.mulf %213, %214 : vector<72x16xf32>
    %216 = vector.broadcast %195 : vector<1x16xf32> to vector<72x16xf32>
    %217 = arith.addf %215, %216 : vector<72x16xf32>
    %cst_72 = arith.constant 0.000000e+00 : f32
    %218 = vector.broadcast %cst_72 : f32 to vector<72x16xf32>
    %219 = arith.maximumf %217, %218 : vector<72x16xf32>
    %c0_73 = arith.constant 0 : index
    %c0_74 = arith.constant 0 : index
    %220 = vector.load %arg14[%c0_73, %c0_74] : memref<16x32xf32, #tpu.memory_space<vmem>>, vector<16x32xf32>
    %cst_75 = arith.constant dense<0.000000e+00> : vector<72x32xf32>
    %221 = tpu.matmul %219, %220, %cst_75 {dimension_numbers = #tpu.dot_dimension_numbers<[1], [0], [0], [1], [0, 0, 1, 1], [], []>} : vector<72x16xf32>, vector<16x32xf32>, vector<72x32xf32> -> vector<72x32xf32>
    %c0_76 = arith.constant 0 : index
    %c0_77 = arith.constant 0 : index
    %222 = vector.load %arg20[%c0_76, %c0_77] : memref<800x72xbf16, #tpu.memory_space<vmem>>, vector<800x72xbf16>
    %223 = arith.extf %222 : vector<800x72xbf16> to vector<800x72xf32>
    %224 = vector.extract_strided_slice %223 {offsets = [0, 0], sizes = [200, 72], strides = [1, 1]} : vector<800x72xf32> to vector<200x72xf32>
    %225 = vector.extract_strided_slice %221 {offsets = [0, 0], sizes = [72, 8], strides = [1, 1]} : vector<72x32xf32> to vector<72x8xf32>
    %cst_78 = arith.constant dense<0.000000e+00> : vector<200x8xf32>
    %226 = tpu.matmul %224, %225, %cst_78 {dimension_numbers = #tpu.dot_dimension_numbers<[1], [0], [0], [1], [0, 0, 1, 1], [], []>} : vector<200x72xf32>, vector<72x8xf32>, vector<200x8xf32> -> vector<200x8xf32>
    %227 = vector.extract_strided_slice %223 {offsets = [200, 0], sizes = [200, 72], strides = [1, 1]} : vector<800x72xf32> to vector<200x72xf32>
    %228 = vector.extract_strided_slice %221 {offsets = [0, 8], sizes = [72, 8], strides = [1, 1]} : vector<72x32xf32> to vector<72x8xf32>
    %cst_79 = arith.constant dense<0.000000e+00> : vector<200x8xf32>
    %229 = tpu.matmul %227, %228, %cst_79 {dimension_numbers = #tpu.dot_dimension_numbers<[1], [0], [0], [1], [0, 0, 1, 1], [], []>} : vector<200x72xf32>, vector<72x8xf32>, vector<200x8xf32> -> vector<200x8xf32>
    %230 = arith.addf %226, %229 : vector<200x8xf32>
    %231 = vector.extract_strided_slice %223 {offsets = [400, 0], sizes = [200, 72], strides = [1, 1]} : vector<800x72xf32> to vector<200x72xf32>
    %232 = vector.extract_strided_slice %221 {offsets = [0, 16], sizes = [72, 8], strides = [1, 1]} : vector<72x32xf32> to vector<72x8xf32>
    %cst_80 = arith.constant dense<0.000000e+00> : vector<200x8xf32>
    %233 = tpu.matmul %231, %232, %cst_80 {dimension_numbers = #tpu.dot_dimension_numbers<[1], [0], [0], [1], [0, 0, 1, 1], [], []>} : vector<200x72xf32>, vector<72x8xf32>, vector<200x8xf32> -> vector<200x8xf32>
    %234 = arith.addf %230, %233 : vector<200x8xf32>
    %235 = vector.extract_strided_slice %223 {offsets = [600, 0], sizes = [200, 72], strides = [1, 1]} : vector<800x72xf32> to vector<200x72xf32>
    %236 = vector.extract_strided_slice %221 {offsets = [0, 24], sizes = [72, 8], strides = [1, 1]} : vector<72x32xf32> to vector<72x8xf32>
    %cst_81 = arith.constant dense<0.000000e+00> : vector<200x8xf32>
    %237 = tpu.matmul %235, %236, %cst_81 {dimension_numbers = #tpu.dot_dimension_numbers<[1], [0], [0], [1], [0, 0, 1, 1], [], []>} : vector<200x72xf32>, vector<72x8xf32>, vector<200x8xf32> -> vector<200x8xf32>
    %238 = arith.addf %234, %237 : vector<200x8xf32>
    %c0_82 = arith.constant 0 : index
    %c0_83 = arith.constant 0 : index
    %239 = vector.load %arg15[%c0_82, %c0_83] : memref<2x8xf32, #tpu.memory_space<vmem>>, vector<1x8xf32>
    %c1_84 = arith.constant 1 : index
    %c0_85 = arith.constant 0 : index
    %240 = vector.load %arg15[%c1_84, %c0_85] : memref<2x8xf32, #tpu.memory_space<vmem>>, vector<1x8xf32>
    %cst_86 = arith.constant dense<0.000000e+00> : vector<8xf32>
    %241 = vector.multi_reduction <add>, %238, %cst_86 [0] : vector<200x8xf32> to vector<8xf32>
    %242 = vector.shape_cast %241 : vector<8xf32> to vector<1x8xf32>
    %cst_87 = arith.constant 2.000000e+02 : f32
    %243 = vector.broadcast %cst_87 : f32 to vector<1x8xf32>
    %244 = arith.divf %242, %243 : vector<1x8xf32>
    %245 = vector.broadcast %244 : vector<1x8xf32> to vector<200x8xf32>
    %246 = arith.subf %238, %245 : vector<200x8xf32>
    %247 = arith.mulf %246, %246 : vector<200x8xf32>
    %cst_88 = arith.constant dense<0.000000e+00> : vector<8xf32>
    %248 = vector.multi_reduction <add>, %247, %cst_88 [0] : vector<200x8xf32> to vector<8xf32>
    %249 = vector.shape_cast %248 : vector<8xf32> to vector<1x8xf32>
    %cst_89 = arith.constant 2.000000e+02 : f32
    %250 = vector.broadcast %cst_89 : f32 to vector<1x8xf32>
    %251 = arith.divf %249, %250 : vector<1x8xf32>
    %252 = vector.broadcast %244 : vector<1x8xf32> to vector<200x8xf32>
    %253 = arith.subf %238, %252 : vector<200x8xf32>
    %cst_90 = arith.constant 9.99999974E-6 : f32
    %254 = vector.broadcast %cst_90 : f32 to vector<1x8xf32>
    %255 = arith.addf %251, %254 : vector<1x8xf32>
    %256 = math.rsqrt %255 : vector<1x8xf32>
    %257 = vector.broadcast %256 : vector<1x8xf32> to vector<200x8xf32>
    %258 = arith.mulf %253, %257 : vector<200x8xf32>
    %259 = vector.broadcast %239 : vector<1x8xf32> to vector<200x8xf32>
    %260 = arith.mulf %258, %259 : vector<200x8xf32>
    %261 = vector.broadcast %240 : vector<1x8xf32> to vector<200x8xf32>
    %262 = arith.addf %260, %261 : vector<200x8xf32>
    %cst_91 = arith.constant 0.000000e+00 : f32
    %263 = vector.broadcast %cst_91 : f32 to vector<200x8xf32>
    %264 = arith.maximumf %262, %263 : vector<200x8xf32>
    %c0_92 = arith.constant 0 : index
    %c0_93 = arith.constant 0 : index
    %265 = vector.load %arg16[%c0_92, %c0_93] : memref<8x1xf32, #tpu.memory_space<vmem>>, vector<8x1xf32>
    %cst_94 = arith.constant dense<0.000000e+00> : vector<200x1xf32>
    %266 = tpu.matmul %264, %265, %cst_94 {dimension_numbers = #tpu.dot_dimension_numbers<[1], [0], [0], [1], [0, 0, 1, 1], [], []>} : vector<200x8xf32>, vector<8x1xf32>, vector<200x1xf32> -> vector<200x1xf32>
    %c0_95 = arith.constant 0 : index
    %c0_96 = arith.constant 0 : index
    %267 = vector.load %arg21[%c0_95, %c0_96] : memref<200x784xbf16, #tpu.memory_space<vmem>>, vector<200x784xbf16>
    %268 = arith.extf %267 : vector<200x784xbf16> to vector<200x784xf32>
    %c0_97 = arith.constant 0 : index
    %c0_98 = arith.constant 0 : index
    %269 = vector.load %arg22[%c0_97, %c0_98] : memref<2x200xf32, #tpu.memory_space<vmem>>, vector<2x200xf32>
    %270 = vector.broadcast %266 : vector<200x1xf32> to vector<200x784xf32>
    %271 = arith.mulf %270, %268 : vector<200x784xf32>
    %cst_99 = arith.constant dense<0.000000e+00> : vector<2x784xf32>
    %272 = tpu.matmul %269, %271, %cst_99 {dimension_numbers = #tpu.dot_dimension_numbers<[1], [0], [0], [1], [0, 0, 1, 1], [], []>} : vector<2x200xf32>, vector<200x784xf32>, vector<2x784xf32> -> vector<2x784xf32>
    %c0_100 = arith.constant 0 : index
    %c0_101 = arith.constant 0 : index
    %273 = vector.load %arg23[%c0_100, %c0_101] : memref<2x784xf32, #tpu.memory_space<vmem>>, vector<2x784xf32>
    tpu.vector_store %arg23[%c0_100, %c0_101], %272 {strides = array<i32>} : memref<2x784xf32, #tpu.memory_space<vmem>>, vector<2x784xf32>,
    return
  }
  func.func @transform_0(%arg0: i32) -> (i32, i32) {
    %c0_i32 = arith.constant 0 : i32
    %c0_i32_0 = arith.constant 0 : i32
    %c0_i32_1 = arith.constant 0 : i32
    return %c0_i32, %c0_i32_0 : i32, i32
  }
  func.func @transform_1(%arg0: i32) -> (i32, i32) {
    %c0_i32 = arith.constant 0 : i32
    %c0_i32_0 = arith.constant 0 : i32
    %c0_i32_1 = arith.constant 0 : i32
    return %c0_i32, %c0_i32_0 : i32, i32
  }
  func.func @transform_2(%arg0: i32) -> (i32, i32) {
    %c0_i32 = arith.constant 0 : i32
    %c0_i32_0 = arith.constant 0 : i32
    %c0_i32_1 = arith.constant 0 : i32
    return %c0_i32, %c0_i32_0 : i32, i32
  }
  func.func @transform_3(%arg0: i32) -> (i32, i32) {
    %c0_i32 = arith.constant 0 : i32
    %c0_i32_0 = arith.constant 0 : i32
    %c0_i32_1 = arith.constant 0 : i32
    return %c0_i32, %c0_i32_0 : i32, i32
  }
  func.func @transform_4(%arg0: i32) -> (i32, i32) {
    %c0_i32 = arith.constant 0 : i32
    %c0_i32_0 = arith.constant 0 : i32
    %c0_i32_1 = arith.constant 0 : i32
    return %c0_i32, %c0_i32_0 : i32, i32
  }
  func.func @transform_5(%arg0: i32) -> (i32, i32) {
    %c0_i32 = arith.constant 0 : i32
    %c0_i32_0 = arith.constant 0 : i32
    %c0_i32_1 = arith.constant 0 : i32
    return %c0_i32, %c0_i32_0 : i32, i32
  }
  func.func @transform_6(%arg0: i32) -> (i32, i32) {
    %c0_i32 = arith.constant 0 : i32
    %c0_i32_0 = arith.constant 0 : i32
    %c0_i32_1 = arith.constant 0 : i32
    return %c0_i32, %c0_i32_0 : i32, i32
  }
  func.func @transform_7(%arg0: i32) -> (i32, i32) {
    %c0_i32 = arith.constant 0 : i32
    %c0_i32_0 = arith.constant 0 : i32
    %c0_i32_1 = arith.constant 0 : i32
    return %c0_i32, %c0_i32_0 : i32, i32
  }
  func.func @transform_8(%arg0: i32) -> (i32, i32) {
    %c0_i32 = arith.constant 0 : i32
    %c0_i32_0 = arith.constant 0 : i32
    %c0_i32_1 = arith.constant 0 : i32
    return %c0_i32, %c0_i32_0 : i32, i32
  }
  func.func @transform_9(%arg0: i32) -> (i32, i32) {
    %c0_i32 = arith.constant 0 : i32
    %c0_i32_0 = arith.constant 0 : i32
    %c0_i32_1 = arith.constant 0 : i32
    return %c0_i32, %c0_i32_0 : i32, i32
  }
  func.func @transform_10(%arg0: i32) -> (i32, i32) {
    %c0_i32 = arith.constant 0 : i32
    %c0_i32_0 = arith.constant 0 : i32
    %c0_i32_1 = arith.constant 0 : i32
    return %c0_i32, %c0_i32_0 : i32, i32
  }
  func.func @transform_11(%arg0: i32) -> (i32, i32) {
    %c0_i32 = arith.constant 0 : i32
    %c0_i32_0 = arith.constant 0 : i32
    %c0_i32_1 = arith.constant 0 : i32
    return %c0_i32, %c0_i32_0 : i32, i32
  }
  func.func @transform_12(%arg0: i32) -> (i32, i32) {
    %c0_i32 = arith.constant 0 : i32
    %c0_i32_0 = arith.constant 0 : i32
    %c0_i32_1 = arith.constant 0 : i32
    return %c0_i32, %c0_i32_0 : i32, i32
  }
  func.func @transform_13(%arg0: i32) -> (i32, i32) {
    %c0_i32 = arith.constant 0 : i32
    %c0_i32_0 = arith.constant 0 : i32
    %c0_i32_1 = arith.constant 0 : i32
    return %c0_i32, %c0_i32_0 : i32, i32
  }
  func.func @transform_14(%arg0: i32) -> (i32, i32) {
    %c0_i32 = arith.constant 0 : i32
    %c0_i32_0 = arith.constant 0 : i32
    %c0_i32_1 = arith.constant 0 : i32
    return %c0_i32, %c0_i32_0 : i32, i32
  }
  func.func @transform_15(%arg0: i32) -> (i32, i32) {
    %c0_i32 = arith.constant 0 : i32
    %c0_i32_0 = arith.constant 0 : i32
    %c0_i32_1 = arith.constant 0 : i32
    return %c0_i32, %c0_i32_0 : i32, i32
  }
  func.func @transform_16(%arg0: i32) -> (i32, i32) {
    %c0_i32 = arith.constant 0 : i32
    %c0_i32_0 = arith.constant 0 : i32
    %c0_i32_1 = arith.constant 0 : i32
    return %c0_i32, %c0_i32_0 : i32, i32
  }
  func.func @transform_17(%arg0: i32) -> (i32, i32) {
    %c0_i32 = arith.constant 0 : i32
    %c0_i32_0 = arith.constant 0 : i32
    %c0_i32_1 = arith.constant 0 : i32
    return %c0_i32, %c0_i32_0 : i32, i32
  }
  func.func @transform_18(%arg0: i32) -> (i32, i32) {
    %c0_i32 = arith.constant 0 : i32
    %c0_i32_0 = arith.constant 0 : i32
    %c0_i32_1 = arith.constant 0 : i32
    return %c0_i32, %c0_i32_0 : i32, i32
  }
  func.func @transform_19(%arg0: i32) -> (i32, i32) {
    %c0_i32 = arith.constant 0 : i32
    %c0_i32_0 = arith.constant 0 : i32
    %c0_i32_1 = arith.constant 0 : i32
    return %c0_i32, %c0_i32_0 : i32, i32
  }
  func.func @transform_20(%arg0: i32) -> (i32, i32) {
    %c0_i32 = arith.constant 0 : i32
    %c0_i32_0 = arith.constant 0 : i32
    %c0_i32_1 = arith.constant 0 : i32
    return %c0_i32, %c0_i32_0 : i32, i32
  }
  func.func @transform_21(%arg0: i32) -> (i32, i32) {
    %c0_i32 = arith.constant 0 : i32
    %c0_i32_0 = arith.constant 0 : i32
    %c0_i32_1 = arith.constant 0 : i32
    return %c0_i32, %c0_i32_0 : i32, i32
  }
  func.func @transform_22(%arg0: i32) -> (i32, i32) {
    %c0_i32 = arith.constant 0 : i32
    %c0_i32_0 = arith.constant 0 : i32
    %c0_i32_1 = arith.constant 0 : i32
    return %c0_i32, %c0_i32_0 : i32, i32
  }
  func.func @transform_23(%arg0: i32) -> (i32, i32) {
    %c0_i32 = arith.constant 0 : i32
    %c0_i32_0 = arith.constant 0 : i32
    %c0_i32_1 = arith.constant 0 : i32
    return %c0_i32, %c0_i32_0 : i32, i32
  }
}

</mosaic_0001>

<llo_original>
// kernel: generator_forward.1
$region0: #{generator_forward.1}
  #allocation0 [shape = 'u32[]', space=smem, size = 0x4, offset = 0x4, fixed_abs, tag = 'smem constant byte address 0x4 - core index']
  #allocation1 [shape = 'u32[144,128]{1,0:T(1,128)}', space=vmem, size = 0x12000, scoped, tag = 'internal scratch']
  %s0 = inlined_call_operand.vmem [shape: f32[450,4], index: 0, kind: input, shape index: {}]
  %s1 = inlined_call_operand.vmem [shape: f32[2,10], index: 1, kind: input, shape index: {}]
  %s2 = inlined_call_operand.vmem [shape: f32[4,8], index: 2, kind: input, shape index: {}]
  %s3 = inlined_call_operand.vmem [shape: f32[32,16], index: 3, kind: input, shape index: {}]
  %s4 = inlined_call_operand.vmem [shape: f32[2,16], index: 4, kind: input, shape index: {}]
  %s5 = inlined_call_operand.vmem [shape: f32[64,32], index: 5, kind: input, shape index: {}]
  %s6 = inlined_call_operand.vmem [shape: f32[2,32], index: 6, kind: input, shape index: {}]
  %s7 = inlined_call_operand.vmem [shape: f32[512,64], index: 7, kind: input, shape index: {}]
  %s8 = inlined_call_operand.vmem [shape: f32[64,20], index: 8, kind: input, shape index: {}]
  %s9 = inlined_call_operand.vmem [shape: f32[1,20], index: 9, kind: input, shape index: {}]
  %s10 = inlined_call_operand.vmem [shape: f32[10,512], index: 10, kind: input, shape index: {}]
  %s11 = inlined_call_operand.vmem [shape: f32[32,64], index: 11, kind: input, shape index: {}]
  %s12 = inlined_call_operand.vmem [shape: f32[2,16], index: 12, kind: input, shape index: {}]
  %s13 = inlined_call_operand.vmem [shape: f32[16,32], index: 13, kind: input, shape index: {}]
  %s14 = inlined_call_operand.vmem [shape: f32[2,8], index: 14, kind: input, shape index: {}]
  %s15 = inlined_call_operand.vmem [shape: f32[8,1], index: 15, kind: input, shape index: {}]
  %s16 = inlined_call_operand.vmem [shape: bf16[512,450], index: 16, kind: input, shape index: {}]
  %s17 = inlined_call_operand.vmem [shape: bf16[200,128], index: 17, kind: input, shape index: {}]
  %s18 = inlined_call_operand.vmem [shape: bf16[288,32], index: 18, kind: input, shape index: {}]
  %s19 = inlined_call_operand.vmem [shape: bf16[800,72], index: 19, kind: input, shape index: {}]
  %s20 = inlined_call_operand.vmem [shape: bf16[200,784], index: 20, kind: input, shape index: {}]
  %s21 = inlined_call_operand.vmem [shape: f32[2,200], index: 21, kind: input, shape index: {}]
  %s22 = inlined_call_operand.vmem [shape: f32[2,784], index: 22, kind: output, shape index: {0}]
  %s23 = inlined_call_operand.vmem [shape: f32[2,20], index: 23, kind: output, shape index: {1}]
  %24 = xla_tuple %s22, %s23
  %s25 = sld [smem:[#allocation0]]
  $region106: #{generator_forward.1} parent=0
    _
  %s27 = ssub.s32 1, %s25
  %s28 = scalar_select 0, %s27, %s25
  // Predicated region
  $region2: #{generator_forward.1} parent=0 // pred_check
    _
  $region3: #{generator_forward.1} parent=0 // pred_check_branch
    %30 = sbr.rel (0) target = $region5
  $region4: #{generator_forward.1} parent=0 // pred_region
    _
  $region5: #{generator_forward.1} parent=0 // pred_fallthru
    _
  // Predicated region
  $region6: #{generator_forward.1} parent=0 // pred_check
    _
  $region7: #{generator_forward.1} parent=0 // pred_check_branch
    %32 = sbr.rel (0) target = $region9
  $region8: #{generator_forward.1} parent=0 // pred_region
    _
  $region9: #{generator_forward.1} parent=0 // pred_fallthru
    _
  // Predicated region
  $region10: #{generator_forward.1} parent=0 // pred_check
    _
  $region11: #{generator_forward.1} parent=0 // pred_check_branch
    %34 = sbr.rel (0) target = $region13
  $region12: #{generator_forward.1} parent=0 // pred_region
    _
  $region13: #{generator_forward.1} parent=0 // pred_fallthru
    _
  // Predicated region
  $region14: #{generator_forward.1} parent=0 // pred_check
    _
  $region15: #{generator_forward.1} parent=0 // pred_check_branch
    %36 = sbr.rel (0) target = $region17
  $region16: #{generator_forward.1} parent=0 // pred_region
    _
  $region17: #{generator_forward.1} parent=0 // pred_fallthru
    _
  // Predicated region
  $region18: #{generator_forward.1} parent=0 // pred_check
    _
  $region19: #{generator_forward.1} parent=0 // pred_check_branch
    %38 = sbr.rel (0) target = $region21
  $region20: #{generator_forward.1} parent=0 // pred_region
    _
  $region21: #{generator_forward.1} parent=0 // pred_fallthru
    _
  // Predicated region
  $region22: #{generator_forward.1} parent=0 // pred_check
    _
  $region23: #{generator_forward.1} parent=0 // pred_check_branch
    %40 = sbr.rel (0) target = $region25
  $region24: #{generator_forward.1} parent=0 // pred_region
    _
  $region25: #{generator_forward.1} parent=0 // pred_fallthru
    _
  // Predicated region
  $region26: #{generator_forward.1} parent=0 // pred_check
    _
  $region27: #{generator_forward.1} parent=0 // pred_check_branch
    %42 = sbr.rel (0) target = $region29
  $region28: #{generator_forward.1} parent=0 // pred_region
    _
  $region29: #{generator_forward.1} parent=0 // pred_fallthru
    _
  // Predicated region
  $region30: #{generator_forward.1} parent=0 // pred_check
    _
  $region31: #{generator_forward.1} parent=0 // pred_check_branch
    %44 = sbr.rel (0) target = $region33
  $region32: #{generator_forward.1} parent=0 // pred_region
    _
  $region33: #{generator_forward.1} parent=0 // pred_fallthru
    _
  // Predicated region
  $region34: #{generator_forward.1} parent=0 // pred_check
    _
  $region35: #{generator_forward.1} parent=0 // pred_check_branch
    %46 = sbr.rel (0) target = $region37
  $region36: #{generator_forward.1} parent=0 // pred_region
    _
  $region37: #{generator_forward.1} parent=0 // pred_fallthru
    _
  // Predicated region
  $region38: #{generator_forward.1} parent=0 // pred_check
    _
  $region39: #{generator_forward.1} parent=0 // pred_check_branch
    %48 = sbr.rel (0) target = $region41
  $region40: #{generator_forward.1} parent=0 // pred_region
    _
  $region41: #{generator_forward.1} parent=0 // pred_fallthru
    _
  // Predicated region
  $region42: #{generator_forward.1} parent=0 // pred_check
    _
  $region43: #{generator_forward.1} parent=0 // pred_check_branch
    %50 = sbr.rel (0) target = $region45
  $region44: #{generator_forward.1} parent=0 // pred_region
    _
  $region45: #{generator_forward.1} parent=0 // pred_fallthru
    _
  // Predicated region
  $region46: #{generator_forward.1} parent=0 // pred_check
    _
  $region47: #{generator_forward.1} parent=0 // pred_check_branch
    %52 = sbr.rel (0) target = $region49
  $region48: #{generator_forward.1} parent=0 // pred_region
    _
  $region49: #{generator_forward.1} parent=0 // pred_fallthru
    _
  // Predicated region
  $region50: #{generator_forward.1} parent=0 // pred_check
    _
  $region51: #{generator_forward.1} parent=0 // pred_check_branch
    %54 = sbr.rel (0) target = $region53
  $region52: #{generator_forward.1} parent=0 // pred_region
    _
  $region53: #{generator_forward.1} parent=0 // pred_fallthru
    _
  // Predicated region
  $region54: #{generator_forward.1} parent=0 // pred_check
    _
  $region55: #{generator_forward.1} parent=0 // pred_check_branch
    %56 = sbr.rel (0) target = $region57
  $region56: #{generator_forward.1} parent=0 // pred_region
    _
  $region57: #{generator_forward.1} parent=0 // pred_fallthru
    _
  // Predicated region
  $region58: #{generator_forward.1} parent=0 // pred_check
    _
  $region59: #{generator_forward.1} parent=0 // pred_check_branch
    %58 = sbr.rel (0) target = $region61
  $region60: #{generator_forward.1} parent=0 // pred_region
    _
  $region61: #{generator_forward.1} parent=0 // pred_fallthru
    _
  // Predicated region
  $region62: #{generator_forward.1} parent=0 // pred_check
    _
  $region63: #{generator_forward.1} parent=0 // pred_check_branch
    %60 = sbr.rel (0) target = $region65
  $region64: #{generator_forward.1} parent=0 // pred_region
    _
  $region65: #{generator_forward.1} parent=0 // pred_fallthru
    _
  // Predicated region
  $region66: #{generator_forward.1} parent=0 // pred_check
    _
  $region67: #{generator_forward.1} parent=0 // pred_check_branch
    %62 = sbr.rel (0) target = $region69
  $region68: #{generator_forward.1} parent=0 // pred_region
    _
  $region69: #{generator_forward.1} parent=0 // pred_fallthru
    _
  // Predicated region
  $region70: #{generator_forward.1} parent=0 // pred_check
    _
  $region71: #{generator_forward.1} parent=0 // pred_check_branch
    %64 = sbr.rel (0) target = $region73
  $region72: #{generator_forward.1} parent=0 // pred_region
    _
  $region73: #{generator_forward.1} parent=0 // pred_fallthru
    _
  // Predicated region
  $region74: #{generator_forward.1} parent=0 // pred_check
    _
  $region75: #{generator_forward.1} parent=0 // pred_check_branch
    %66 = sbr.rel (0) target = $region77
  $region76: #{generator_forward.1} parent=0 // pred_region
    _
  $region77: #{generator_forward.1} parent=0 // pred_fallthru
    _
  // Predicated region
  $region78: #{generator_forward.1} parent=0 // pred_check
    _
  $region79: #{generator_forward.1} parent=0 // pred_check_branch
    %68 = sbr.rel (0) target = $region81
  $region80: #{generator_forward.1} parent=0 // pred_region
    _
  $region81: #{generator_forward.1} parent=0 // pred_fallthru
    _
  // Predicated region
  $region82: #{generator_forward.1} parent=0 // pred_check
    _
  $region83: #{generator_forward.1} parent=0 // pred_check_branch
    %70 = sbr.rel (0) target = $region85
  $region84: #{generator_forward.1} parent=0 // pred_region
    _
  $region85: #{generator_forward.1} parent=0 // pred_fallthru
    _
  // Predicated region
  $region86: #{generator_forward.1} parent=0 // pred_check
    _
  $region87: #{generator_forward.1} parent=0 // pred_check_branch
    %72 = sbr.rel (0) target = $region89
  $region88: #{generator_forward.1} parent=0 // pred_region
    _
  $region89: #{generator_forward.1} parent=0 // pred_fallthru
    _
  %v73 = vld [vmem:[%s0] sm:$0xff]
  %v74 = vld [vmem:[%s0 + $0x8] sm:$0xff]
  %v75 = vld [vmem:[%s0 + $0x10] sm:$0xff]
  %v76 = vld [vmem:[%s0 + $0x18] sm:$0xff]
  %v77 = vld [vmem:[%s0 + $0x20] sm:$0xff]
  %v78 = vld [vmem:[%s0 + $0x28] sm:$0xff]
  %v79 = vld [vmem:[%s0 + $0x30] sm:$0xff]
  %v80 = vld [vmem:[%s0 + $0x38] sm:$0xff]
  %v81 = vld [vmem:[%s0 + $0x40] sm:$0xff]
  %v82 = vld [vmem:[%s0 + $0x48] sm:$0xff]
  %v83 = vld [vmem:[%s0 + $0x50] sm:$0xff]
  %v84 = vld [vmem:[%s0 + $0x58] sm:$0xff]
  %v85 = vld [vmem:[%s0 + $0x60] sm:$0xff]
  %v86 = vld [vmem:[%s0 + $0x68] sm:$0xff]
  %v87 = vld [vmem:[%s0 + $0x70] sm:$0xff]
  %v88 = vld [vmem:[%s0 + $0x78] sm:$0xff]
  %v89 = vld [vmem:[%s0 + $0x80] sm:$0xff]
  %v90 = vld [vmem:[%s0 + $0x88] sm:$0xff]
  %v91 = vld [vmem:[%s0 + $0x90] sm:$0xff]
  %v92 = vld [vmem:[%s0 + $0x98] sm:$0xff]
  %v93 = vld [vmem:[%s0 + $0xa0] sm:$0xff]
  %v94 = vld [vmem:[%s0 + $0xa8] sm:$0xff]
  %v95 = vld [vmem:[%s0 + $0xb0] sm:$0xff]
  %v96 = vld [vmem:[%s0 + $0xb8] sm:$0xff]
  %v97 = vld [vmem:[%s0 + $0xc0] sm:$0xff]
  %v98 = vld [vmem:[%s0 + $0xc8] sm:$0xff]
  %v99 = vld [vmem:[%s0 + $0xd0] sm:$0xff]
  %v100 = vld [vmem:[%s0 + $0xd8] sm:$0xff]
  %v101 = vld [vmem:[%s0 + $0xe0] sm:$0xff]
  %v102 = vld [vmem:[%s0 + $0xe8] sm:$0xff]
  %v103 = vld [vmem:[%s0 + $0xf0] sm:$0xff]
  %v104 = vld [vmem:[%s0 + $0xf8] sm:$0xff]
  %v105 = vld [vmem:[%s0 + $0x100] sm:$0xff]
  %v106 = vld [vmem:[%s0 + $0x108] sm:$0xff]
  %v107 = vld [vmem:[%s0 + $0x110] sm:$0xff]
  %v108 = vld [vmem:[%s0 + $0x118] sm:$0xff]
  %v109 = vld [vmem:[%s0 + $0x120] sm:$0xff]
  %v110 = vld [vmem:[%s0 + $0x128] sm:$0xff]
  %v111 = vld [vmem:[%s0 + $0x130] sm:$0xff]
  %v112 = vld [vmem:[%s0 + $0x138] sm:$0xff]
  %v113 = vld [vmem:[%s0 + $0x140] sm:$0xff]
  %v114 = vld [vmem:[%s0 + $0x148] sm:$0xff]
  %v115 = vld [vmem:[%s0 + $0x150] sm:$0xff]
  %v116 = vld [vmem:[%s0 + $0x158] sm:$0xff]
  %v117 = vld [vmem:[%s0 + $0x160] sm:$0xff]
  %v118 = vld [vmem:[%s0 + $0x168] sm:$0xff]
  %v119 = vld [vmem:[%s0 + $0x170] sm:$0xff]
  %v120 = vld [vmem:[%s0 + $0x178] sm:$0xff]
  %v121 = vld [vmem:[%s0 + $0x180] sm:$0xff]
  %v122 = vld [vmem:[%s0 + $0x188] sm:$0xff]
  %v123 = vld [vmem:[%s0 + $0x190] sm:$0xff]
  %v124 = vld [vmem:[%s0 + $0x198] sm:$0xff]
  %v125 = vld [vmem:[%s0 + $0x1a0] sm:$0xff]
  %v126 = vld [vmem:[%s0 + $0x1a8] sm:$0xff]
  %v127 = vld [vmem:[%s0 + $0x1b0] sm:$0xff]
  %v128 = vld [vmem:[%s0 + $0x1b8] sm:$0xff]
  %v129 = vld [vmem:[%s0 + $0x1c0] sm:$0x3]
  %v130 = vld [vmem:[%s2] sm:$0xf]
  %vm131 = vcmask 31744
  %v133 = vsel %vm131, %v73, 0
  %v136 = vsel %vm131, %v74, 0
  %v139 = vsel %vm131, %v75, 0
  %v142 = vsel %vm131, %v76, 0
  %v145 = vsel %vm131, %v77, 0
  %v148 = vsel %vm131, %v78, 0
  %v151 = vsel %vm131, %v79, 0
  %v154 = vsel %vm131, %v80, 0
  %v157 = vsel %vm131, %v81, 0
  %v160 = vsel %vm131, %v82, 0
  %v163 = vsel %vm131, %v83, 0
  %v166 = vsel %vm131, %v84, 0
  %v169 = vsel %vm131, %v85, 0
  %v172 = vsel %vm131, %v86, 0
  %v175 = vsel %vm131, %v87, 0
  %v178 = vsel %vm131, %v88, 0
  %v181 = vsel %vm131, %v89, 0
  %v184 = vsel %vm131, %v90, 0
  %v187 = vsel %vm131, %v91, 0
  %v190 = vsel %vm131, %v92, 0
  %v193 = vsel %vm131, %v93, 0
  %v196 = vsel %vm131, %v94, 0
  %v199 = vsel %vm131, %v95, 0
  %v202 = vsel %vm131, %v96, 0
  %v205 = vsel %vm131, %v97, 0
  %v208 = vsel %vm131, %v98, 0
  %v211 = vsel %vm131, %v99, 0
  %v214 = vsel %vm131, %v100, 0
  %v217 = vsel %vm131, %v101, 0
  %v220 = vsel %vm131, %v102, 0
  %v223 = vsel %vm131, %v103, 0
  %v226 = vsel %vm131, %v104, 0
  %v229 = vsel %vm131, %v105, 0
  %v232 = vsel %vm131, %v106, 0
  %v235 = vsel %vm131, %v107, 0
  %v238 = vsel %vm131, %v108, 0
  %v241 = vsel %vm131, %v109, 0
  %v244 = vsel %vm131, %v110, 0
  %v247 = vsel %vm131, %v111, 0
  %v250 = vsel %vm131, %v112, 0
  %v253 = vsel %vm131, %v113, 0
  %v256 = vsel %vm131, %v114, 0
  %v259 = vsel %vm131, %v115, 0
  %v262 = vsel %vm131, %v116, 0
  %v265 = vsel %vm131, %v117, 0
  %v268 = vsel %vm131, %v118, 0
  %v271 = vsel %vm131, %v119, 0
  %v274 = vsel %vm131, %v120, 0
  %v277 = vsel %vm131, %v121, 0
  %v280 = vsel %vm131, %v122, 0
  %v283 = vsel %vm131, %v123, 0
  %v286 = vsel %vm131, %v124, 0
  %v289 = vsel %vm131, %v125, 0
  %v292 = vsel %vm131, %v126, 0
  %v295 = vsel %vm131, %v127, 0
  %v298 = vsel %vm131, %v128, 0
  %v301 = vsel %vm131, %v129, 0
  %vm303 = vcmask 1043456
  %v305 = vsel %vm303, %v130, 0
  %307 = vmatprep.subr.mxu0 0.0
  %308 = vmatpush1.msra.mxu0 0.0
  %309 = vmatprep.subr.mxu0 0.0
  %310 = vmatpush1.msra.mxu0 0.0
  %311 = vmatprep.subr.mxu0 0.0
  %312 = vmatpush1.msra.mxu0 0.0
  %313 = vmatprep.subr.mxu0 0.0
  %314 = vmatpush1.msra.mxu0 0.0
  %315 = vmatprep.subr.mxu0 0.0
  %316 = vmatpush1.msra.mxu0 0.0
  %317 = vmatprep.subr.mxu0 0.0
  %318 = vmatpush1.msra.mxu0 0.0
  %319 = vmatprep.subr.mxu0 0.0
  %320 = vmatpush1.msra.mxu0 0.0
  %321 = vmatprep.subr.mxu0 0.0
  %322 = vmatpush1.msra.mxu0 0.0
  %323 = vmatprep.subr.mxu0 0.0
  %324 = vmatpush1.msra.mxu0 0.0
  %325 = vmatprep.subr.mxu0 0.0
  %326 = vmatpush1.msra.mxu0 0.0
  %327 = vmatprep.subr.mxu0 0.0
  %328 = vmatpush1.msra.mxu0 0.0
  %329 = vmatprep.subr.mxu0 0.0
  %330 = vmatpush1.msra.mxu0 0.0
  %331 = vmatprep.subr.mxu0 0.0
  %332 = vmatpush1.msra.mxu0 0.0
  %333 = vmatprep.subr.mxu0 0.0
  %334 = vmatpush1.msra.mxu0 0.0
  %335 = vmatprep.subr.mxu0 0.0
  %336 = vmatpush1.msra.mxu0 0.0
  %337 = vmatprep.subr.mxu0 0.0
  %338 = vmatpush1.msra.mxu0 %v305
  %339 = vmatprep.subr.mxu0 0.0
  %340 = vmatpush2.msra.mxu0 0.0
  %341 = vmatprep.subr.mxu0 0.0
  %342 = vmatpush2.msra.mxu0 0.0
  %343 = vmatprep.subr.mxu0 0.0
  %344 = vmatpush2.msra.mxu0 0.0
  %345 = vmatprep.subr.mxu0 0.0
  %346 = vmatpush2.msra.mxu0 0.0
  %347 = vmatprep.subr.mxu0 0.0
  %348 = vmatpush2.msra.mxu0 0.0
  %349 = vmatprep.subr.mxu0 0.0
  %350 = vmatpush2.msra.mxu0 0.0
  %351 = vmatprep.subr.mxu0 0.0
  %352 = vmatpush2.msra.mxu0 0.0
  %353 = vmatprep.subr.mxu0 0.0
  %354 = vmatpush2.msra.mxu0 0.0
  %355 = vmatprep.subr.mxu0 0.0
  %356 = vmatpush2.msra.mxu0 0.0
  %357 = vmatprep.subr.mxu0 0.0
  %358 = vmatpush2.msra.mxu0 0.0
  %359 = vmatprep.subr.mxu0 0.0
  %360 = vmatpush2.msra.mxu0 0.0
  %361 = vmatprep.subr.mxu0 0.0
  %362 = vmatpush2.msra.mxu0 0.0
  %363 = vmatprep.subr.mxu0 0.0
  %364 = vmatpush2.msra.mxu0 0.0
  %365 = vmatprep.subr.mxu0 0.0
  %366 = vmatpush2.msra.mxu0 0.0
  %367 = vmatprep.subr.mxu0 0.0
  %368 = vmatpush2.msra.mxu0 0.0
  %369 = vmatprep.subr.mxu0 0.0
  %370 = vmatpush2.msra.mxu0 0.0
  %371 = vmatprep.mubr.f32.mxu0 0.0
  %372 = vmatmul.mubr.f32.gmra.mxu0 %v133
  %v373 = vpop.f32.mrf.mxu0
  %v374 = vadd.f32 0.0, %v373
  %v375 = vpop.f32.mrf.mxu0
  %376 = vmatprep.mubr.f32.mxu0 0.0
  %377 = vmatmul.mubr.f32.gmra.mxu0 %v136
  %v378 = vpop.f32.mrf.mxu0
  %v379 = vadd.f32 0.0, %v378
  %v380 = vpop.f32.mrf.mxu0
  %381 = vmatprep.mubr.f32.mxu0 0.0
  %382 = vmatmul.mubr.f32.gmra.mxu0 %v139
  %v383 = vpop.f32.mrf.mxu0
  %v384 = vadd.f32 0.0, %v383
  %v385 = vpop.f32.mrf.mxu0
  %386 = vmatprep.mubr.f32.mxu0 0.0
  %387 = vmatmul.mubr.f32.gmra.mxu0 %v142
  %v388 = vpop.f32.mrf.mxu0
  %v389 = vadd.f32 0.0, %v388
  %v390 = vpop.f32.mrf.mxu0
  %391 = vmatprep.mubr.f32.mxu0 0.0
  %392 = vmatmul.mubr.f32.gmra.mxu0 %v145
  %v393 = vpop.f32.mrf.mxu0
  %v394 = vadd.f32 0.0, %v393
  %v395 = vpop.f32.mrf.mxu0
  %396 = vmatprep.mubr.f32.mxu0 0.0
  %397 = vmatmul.mubr.f32.gmra.mxu0 %v148
  %v398 = vpop.f32.mrf.mxu0
  %v399 = vadd.f32 0.0, %v398
  %v400 = vpop.f32.mrf.mxu0
  %401 = vmatprep.mubr.f32.mxu0 0.0
  %402 = vmatmul.mubr.f32.gmra.mxu0 %v151
  %v403 = vpop.f32.mrf.mxu0
  %v404 = vadd.f32 0.0, %v403
  %v405 = vpop.f32.mrf.mxu0
  %406 = vmatprep.mubr.f32.mxu0 0.0
  %407 = vmatmul.mubr.f32.gmra.mxu0 %v154
  %v408 = vpop.f32.mrf.mxu0
  %v409 = vadd.f32 0.0, %v408
  %v410 = vpop.f32.mrf.mxu0
  %411 = vmatprep.mubr.f32.mxu0 0.0
  %412 = vmatmul.mubr.f32.gmra.mxu0 %v157
  %v413 = vpop.f32.mrf.mxu0
  %v414 = vadd.f32 0.0, %v413
  %v415 = vpop.f32.mrf.mxu0
  %416 = vmatprep.mubr.f32.mxu0 0.0
  %417 = vmatmul.mubr.f32.gmra.mxu0 %v160
  %v418 = vpop.f32.mrf.mxu0
  %v419 = vadd.f32 0.0, %v418
  %v420 = vpop.f32.mrf.mxu0
  %421 = vmatprep.mubr.f32.mxu0 0.0
  %422 = vmatmul.mubr.f32.gmra.mxu0 %v163
  %v423 = vpop.f32.mrf.mxu0
  %v424 = vadd.f32 0.0, %v423
  %v425 = vpop.f32.mrf.mxu0
  %426 = vmatprep.mubr.f32.mxu0 0.0
  %427 = vmatmul.mubr.f32.gmra.mxu0 %v166
  %v428 = vpop.f32.mrf.mxu0
  %v429 = vadd.f32 0.0, %v428
  %v430 = vpop.f32.mrf.mxu0
  %431 = vmatprep.mubr.f32.mxu0 0.0
  %432 = vmatmul.mubr.f32.gmra.mxu0 %v169
  %v433 = vpop.f32.mrf.mxu0
  %v434 = vadd.f32 0.0, %v433
  %v435 = vpop.f32.mrf.mxu0
  %436 = vmatprep.mubr.f32.mxu0 0.0
  %437 = vmatmul.mubr.f32.gmra.mxu0 %v172
  %v438 = vpop.f32.mrf.mxu0
  %v439 = vadd.f32 0.0, %v438
  %v440 = vpop.f32.mrf.mxu0
  %441 = vmatprep.mubr.f32.mxu0 0.0
  %442 = vmatmul.mubr.f32.gmra.mxu0 %v175
  %v443 = vpop.f32.mrf.mxu0
  %v444 = vadd.f32 0.0, %v443
  %v445 = vpop.f32.mrf.mxu0
  %446 = vmatprep.mubr.f32.mxu0 0.0
  %447 = vmatmul.mubr.f32.gmra.mxu0 %v178
  %v448 = vpop.f32.mrf.mxu0
  %v449 = vadd.f32 0.0, %v448
  %v450 = vpop.f32.mrf.mxu0
  %451 = vmatprep.mubr.f32.mxu0 0.0
  %452 = vmatmul.mubr.f32.gmra.mxu0 %v181
  %v453 = vpop.f32.mrf.mxu0
  %v454 = vadd.f32 0.0, %v453
  %v455 = vpop.f32.mrf.mxu0
  %456 = vmatprep.mubr.f32.mxu0 0.0
  %457 = vmatmul.mubr.f32.gmra.mxu0 %v184
  %v458 = vpop.f32.mrf.mxu0
  %v459 = vadd.f32 0.0, %v458
  %v460 = vpop.f32.mrf.mxu0
  %461 = vmatprep.mubr.f32.mxu0 0.0
  %462 = vmatmul.mubr.f32.gmra.mxu0 %v187
  %v463 = vpop.f32.mrf.mxu0
  %v464 = vadd.f32 0.0, %v463
  %v465 = vpop.f32.mrf.mxu0
  %466 = vmatprep.mubr.f32.mxu0 0.0
  %467 = vmatmul.mubr.f32.gmra.mxu0 %v190
  %v468 = vpop.f32.mrf.mxu0
  %v469 = vadd.f32 0.0, %v468
  %v470 = vpop.f32.mrf.mxu0
  %471 = vmatprep.mubr.f32.mxu0 0.0
  %472 = vmatmul.mubr.f32.gmra.mxu0 %v193
  %v473 = vpop.f32.mrf.mxu0
  %v474 = vadd.f32 0.0, %v473
  %v475 = vpop.f32.mrf.mxu0
  %476 = vmatprep.mubr.f32.mxu0 0.0
  %477 = vmatmul.mubr.f32.gmra.mxu0 %v196
  %v478 = vpop.f32.mrf.mxu0
  %v479 = vadd.f32 0.0, %v478
  %v480 = vpop.f32.mrf.mxu0
  %481 = vmatprep.mubr.f32.mxu0 0.0
  %482 = vmatmul.mubr.f32.gmra.mxu0 %v199
  %v483 = vpop.f32.mrf.mxu0
  %v484 = vadd.f32 0.0, %v483
  %v485 = vpop.f32.mrf.mxu0
  %486 = vmatprep.mubr.f32.mxu0 0.0
  %487 = vmatmul.mubr.f32.gmra.mxu0 %v202
  %v488 = vpop.f32.mrf.mxu0
  %v489 = vadd.f32 0.0, %v488
  %v490 = vpop.f32.mrf.mxu0
  %491 = vmatprep.mubr.f32.mxu0 0.0
  %492 = vmatmul.mubr.f32.gmra.mxu0 %v205
  %v493 = vpop.f32.mrf.mxu0
  %v494 = vadd.f32 0.0, %v493
  %v495 = vpop.f32.mrf.mxu0
  %496 = vmatprep.mubr.f32.mxu0 0.0
  %497 = vmatmul.mubr.f32.gmra.mxu0 %v208
  %v498 = vpop.f32.mrf.mxu0
  %v499 = vadd.f32 0.0, %v498
  %v500 = vpop.f32.mrf.mxu0
  %501 = vmatprep.mubr.f32.mxu0 0.0
  %502 = vmatmul.mubr.f32.gmra.mxu0 %v211
  %v503 = vpop.f32.mrf.mxu0
  %v504 = vadd.f32 0.0, %v503
  %v505 = vpop.f32.mrf.mxu0
  %506 = vmatprep.mubr.f32.mxu0 0.0
  %507 = vmatmul.mubr.f32.gmra.mxu0 %v214
  %v508 = vpop.f32.mrf.mxu0
  %v509 = vadd.f32 0.0, %v508
  %v510 = vpop.f32.mrf.mxu0
  %511 = vmatprep.mubr.f32.mxu0 0.0
  %512 = vmatmul.mubr.f32.gmra.mxu0 %v217
  %v513 = vpop.f32.mrf.mxu0
  %v514 = vadd.f32 0.0, %v513
  %v515 = vpop.f32.mrf.mxu0
  %516 = vmatprep.mubr.f32.mxu0 0.0
  %517 = vmatmul.mubr.f32.gmra.mxu0 %v220
  %v518 = vpop.f32.mrf.mxu0
  %v519 = vadd.f32 0.0, %v518
  %v520 = vpop.f32.mrf.mxu0
  %521 = vmatprep.mubr.f32.mxu0 0.0
  %522 = vmatmul.mubr.f32.gmra.mxu0 %v223
  %v523 = vpop.f32.mrf.mxu0
  %v524 = vadd.f32 0.0, %v523
  %v525 = vpop.f32.mrf.mxu0
  %526 = vmatprep.mubr.f32.mxu0 0.0
  %527 = vmatmul.mubr.f32.gmra.mxu0 %v226
  %v528 = vpop.f32.mrf.mxu0
  %v529 = vadd.f32 0.0, %v528
  %v530 = vpop.f32.mrf.mxu0
  %531 = vmatprep.mubr.f32.mxu0 0.0
  %532 = vmatmul.mubr.f32.gmra.mxu0 %v229
  %v533 = vpop.f32.mrf.mxu0
  %v534 = vadd.f32 0.0, %v533
  %v535 = vpop.f32.mrf.mxu0
  %536 = vmatprep.mubr.f32.mxu0 0.0
  %537 = vmatmul.mubr.f32.gmra.mxu0 %v232
  %v538 = vpop.f32.mrf.mxu0
  %v539 = vadd.f32 0.0, %v538
  %v540 = vpop.f32.mrf.mxu0
  %541 = vmatprep.mubr.f32.mxu0 0.0
  %542 = vmatmul.mubr.f32.gmra.mxu0 %v235
  %v543 = vpop.f32.mrf.mxu0
  %v544 = vadd.f32 0.0, %v543
  %v545 = vpop.f32.mrf.mxu0
  %546 = vmatprep.mubr.f32.mxu0 0.0
  %547 = vmatmul.mubr.f32.gmra.mxu0 %v238
  %v548 = vpop.f32.mrf.mxu0
  %v549 = vadd.f32 0.0, %v548
  %v550 = vpop.f32.mrf.mxu0
  %551 = vmatprep.mubr.f32.mxu0 0.0
  %552 = vmatmul.mubr.f32.gmra.mxu0 %v241
  %v553 = vpop.f32.mrf.mxu0
  %v554 = vadd.f32 0.0, %v553
  %v555 = vpop.f32.mrf.mxu0
  %556 = vmatprep.mubr.f32.mxu0 0.0
  %557 = vmatmul.mubr.f32.gmra.mxu0 %v244
  %v558 = vpop.f32.mrf.mxu0
  %v559 = vadd.f32 0.0, %v558
  %v560 = vpop.f32.mrf.mxu0
  %561 = vmatprep.mubr.f32.mxu0 0.0
  %562 = vmatmul.mubr.f32.gmra.mxu0 %v247
  %v563 = vpop.f32.mrf.mxu0
  %v564 = vadd.f32 0.0, %v563
  %v565 = vpop.f32.mrf.mxu0
  %566 = vmatprep.mubr.f32.mxu0 0.0
  %567 = vmatmul.mubr.f32.gmra.mxu0 %v250
  %v568 = vpop.f32.mrf.mxu0
  %v569 = vadd.f32 0.0, %v568
  %v570 = vpop.f32.mrf.mxu0
  %571 = vmatprep.mubr.f32.mxu0 0.0
  %572 = vmatmul.mubr.f32.gmra.mxu0 %v253
  %v573 = vpop.f32.mrf.mxu0
  %v574 = vadd.f32 0.0, %v573
  %v575 = vpop.f32.mrf.mxu0
  %576 = vmatprep.mubr.f32.mxu0 0.0
  %577 = vmatmul.mubr.f32.gmra.mxu0 %v256
  %v578 = vpop.f32.mrf.mxu0
  %v579 = vadd.f32 0.0, %v578
  %v580 = vpop.f32.mrf.mxu0
  %581 = vmatprep.mubr.f32.mxu0 0.0
  %582 = vmatmul.mubr.f32.gmra.mxu0 %v259
  %v583 = vpop.f32.mrf.mxu0
  %v584 = vadd.f32 0.0, %v583
  %v585 = vpop.f32.mrf.mxu0
  %586 = vmatprep.mubr.f32.mxu0 0.0
  %587 = vmatmul.mubr.f32.gmra.mxu0 %v262
  %v588 = vpop.f32.mrf.mxu0
  %v589 = vadd.f32 0.0, %v588
  %v590 = vpop.f32.mrf.mxu0
  %591 = vmatprep.mubr.f32.mxu0 0.0
  %592 = vmatmul.mubr.f32.gmra.mxu0 %v265
  %v593 = vpop.f32.mrf.mxu0
  %v594 = vadd.f32 0.0, %v593
  %v595 = vpop.f32.mrf.mxu0
  %596 = vmatprep.mubr.f32.mxu0 0.0
  %597 = vmatmul.mubr.f32.gmra.mxu0 %v268
  %v598 = vpop.f32.mrf.mxu0
  %v599 = vadd.f32 0.0, %v598
  %v600 = vpop.f32.mrf.mxu0
  %601 = vmatprep.mubr.f32.mxu0 0.0
  %602 = vmatmul.mubr.f32.gmra.mxu0 %v271
  %v603 = vpop.f32.mrf.mxu0
  %v604 = vadd.f32 0.0, %v603
  %v605 = vpop.f32.mrf.mxu0
  %606 = vmatprep.mubr.f32.mxu0 0.0
  %607 = vmatmul.mubr.f32.gmra.mxu0 %v274
  %v608 = vpop.f32.mrf.mxu0
  %v609 = vadd.f32 0.0, %v608
  %v610 = vpop.f32.mrf.mxu0
  %611 = vmatprep.mubr.f32.mxu0 0.0
  %612 = vmatmul.mubr.f32.gmra.mxu0 %v277
  %v613 = vpop.f32.mrf.mxu0
  %v614 = vadd.f32 0.0, %v613
  %v615 = vpop.f32.mrf.mxu0
  %616 = vmatprep.mubr.f32.mxu0 0.0
  %617 = vmatmul.mubr.f32.gmra.mxu0 %v280
  %v618 = vpop.f32.mrf.mxu0
  %v619 = vadd.f32 0.0, %v618
  %v620 = vpop.f32.mrf.mxu0
  %621 = vmatprep.mubr.f32.mxu0 0.0
  %622 = vmatmul.mubr.f32.gmra.mxu0 %v283
  %v623 = vpop.f32.mrf.mxu0
  %v624 = vadd.f32 0.0, %v623
  %v625 = vpop.f32.mrf.mxu0
  %626 = vmatprep.mubr.f32.mxu0 0.0
  %627 = vmatmul.mubr.f32.gmra.mxu0 %v286
  %v628 = vpop.f32.mrf.mxu0
  %v629 = vadd.f32 0.0, %v628
  %v630 = vpop.f32.mrf.mxu0
  %631 = vmatprep.mubr.f32.mxu0 0.0
  %632 = vmatmul.mubr.f32.gmra.mxu0 %v289
  %v633 = vpop.f32.mrf.mxu0
  %v634 = vadd.f32 0.0, %v633
  %v635 = vpop.f32.mrf.mxu0
  %636 = vmatprep.mubr.f32.mxu0 0.0
  %637 = vmatmul.mubr.f32.gmra.mxu0 %v292
  %v638 = vpop.f32.mrf.mxu0
  %v639 = vadd.f32 0.0, %v638
  %v640 = vpop.f32.mrf.mxu0
  %641 = vmatprep.mubr.f32.mxu0 0.0
  %642 = vmatmul.mubr.f32.gmra.mxu0 %v295
  %v643 = vpop.f32.mrf.mxu0
  %v644 = vadd.f32 0.0, %v643
  %v645 = vpop.f32.mrf.mxu0
  %646 = vmatprep.mubr.f32.mxu0 0.0
  %647 = vmatmul.mubr.f32.gmra.mxu0 %v298
  %v648 = vpop.f32.mrf.mxu0
  %v649 = vadd.f32 0.0, %v648
  %v650 = vpop.f32.mrf.mxu0
  %651 = vmatprep.mubr.f32.mxu0 0.0
  %652 = vmatmul.mubr.f32.gmra.mxu0 %v301
  %v653 = vpop.f32.mrf.mxu0
  %v654 = vadd.f32 0.0, %v653
  %v655 = vpop.f32.mrf.mxu0
  %656 = vdwg.mxu0
  %vm657 = vcmp.gt.f32.partialorder %v374, 0.0
  %vm658 = vcmp.gt.f32.partialorder %v379, 0.0
  %vm659 = vcmp.gt.f32.partialorder %v384, 0.0
  %vm660 = vcmp.gt.f32.partialorder %v389, 0.0
  %vm661 = vcmp.gt.f32.partialorder %v394, 0.0
  %vm662 = vcmp.gt.f32.partialorder %v399, 0.0
  %vm663 = vcmp.gt.f32.partialorder %v404, 0.0
  %vm664 = vcmp.gt.f32.partialorder %v409, 0.0
  %vm665 = vcmp.gt.f32.partialorder %v414, 0.0
  %vm666 = vcmp.gt.f32.partialorder %v419, 0.0
  %vm667 = vcmp.gt.f32.partialorder %v424, 0.0
  %vm668 = vcmp.gt.f32.partialorder %v429, 0.0
  %vm669 = vcmp.gt.f32.partialorder %v434, 0.0
  %vm670 = vcmp.gt.f32.partialorder %v439, 0.0
  %vm671 = vcmp.gt.f32.partialorder %v444, 0.0
  %vm672 = vcmp.gt.f32.partialorder %v449, 0.0
  %vm673 = vcmp.gt.f32.partialorder %v454, 0.0
  %vm674 = vcmp.gt.f32.partialorder %v459, 0.0
  %vm675 = vcmp.gt.f32.partialorder %v464, 0.0
  %vm676 = vcmp.gt.f32.partialorder %v469, 0.0
  %vm677 = vcmp.gt.f32.partialorder %v474, 0.0
  %vm678 = vcmp.gt.f32.partialorder %v479, 0.0
  %vm679 = vcmp.gt.f32.partialorder %v484, 0.0
  %vm680 = vcmp.gt.f32.partialorder %v489, 0.0
  %vm681 = vcmp.gt.f32.partialorder %v494, 0.0
  %vm682 = vcmp.gt.f32.partialorder %v499, 0.0
  %vm683 = vcmp.gt.f32.partialorder %v504, 0.0
  %vm684 = vcmp.gt.f32.partialorder %v509, 0.0
  %vm685 = vcmp.gt.f32.partialorder %v514, 0.0
  %vm686 = vcmp.gt.f32.partialorder %v519, 0.0
  %vm687 = vcmp.gt.f32.partialorder %v524, 0.0
  %vm688 = vcmp.gt.f32.partialorder %v529, 0.0
  %vm689 = vcmp.gt.f32.partialorder %v534, 0.0
  %vm690 = vcmp.gt.f32.partialorder %v539, 0.0
  %vm691 = vcmp.gt.f32.partialorder %v544, 0.0
  %vm692 = vcmp.gt.f32.partialorder %v549, 0.0
  %vm693 = vcmp.gt.f32.partialorder %v554, 0.0
  %vm694 = vcmp.gt.f32.partialorder %v559, 0.0
  %vm695 = vcmp.gt.f32.partialorder %v564, 0.0
  %vm696 = vcmp.gt.f32.partialorder %v569, 0.0
  %vm697 = vcmp.gt.f32.partialorder %v574, 0.0
  %vm698 = vcmp.gt.f32.partialorder %v579, 0.0
  %vm699 = vcmp.gt.f32.partialorder %v584, 0.0
  %vm700 = vcmp.gt.f32.partialorder %v589, 0.0
  %vm701 = vcmp.gt.f32.partialorder %v594, 0.0
  %vm702 = vcmp.gt.f32.partialorder %v599, 0.0
  %vm703 = vcmp.gt.f32.partialorder %v604, 0.0
  %vm704 = vcmp.gt.f32.partialorder %v609, 0.0
  %vm705 = vcmp.gt.f32.partialorder %v614, 0.0
  %vm706 = vcmp.gt.f32.partialorder %v619, 0.0
  %vm707 = vcmp.gt.f32.partialorder %v624, 0.0
  %vm708 = vcmp.gt.f32.partialorder %v629, 0.0
  %vm709 = vcmp.gt.f32.partialorder %v634, 0.0
  %vm710 = vcmp.gt.f32.partialorder %v639, 0.0
  %vm711 = vcmp.gt.f32.partialorder %v644, 0.0
  %vm712 = vcmp.gt.f32.partialorder %v649, 0.0
  %vm713 = vcmp.gt.f32.partialorder %v654, 0.0
  %v714 = vmul.f32 %v374, 0.2
  %v715 = vmul.f32 %v379, 0.2
  %v716 = vmul.f32 %v384, 0.2
  %v717 = vmul.f32 %v389, 0.2
  %v718 = vmul.f32 %v394, 0.2
  %v719 = vmul.f32 %v399, 0.2
  %v720 = vmul.f32 %v404, 0.2
  %v721 = vmul.f32 %v409, 0.2
  %v722 = vmul.f32 %v414, 0.2
  %v723 = vmul.f32 %v419, 0.2
  %v724 = vmul.f32 %v424, 0.2
  %v725 = vmul.f32 %v429, 0.2
  %v726 = vmul.f32 %v434, 0.2
  %v727 = vmul.f32 %v439, 0.2
  %v728 = vmul.f32 %v444, 0.2
  %v729 = vmul.f32 %v449, 0.2
  %v730 = vmul.f32 %v454, 0.2
  %v731 = vmul.f32 %v459, 0.2
  %v732 = vmul.f32 %v464, 0.2
  %v733 = vmul.f32 %v469, 0.2
  %v734 = vmul.f32 %v474, 0.2
  %v735 = vmul.f32 %v479, 0.2
  %v736 = vmul.f32 %v484, 0.2
  %v737 = vmul.f32 %v489, 0.2
  %v738 = vmul.f32 %v494, 0.2
  %v739 = vmul.f32 %v499, 0.2
  %v740 = vmul.f32 %v504, 0.2
  %v741 = vmul.f32 %v509, 0.2
  %v742 = vmul.f32 %v514, 0.2
  %v743 = vmul.f32 %v519, 0.2
  %v744 = vmul.f32 %v524, 0.2
  %v745 = vmul.f32 %v529, 0.2
  %v746 = vmul.f32 %v534, 0.2
  %v747 = vmul.f32 %v539, 0.2
  %v748 = vmul.f32 %v544, 0.2
  %v749 = vmul.f32 %v549, 0.2
  %v750 = vmul.f32 %v554, 0.2
  %v751 = vmul.f32 %v559, 0.2
  %v752 = vmul.f32 %v564, 0.2
  %v753 = vmul.f32 %v569, 0.2
  %v754 = vmul.f32 %v574, 0.2
  %v755 = vmul.f32 %v579, 0.2
  %v756 = vmul.f32 %v584, 0.2
  %v757 = vmul.f32 %v589, 0.2
  %v758 = vmul.f32 %v594, 0.2
  %v759 = vmul.f32 %v599, 0.2
  %v760 = vmul.f32 %v604, 0.2
  %v761 = vmul.f32 %v609, 0.2
  %v762 = vmul.f32 %v614, 0.2
  %v763 = vmul.f32 %v619, 0.2
  %v764 = vmul.f32 %v624, 0.2
  %v765 = vmul.f32 %v629, 0.2
  %v766 = vmul.f32 %v634, 0.2
  %v767 = vmul.f32 %v639, 0.2
  %v768 = vmul.f32 %v644, 0.2
  %v769 = vmul.f32 %v649, 0.2
  %v770 = vmul.f32 %v654, 0.2
  %v771 = vsel %vm657, %v374, %v714
  %v772 = vsel %vm658, %v379, %v715
  %v773 = vsel %vm659, %v384, %v716
  %v774 = vsel %vm660, %v389, %v717
  %v775 = vsel %vm661, %v394, %v718
  %v776 = vsel %vm662, %v399, %v719
  %v777 = vsel %vm663, %v404, %v720
  %v778 = vsel %vm664, %v409, %v721
  %v779 = vsel %vm665, %v414, %v722
  %v780 = vsel %vm666, %v419, %v723
  %v781 = vsel %vm667, %v424, %v724
  %v782 = vsel %vm668, %v429, %v725
  %v783 = vsel %vm669, %v434, %v726
  %v784 = vsel %vm670, %v439, %v727
  %v785 = vsel %vm671, %v444, %v728
  %v786 = vsel %vm672, %v449, %v729
  %v787 = vsel %vm673, %v454, %v730
  %v788 = vsel %vm674, %v459, %v731
  %v789 = vsel %vm675, %v464, %v732
  %v790 = vsel %vm676, %v469, %v733
  %v791 = vsel %vm677, %v474, %v734
  %v792 = vsel %vm678, %v479, %v735
  %v793 = vsel %vm679, %v484, %v736
  %v794 = vsel %vm680, %v489, %v737
  %v795 = vsel %vm681, %v494, %v738
  %v796 = vsel %vm682, %v499, %v739
  %v797 = vsel %vm683, %v504, %v740
  %v798 = vsel %vm684, %v509, %v741
  %v799 = vsel %vm685, %v514, %v742
  %v800 = vsel %vm686, %v519, %v743
  %v801 = vsel %vm687, %v524, %v744
  %v802 = vsel %vm688, %v529, %v745
  %v803 = vsel %vm689, %v534, %v746
  %v804 = vsel %vm690, %v539, %v747
  %v805 = vsel %vm691, %v544, %v748
  %v806 = vsel %vm692, %v549, %v749
  %v807 = vsel %vm693, %v554, %v750
  %v808 = vsel %vm694, %v559, %v751
  %v809 = vsel %vm695, %v564, %v752
  %v810 = vsel %vm696, %v569, %v753
  %v811 = vsel %vm697, %v574, %v754
  %v812 = vsel %vm698, %v579, %v755
  %v813 = vsel %vm699, %v584, %v756
  %v814 = vsel %vm700, %v589, %v757
  %v815 = vsel %vm701, %v594, %v758
  %v816 = vsel %vm702, %v599, %v759
  %v817 = vsel %vm703, %v604, %v760
  %v818 = vsel %vm704, %v609, %v761
  %v819 = vsel %vm705, %v614, %v762
  %v820 = vsel %vm706, %v619, %v763
  %v821 = vsel %vm707, %v624, %v764
  %v822 = vsel %vm708, %v629, %v765
  %v823 = vsel %vm709, %v634, %v766
  %v824 = vsel %vm710, %v639, %v767
  %v825 = vsel %vm711, %v644, %v768
  %v826 = vsel %vm712, %v649, %v769
  %v827 = vsel %vm713, %v654, %v770
  %v828 = vld [vmem:[%s16] sm:$0xff]
  %v829 = vld [vmem:[%s16 + $0x8] sm:$0xff]
  %v830 = vld [vmem:[%s16 + $0x10] sm:$0xff]
  %v831 = vld [vmem:[%s16 + $0x18] sm:$0xff]
  %v832 = vld [vmem:[%s16 + $0x20] sm:$0xff]
  %v833 = vld [vmem:[%s16 + $0x28] sm:$0xff]
  %v834 = vld [vmem:[%s16 + $0x30] sm:$0xff]
  %v835 = vld [vmem:[%s16 + $0x38] sm:$0xff]
  %v836 = vld [vmem:[%s16 + $0x40] sm:$0xff]
  %v837 = vld [vmem:[%s16 + $0x48] sm:$0xff]
  %v838 = vld [vmem:[%s16 + $0x50] sm:$0xff]
  %v839 = vld [vmem:[%s16 + $0x58] sm:$0xff]
  %v840 = vld [vmem:[%s16 + $0x60] sm:$0xff]
  %v841 = vld [vmem:[%s16 + $0x68] sm:$0xff]
  %v842 = vld [vmem:[%s16 + $0x70] sm:$0xff]
  %v843 = vld [vmem:[%s16 + $0x78] sm:$0xff]
  %v844 = vld [vmem:[%s16 + $0x80] sm:$0xff]
  %v845 = vld [vmem:[%s16 + $0x88] sm:$0xff]
  %v846 = vld [vmem:[%s16 + $0x90] sm:$0xff]
  %v847 = vld [vmem:[%s16 + $0x98] sm:$0xff]
  %v848 = vld [vmem:[%s16 + $0xa0] sm:$0xff]
  %v849 = vld [vmem:[%s16 + $0xa8] sm:$0xff]
  %v850 = vld [vmem:[%s16 + $0xb0] sm:$0xff]
  %v851 = vld [vmem:[%s16 + $0xb8] sm:$0xff]
  %v852 = vld [vmem:[%s16 + $0xc0] sm:$0xff]
  %v853 = vld [vmem:[%s16 + $0xc8] sm:$0xff]
  %v854 = vld [vmem:[%s16 + $0xd0] sm:$0xff]
  %v855 = vld [vmem:[%s16 + $0xd8] sm:$0xff]
  %v856 = vld [vmem:[%s16 + $0xe0] sm:$0xff]
  %v857 = vld [vmem:[%s16 + $0xe8] sm:$0xff]
  %v858 = vld [vmem:[%s16 + $0xf0] sm:$0xff]
  %v859 = vld [vmem:[%s16 + $0xf8] sm:$0xff]
  %v860 = vld [vmem:[%s16 + $0x100] sm:$0xff]
  %v861 = vld [vmem:[%s16 + $0x108] sm:$0xff]
  %v862 = vld [vmem:[%s16 + $0x110] sm:$0xff]
  %v863 = vld [vmem:[%s16 + $0x118] sm:$0xff]
  %v864 = vld [vmem:[%s16 + $0x120] sm:$0xff]
  %v865 = vld [vmem:[%s16 + $0x128] sm:$0xff]
  %v866 = vld [vmem:[%s16 + $0x130] sm:$0xff]
  %v867 = vld [vmem:[%s16 + $0x138] sm:$0xff]
  %v868 = vld [vmem:[%s16 + $0x140] sm:$0xff]
  %v869 = vld [vmem:[%s16 + $0x148] sm:$0xff]
  %v870 = vld [vmem:[%s16 + $0x150] sm:$0xff]
  %v871 = vld [vmem:[%s16 + $0x158] sm:$0xff]
  %v872 = vld [vmem:[%s16 + $0x160] sm:$0xff]
  %v873 = vld [vmem:[%s16 + $0x168] sm:$0xff]
  %v874 = vld [vmem:[%s16 + $0x170] sm:$0xff]
  %v875 = vld [vmem:[%s16 + $0x178] sm:$0xff]
  %v876 = vld [vmem:[%s16 + $0x180] sm:$0xff]
  %v877 = vld [vmem:[%s16 + $0x188] sm:$0xff]
  %v878 = vld [vmem:[%s16 + $0x190] sm:$0xff]
  %v879 = vld [vmem:[%s16 + $0x198] sm:$0xff]
  %v880 = vld [vmem:[%s16 + $0x1a0] sm:$0xff]
  %v881 = vld [vmem:[%s16 + $0x1a8] sm:$0xff]
  %v882 = vld [vmem:[%s16 + $0x1b0] sm:$0xff]
  %v883 = vld [vmem:[%s16 + $0x1b8] sm:$0xff]
  %v884 = vld [vmem:[%s16 + $0x1c0] sm:$0xff]
  %v885 = vld [vmem:[%s16 + $0x1c8] sm:$0xff]
  %v886 = vld [vmem:[%s16 + $0x1d0] sm:$0xff]
  %v887 = vld [vmem:[%s16 + $0x1d8] sm:$0xff]
  %v888 = vld [vmem:[%s16 + $0x1e0] sm:$0xff]
  %v889 = vld [vmem:[%s16 + $0x1e8] sm:$0xff]
  %v890 = vld [vmem:[%s16 + $0x1f0] sm:$0xff]
  %v891 = vld [vmem:[%s16 + $0x1f8] sm:$0xff]
  %v892 = vld [vmem:[%s16 + $0x200] sm:$0xff]
  %v893 = vld [vmem:[%s16 + $0x208] sm:$0xff]
  %v894 = vld [vmem:[%s16 + $0x210] sm:$0xff]
  %v895 = vld [vmem:[%s16 + $0x218] sm:$0xff]
  %v896 = vld [vmem:[%s16 + $0x220] sm:$0xff]
  %v897 = vld [vmem:[%s16 + $0x228] sm:$0xff]
  %v898 = vld [vmem:[%s16 + $0x230] sm:$0xff]
  %v899 = vld [vmem:[%s16 + $0x238] sm:$0xff]
  %v900 = vld [vmem:[%s16 + $0x240] sm:$0xff]
  %v901 = vld [vmem:[%s16 + $0x248] sm:$0xff]
  %v902 = vld [vmem:[%s16 + $0x250] sm:$0xff]
  %v903 = vld [vmem:[%s16 + $0x258] sm:$0xff]
  %v904 = vld [vmem:[%s16 + $0x260] sm:$0xff]
  %v905 = vld [vmem:[%s16 + $0x268] sm:$0xff]
  %v906 = vld [vmem:[%s16 + $0x270] sm:$0xff]
  %v907 = vld [vmem:[%s16 + $0x278] sm:$0xff]
  %v908 = vld [vmem:[%s16 + $0x280] sm:$0xff]
  %v909 = vld [vmem:[%s16 + $0x288] sm:$0xff]
  %v910 = vld [vmem:[%s16 + $0x290] sm:$0xff]
  %v911 = vld [vmem:[%s16 + $0x298] sm:$0xff]
  %v912 = vld [vmem:[%s16 + $0x2a0] sm:$0xff]
  %v913 = vld [vmem:[%s16 + $0x2a8] sm:$0xff]
  %v914 = vld [vmem:[%s16 + $0x2b0] sm:$0xff]
  %v915 = vld [vmem:[%s16 + $0x2b8] sm:$0xff]
  %v916 = vld [vmem:[%s16 + $0x2c0] sm:$0xff]
  %v917 = vld [vmem:[%s16 + $0x2c8] sm:$0xff]
  %v918 = vld [vmem:[%s16 + $0x2d0] sm:$0xff]
  %v919 = vld [vmem:[%s16 + $0x2d8] sm:$0xff]
  %v920 = vld [vmem:[%s16 + $0x2e0] sm:$0xff]
  %v921 = vld [vmem:[%s16 + $0x2e8] sm:$0xff]
  %v922 = vld [vmem:[%s16 + $0x2f0] sm:$0xff]
  %v923 = vld [vmem:[%s16 + $0x2f8] sm:$0xff]
  %v924 = vld [vmem:[%s16 + $0x300] sm:$0xff]
  %v925 = vld [vmem:[%s16 + $0x308] sm:$0xff]
  %v926 = vld [vmem:[%s16 + $0x310] sm:$0xff]
  %v927 = vld [vmem:[%s16 + $0x318] sm:$0xff]
  %v928 = vld [vmem:[%s16 + $0x320] sm:$0xff]
  %v929 = vld [vmem:[%s16 + $0x328] sm:$0xff]
  %v930 = vld [vmem:[%s16 + $0x330] sm:$0xff]
  %v931 = vld [vmem:[%s16 + $0x338] sm:$0xff]
  %v932 = vld [vmem:[%s16 + $0x340] sm:$0xff]
  %v933 = vld [vmem:[%s16 + $0x348] sm:$0xff]
  %v934 = vld [vmem:[%s16 + $0x350] sm:$0xff]
  %v935 = vld [vmem:[%s16 + $0x358] sm:$0xff]
  %v936 = vld [vmem:[%s16 + $0x360] sm:$0xff]
  %v937 = vld [vmem:[%s16 + $0x368] sm:$0xff]
  %v938 = vld [vmem:[%s16 + $0x370] sm:$0xff]
  %v939 = vld [vmem:[%s16 + $0x378] sm:$0xff]
  %v940 = vld [vmem:[%s16 + $0x380] sm:$0xff]
  %v941 = vld [vmem:[%s16 + $0x388] sm:$0xff]
  %v942 = vld [vmem:[%s16 + $0x390] sm:$0xff]
  %v943 = vld [vmem:[%s16 + $0x398] sm:$0xff]
  %v944 = vld [vmem:[%s16 + $0x3a0] sm:$0xff]
  %v945 = vld [vmem:[%s16 + $0x3a8] sm:$0xff]
  %v946 = vld [vmem:[%s16 + $0x3b0] sm:$0xff]
  %v947 = vld [vmem:[%s16 + $0x3b8] sm:$0xff]
  %v948 = vld [vmem:[%s16 + $0x3c0] sm:$0xff]
  %v949 = vld [vmem:[%s16 + $0x3c8] sm:$0xff]
  %v950 = vld [vmem:[%s16 + $0x3d0] sm:$0xff]
  %v951 = vld [vmem:[%s16 + $0x3d8] sm:$0xff]
  %v952 = vld [vmem:[%s16 + $0x3e0] sm:$0xff]
  %v953 = vld [vmem:[%s16 + $0x3e8] sm:$0xff]
  %v954 = vld [vmem:[%s16 + $0x3f0] sm:$0xff]
  %v955 = vld [vmem:[%s16 + $0x3f8] sm:$0xff]
  %v956 = vunpack.c.l.bf16 %v828
  %v957 = vunpack.c.h.bf16 %v828
  %v958 = vunpack.c.l.bf16 %v829
  %v959 = vunpack.c.h.bf16 %v829
  %v960 = vunpack.c.l.bf16 %v830
  %v961 = vunpack.c.h.bf16 %v830
  %v962 = vunpack.c.l.bf16 %v831
  %v963 = vunpack.c.h.bf16 %v831
  %v964 = vunpack.c.l.bf16 %v832
  %v965 = vunpack.c.h.bf16 %v832
  %v966 = vunpack.c.l.bf16 %v833
  %v967 = vunpack.c.h.bf16 %v833
  %v968 = vunpack.c.l.bf16 %v834
  %v969 = vunpack.c.h.bf16 %v834
  %v970 = vunpack.c.l.bf16 %v835
  %v971 = vunpack.c.h.bf16 %v835
  %v972 = vunpack.c.l.bf16 %v836
  %v973 = vunpack.c.h.bf16 %v836
  %v974 = vunpack.c.l.bf16 %v837
  %v975 = vunpack.c.h.bf16 %v837
  %v976 = vunpack.c.l.bf16 %v838
  %v977 = vunpack.c.h.bf16 %v838
  %v978 = vunpack.c.l.bf16 %v839
  %v979 = vunpack.c.h.bf16 %v839
  %v980 = vunpack.c.l.bf16 %v840
  %v981 = vunpack.c.h.bf16 %v840
  %v982 = vunpack.c.l.bf16 %v841
  %v983 = vunpack.c.h.bf16 %v841
  %v984 = vunpack.c.l.bf16 %v842
  %v985 = vunpack.c.h.bf16 %v842
  %v986 = vunpack.c.l.bf16 %v843
  %v987 = vunpack.c.h.bf16 %v843
  %v988 = vunpack.c.l.bf16 %v844
  %v989 = vunpack.c.h.bf16 %v844
  %v990 = vunpack.c.l.bf16 %v845
  %v991 = vunpack.c.h.bf16 %v845
  %v992 = vunpack.c.l.bf16 %v846
  %v993 = vunpack.c.h.bf16 %v846
  %v994 = vunpack.c.l.bf16 %v847
  %v995 = vunpack.c.h.bf16 %v847
  %v996 = vunpack.c.l.bf16 %v848
  %v997 = vunpack.c.h.bf16 %v848
  %v998 = vunpack.c.l.bf16 %v849
  %v999 = vunpack.c.h.bf16 %v849
  %v1000 = vunpack.c.l.bf16 %v850
  %v1001 = vunpack.c.h.bf16 %v850
  %v1002 = vunpack.c.l.bf16 %v851
  %v1003 = vunpack.c.h.bf16 %v851
  %v1004 = vunpack.c.l.bf16 %v852
  %v1005 = vunpack.c.h.bf16 %v852
  %v1006 = vunpack.c.l.bf16 %v853
  %v1007 = vunpack.c.h.bf16 %v853
  %v1008 = vunpack.c.l.bf16 %v854
  %v1009 = vunpack.c.h.bf16 %v854
  %v1010 = vunpack.c.l.bf16 %v855
  %v1011 = vunpack.c.h.bf16 %v855
  %v1012 = vunpack.c.l.bf16 %v856
  %v1013 = vunpack.c.h.bf16 %v856
  %v1014 = vunpack.c.l.bf16 %v857
  %v1015 = vunpack.c.h.bf16 %v857
  %v1016 = vunpack.c.l.bf16 %v858
  %v1017 = vunpack.c.h.bf16 %v858
  %v1018 = vunpack.c.l.bf16 %v859
  %v1019 = vunpack.c.h.bf16 %v859
  %v1020 = vunpack.c.l.bf16 %v860
  %v1021 = vunpack.c.h.bf16 %v860
  %v1022 = vunpack.c.l.bf16 %v861
  %v1023 = vunpack.c.h.bf16 %v861
  %v1024 = vunpack.c.l.bf16 %v862
  %v1025 = vunpack.c.h.bf16 %v862
  %v1026 = vunpack.c.l.bf16 %v863
  %v1027 = vunpack.c.h.bf16 %v863
  %v1028 = vunpack.c.l.bf16 %v864
  %v1029 = vunpack.c.h.bf16 %v864
  %v1030 = vunpack.c.l.bf16 %v865
  %v1031 = vunpack.c.h.bf16 %v865
  %v1032 = vunpack.c.l.bf16 %v866
  %v1033 = vunpack.c.h.bf16 %v866
  %v1034 = vunpack.c.l.bf16 %v867
  %v1035 = vunpack.c.h.bf16 %v867
  %v1036 = vunpack.c.l.bf16 %v868
  %v1037 = vunpack.c.h.bf16 %v868
  %v1038 = vunpack.c.l.bf16 %v869
  %v1039 = vunpack.c.h.bf16 %v869
  %v1040 = vunpack.c.l.bf16 %v870
  %v1041 = vunpack.c.h.bf16 %v870
  %v1042 = vunpack.c.l.bf16 %v871
  %v1043 = vunpack.c.h.bf16 %v871
  %v1044 = vunpack.c.l.bf16 %v872
  %v1045 = vunpack.c.h.bf16 %v872
  %v1046 = vunpack.c.l.bf16 %v873
  %v1047 = vunpack.c.h.bf16 %v873
  %v1048 = vunpack.c.l.bf16 %v874
  %v1049 = vunpack.c.h.bf16 %v874
  %v1050 = vunpack.c.l.bf16 %v875
  %v1051 = vunpack.c.h.bf16 %v875
  %v1052 = vunpack.c.l.bf16 %v876
  %v1053 = vunpack.c.h.bf16 %v876
  %v1054 = vunpack.c.l.bf16 %v877
  %v1055 = vunpack.c.h.bf16 %v877
  %v1056 = vunpack.c.l.bf16 %v878
  %v1057 = vunpack.c.h.bf16 %v878
  %v1058 = vunpack.c.l.bf16 %v879
  %v1059 = vunpack.c.h.bf16 %v879
  %v1060 = vunpack.c.l.bf16 %v880
  %v1061 = vunpack.c.h.bf16 %v880
  %v1062 = vunpack.c.l.bf16 %v881
  %v1063 = vunpack.c.h.bf16 %v881
  %v1064 = vunpack.c.l.bf16 %v882
  %v1065 = vunpack.c.h.bf16 %v882
  %v1066 = vunpack.c.l.bf16 %v883
  %v1067 = vunpack.c.h.bf16 %v883
  %v1068 = vunpack.c.l.bf16 %v884
  %v1069 = vunpack.c.h.bf16 %v884
  %v1070 = vunpack.c.l.bf16 %v885
  %v1071 = vunpack.c.h.bf16 %v885
  %v1072 = vunpack.c.l.bf16 %v886
  %v1073 = vunpack.c.h.bf16 %v886
  %v1074 = vunpack.c.l.bf16 %v887
  %v1075 = vunpack.c.h.bf16 %v887
  %v1076 = vunpack.c.l.bf16 %v888
  %v1077 = vunpack.c.h.bf16 %v888
  %v1078 = vunpack.c.l.bf16 %v889
  %v1079 = vunpack.c.h.bf16 %v889
  %v1080 = vunpack.c.l.bf16 %v890
  %v1081 = vunpack.c.h.bf16 %v890
  %v1082 = vunpack.c.l.bf16 %v891
  %v1083 = vunpack.c.h.bf16 %v891
  %v1084 = vunpack.c.l.bf16 %v892
  %v1085 = vunpack.c.h.bf16 %v892
  %v1086 = vunpack.c.l.bf16 %v893
  %v1087 = vunpack.c.h.bf16 %v893
  %v1088 = vunpack.c.l.bf16 %v894
  %v1089 = vunpack.c.h.bf16 %v894
  %v1090 = vunpack.c.l.bf16 %v895
  %v1091 = vunpack.c.h.bf16 %v895
  %v1092 = vunpack.c.l.bf16 %v896
  %v1093 = vunpack.c.h.bf16 %v896
  %v1094 = vunpack.c.l.bf16 %v897
  %v1095 = vunpack.c.h.bf16 %v897
  %v1096 = vunpack.c.l.bf16 %v898
  %v1097 = vunpack.c.h.bf16 %v898
  %v1098 = vunpack.c.l.bf16 %v899
  %v1099 = vunpack.c.h.bf16 %v899
  %v1100 = vunpack.c.l.bf16 %v900
  %v1101 = vunpack.c.h.bf16 %v900
  %v1102 = vunpack.c.l.bf16 %v901
  %v1103 = vunpack.c.h.bf16 %v901
  %v1104 = vunpack.c.l.bf16 %v902
  %v1105 = vunpack.c.h.bf16 %v902
  %v1106 = vunpack.c.l.bf16 %v903
  %v1107 = vunpack.c.h.bf16 %v903
  %v1108 = vunpack.c.l.bf16 %v904
  %v1109 = vunpack.c.h.bf16 %v904
  %v1110 = vunpack.c.l.bf16 %v905
  %v1111 = vunpack.c.h.bf16 %v905
  %v1112 = vunpack.c.l.bf16 %v906
  %v1113 = vunpack.c.h.bf16 %v906
  %v1114 = vunpack.c.l.bf16 %v907
  %v1115 = vunpack.c.h.bf16 %v907
  %v1116 = vunpack.c.l.bf16 %v908
  %v1117 = vunpack.c.h.bf16 %v908
  %v1118 = vunpack.c.l.bf16 %v909
  %v1119 = vunpack.c.h.bf16 %v909
  %v1120 = vunpack.c.l.bf16 %v910
  %v1121 = vunpack.c.h.bf16 %v910
  %v1122 = vunpack.c.l.bf16 %v911
  %v1123 = vunpack.c.h.bf16 %v911
  %v1124 = vunpack.c.l.bf16 %v912
  %v1125 = vunpack.c.h.bf16 %v912
  %v1126 = vunpack.c.l.bf16 %v913
  %v1127 = vunpack.c.h.bf16 %v913
  %v1128 = vunpack.c.l.bf16 %v914
  %v1129 = vunpack.c.h.bf16 %v914
  %v1130 = vunpack.c.l.bf16 %v915
  %v1131 = vunpack.c.h.bf16 %v915
  %v1132 = vunpack.c.l.bf16 %v916
  %v1133 = vunpack.c.h.bf16 %v916
  %v1134 = vunpack.c.l.bf16 %v917
  %v1135 = vunpack.c.h.bf16 %v917
  %v1136 = vunpack.c.l.bf16 %v918
  %v1137 = vunpack.c.h.bf16 %v918
  %v1138 = vunpack.c.l.bf16 %v919
  %v1139 = vunpack.c.h.bf16 %v919
  %v1140 = vunpack.c.l.bf16 %v920
  %v1141 = vunpack.c.h.bf16 %v920
  %v1142 = vunpack.c.l.bf16 %v921
  %v1143 = vunpack.c.h.bf16 %v921
  %v1144 = vunpack.c.l.bf16 %v922
  %v1145 = vunpack.c.h.bf16 %v922
  %v1146 = vunpack.c.l.bf16 %v923
  %v1147 = vunpack.c.h.bf16 %v923
  %v1148 = vunpack.c.l.bf16 %v924
  %v1149 = vunpack.c.h.bf16 %v924
  %v1150 = vunpack.c.l.bf16 %v925
  %v1151 = vunpack.c.h.bf16 %v925
  %v1152 = vunpack.c.l.bf16 %v926
  %v1153 = vunpack.c.h.bf16 %v926
  %v1154 = vunpack.c.l.bf16 %v927
  %v1155 = vunpack.c.h.bf16 %v927
  %v1156 = vunpack.c.l.bf16 %v928
  %v1157 = vunpack.c.h.bf16 %v928
  %v1158 = vunpack.c.l.bf16 %v929
  %v1159 = vunpack.c.h.bf16 %v929
  %v1160 = vunpack.c.l.bf16 %v930
  %v1161 = vunpack.c.h.bf16 %v930
  %v1162 = vunpack.c.l.bf16 %v931
  %v1163 = vunpack.c.h.bf16 %v931
  %v1164 = vunpack.c.l.bf16 %v932
  %v1165 = vunpack.c.h.bf16 %v932
  %v1166 = vunpack.c.l.bf16 %v933
  %v1167 = vunpack.c.h.bf16 %v933
  %v1168 = vunpack.c.l.bf16 %v934
  %v1169 = vunpack.c.h.bf16 %v934
  %v1170 = vunpack.c.l.bf16 %v935
  %v1171 = vunpack.c.h.bf16 %v935
  %v1172 = vunpack.c.l.bf16 %v936
  %v1173 = vunpack.c.h.bf16 %v936
  %v1174 = vunpack.c.l.bf16 %v937
  %v1175 = vunpack.c.h.bf16 %v937
  %v1176 = vunpack.c.l.bf16 %v938
  %v1177 = vunpack.c.h.bf16 %v938
  %v1178 = vunpack.c.l.bf16 %v939
  %v1179 = vunpack.c.h.bf16 %v939
  %v1180 = vunpack.c.l.bf16 %v940
  %v1181 = vunpack.c.h.bf16 %v940
  %v1182 = vunpack.c.l.bf16 %v941
  %v1183 = vunpack.c.h.bf16 %v941
  %v1184 = vunpack.c.l.bf16 %v942
  %v1185 = vunpack.c.h.bf16 %v942
  %v1186 = vunpack.c.l.bf16 %v943
  %v1187 = vunpack.c.h.bf16 %v943
  %v1188 = vunpack.c.l.bf16 %v944
  %v1189 = vunpack.c.h.bf16 %v944
  %v1190 = vunpack.c.l.bf16 %v945
  %v1191 = vunpack.c.h.bf16 %v945
  %v1192 = vunpack.c.l.bf16 %v946
  %v1193 = vunpack.c.h.bf16 %v946
  %v1194 = vunpack.c.l.bf16 %v947
  %v1195 = vunpack.c.h.bf16 %v947
  %v1196 = vunpack.c.l.bf16 %v948
  %v1197 = vunpack.c.h.bf16 %v948
  %v1198 = vunpack.c.l.bf16 %v949
  %v1199 = vunpack.c.h.bf16 %v949
  %v1200 = vunpack.c.l.bf16 %v950
  %v1201 = vunpack.c.h.bf16 %v950
  %v1202 = vunpack.c.l.bf16 %v951
  %v1203 = vunpack.c.h.bf16 %v951
  %v1204 = vunpack.c.l.bf16 %v952
  %v1205 = vunpack.c.h.bf16 %v952
  %v1206 = vunpack.c.l.bf16 %v953
  %v1207 = vunpack.c.h.bf16 %v953
  %v1208 = vunpack.c.l.bf16 %v954
  %v1209 = vunpack.c.h.bf16 %v954
  %v1210 = vunpack.c.l.bf16 %v955
  %v1211 = vunpack.c.h.bf16 %v955
  %vm1212 = vcmask 539648
  %v1214 = vsel %vm1212, %v959, 0
  %v1217 = vsel %vm1212, %v963, 0
  %v1220 = vsel %vm1212, %v967, 0
  %v1223 = vsel %vm1212, %v971, 0
  %v1226 = vsel %vm1212, %v975, 0
  %v1229 = vsel %vm1212, %v979, 0
  %v1232 = vsel %vm1212, %v983, 0
  %v1235 = vsel %vm1212, %v987, 0
  %v1238 = vsel %vm1212, %v991, 0
  %v1241 = vsel %vm1212, %v995, 0
  %v1244 = vsel %vm1212, %v999, 0
  %v1247 = vsel %vm1212, %v1003, 0
  %v1250 = vsel %vm1212, %v1007, 0
  %v1253 = vsel %vm1212, %v1011, 0
  %v1256 = vsel %vm1212, %v1015, 0
  %v1259 = vsel %vm1212, %v1019, 0
  %v1262 = vsel %vm1212, %v1023, 0
  %v1265 = vsel %vm1212, %v1027, 0
  %v1268 = vsel %vm1212, %v1031, 0
  %v1271 = vsel %vm1212, %v1035, 0
  %v1274 = vsel %vm1212, %v1039, 0
  %v1277 = vsel %vm1212, %v1043, 0
  %v1280 = vsel %vm1212, %v1047, 0
  %v1283 = vsel %vm1212, %v1051, 0
  %v1286 = vsel %vm1212, %v1055, 0
  %v1289 = vsel %vm1212, %v1059, 0
  %v1292 = vsel %vm1212, %v1063, 0
  %v1295 = vsel %vm1212, %v1067, 0
  %v1298 = vsel %vm1212, %v1071, 0
  %v1301 = vsel %vm1212, %v1075, 0
  %v1304 = vsel %vm1212, %v1079, 0
  %v1307 = vsel %vm1212, %v1083, 0
  %v1310 = vsel %vm1212, %v1087, 0
  %v1313 = vsel %vm1212, %v1091, 0
  %v1316 = vsel %vm1212, %v1095, 0
  %v1319 = vsel %vm1212, %v1099, 0
  %v1322 = vsel %vm1212, %v1103, 0
  %v1325 = vsel %vm1212, %v1107, 0
  %v1328 = vsel %vm1212, %v1111, 0
  %v1331 = vsel %vm1212, %v1115, 0
  %v1334 = vsel %vm1212, %v1119, 0
  %v1337 = vsel %vm1212, %v1123, 0
  %v1340 = vsel %vm1212, %v1127, 0
  %v1343 = vsel %vm1212, %v1131, 0
  %v1346 = vsel %vm1212, %v1135, 0
  %v1349 = vsel %vm1212, %v1139, 0
  %v1352 = vsel %vm1212, %v1143, 0
  %v1355 = vsel %vm1212, %v1147, 0
  %v1358 = vsel %vm1212, %v1151, 0
  %v1361 = vsel %vm1212, %v1155, 0
  %v1364 = vsel %vm1212, %v1159, 0
  %v1367 = vsel %vm1212, %v1163, 0
  %v1370 = vsel %vm1212, %v1167, 0
  %v1373 = vsel %vm1212, %v1171, 0
  %v1376 = vsel %vm1212, %v1175, 0
  %v1379 = vsel %vm1212, %v1179, 0
  %v1382 = vsel %vm1212, %v1183, 0
  %v1385 = vsel %vm1212, %v1187, 0
  %v1388 = vsel %vm1212, %v1191, 0
  %v1391 = vsel %vm1212, %v1195, 0
  %v1394 = vsel %vm1212, %v1199, 0
  %v1397 = vsel %vm1212, %v1203, 0
  %v1400 = vsel %vm1212, %v1207, 0
  %v1403 = vsel %vm1212, %v1211, 0
  %vm1405 = vcmask 1041408
  %v1407 = vsel %vm1405, %v827, 0
  %1409 = vmatprep.subr.mxu0 0.0
  %1410 = vmatpush1.msra.mxu0 %v786
  %1411 = vmatprep.subr.mxu0 0.0
  %1412 = vmatpush1.msra.mxu0 %v785
  %1413 = vmatprep.subr.mxu0 0.0
  %1414 = vmatpush1.msra.mxu0 %v784
  %1415 = vmatprep.subr.mxu0 0.0
  %1416 = vmatpush1.msra.mxu0 %v783
  %1417 = vmatprep.subr.mxu0 0.0
  %1418 = vmatpush1.msra.mxu0 %v782
  %1419 = vmatprep.subr.mxu0 0.0
  %1420 = vmatpush1.msra.mxu0 %v781
  %1421 = vmatprep.subr.mxu0 0.0
  %1422 = vmatpush1.msra.mxu0 %v780
  %1423 = vmatprep.subr.mxu0 0.0
  %1424 = vmatpush1.msra.mxu0 %v779
  %1425 = vmatprep.subr.mxu0 0.0
  %1426 = vmatpush1.msra.mxu0 %v778
  %1427 = vmatprep.subr.mxu0 0.0
  %1428 = vmatpush1.msra.mxu0 %v777
  %1429 = vmatprep.subr.mxu0 0.0
  %1430 = vmatpush1.msra.mxu0 %v776
  %1431 = vmatprep.subr.mxu0 0.0
  %1432 = vmatpush1.msra.mxu0 %v775
  %1433 = vmatprep.subr.mxu0 0.0
  %1434 = vmatpush1.msra.mxu0 %v774
  %1435 = vmatprep.subr.mxu0 0.0
  %1436 = vmatpush1.msra.mxu0 %v773
  %1437 = vmatprep.subr.mxu0 0.0
  %1438 = vmatpush1.msra.mxu0 %v772
  %1439 = vmatprep.subr.mxu0 0.0
  %1440 = vmatpush1.msra.mxu0 %v771
  %1441 = vmatprep.subr.mxu0 0.0
  %1442 = vmatpush2.msra.mxu0 %v802
  %1443 = vmatprep.subr.mxu0 0.0
  %1444 = vmatpush2.msra.mxu0 %v801
  %1445 = vmatprep.subr.mxu0 0.0
  %1446 = vmatpush2.msra.mxu0 %v800
  %1447 = vmatprep.subr.mxu0 0.0
  %1448 = vmatpush2.msra.mxu0 %v799
  %1449 = vmatprep.subr.mxu0 0.0
  %1450 = vmatpush2.msra.mxu0 %v798
  %1451 = vmatprep.subr.mxu0 0.0
  %1452 = vmatpush2.msra.mxu0 %v797
  %1453 = vmatprep.subr.mxu0 0.0
  %1454 = vmatpush2.msra.mxu0 %v796
  %1455 = vmatprep.subr.mxu0 0.0
  %1456 = vmatpush2.msra.mxu0 %v795
  %1457 = vmatprep.subr.mxu0 0.0
  %1458 = vmatpush2.msra.mxu0 %v794
  %1459 = vmatprep.subr.mxu0 0.0
  %1460 = vmatpush2.msra.mxu0 %v793
  %1461 = vmatprep.subr.mxu0 0.0
  %1462 = vmatpush2.msra.mxu0 %v792
  %1463 = vmatprep.subr.mxu0 0.0
  %1464 = vmatpush2.msra.mxu0 %v791
  %1465 = vmatprep.subr.mxu0 0.0
  %1466 = vmatpush2.msra.mxu0 %v790
  %1467 = vmatprep.subr.mxu0 0.0
  %1468 = vmatpush2.msra.mxu0 %v789
  %1469 = vmatprep.subr.mxu0 0.0
  %1470 = vmatpush2.msra.mxu0 %v788
  %1471 = vmatprep.subr.mxu0 0.0
  %1472 = vmatpush2.msra.mxu0 %v787
  %1473 = vmatprep.mubr.f32.mxu0 %v957
  %1474 = vmatmul.mubr.f32.gmra.mxu0 %v956
  %v1475 = vpop.f32.mrf.mxu0
  %v1476 = vadd.f32 0.0, %v1475
  %v1477 = vpop.f32.mrf.mxu0
  %1478 = vmatprep.mubr.f32.mxu0 %v961
  %1479 = vmatmul.mubr.f32.gmra.mxu0 %v960
  %v1480 = vpop.f32.mrf.mxu0
  %v1481 = vadd.f32 0.0, %v1480
  %v1482 = vpop.f32.mrf.mxu0
  %1483 = vmatprep.mubr.f32.mxu0 %v965
  %1484 = vmatmul.mubr.f32.gmra.mxu0 %v964
  %v1485 = vpop.f32.mrf.mxu0
  %v1486 = vadd.f32 0.0, %v1485
  %v1487 = vpop.f32.mrf.mxu0
  %1488 = vmatprep.mubr.f32.mxu0 %v969
  %1489 = vmatmul.mubr.f32.gmra.mxu0 %v968
  %v1490 = vpop.f32.mrf.mxu0
  %v1491 = vadd.f32 0.0, %v1490
  %v1492 = vpop.f32.mrf.mxu0
  %1493 = vmatprep.mubr.f32.mxu0 %v973
  %1494 = vmatmul.mubr.f32.gmra.mxu0 %v972
  %v1495 = vpop.f32.mrf.mxu0
  %v1496 = vadd.f32 0.0, %v1495
  %v1497 = vpop.f32.mrf.mxu0
  %1498 = vmatprep.mubr.f32.mxu0 %v977
  %1499 = vmatmul.mubr.f32.gmra.mxu0 %v976
  %v1500 = vpop.f32.mrf.mxu0
  %v1501 = vadd.f32 0.0, %v1500
  %v1502 = vpop.f32.mrf.mxu0
  %1503 = vmatprep.mubr.f32.mxu0 %v981
  %1504 = vmatmul.mubr.f32.gmra.mxu0 %v980
  %v1505 = vpop.f32.mrf.mxu0
  %v1506 = vadd.f32 0.0, %v1505
  %v1507 = vpop.f32.mrf.mxu0
  %1508 = vmatprep.mubr.f32.mxu0 %v985
  %1509 = vmatmul.mubr.f32.gmra.mxu0 %v984
  %v1510 = vpop.f32.mrf.mxu0
  %v1511 = vadd.f32 0.0, %v1510
  %v1512 = vpop.f32.mrf.mxu0
  %1513 = vmatprep.mubr.f32.mxu0 %v989
  %1514 = vmatmul.mubr.f32.gmra.mxu0 %v988
  %v1515 = vpop.f32.mrf.mxu0
  %v1516 = vadd.f32 0.0, %v1515
  %v1517 = vpop.f32.mrf.mxu0
  %1518 = vmatprep.mubr.f32.mxu0 %v993
  %1519 = vmatmul.mubr.f32.gmra.mxu0 %v992
  %v1520 = vpop.f32.mrf.mxu0
  %v1521 = vadd.f32 0.0, %v1520
  %v1522 = vpop.f32.mrf.mxu0
  %1523 = vmatprep.mubr.f32.mxu0 %v997
  %1524 = vmatmul.mubr.f32.gmra.mxu0 %v996
  %v1525 = vpop.f32.mrf.mxu0
  %v1526 = vadd.f32 0.0, %v1525
  %v1527 = vpop.f32.mrf.mxu0
  %1528 = vmatprep.mubr.f32.mxu0 %v1001
  %1529 = vmatmul.mubr.f32.gmra.mxu0 %v1000
  %v1530 = vpop.f32.mrf.mxu0
  %v1531 = vadd.f32 0.0, %v1530
  %v1532 = vpop.f32.mrf.mxu0
  %1533 = vmatprep.mubr.f32.mxu0 %v1005
  %1534 = vmatmul.mubr.f32.gmra.mxu0 %v1004
  %v1535 = vpop.f32.mrf.mxu0
  %v1536 = vadd.f32 0.0, %v1535
  %v1537 = vpop.f32.mrf.mxu0
  %1538 = vmatprep.mubr.f32.mxu0 %v1009
  %1539 = vmatmul.mubr.f32.gmra.mxu0 %v1008
  %v1540 = vpop.f32.mrf.mxu0
  %v1541 = vadd.f32 0.0, %v1540
  %v1542 = vpop.f32.mrf.mxu0
  %1543 = vmatprep.mubr.f32.mxu0 %v1013
  %1544 = vmatmul.mubr.f32.gmra.mxu0 %v1012
  %v1545 = vpop.f32.mrf.mxu0
  %v1546 = vadd.f32 0.0, %v1545
  %v1547 = vpop.f32.mrf.mxu0
  %1548 = vmatprep.mubr.f32.mxu0 %v1017
  %1549 = vmatmul.mubr.f32.gmra.mxu0 %v1016
  %v1550 = vpop.f32.mrf.mxu0
  %v1551 = vadd.f32 0.0, %v1550
  %v1552 = vpop.f32.mrf.mxu0
  %1553 = vmatprep.mubr.f32.mxu0 %v1021
  %1554 = vmatmul.mubr.f32.gmra.mxu0 %v1020
  %v1555 = vpop.f32.mrf.mxu0
  %v1556 = vadd.f32 0.0, %v1555
  %v1557 = vpop.f32.mrf.mxu0
  %1558 = vmatprep.mubr.f32.mxu0 %v1025
  %1559 = vmatmul.mubr.f32.gmra.mxu0 %v1024
  %v1560 = vpop.f32.mrf.mxu0
  %v1561 = vadd.f32 0.0, %v1560
  %v1562 = vpop.f32.mrf.mxu0
  %1563 = vmatprep.mubr.f32.mxu0 %v1029
  %1564 = vmatmul.mubr.f32.gmra.mxu0 %v1028
  %v1565 = vpop.f32.mrf.mxu0
  %v1566 = vadd.f32 0.0, %v1565
  %v1567 = vpop.f32.mrf.mxu0
  %1568 = vmatprep.mubr.f32.mxu0 %v1033
  %1569 = vmatmul.mubr.f32.gmra.mxu0 %v1032
  %v1570 = vpop.f32.mrf.mxu0
  %v1571 = vadd.f32 0.0, %v1570
  %v1572 = vpop.f32.mrf.mxu0
  %1573 = vmatprep.mubr.f32.mxu0 %v1037
  %1574 = vmatmul.mubr.f32.gmra.mxu0 %v1036
  %v1575 = vpop.f32.mrf.mxu0
  %v1576 = vadd.f32 0.0, %v1575
  %v1577 = vpop.f32.mrf.mxu0
  %1578 = vmatprep.mubr.f32.mxu0 %v1041
  %1579 = vmatmul.mubr.f32.gmra.mxu0 %v1040
  %v1580 = vpop.f32.mrf.mxu0
  %v1581 = vadd.f32 0.0, %v1580
  %v1582 = vpop.f32.mrf.mxu0
  %1583 = vmatprep.mubr.f32.mxu0 %v1045
  %1584 = vmatmul.mubr.f32.gmra.mxu0 %v1044
  %v1585 = vpop.f32.mrf.mxu0
  %v1586 = vadd.f32 0.0, %v1585
  %v1587 = vpop.f32.mrf.mxu0
  %1588 = vmatprep.mubr.f32.mxu0 %v1049
  %1589 = vmatmul.mubr.f32.gmra.mxu0 %v1048
  %v1590 = vpop.f32.mrf.mxu0
  %v1591 = vadd.f32 0.0, %v1590
  %v1592 = vpop.f32.mrf.mxu0
  %1593 = vmatprep.mubr.f32.mxu0 %v1053
  %1594 = vmatmul.mubr.f32.gmra.mxu0 %v1052
  %v1595 = vpop.f32.mrf.mxu0
  %v1596 = vadd.f32 0.0, %v1595
  %v1597 = vpop.f32.mrf.mxu0
  %1598 = vmatprep.mubr.f32.mxu0 %v1057
  %1599 = vmatmul.mubr.f32.gmra.mxu0 %v1056
  %v1600 = vpop.f32.mrf.mxu0
  %v1601 = vadd.f32 0.0, %v1600
  %v1602 = vpop.f32.mrf.mxu0
  %1603 = vmatprep.mubr.f32.mxu0 %v1061
  %1604 = vmatmul.mubr.f32.gmra.mxu0 %v1060
  %v1605 = vpop.f32.mrf.mxu0
  %v1606 = vadd.f32 0.0, %v1605
  %v1607 = vpop.f32.mrf.mxu0
  %1608 = vmatprep.mubr.f32.mxu0 %v1065
  %1609 = vmatmul.mubr.f32.gmra.mxu0 %v1064
  %v1610 = vpop.f32.mrf.mxu0
  %v1611 = vadd.f32 0.0, %v1610
  %v1612 = vpop.f32.mrf.mxu0
  %1613 = vmatprep.mubr.f32.mxu0 %v1069
  %1614 = vmatmul.mubr.f32.gmra.mxu0 %v1068
  %v1615 = vpop.f32.mrf.mxu0
  %v1616 = vadd.f32 0.0, %v1615
  %v1617 = vpop.f32.mrf.mxu0
  %1618 = vmatprep.mubr.f32.mxu0 %v1073
  %1619 = vmatmul.mubr.f32.gmra.mxu0 %v1072
  %v1620 = vpop.f32.mrf.mxu0
  %v1621 = vadd.f32 0.0, %v1620
  %v1622 = vpop.f32.mrf.mxu0
  %1623 = vmatprep.mubr.f32.mxu0 %v1077
  %1624 = vmatmul.mubr.f32.gmra.mxu0 %v1076
  %v1625 = vpop.f32.mrf.mxu0
  %v1626 = vadd.f32 0.0, %v1625
  %v1627 = vpop.f32.mrf.mxu0
  %1628 = vmatprep.mubr.f32.mxu0 %v1081
  %1629 = vmatmul.mubr.f32.gmra.mxu0 %v1080
  %v1630 = vpop.f32.mrf.mxu0
  %v1631 = vadd.f32 0.0, %v1630
  %v1632 = vpop.f32.mrf.mxu0
  %1633 = vmatprep.mubr.f32.mxu0 %v1085
  %1634 = vmatmul.mubr.f32.gmra.mxu0 %v1084
  %v1635 = vpop.f32.mrf.mxu0
  %v1636 = vadd.f32 0.0, %v1635
  %v1637 = vpop.f32.mrf.mxu0
  %1638 = vmatprep.mubr.f32.mxu0 %v1089
  %1639 = vmatmul.mubr.f32.gmra.mxu0 %v1088
  %v1640 = vpop.f32.mrf.mxu0
  %v1641 = vadd.f32 0.0, %v1640
  %v1642 = vpop.f32.mrf.mxu0
  %1643 = vmatprep.mubr.f32.mxu0 %v1093
  %1644 = vmatmul.mubr.f32.gmra.mxu0 %v1092
  %v1645 = vpop.f32.mrf.mxu0
  %v1646 = vadd.f32 0.0, %v1645
  %v1647 = vpop.f32.mrf.mxu0
  %1648 = vmatprep.mubr.f32.mxu0 %v1097
  %1649 = vmatmul.mubr.f32.gmra.mxu0 %v1096
  %v1650 = vpop.f32.mrf.mxu0
  %v1651 = vadd.f32 0.0, %v1650
  %v1652 = vpop.f32.mrf.mxu0
  %1653 = vmatprep.mubr.f32.mxu0 %v1101
  %1654 = vmatmul.mubr.f32.gmra.mxu0 %v1100
  %v1655 = vpop.f32.mrf.mxu0
  %v1656 = vadd.f32 0.0, %v1655
  %v1657 = vpop.f32.mrf.mxu0
  %1658 = vmatprep.mubr.f32.mxu0 %v1105
  %1659 = vmatmul.mubr.f32.gmra.mxu0 %v1104
  %v1660 = vpop.f32.mrf.mxu0
  %v1661 = vadd.f32 0.0, %v1660
  %v1662 = vpop.f32.mrf.mxu0
  %1663 = vmatprep.mubr.f32.mxu0 %v1109
  %1664 = vmatmul.mubr.f32.gmra.mxu0 %v1108
  %v1665 = vpop.f32.mrf.mxu0
  %v1666 = vadd.f32 0.0, %v1665
  %v1667 = vpop.f32.mrf.mxu0
  %1668 = vmatprep.mubr.f32.mxu0 %v1113
  %1669 = vmatmul.mubr.f32.gmra.mxu0 %v1112
  %v1670 = vpop.f32.mrf.mxu0
  %v1671 = vadd.f32 0.0, %v1670
  %v1672 = vpop.f32.mrf.mxu0
  %1673 = vmatprep.mubr.f32.mxu0 %v1117
  %1674 = vmatmul.mubr.f32.gmra.mxu0 %v1116
  %v1675 = vpop.f32.mrf.mxu0
  %v1676 = vadd.f32 0.0, %v1675
  %v1677 = vpop.f32.mrf.mxu0
  %1678 = vmatprep.mubr.f32.mxu0 %v1121
  %1679 = vmatmul.mubr.f32.gmra.mxu0 %v1120
  %v1680 = vpop.f32.mrf.mxu0
  %v1681 = vadd.f32 0.0, %v1680
  %v1682 = vpop.f32.mrf.mxu0
  %1683 = vmatprep.mubr.f32.mxu0 %v1125
  %1684 = vmatmul.mubr.f32.gmra.mxu0 %v1124
  %v1685 = vpop.f32.mrf.mxu0
  %v1686 = vadd.f32 0.0, %v1685
  %v1687 = vpop.f32.mrf.mxu0
  %1688 = vmatprep.mubr.f32.mxu0 %v1129
  %1689 = vmatmul.mubr.f32.gmra.mxu0 %v1128
  %v1690 = vpop.f32.mrf.mxu0
  %v1691 = vadd.f32 0.0, %v1690
  %v1692 = vpop.f32.mrf.mxu0
  %1693 = vmatprep.mubr.f32.mxu0 %v1133
  %1694 = vmatmul.mubr.f32.gmra.mxu0 %v1132
  %v1695 = vpop.f32.mrf.mxu0
  %v1696 = vadd.f32 0.0, %v1695
  %v1697 = vpop.f32.mrf.mxu0
  %1698 = vmatprep.mubr.f32.mxu0 %v1137
  %1699 = vmatmul.mubr.f32.gmra.mxu0 %v1136
  %v1700 = vpop.f32.mrf.mxu0
  %v1701 = vadd.f32 0.0, %v1700
  %v1702 = vpop.f32.mrf.mxu0
  %1703 = vmatprep.mubr.f32.mxu0 %v1141
  %1704 = vmatmul.mubr.f32.gmra.mxu0 %v1140
  %v1705 = vpop.f32.mrf.mxu0
  %v1706 = vadd.f32 0.0, %v1705
  %v1707 = vpop.f32.mrf.mxu0
  %1708 = vmatprep.mubr.f32.mxu0 %v1145
  %1709 = vmatmul.mubr.f32.gmra.mxu0 %v1144
  %v1710 = vpop.f32.mrf.mxu0
  %v1711 = vadd.f32 0.0, %v1710
  %v1712 = vpop.f32.mrf.mxu0
  %1713 = vmatprep.mubr.f32.mxu0 %v1149
  %1714 = vmatmul.mubr.f32.gmra.mxu0 %v1148
  %v1715 = vpop.f32.mrf.mxu0
  %v1716 = vadd.f32 0.0, %v1715
  %v1717 = vpop.f32.mrf.mxu0
  %1718 = vmatprep.mubr.f32.mxu0 %v1153
  %1719 = vmatmul.mubr.f32.gmra.mxu0 %v1152
  %v1720 = vpop.f32.mrf.mxu0
  %v1721 = vadd.f32 0.0, %v1720
  %v1722 = vpop.f32.mrf.mxu0
  %1723 = vmatprep.mubr.f32.mxu0 %v1157
  %1724 = vmatmul.mubr.f32.gmra.mxu0 %v1156
  %v1725 = vpop.f32.mrf.mxu0
  %v1726 = vadd.f32 0.0, %v1725
  %v1727 = vpop.f32.mrf.mxu0
  %1728 = vmatprep.mubr.f32.mxu0 %v1161
  %1729 = vmatmul.mubr.f32.gmra.mxu0 %v1160
  %v1730 = vpop.f32.mrf.mxu0
  %v1731 = vadd.f32 0.0, %v1730
  %v1732 = vpop.f32.mrf.mxu0
  %1733 = vmatprep.mubr.f32.mxu0 %v1165
  %1734 = vmatmul.mubr.f32.gmra.mxu0 %v1164
  %v1735 = vpop.f32.mrf.mxu0
  %v1736 = vadd.f32 0.0, %v1735
  %v1737 = vpop.f32.mrf.mxu0
  %1738 = vmatprep.mubr.f32.mxu0 %v1169
  %1739 = vmatmul.mubr.f32.gmra.mxu0 %v1168
  %v1740 = vpop.f32.mrf.mxu0
  %v1741 = vadd.f32 0.0, %v1740
  %v1742 = vpop.f32.mrf.mxu0
  %1743 = vmatprep.mubr.f32.mxu0 %v1173
  %1744 = vmatmul.mubr.f32.gmra.mxu0 %v1172
  %v1745 = vpop.f32.mrf.mxu0
  %v1746 = vadd.f32 0.0, %v1745
  %v1747 = vpop.f32.mrf.mxu0
  %1748 = vmatprep.mubr.f32.mxu0 %v1177
  %1749 = vmatmul.mubr.f32.gmra.mxu0 %v1176
  %v1750 = vpop.f32.mrf.mxu0
  %v1751 = vadd.f32 0.0, %v1750
  %v1752 = vpop.f32.mrf.mxu0
  %1753 = vmatprep.mubr.f32.mxu0 %v1181
  %1754 = vmatmul.mubr.f32.gmra.mxu0 %v1180
  %v1755 = vpop.f32.mrf.mxu0
  %v1756 = vadd.f32 0.0, %v1755
  %v1757 = vpop.f32.mrf.mxu0
  %1758 = vmatprep.mubr.f32.mxu0 %v1185
  %1759 = vmatmul.mubr.f32.gmra.mxu0 %v1184
  %v1760 = vpop.f32.mrf.mxu0
  %v1761 = vadd.f32 0.0, %v1760
  %v1762 = vpop.f32.mrf.mxu0
  %1763 = vmatprep.mubr.f32.mxu0 %v1189
  %1764 = vmatmul.mubr.f32.gmra.mxu0 %v1188
  %v1765 = vpop.f32.mrf.mxu0
  %v1766 = vadd.f32 0.0, %v1765
  %v1767 = vpop.f32.mrf.mxu0
  %1768 = vmatprep.mubr.f32.mxu0 %v1193
  %1769 = vmatmul.mubr.f32.gmra.mxu0 %v1192
  %v1770 = vpop.f32.mrf.mxu0
  %v1771 = vadd.f32 0.0, %v1770
  %v1772 = vpop.f32.mrf.mxu0
  %1773 = vmatprep.mubr.f32.mxu0 %v1197
  %1774 = vmatmul.mubr.f32.gmra.mxu0 %v1196
  %v1775 = vpop.f32.mrf.mxu0
  %v1776 = vadd.f32 0.0, %v1775
  %v1777 = vpop.f32.mrf.mxu0
  %1778 = vmatprep.mubr.f32.mxu0 %v1201
  %1779 = vmatmul.mubr.f32.gmra.mxu0 %v1200
  %v1780 = vpop.f32.mrf.mxu0
  %v1781 = vadd.f32 0.0, %v1780
  %v1782 = vpop.f32.mrf.mxu0
  %1783 = vmatprep.mubr.f32.mxu0 %v1205
  %1784 = vmatmul.mubr.f32.gmra.mxu0 %v1204
  %v1785 = vpop.f32.mrf.mxu0
  %v1786 = vadd.f32 0.0, %v1785
  %v1787 = vpop.f32.mrf.mxu0
  %1788 = vmatprep.mubr.f32.mxu0 %v1209
  %1789 = vmatmul.mubr.f32.gmra.mxu0 %v1208
  %v1790 = vpop.f32.mrf.mxu0
  %v1791 = vadd.f32 0.0, %v1790
  %v1792 = vpop.f32.mrf.mxu0
  %1793 = vdwg.mxu0
  %1794 = vmatprep.subr.mxu0 0.0
  %1795 = vmatpush1.msra.mxu0 %v818
  %1796 = vmatprep.subr.mxu0 0.0
  %1797 = vmatpush1.msra.mxu0 %v817
  %1798 = vmatprep.subr.mxu0 0.0
  %1799 = vmatpush1.msra.mxu0 %v816
  %1800 = vmatprep.subr.mxu0 0.0
  %1801 = vmatpush1.msra.mxu0 %v815
  %1802 = vmatprep.subr.mxu0 0.0
  %1803 = vmatpush1.msra.mxu0 %v814
  %1804 = vmatprep.subr.mxu0 0.0
  %1805 = vmatpush1.msra.mxu0 %v813
  %1806 = vmatprep.subr.mxu0 0.0
  %1807 = vmatpush1.msra.mxu0 %v812
  %1808 = vmatprep.subr.mxu0 0.0
  %1809 = vmatpush1.msra.mxu0 %v811
  %1810 = vmatprep.subr.mxu0 0.0
  %1811 = vmatpush1.msra.mxu0 %v810
  %1812 = vmatprep.subr.mxu0 0.0
  %1813 = vmatpush1.msra.mxu0 %v809
  %1814 = vmatprep.subr.mxu0 0.0
  %1815 = vmatpush1.msra.mxu0 %v808
  %1816 = vmatprep.subr.mxu0 0.0
  %1817 = vmatpush1.msra.mxu0 %v807
  %1818 = vmatprep.subr.mxu0 0.0
  %1819 = vmatpush1.msra.mxu0 %v806
  %1820 = vmatprep.subr.mxu0 0.0
  %1821 = vmatpush1.msra.mxu0 %v805
  %1822 = vmatprep.subr.mxu0 0.0
  %1823 = vmatpush1.msra.mxu0 %v804
  %1824 = vmatprep.subr.mxu0 0.0
  %1825 = vmatpush1.msra.mxu0 %v803
  %1826 = vmatprep.subr.mxu0 0.0
  %1827 = vmatpush2.msra.mxu0 0.0
  %1828 = vmatprep.subr.mxu0 0.0
  %1829 = vmatpush2.msra.mxu0 0.0
  %1830 = vmatprep.subr.mxu0 0.0
  %1831 = vmatpush2.msra.mxu0 0.0
  %1832 = vmatprep.subr.mxu0 0.0
  %1833 = vmatpush2.msra.mxu0 0.0
  %1834 = vmatprep.subr.mxu0 0.0
  %1835 = vmatpush2.msra.mxu0 0.0
  %1836 = vmatprep.subr.mxu0 0.0
  %1837 = vmatpush2.msra.mxu0 0.0
  %1838 = vmatprep.subr.mxu0 0.0
  %1839 = vmatpush2.msra.mxu0 0.0
  %1840 = vmatprep.subr.mxu0 0.0
  %1841 = vmatpush2.msra.mxu0 %v1407
  %1842 = vmatprep.subr.mxu0 0.0
  %1843 = vmatpush2.msra.mxu0 %v826
  %1844 = vmatprep.subr.mxu0 0.0
  %1845 = vmatpush2.msra.mxu0 %v825
  %1846 = vmatprep.subr.mxu0 0.0
  %1847 = vmatpush2.msra.mxu0 %v824
  %1848 = vmatprep.subr.mxu0 0.0
  %1849 = vmatpush2.msra.mxu0 %v823
  %1850 = vmatprep.subr.mxu0 0.0
  %1851 = vmatpush2.msra.mxu0 %v822
  %1852 = vmatprep.subr.mxu0 0.0
  %1853 = vmatpush2.msra.mxu0 %v821
  %1854 = vmatprep.subr.mxu0 0.0
  %1855 = vmatpush2.msra.mxu0 %v820
  %1856 = vmatprep.subr.mxu0 0.0
  %1857 = vmatpush2.msra.mxu0 %v819
  %1858 = vmatprep.mubr.f32.mxu0 %v1214
  %1859 = vmatmul.mubr.f32.gmra.mxu0 %v958
  %v1860 = vpop.f32.mrf.mxu0
  %v1861 = vadd.f32 %v1476, %v1860
  %v1862 = vpop.f32.mrf.mxu0
  %1863 = vmatprep.mubr.f32.mxu0 %v1217
  %1864 = vmatmul.mubr.f32.gmra.mxu0 %v962
  %v1865 = vpop.f32.mrf.mxu0
  %v1866 = vadd.f32 %v1481, %v1865
  %v1867 = vpop.f32.mrf.mxu0
  %1868 = vmatprep.mubr.f32.mxu0 %v1220
  %1869 = vmatmul.mubr.f32.gmra.mxu0 %v966
  %v1870 = vpop.f32.mrf.mxu0
  %v1871 = vadd.f32 %v1486, %v1870
  %v1872 = vpop.f32.mrf.mxu0
  %1873 = vmatprep.mubr.f32.mxu0 %v1223
  %1874 = vmatmul.mubr.f32.gmra.mxu0 %v970
  %v1875 = vpop.f32.mrf.mxu0
  %v1876 = vadd.f32 %v1491, %v1875
  %v1877 = vpop.f32.mrf.mxu0
  %1878 = vmatprep.mubr.f32.mxu0 %v1226
  %1879 = vmatmul.mubr.f32.gmra.mxu0 %v974
  %v1880 = vpop.f32.mrf.mxu0
  %v1881 = vadd.f32 %v1496, %v1880
  %v1882 = vpop.f32.mrf.mxu0
  %1883 = vmatprep.mubr.f32.mxu0 %v1229
  %1884 = vmatmul.mubr.f32.gmra.mxu0 %v978
  %v1885 = vpop.f32.mrf.mxu0
  %v1886 = vadd.f32 %v1501, %v1885
  %v1887 = vpop.f32.mrf.mxu0
  %1888 = vmatprep.mubr.f32.mxu0 %v1232
  %1889 = vmatmul.mubr.f32.gmra.mxu0 %v982
  %v1890 = vpop.f32.mrf.mxu0
  %v1891 = vadd.f32 %v1506, %v1890
  %v1892 = vpop.f32.mrf.mxu0
  %1893 = vmatprep.mubr.f32.mxu0 %v1235
  %1894 = vmatmul.mubr.f32.gmra.mxu0 %v986
  %v1895 = vpop.f32.mrf.mxu0
  %v1896 = vadd.f32 %v1511, %v1895
  %v1897 = vpop.f32.mrf.mxu0
  %1898 = vmatprep.mubr.f32.mxu0 %v1238
  %1899 = vmatmul.mubr.f32.gmra.mxu0 %v990
  %v1900 = vpop.f32.mrf.mxu0
  %v1901 = vadd.f32 %v1516, %v1900
  %v1902 = vpop.f32.mrf.mxu0
  %1903 = vmatprep.mubr.f32.mxu0 %v1241
  %1904 = vmatmul.mubr.f32.gmra.mxu0 %v994
  %v1905 = vpop.f32.mrf.mxu0
  %v1906 = vadd.f32 %v1521, %v1905
  %v1907 = vpop.f32.mrf.mxu0
  %1908 = vmatprep.mubr.f32.mxu0 %v1244
  %1909 = vmatmul.mubr.f32.gmra.mxu0 %v998
  %v1910 = vpop.f32.mrf.mxu0
  %v1911 = vadd.f32 %v1526, %v1910
  %v1912 = vpop.f32.mrf.mxu0
  %1913 = vmatprep.mubr.f32.mxu0 %v1247
  %1914 = vmatmul.mubr.f32.gmra.mxu0 %v1002
  %v1915 = vpop.f32.mrf.mxu0
  %v1916 = vadd.f32 %v1531, %v1915
  %v1917 = vpop.f32.mrf.mxu0
  %1918 = vmatprep.mubr.f32.mxu0 %v1250
  %1919 = vmatmul.mubr.f32.gmra.mxu0 %v1006
  %v1920 = vpop.f32.mrf.mxu0
  %v1921 = vadd.f32 %v1536, %v1920
  %v1922 = vpop.f32.mrf.mxu0
  %1923 = vmatprep.mubr.f32.mxu0 %v1253
  %1924 = vmatmul.mubr.f32.gmra.mxu0 %v1010
  %v1925 = vpop.f32.mrf.mxu0
  %v1926 = vadd.f32 %v1541, %v1925
  %v1927 = vpop.f32.mrf.mxu0
  %1928 = vmatprep.mubr.f32.mxu0 %v1256
  %1929 = vmatmul.mubr.f32.gmra.mxu0 %v1014
  %v1930 = vpop.f32.mrf.mxu0
  %v1931 = vadd.f32 %v1546, %v1930
  %v1932 = vpop.f32.mrf.mxu0
  %1933 = vmatprep.mubr.f32.mxu0 %v1259
  %1934 = vmatmul.mubr.f32.gmra.mxu0 %v1018
  %v1935 = vpop.f32.mrf.mxu0
  %v1936 = vadd.f32 %v1551, %v1935
  %v1937 = vpop.f32.mrf.mxu0
  %1938 = vmatprep.mubr.f32.mxu0 %v1262
  %1939 = vmatmul.mubr.f32.gmra.mxu0 %v1022
  %v1940 = vpop.f32.mrf.mxu0
  %v1941 = vadd.f32 %v1556, %v1940
  %v1942 = vpop.f32.mrf.mxu0
  %1943 = vmatprep.mubr.f32.mxu0 %v1265
  %1944 = vmatmul.mubr.f32.gmra.mxu0 %v1026
  %v1945 = vpop.f32.mrf.mxu0
  %v1946 = vadd.f32 %v1561, %v1945
  %v1947 = vpop.f32.mrf.mxu0
  %1948 = vmatprep.mubr.f32.mxu0 %v1268
  %1949 = vmatmul.mubr.f32.gmra.mxu0 %v1030
  %v1950 = vpop.f32.mrf.mxu0
  %v1951 = vadd.f32 %v1566, %v1950
  %v1952 = vpop.f32.mrf.mxu0
  %1953 = vmatprep.mubr.f32.mxu0 %v1271
  %1954 = vmatmul.mubr.f32.gmra.mxu0 %v1034
  %v1955 = vpop.f32.mrf.mxu0
  %v1956 = vadd.f32 %v1571, %v1955
  %v1957 = vpop.f32.mrf.mxu0
  %1958 = vmatprep.mubr.f32.mxu0 %v1274
  %1959 = vmatmul.mubr.f32.gmra.mxu0 %v1038
  %v1960 = vpop.f32.mrf.mxu0
  %v1961 = vadd.f32 %v1576, %v1960
  %v1962 = vpop.f32.mrf.mxu0
  %1963 = vmatprep.mubr.f32.mxu0 %v1277
  %1964 = vmatmul.mubr.f32.gmra.mxu0 %v1042
  %v1965 = vpop.f32.mrf.mxu0
  %v1966 = vadd.f32 %v1581, %v1965
  %v1967 = vpop.f32.mrf.mxu0
  %1968 = vmatprep.mubr.f32.mxu0 %v1280
  %1969 = vmatmul.mubr.f32.gmra.mxu0 %v1046
  %v1970 = vpop.f32.mrf.mxu0
  %v1971 = vadd.f32 %v1586, %v1970
  %v1972 = vpop.f32.mrf.mxu0
  %1973 = vmatprep.mubr.f32.mxu0 %v1283
  %1974 = vmatmul.mubr.f32.gmra.mxu0 %v1050
  %v1975 = vpop.f32.mrf.mxu0
  %v1976 = vadd.f32 %v1591, %v1975
  %v1977 = vpop.f32.mrf.mxu0
  %1978 = vmatprep.mubr.f32.mxu0 %v1286
  %1979 = vmatmul.mubr.f32.gmra.mxu0 %v1054
  %v1980 = vpop.f32.mrf.mxu0
  %v1981 = vadd.f32 %v1596, %v1980
  %v1982 = vpop.f32.mrf.mxu0
  %1983 = vmatprep.mubr.f32.mxu0 %v1289
  %1984 = vmatmul.mubr.f32.gmra.mxu0 %v1058
  %v1985 = vpop.f32.mrf.mxu0
  %v1986 = vadd.f32 %v1601, %v1985
  %v1987 = vpop.f32.mrf.mxu0
  %1988 = vmatprep.mubr.f32.mxu0 %v1292
  %1989 = vmatmul.mubr.f32.gmra.mxu0 %v1062
  %v1990 = vpop.f32.mrf.mxu0
  %v1991 = vadd.f32 %v1606, %v1990
  %v1992 = vpop.f32.mrf.mxu0
  %1993 = vmatprep.mubr.f32.mxu0 %v1295
  %1994 = vmatmul.mubr.f32.gmra.mxu0 %v1066
  %v1995 = vpop.f32.mrf.mxu0
  %v1996 = vadd.f32 %v1611, %v1995
  %v1997 = vpop.f32.mrf.mxu0
  %1998 = vmatprep.mubr.f32.mxu0 %v1298
  %1999 = vmatmul.mubr.f32.gmra.mxu0 %v1070
  %v2000 = vpop.f32.mrf.mxu0
  %v2001 = vadd.f32 %v1616, %v2000
  %v2002 = vpop.f32.mrf.mxu0
  %2003 = vmatprep.mubr.f32.mxu0 %v1301
  %2004 = vmatmul.mubr.f32.gmra.mxu0 %v1074
  %v2005 = vpop.f32.mrf.mxu0
  %v2006 = vadd.f32 %v1621, %v2005
  %v2007 = vpop.f32.mrf.mxu0
  %2008 = vmatprep.mubr.f32.mxu0 %v1304
  %2009 = vmatmul.mubr.f32.gmra.mxu0 %v1078
  %v2010 = vpop.f32.mrf.mxu0
  %v2011 = vadd.f32 %v1626, %v2010
  %v2012 = vpop.f32.mrf.mxu0
  %2013 = vmatprep.mubr.f32.mxu0 %v1307
  %2014 = vmatmul.mubr.f32.gmra.mxu0 %v1082
  %v2015 = vpop.f32.mrf.mxu0
  %v2016 = vadd.f32 %v1631, %v2015
  %v2017 = vpop.f32.mrf.mxu0
  %2018 = vmatprep.mubr.f32.mxu0 %v1310
  %2019 = vmatmul.mubr.f32.gmra.mxu0 %v1086
  %v2020 = vpop.f32.mrf.mxu0
  %v2021 = vadd.f32 %v1636, %v2020
  %v2022 = vpop.f32.mrf.mxu0
  %2023 = vmatprep.mubr.f32.mxu0 %v1313
  %2024 = vmatmul.mubr.f32.gmra.mxu0 %v1090
  %v2025 = vpop.f32.mrf.mxu0
  %v2026 = vadd.f32 %v1641, %v2025
  %v2027 = vpop.f32.mrf.mxu0
  %2028 = vmatprep.mubr.f32.mxu0 %v1316
  %2029 = vmatmul.mubr.f32.gmra.mxu0 %v1094
  %v2030 = vpop.f32.mrf.mxu0
  %v2031 = vadd.f32 %v1646, %v2030
  %v2032 = vpop.f32.mrf.mxu0
  %2033 = vmatprep.mubr.f32.mxu0 %v1319
  %2034 = vmatmul.mubr.f32.gmra.mxu0 %v1098
  %v2035 = vpop.f32.mrf.mxu0
  %v2036 = vadd.f32 %v1651, %v2035
  %v2037 = vpop.f32.mrf.mxu0
  %2038 = vmatprep.mubr.f32.mxu0 %v1322
  %2039 = vmatmul.mubr.f32.gmra.mxu0 %v1102
  %v2040 = vpop.f32.mrf.mxu0
  %v2041 = vadd.f32 %v1656, %v2040
  %v2042 = vpop.f32.mrf.mxu0
  %2043 = vmatprep.mubr.f32.mxu0 %v1325
  %2044 = vmatmul.mubr.f32.gmra.mxu0 %v1106
  %v2045 = vpop.f32.mrf.mxu0
  %v2046 = vadd.f32 %v1661, %v2045
  %v2047 = vpop.f32.mrf.mxu0
  %2048 = vmatprep.mubr.f32.mxu0 %v1328
  %2049 = vmatmul.mubr.f32.gmra.mxu0 %v1110
  %v2050 = vpop.f32.mrf.mxu0
  %v2051 = vadd.f32 %v1666, %v2050
  %v2052 = vpop.f32.mrf.mxu0
  %2053 = vmatprep.mubr.f32.mxu0 %v1331
  %2054 = vmatmul.mubr.f32.gmra.mxu0 %v1114
  %v2055 = vpop.f32.mrf.mxu0
  %v2056 = vadd.f32 %v1671, %v2055
  %v2057 = vpop.f32.mrf.mxu0
  %2058 = vmatprep.mubr.f32.mxu0 %v1334
  %2059 = vmatmul.mubr.f32.gmra.mxu0 %v1118
  %v2060 = vpop.f32.mrf.mxu0
  %v2061 = vadd.f32 %v1676, %v2060
  %v2062 = vpop.f32.mrf.mxu0
  %2063 = vmatprep.mubr.f32.mxu0 %v1337
  %2064 = vmatmul.mubr.f32.gmra.mxu0 %v1122
  %v2065 = vpop.f32.mrf.mxu0
  %v2066 = vadd.f32 %v1681, %v2065
  %v2067 = vpop.f32.mrf.mxu0
  %2068 = vmatprep.mubr.f32.mxu0 %v1340
  %2069 = vmatmul.mubr.f32.gmra.mxu0 %v1126
  %v2070 = vpop.f32.mrf.mxu0
  %v2071 = vadd.f32 %v1686, %v2070
  %v2072 = vpop.f32.mrf.mxu0
  %2073 = vmatprep.mubr.f32.mxu0 %v1343
  %2074 = vmatmul.mubr.f32.gmra.mxu0 %v1130
  %v2075 = vpop.f32.mrf.mxu0
  %v2076 = vadd.f32 %v1691, %v2075
  %v2077 = vpop.f32.mrf.mxu0
  %2078 = vmatprep.mubr.f32.mxu0 %v1346
  %2079 = vmatmul.mubr.f32.gmra.mxu0 %v1134
  %v2080 = vpop.f32.mrf.mxu0
  %v2081 = vadd.f32 %v1696, %v2080
  %v2082 = vpop.f32.mrf.mxu0
  %2083 = vmatprep.mubr.f32.mxu0 %v1349
  %2084 = vmatmul.mubr.f32.gmra.mxu0 %v1138
  %v2085 = vpop.f32.mrf.mxu0
  %v2086 = vadd.f32 %v1701, %v2085
  %v2087 = vpop.f32.mrf.mxu0
  %2088 = vmatprep.mubr.f32.mxu0 %v1352
  %2089 = vmatmul.mubr.f32.gmra.mxu0 %v1142
  %v2090 = vpop.f32.mrf.mxu0
  %v2091 = vadd.f32 %v1706, %v2090
  %v2092 = vpop.f32.mrf.mxu0
  %2093 = vmatprep.mubr.f32.mxu0 %v1355
  %2094 = vmatmul.mubr.f32.gmra.mxu0 %v1146
  %v2095 = vpop.f32.mrf.mxu0
  %v2096 = vadd.f32 %v1711, %v2095
  %v2097 = vpop.f32.mrf.mxu0
  %2098 = vmatprep.mubr.f32.mxu0 %v1358
  %2099 = vmatmul.mubr.f32.gmra.mxu0 %v1150
  %v2100 = vpop.f32.mrf.mxu0
  %v2101 = vadd.f32 %v1716, %v2100
  %v2102 = vpop.f32.mrf.mxu0
  %2103 = vmatprep.mubr.f32.mxu0 %v1361
  %2104 = vmatmul.mubr.f32.gmra.mxu0 %v1154
  %v2105 = vpop.f32.mrf.mxu0
  %v2106 = vadd.f32 %v1721, %v2105
  %v2107 = vpop.f32.mrf.mxu0
  %2108 = vmatprep.mubr.f32.mxu0 %v1364
  %2109 = vmatmul.mubr.f32.gmra.mxu0 %v1158
  %v2110 = vpop.f32.mrf.mxu0
  %v2111 = vadd.f32 %v1726, %v2110
  %v2112 = vpop.f32.mrf.mxu0
  %2113 = vmatprep.mubr.f32.mxu0 %v1367
  %2114 = vmatmul.mubr.f32.gmra.mxu0 %v1162
  %v2115 = vpop.f32.mrf.mxu0
  %v2116 = vadd.f32 %v1731, %v2115
  %v2117 = vpop.f32.mrf.mxu0
  %2118 = vmatprep.mubr.f32.mxu0 %v1370
  %2119 = vmatmul.mubr.f32.gmra.mxu0 %v1166
  %v2120 = vpop.f32.mrf.mxu0
  %v2121 = vadd.f32 %v1736, %v2120
  %v2122 = vpop.f32.mrf.mxu0
  %2123 = vmatprep.mubr.f32.mxu0 %v1373
  %2124 = vmatmul.mubr.f32.gmra.mxu0 %v1170
  %v2125 = vpop.f32.mrf.mxu0
  %v2126 = vadd.f32 %v1741, %v2125
  %v2127 = vpop.f32.mrf.mxu0
  %2128 = vmatprep.mubr.f32.mxu0 %v1376
  %2129 = vmatmul.mubr.f32.gmra.mxu0 %v1174
  %v2130 = vpop.f32.mrf.mxu0
  %v2131 = vadd.f32 %v1746, %v2130
  %v2132 = vpop.f32.mrf.mxu0
  %2133 = vmatprep.mubr.f32.mxu0 %v1379
  %2134 = vmatmul.mubr.f32.gmra.mxu0 %v1178
  %v2135 = vpop.f32.mrf.mxu0
  %v2136 = vadd.f32 %v1751, %v2135
  %v2137 = vpop.f32.mrf.mxu0
  %2138 = vmatprep.mubr.f32.mxu0 %v1382
  %2139 = vmatmul.mubr.f32.gmra.mxu0 %v1182
  %v2140 = vpop.f32.mrf.mxu0
  %v2141 = vadd.f32 %v1756, %v2140
  %v2142 = vpop.f32.mrf.mxu0
  %2143 = vmatprep.mubr.f32.mxu0 %v1385
  %2144 = vmatmul.mubr.f32.gmra.mxu0 %v1186
  %v2145 = vpop.f32.mrf.mxu0
  %v2146 = vadd.f32 %v1761, %v2145
  %v2147 = vpop.f32.mrf.mxu0
  %2148 = vmatprep.mubr.f32.mxu0 %v1388
  %2149 = vmatmul.mubr.f32.gmra.mxu0 %v1190
  %v2150 = vpop.f32.mrf.mxu0
  %v2151 = vadd.f32 %v1766, %v2150
  %v2152 = vpop.f32.mrf.mxu0
  %2153 = vmatprep.mubr.f32.mxu0 %v1391
  %2154 = vmatmul.mubr.f32.gmra.mxu0 %v1194
  %v2155 = vpop.f32.mrf.mxu0
  %v2156 = vadd.f32 %v1771, %v2155
  %v2157 = vpop.f32.mrf.mxu0
  %2158 = vmatprep.mubr.f32.mxu0 %v1394
  %2159 = vmatmul.mubr.f32.gmra.mxu0 %v1198
  %v2160 = vpop.f32.mrf.mxu0
  %v2161 = vadd.f32 %v1776, %v2160
  %v2162 = vpop.f32.mrf.mxu0
  %2163 = vmatprep.mubr.f32.mxu0 %v1397
  %2164 = vmatmul.mubr.f32.gmra.mxu0 %v1202
  %v2165 = vpop.f32.mrf.mxu0
  %v2166 = vadd.f32 %v1781, %v2165
  %v2167 = vpop.f32.mrf.mxu0
  %2168 = vmatprep.mubr.f32.mxu0 %v1400
  %2169 = vmatmul.mubr.f32.gmra.mxu0 %v1206
  %v2170 = vpop.f32.mrf.mxu0
  %v2171 = vadd.f32 %v1786, %v2170
  %v2172 = vpop.f32.mrf.mxu0
  %2173 = vmatprep.mubr.f32.mxu0 %v1403
  %2174 = vmatmul.mubr.f32.gmra.mxu0 %v1210
  %v2175 = vpop.f32.mrf.mxu0
  %v2176 = vadd.f32 %v1791, %v2175
  %v2177 = vpop.f32.mrf.mxu0
  %2178 = vdwg.mxu0
  %2195 = vrot.lane.b32.xlu0 %v1941, 8
  %v2196 = vpop.permute.xlu0 %2195
  %2197 = vrot.lane.b32.xlu0 %v1946, 8
  %v2198 = vpop.permute.xlu0 %2197
  %2199 = vrot.lane.b32.xlu0 %v1951, 8
  %v2200 = vpop.permute.xlu0 %2199
  %2201 = vrot.lane.b32.xlu0 %v1956, 8
  %v2202 = vpop.permute.xlu0 %2201
  %2203 = vrot.lane.b32.xlu0 %v1961, 8
  %v2204 = vpop.permute.xlu0 %2203
  %2205 = vrot.lane.b32.xlu0 %v1966, 8
  %v2206 = vpop.permute.xlu0 %2205
  %2207 = vrot.lane.b32.xlu0 %v1971, 8
  %v2208 = vpop.permute.xlu0 %2207
  %2209 = vrot.lane.b32.xlu0 %v1976, 8
  %v2210 = vpop.permute.xlu0 %2209
  %2211 = vrot.lane.b32.xlu0 %v1981, 8
  %v2212 = vpop.permute.xlu0 %2211
  %2213 = vrot.lane.b32.xlu0 %v1986, 8
  %v2214 = vpop.permute.xlu0 %2213
  %2215 = vrot.lane.b32.xlu0 %v1991, 8
  %v2216 = vpop.permute.xlu0 %2215
  %2217 = vrot.lane.b32.xlu0 %v1996, 8
  %v2218 = vpop.permute.xlu0 %2217
  %2219 = vrot.lane.b32.xlu0 %v2001, 8
  %v2220 = vpop.permute.xlu0 %2219
  %2221 = vrot.lane.b32.xlu0 %v2006, 8
  %v2222 = vpop.permute.xlu0 %2221
  %2223 = vrot.lane.b32.xlu0 %v2011, 8
  %v2224 = vpop.permute.xlu0 %2223
  %2225 = vrot.lane.b32.xlu0 %v2016, 8
  %v2226 = vpop.permute.xlu0 %2225
  %2259 = vrot.lane.b32.xlu0 %v2021, 16
  %v2260 = vpop.permute.xlu0 %2259
  %2261 = vrot.lane.b32.xlu0 %v2026, 16
  %v2262 = vpop.permute.xlu0 %2261
  %2263 = vrot.lane.b32.xlu0 %v2031, 16
  %v2264 = vpop.permute.xlu0 %2263
  %2265 = vrot.lane.b32.xlu0 %v2036, 16
  %v2266 = vpop.permute.xlu0 %2265
  %2267 = vrot.lane.b32.xlu0 %v2041, 16
  %v2268 = vpop.permute.xlu0 %2267
  %2269 = vrot.lane.b32.xlu0 %v2046, 16
  %v2270 = vpop.permute.xlu0 %2269
  %2271 = vrot.lane.b32.xlu0 %v2051, 16
  %v2272 = vpop.permute.xlu0 %2271
  %2273 = vrot.lane.b32.xlu0 %v2056, 16
  %v2274 = vpop.permute.xlu0 %2273
  %2275 = vrot.lane.b32.xlu0 %v2061, 16
  %v2276 = vpop.permute.xlu0 %2275
  %2277 = vrot.lane.b32.xlu0 %v2066, 16
  %v2278 = vpop.permute.xlu0 %2277
  %2279 = vrot.lane.b32.xlu0 %v2071, 16
  %v2280 = vpop.permute.xlu0 %2279
  %2281 = vrot.lane.b32.xlu0 %v2076, 16
  %v2282 = vpop.permute.xlu0 %2281
  %2283 = vrot.lane.b32.xlu0 %v2081, 16
  %v2284 = vpop.permute.xlu0 %2283
  %2285 = vrot.lane.b32.xlu0 %v2086, 16
  %v2286 = vpop.permute.xlu0 %2285
  %2287 = vrot.lane.b32.xlu0 %v2091, 16
  %v2288 = vpop.permute.xlu0 %2287
  %2289 = vrot.lane.b32.xlu0 %v2096, 16
  %v2290 = vpop.permute.xlu0 %2289
  %2323 = vrot.lane.b32.xlu0 %v2101, 24
  %v2324 = vpop.permute.xlu0 %2323
  %2325 = vrot.lane.b32.xlu0 %v2106, 24
  %v2326 = vpop.permute.xlu0 %2325
  %2327 = vrot.lane.b32.xlu0 %v2111, 24
  %v2328 = vpop.permute.xlu0 %2327
  %2329 = vrot.lane.b32.xlu0 %v2116, 24
  %v2330 = vpop.permute.xlu0 %2329
  %2331 = vrot.lane.b32.xlu0 %v2121, 24
  %v2332 = vpop.permute.xlu0 %2331
  %2333 = vrot.lane.b32.xlu0 %v2126, 24
  %v2334 = vpop.permute.xlu0 %2333
  %2335 = vrot.lane.b32.xlu0 %v2131, 24
  %v2336 = vpop.permute.xlu0 %2335
  %2337 = vrot.lane.b32.xlu0 %v2136, 24
  %v2338 = vpop.permute.xlu0 %2337
  %2339 = vrot.lane.b32.xlu0 %v2141, 24
  %v2340 = vpop.permute.xlu0 %2339
  %2341 = vrot.lane.b32.xlu0 %v2146, 24
  %v2342 = vpop.permute.xlu0 %2341
  %2343 = vrot.lane.b32.xlu0 %v2151, 24
  %v2344 = vpop.permute.xlu0 %2343
  %2345 = vrot.lane.b32.xlu0 %v2156, 24
  %v2346 = vpop.permute.xlu0 %2345
  %2347 = vrot.lane.b32.xlu0 %v2161, 24
  %v2348 = vpop.permute.xlu0 %2347
  %2349 = vrot.lane.b32.xlu0 %v2166, 24
  %v2350 = vpop.permute.xlu0 %2349
  %2351 = vrot.lane.b32.xlu0 %v2171, 24
  %v2352 = vpop.permute.xlu0 %2351
  %2353 = vrot.lane.b32.xlu0 %v2176, 24
  %v2354 = vpop.permute.xlu0 %2353
  %vm2371 = vcmask 64512
  %v2372 = vsel %vm2371, %v1861, %v2196
  %v2373 = vsel %vm2371, %v1866, %v2198
  %v2374 = vsel %vm2371, %v1871, %v2200
  %v2375 = vsel %vm2371, %v1876, %v2202
  %v2376 = vsel %vm2371, %v1881, %v2204
  %v2377 = vsel %vm2371, %v1886, %v2206
  %v2378 = vsel %vm2371, %v1891, %v2208
  %v2379 = vsel %vm2371, %v1896, %v2210
  %v2380 = vsel %vm2371, %v1901, %v2212
  %v2381 = vsel %vm2371, %v1906, %v2214
  %v2382 = vsel %vm2371, %v1911, %v2216
  %v2383 = vsel %vm2371, %v1916, %v2218
  %v2384 = vsel %vm2371, %v1921, %v2220
  %v2385 = vsel %vm2371, %v1926, %v2222
  %v2386 = vsel %vm2371, %v1931, %v2224
  %v2387 = vsel %vm2371, %v1936, %v2226
  %vm2388 = vcmask 130048
  %v2389 = vsel %vm2388, %v2372, %v2260
  %v2390 = vsel %vm2388, %v2373, %v2262
  %v2391 = vsel %vm2388, %v2374, %v2264
  %v2392 = vsel %vm2388, %v2375, %v2266
  %v2393 = vsel %vm2388, %v2376, %v2268
  %v2394 = vsel %vm2388, %v2377, %v2270
  %v2395 = vsel %vm2388, %v2378, %v2272
  %v2396 = vsel %vm2388, %v2379, %v2274
  %v2397 = vsel %vm2388, %v2380, %v2276
  %v2398 = vsel %vm2388, %v2381, %v2278
  %v2399 = vsel %vm2388, %v2382, %v2280
  %v2400 = vsel %vm2388, %v2383, %v2282
  %v2401 = vsel %vm2388, %v2384, %v2284
  %v2402 = vsel %vm2388, %v2385, %v2286
  %v2403 = vsel %vm2388, %v2386, %v2288
  %v2404 = vsel %vm2388, %v2387, %v2290
  %vm2405 = vcmask 195584
  %v2406 = vsel %vm2405, %v2389, %v2324
  %v2407 = vsel %vm2405, %v2390, %v2326
  %v2408 = vsel %vm2405, %v2391, %v2328
  %v2409 = vsel %vm2405, %v2392, %v2330
  %v2410 = vsel %vm2405, %v2393, %v2332
  %v2411 = vsel %vm2405, %v2394, %v2334
  %v2412 = vsel %vm2405, %v2395, %v2336
  %v2413 = vsel %vm2405, %v2396, %v2338
  %v2414 = vsel %vm2405, %v2397, %v2340
  %v2415 = vsel %vm2405, %v2398, %v2342
  %v2416 = vsel %vm2405, %v2399, %v2344
  %v2417 = vsel %vm2405, %v2400, %v2346
  %v2418 = vsel %vm2405, %v2401, %v2348
  %v2419 = vsel %vm2405, %v2402, %v2350
  %v2420 = vsel %vm2405, %v2403, %v2352
  %v2421 = vsel %vm2405, %v2404, %v2354
  %v2422 = vld [vmem:[%s3] sm:$0xff]
  %v2423 = vld [vmem:[%s3 + $0x8] sm:$0xff]
  %v2424 = vld [vmem:[%s3 + $0x10] sm:$0xff]
  %v2425 = vld [vmem:[%s3 + $0x18] sm:$0xff]
  %vm2426 = vcmask 261120
  %v2428 = vsel %vm2426, %v2406, 0
  %v2431 = vsel %vm2426, %v2407, 0
  %v2434 = vsel %vm2426, %v2408, 0
  %v2437 = vsel %vm2426, %v2409, 0
  %v2440 = vsel %vm2426, %v2410, 0
  %v2443 = vsel %vm2426, %v2411, 0
  %v2446 = vsel %vm2426, %v2412, 0
  %v2449 = vsel %vm2426, %v2413, 0
  %v2452 = vsel %vm2426, %v2414, 0
  %v2455 = vsel %vm2426, %v2415, 0
  %v2458 = vsel %vm2426, %v2416, 0
  %v2461 = vsel %vm2426, %v2417, 0
  %v2464 = vsel %vm2426, %v2418, 0
  %v2467 = vsel %vm2426, %v2419, 0
  %v2470 = vsel %vm2426, %v2420, 0
  %v2473 = vsel %vm2426, %v2421, 0
  %2475 = vmatprep.subr.mxu0 0.0
  %2476 = vmatpush1.msra.mxu0 0.0
  %2477 = vmatprep.subr.mxu0 0.0
  %2478 = vmatpush1.msra.mxu0 0.0
  %2479 = vmatprep.subr.mxu0 0.0
  %2480 = vmatpush1.msra.mxu0 0.0
  %2481 = vmatprep.subr.mxu0 0.0
  %2482 = vmatpush1.msra.mxu0 0.0
  %2483 = vmatprep.subr.mxu0 0.0
  %2484 = vmatpush1.msra.mxu0 0.0
  %2485 = vmatprep.subr.mxu0 0.0
  %2486 = vmatpush1.msra.mxu0 0.0
  %2487 = vmatprep.subr.mxu0 0.0
  %2488 = vmatpush1.msra.mxu0 0.0
  %2489 = vmatprep.subr.mxu0 0.0
  %2490 = vmatpush1.msra.mxu0 0.0
  %2491 = vmatprep.subr.mxu0 0.0
  %2492 = vmatpush1.msra.mxu0 0.0
  %2493 = vmatprep.subr.mxu0 0.0
  %2494 = vmatpush1.msra.mxu0 0.0
  %2495 = vmatprep.subr.mxu0 0.0
  %2496 = vmatpush1.msra.mxu0 0.0
  %2497 = vmatprep.subr.mxu0 0.0
  %2498 = vmatpush1.msra.mxu0 0.0
  %2499 = vmatprep.subr.mxu0 0.0
  %2500 = vmatpush1.msra.mxu0 %v2425
  %2501 = vmatprep.subr.mxu0 0.0
  %2502 = vmatpush1.msra.mxu0 %v2424
  %2503 = vmatprep.subr.mxu0 0.0
  %2504 = vmatpush1.msra.mxu0 %v2423
  %2505 = vmatprep.subr.mxu0 0.0
  %2506 = vmatpush1.msra.mxu0 %v2422
  %2507 = vmatprep.subr.mxu0 0.0
  %2508 = vmatpush2.msra.mxu0 0.0
  %2509 = vmatprep.subr.mxu0 0.0
  %2510 = vmatpush2.msra.mxu0 0.0
  %2511 = vmatprep.subr.mxu0 0.0
  %2512 = vmatpush2.msra.mxu0 0.0
  %2513 = vmatprep.subr.mxu0 0.0
  %2514 = vmatpush2.msra.mxu0 0.0
  %2515 = vmatprep.subr.mxu0 0.0
  %2516 = vmatpush2.msra.mxu0 0.0
  %2517 = vmatprep.subr.mxu0 0.0
  %2518 = vmatpush2.msra.mxu0 0.0
  %2519 = vmatprep.subr.mxu0 0.0
  %2520 = vmatpush2.msra.mxu0 0.0
  %2521 = vmatprep.subr.mxu0 0.0
  %2522 = vmatpush2.msra.mxu0 0.0
  %2523 = vmatprep.subr.mxu0 0.0
  %2524 = vmatpush2.msra.mxu0 0.0
  %2525 = vmatprep.subr.mxu0 0.0
  %2526 = vmatpush2.msra.mxu0 0.0
  %2527 = vmatprep.subr.mxu0 0.0
  %2528 = vmatpush2.msra.mxu0 0.0
  %2529 = vmatprep.subr.mxu0 0.0
  %2530 = vmatpush2.msra.mxu0 0.0
  %2531 = vmatprep.subr.mxu0 0.0
  %2532 = vmatpush2.msra.mxu0 0.0
  %2533 = vmatprep.subr.mxu0 0.0
  %2534 = vmatpush2.msra.mxu0 0.0
  %2535 = vmatprep.subr.mxu0 0.0
  %2536 = vmatpush2.msra.mxu0 0.0
  %2537 = vmatprep.subr.mxu0 0.0
  %2538 = vmatpush2.msra.mxu0 0.0
  %2539 = vmatprep.mubr.f32.mxu0 0.0
  %2540 = vmatmul.mubr.f32.gmra.mxu0 %v2428
  %v2541 = vpop.f32.mrf.mxu0
  %v2542 = vadd.f32 0.0, %v2541
  %v2543 = vpop.f32.mrf.mxu0
  %2544 = vmatprep.mubr.f32.mxu0 0.0
  %2545 = vmatmul.mubr.f32.gmra.mxu0 %v2431
  %v2546 = vpop.f32.mrf.mxu0
  %v2547 = vadd.f32 0.0, %v2546
  %v2548 = vpop.f32.mrf.mxu0
  %2549 = vmatprep.mubr.f32.mxu0 0.0
  %2550 = vmatmul.mubr.f32.gmra.mxu0 %v2434
  %v2551 = vpop.f32.mrf.mxu0
  %v2552 = vadd.f32 0.0, %v2551
  %v2553 = vpop.f32.mrf.mxu0
  %2554 = vmatprep.mubr.f32.mxu0 0.0
  %2555 = vmatmul.mubr.f32.gmra.mxu0 %v2437
  %v2556 = vpop.f32.mrf.mxu0
  %v2557 = vadd.f32 0.0, %v2556
  %v2558 = vpop.f32.mrf.mxu0
  %2559 = vmatprep.mubr.f32.mxu0 0.0
  %2560 = vmatmul.mubr.f32.gmra.mxu0 %v2440
  %v2561 = vpop.f32.mrf.mxu0
  %v2562 = vadd.f32 0.0, %v2561
  %v2563 = vpop.f32.mrf.mxu0
  %2564 = vmatprep.mubr.f32.mxu0 0.0
  %2565 = vmatmul.mubr.f32.gmra.mxu0 %v2443
  %v2566 = vpop.f32.mrf.mxu0
  %v2567 = vadd.f32 0.0, %v2566
  %v2568 = vpop.f32.mrf.mxu0
  %2569 = vmatprep.mubr.f32.mxu0 0.0
  %2570 = vmatmul.mubr.f32.gmra.mxu0 %v2446
  %v2571 = vpop.f32.mrf.mxu0
  %v2572 = vadd.f32 0.0, %v2571
  %v2573 = vpop.f32.mrf.mxu0
  %2574 = vmatprep.mubr.f32.mxu0 0.0
  %2575 = vmatmul.mubr.f32.gmra.mxu0 %v2449
  %v2576 = vpop.f32.mrf.mxu0
  %v2577 = vadd.f32 0.0, %v2576
  %v2578 = vpop.f32.mrf.mxu0
  %2579 = vmatprep.mubr.f32.mxu0 0.0
  %2580 = vmatmul.mubr.f32.gmra.mxu0 %v2452
  %v2581 = vpop.f32.mrf.mxu0
  %v2582 = vadd.f32 0.0, %v2581
  %v2583 = vpop.f32.mrf.mxu0
  %2584 = vmatprep.mubr.f32.mxu0 0.0
  %2585 = vmatmul.mubr.f32.gmra.mxu0 %v2455
  %v2586 = vpop.f32.mrf.mxu0
  %v2587 = vadd.f32 0.0, %v2586
  %v2588 = vpop.f32.mrf.mxu0
  %2589 = vmatprep.mubr.f32.mxu0 0.0
  %2590 = vmatmul.mubr.f32.gmra.mxu0 %v2458
  %v2591 = vpop.f32.mrf.mxu0
  %v2592 = vadd.f32 0.0, %v2591
  %v2593 = vpop.f32.mrf.mxu0
  %2594 = vmatprep.mubr.f32.mxu0 0.0
  %2595 = vmatmul.mubr.f32.gmra.mxu0 %v2461
  %v2596 = vpop.f32.mrf.mxu0
  %v2597 = vadd.f32 0.0, %v2596
  %v2598 = vpop.f32.mrf.mxu0
  %2599 = vmatprep.mubr.f32.mxu0 0.0
  %2600 = vmatmul.mubr.f32.gmra.mxu0 %v2464
  %v2601 = vpop.f32.mrf.mxu0
  %v2602 = vadd.f32 0.0, %v2601
  %v2603 = vpop.f32.mrf.mxu0
  %2604 = vmatprep.mubr.f32.mxu0 0.0
  %2605 = vmatmul.mubr.f32.gmra.mxu0 %v2467
  %v2606 = vpop.f32.mrf.mxu0
  %v2607 = vadd.f32 0.0, %v2606
  %v2608 = vpop.f32.mrf.mxu0
  %2609 = vmatprep.mubr.f32.mxu0 0.0
  %2610 = vmatmul.mubr.f32.gmra.mxu0 %v2470
  %v2611 = vpop.f32.mrf.mxu0
  %v2612 = vadd.f32 0.0, %v2611
  %v2613 = vpop.f32.mrf.mxu0
  %2614 = vmatprep.mubr.f32.mxu0 0.0
  %2615 = vmatmul.mubr.f32.gmra.mxu0 %v2473
  %v2616 = vpop.f32.mrf.mxu0
  %v2617 = vadd.f32 0.0, %v2616
  %v2618 = vpop.f32.mrf.mxu0
  %2619 = vdwg.mxu0
  %v2620 = vld [vmem:[%s4] sm:$0x1]
  %v2621 = vld [vmem:[%s4 + $0x1] sm:$0x1]
  %v2622 = vsel %vm2388, %v2542, 0.0
  %v2623 = vsel %vm2388, %v2547, 0.0
  %v2624 = vadd.f32 %v2622, %v2623
  %v2625 = vsel %vm2388, %v2552, 0.0
  %v2626 = vadd.f32 %v2624, %v2625
  %v2627 = vsel %vm2388, %v2557, 0.0
  %v2628 = vadd.f32 %v2626, %v2627
  %v2629 = vsel %vm2388, %v2562, 0.0
  %v2630 = vadd.f32 %v2628, %v2629
  %v2631 = vsel %vm2388, %v2567, 0.0
  %v2632 = vadd.f32 %v2630, %v2631
  %v2633 = vsel %vm2388, %v2572, 0.0
  %v2634 = vadd.f32 %v2632, %v2633
  %v2635 = vsel %vm2388, %v2577, 0.0
  %v2636 = vadd.f32 %v2634, %v2635
  %v2637 = vsel %vm2388, %v2582, 0.0
  %v2638 = vadd.f32 %v2636, %v2637
  %v2639 = vsel %vm2388, %v2587, 0.0
  %v2640 = vadd.f32 %v2638, %v2639
  %v2641 = vsel %vm2388, %v2592, 0.0
  %v2642 = vadd.f32 %v2640, %v2641
  %v2643 = vsel %vm2388, %v2597, 0.0
  %v2644 = vadd.f32 %v2642, %v2643
  %v2645 = vsel %vm2388, %v2602, 0.0
  %v2646 = vadd.f32 %v2644, %v2645
  %v2647 = vsel %vm2388, %v2607, 0.0
  %v2648 = vadd.f32 %v2646, %v2647
  %v2649 = vsel %vm2388, %v2612, 0.0
  %v2650 = vadd.f32 %v2648, %v2649
  %v2651 = vsel %vm2388, %v2617, 0.0
  %v2652 = vadd.f32 %v2650, %v2651
  %v2653 = vrot.slane %v2652, 4
  %v2654 = vadd.f32 %v2652, %v2653
  %v2655 = vrot.slane %v2654, 2
  %v2656 = vadd.f32 %v2654, %v2655
  %v2657 = vrot.slane %v2656, 1
  %v2658 = vadd.f32 %v2656, %v2657
  %v2659 = vrcp.pop 128.0
  %v2660 = vmul.f32 %v2658, %v2659
  %v2661 = vsub.f32 %v2542, %v2660
  %v2662 = vsub.f32 %v2547, %v2660
  %v2663 = vsub.f32 %v2552, %v2660
  %v2664 = vsub.f32 %v2557, %v2660
  %v2665 = vsub.f32 %v2562, %v2660
  %v2666 = vsub.f32 %v2567, %v2660
  %v2667 = vsub.f32 %v2572, %v2660
  %v2668 = vsub.f32 %v2577, %v2660
  %v2669 = vsub.f32 %v2582, %v2660
  %v2670 = vsub.f32 %v2587, %v2660
  %v2671 = vsub.f32 %v2592, %v2660
  %v2672 = vsub.f32 %v2597, %v2660
  %v2673 = vsub.f32 %v2602, %v2660
  %v2674 = vsub.f32 %v2607, %v2660
  %v2675 = vsub.f32 %v2612, %v2660
  %v2676 = vsub.f32 %v2617, %v2660
  %v2677 = vmul.f32 %v2661, %v2661
  %v2678 = vmul.f32 %v2662, %v2662
  %v2679 = vmul.f32 %v2663, %v2663
  %v2680 = vmul.f32 %v2664, %v2664
  %v2681 = vmul.f32 %v2665, %v2665
  %v2682 = vmul.f32 %v2666, %v2666
  %v2683 = vmul.f32 %v2667, %v2667
  %v2684 = vmul.f32 %v2668, %v2668
  %v2685 = vmul.f32 %v2669, %v2669
  %v2686 = vmul.f32 %v2670, %v2670
  %v2687 = vmul.f32 %v2671, %v2671
  %v2688 = vmul.f32 %v2672, %v2672
  %v2689 = vmul.f32 %v2673, %v2673
  %v2690 = vmul.f32 %v2674, %v2674
  %v2691 = vmul.f32 %v2675, %v2675
  %v2692 = vmul.f32 %v2676, %v2676
  %v2693 = vsel %vm2388, %v2677, 0.0
  %v2694 = vsel %vm2388, %v2678, 0.0
  %v2695 = vadd.f32 %v2693, %v2694
  %v2696 = vsel %vm2388, %v2679, 0.0
  %v2697 = vadd.f32 %v2695, %v2696
  %v2698 = vsel %vm2388, %v2680, 0.0
  %v2699 = vadd.f32 %v2697, %v2698
  %v2700 = vsel %vm2388, %v2681, 0.0
  %v2701 = vadd.f32 %v2699, %v2700
  %v2702 = vsel %vm2388, %v2682, 0.0
  %v2703 = vadd.f32 %v2701, %v2702
  %v2704 = vsel %vm2388, %v2683, 0.0
  %v2705 = vadd.f32 %v2703, %v2704
  %v2706 = vsel %vm2388, %v2684, 0.0
  %v2707 = vadd.f32 %v2705, %v2706
  %v2708 = vsel %vm2388, %v2685, 0.0
  %v2709 = vadd.f32 %v2707, %v2708
  %v2710 = vsel %vm2388, %v2686, 0.0
  %v2711 = vadd.f32 %v2709, %v2710
  %v2712 = vsel %vm2388, %v2687, 0.0
  %v2713 = vadd.f32 %v2711, %v2712
  %v2714 = vsel %vm2388, %v2688, 0.0
  %v2715 = vadd.f32 %v2713, %v2714
  %v2716 = vsel %vm2388, %v2689, 0.0
  %v2717 = vadd.f32 %v2715, %v2716
  %v2718 = vsel %vm2388, %v2690, 0.0
  %v2719 = vadd.f32 %v2717, %v2718
  %v2720 = vsel %vm2388, %v2691, 0.0
  %v2721 = vadd.f32 %v2719, %v2720
  %v2722 = vsel %vm2388, %v2692, 0.0
  %v2723 = vadd.f32 %v2721, %v2722
  %v2724 = vrot.slane %v2723, 4
  %v2725 = vadd.f32 %v2723, %v2724
  %v2726 = vrot.slane %v2725, 2
  %v2727 = vadd.f32 %v2725, %v2726
  %v2728 = vrot.slane %v2727, 1
  %v2729 = vadd.f32 %v2727, %v2728
  %v2730 = vmul.f32 %v2729, %v2659
  %v2731 = vadd.f32 %v2730, 1e-05
  %v2732 = vrsqrt.pop %v2731
  %v2733 = vmul.f32 %v2661, %v2732
  %v2734 = vmul.f32 %v2662, %v2732
  %v2735 = vmul.f32 %v2663, %v2732
  %v2736 = vmul.f32 %v2664, %v2732
  %v2737 = vmul.f32 %v2665, %v2732
  %v2738 = vmul.f32 %v2666, %v2732
  %v2739 = vmul.f32 %v2667, %v2732
  %v2740 = vmul.f32 %v2668, %v2732
  %v2741 = vmul.f32 %v2669, %v2732
  %v2742 = vmul.f32 %v2670, %v2732
  %v2743 = vmul.f32 %v2671, %v2732
  %v2744 = vmul.f32 %v2672, %v2732
  %v2745 = vmul.f32 %v2673, %v2732
  %v2746 = vmul.f32 %v2674, %v2732
  %v2747 = vmul.f32 %v2675, %v2732
  %v2748 = vmul.f32 %v2676, %v2732
  %v2749 = vlaneseq
  %v2750 = vshrl.u32 %v2749, 7
  %v2751 = vsub.s32 0, %v2750
  %v2752 = vrot.slane %v2620, %v2751
  %v2753 = vmul.f32 %v2733, %v2752
  %v2754 = vmul.f32 %v2734, %v2752
  %v2755 = vmul.f32 %v2735, %v2752
  %v2756 = vmul.f32 %v2736, %v2752
  %v2757 = vmul.f32 %v2737, %v2752
  %v2758 = vmul.f32 %v2738, %v2752
  %v2759 = vmul.f32 %v2739, %v2752
  %v2760 = vmul.f32 %v2740, %v2752
  %v2761 = vmul.f32 %v2741, %v2752
  %v2762 = vmul.f32 %v2742, %v2752
  %v2763 = vmul.f32 %v2743, %v2752
  %v2764 = vmul.f32 %v2744, %v2752
  %v2765 = vmul.f32 %v2745, %v2752
  %v2766 = vmul.f32 %v2746, %v2752
  %v2767 = vmul.f32 %v2747, %v2752
  %v2768 = vmul.f32 %v2748, %v2752
  %v2769 = vlaneseq
  %v2770 = vshrl.u32 %v2769, 7
  %v2771 = vsub.s32 0, %v2770
  %v2772 = vrot.slane %v2621, %v2771
  %v2773 = vadd.f32 %v2753, %v2772
  %v2774 = vadd.f32 %v2754, %v2772
  %v2775 = vadd.f32 %v2755, %v2772
  %v2776 = vadd.f32 %v2756, %v2772
  %v2777 = vadd.f32 %v2757, %v2772
  %v2778 = vadd.f32 %v2758, %v2772
  %v2779 = vadd.f32 %v2759, %v2772
  %v2780 = vadd.f32 %v2760, %v2772
  %v2781 = vadd.f32 %v2761, %v2772
  %v2782 = vadd.f32 %v2762, %v2772
  %v2783 = vadd.f32 %v2763, %v2772
  %v2784 = vadd.f32 %v2764, %v2772
  %v2785 = vadd.f32 %v2765, %v2772
  %v2786 = vadd.f32 %v2766, %v2772
  %v2787 = vadd.f32 %v2767, %v2772
  %v2788 = vadd.f32 %v2768, %v2772
  %v2789 = vmax.f32 %v2773, 0.0
  %v2790 = vmax.f32 %v2774, 0.0
  %v2791 = vmax.f32 %v2775, 0.0
  %v2792 = vmax.f32 %v2776, 0.0
  %v2793 = vmax.f32 %v2777, 0.0
  %v2794 = vmax.f32 %v2778, 0.0
  %v2795 = vmax.f32 %v2779, 0.0
  %v2796 = vmax.f32 %v2780, 0.0
  %v2797 = vmax.f32 %v2781, 0.0
  %v2798 = vmax.f32 %v2782, 0.0
  %v2799 = vmax.f32 %v2783, 0.0
  %v2800 = vmax.f32 %v2784, 0.0
  %v2801 = vmax.f32 %v2785, 0.0
  %v2802 = vmax.f32 %v2786, 0.0
  %v2803 = vmax.f32 %v2787, 0.0
  %v2804 = vmax.f32 %v2788, 0.0
  %v2805 = vld [vmem:[%s17] sm:$0xf]
  %v2806 = vld [vmem:[%s17 + $0x4] sm:$0xf]
  %v2807 = vld [vmem:[%s17 + $0x8] sm:$0xf]
  %v2808 = vld [vmem:[%s17 + $0xc] sm:$0xf]
  %v2809 = vld [vmem:[%s17 + $0x10] sm:$0xf]
  %v2810 = vld [vmem:[%s17 + $0x14] sm:$0xf]
  %v2811 = vld [vmem:[%s17 + $0x18] sm:$0xf]
  %v2812 = vld [vmem:[%s17 + $0x1c] sm:$0xf]
  %v2813 = vld [vmem:[%s17 + $0x20] sm:$0xf]
  %v2814 = vld [vmem:[%s17 + $0x24] sm:$0xf]
  %v2815 = vld [vmem:[%s17 + $0x28] sm:$0xf]
  %v2816 = vld [vmem:[%s17 + $0x2c] sm:$0xf]
  %v2817 = vld [vmem:[%s17 + $0x30] sm:$0xf]
  %v2818 = vld [vmem:[%s17 + $0x34] sm:$0xf]
  %v2819 = vld [vmem:[%s17 + $0x38] sm:$0xf]
  %v2820 = vld [vmem:[%s17 + $0x3c] sm:$0xf]
  %v2821 = vld [vmem:[%s17 + $0x40] sm:$0xf]
  %v2822 = vld [vmem:[%s17 + $0x44] sm:$0xf]
  %v2823 = vld [vmem:[%s17 + $0x48] sm:$0xf]
  %v2824 = vld [vmem:[%s17 + $0x4c] sm:$0xf]
  %v2825 = vld [vmem:[%s17 + $0x50] sm:$0xf]
  %v2826 = vld [vmem:[%s17 + $0x54] sm:$0xf]
  %v2827 = vld [vmem:[%s17 + $0x58] sm:$0xf]
  %v2828 = vld [vmem:[%s17 + $0x5c] sm:$0xf]
  %v2829 = vld [vmem:[%s17 + $0x60] sm:$0xf]
  %v2830 = vunpack.c.l.bf16 %v2805
  %v2831 = vunpack.c.l.bf16 %v2806
  %v2832 = vunpack.c.l.bf16 %v2807
  %v2833 = vunpack.c.l.bf16 %v2808
  %v2834 = vunpack.c.l.bf16 %v2809
  %v2835 = vunpack.c.l.bf16 %v2810
  %v2836 = vunpack.c.l.bf16 %v2811
  %v2837 = vunpack.c.l.bf16 %v2812
  %v2838 = vunpack.c.l.bf16 %v2813
  %v2839 = vunpack.c.l.bf16 %v2814
  %v2840 = vunpack.c.l.bf16 %v2815
  %v2841 = vunpack.c.l.bf16 %v2816
  %v2842 = vunpack.c.l.bf16 %v2817
  %v2843 = vunpack.c.l.bf16 %v2818
  %v2844 = vunpack.c.l.bf16 %v2819
  %v2845 = vunpack.c.l.bf16 %v2820
  %v2846 = vunpack.c.l.bf16 %v2821
  %v2847 = vunpack.c.l.bf16 %v2822
  %v2848 = vunpack.c.l.bf16 %v2823
  %v2849 = vunpack.c.l.bf16 %v2824
  %v2850 = vunpack.c.l.bf16 %v2825
  %v2851 = vunpack.c.l.bf16 %v2826
  %v2852 = vunpack.c.l.bf16 %v2827
  %v2853 = vunpack.c.l.bf16 %v2828
  %v2854 = vunpack.c.l.bf16 %v2829
  %2855 = vmatprep.subr.mxu0 0.0
  %2856 = vmatpush1.msra.mxu0 %v2804
  %2857 = vmatprep.subr.mxu0 0.0
  %2858 = vmatpush1.msra.mxu0 %v2803
  %2859 = vmatprep.subr.mxu0 0.0
  %2860 = vmatpush1.msra.mxu0 %v2802
  %2861 = vmatprep.subr.mxu0 0.0
  %2862 = vmatpush1.msra.mxu0 %v2801
  %2863 = vmatprep.subr.mxu0 0.0
  %2864 = vmatpush1.msra.mxu0 %v2800
  %2865 = vmatprep.subr.mxu0 0.0
  %2866 = vmatpush1.msra.mxu0 %v2799
  %2867 = vmatprep.subr.mxu0 0.0
  %2868 = vmatpush1.msra.mxu0 %v2798
  %2869 = vmatprep.subr.mxu0 0.0
  %2870 = vmatpush1.msra.mxu0 %v2797
  %2871 = vmatprep.subr.mxu0 0.0
  %2872 = vmatpush1.msra.mxu0 %v2796
  %2873 = vmatprep.subr.mxu0 0.0
  %2874 = vmatpush1.msra.mxu0 %v2795
  %2875 = vmatprep.subr.mxu0 0.0
  %2876 = vmatpush1.msra.mxu0 %v2794
  %2877 = vmatprep.subr.mxu0 0.0
  %2878 = vmatpush1.msra.mxu0 %v2793
  %2879 = vmatprep.subr.mxu0 0.0
  %2880 = vmatpush1.msra.mxu0 %v2792
  %2881 = vmatprep.subr.mxu0 0.0
  %2882 = vmatpush1.msra.mxu0 %v2791
  %2883 = vmatprep.subr.mxu0 0.0
  %2884 = vmatpush1.msra.mxu0 %v2790
  %2885 = vmatprep.subr.mxu0 0.0
  %2886 = vmatpush1.msra.mxu0 %v2789
  %2887 = vmatprep.subr.mxu0 0.0
  %2888 = vmatpush2.msra.mxu0 0.0
  %2889 = vmatprep.subr.mxu0 0.0
  %2890 = vmatpush2.msra.mxu0 0.0
  %2891 = vmatprep.subr.mxu0 0.0
  %2892 = vmatpush2.msra.mxu0 0.0
  %2893 = vmatprep.subr.mxu0 0.0
  %2894 = vmatpush2.msra.mxu0 0.0
  %2895 = vmatprep.subr.mxu0 0.0
  %2896 = vmatpush2.msra.mxu0 0.0
  %2897 = vmatprep.subr.mxu0 0.0
  %2898 = vmatpush2.msra.mxu0 0.0
  %2899 = vmatprep.subr.mxu0 0.0
  %2900 = vmatpush2.msra.mxu0 0.0
  %2901 = vmatprep.subr.mxu0 0.0
  %2902 = vmatpush2.msra.mxu0 0.0
  %2903 = vmatprep.subr.mxu0 0.0
  %2904 = vmatpush2.msra.mxu0 0.0
  %2905 = vmatprep.subr.mxu0 0.0
  %2906 = vmatpush2.msra.mxu0 0.0
  %2907 = vmatprep.subr.mxu0 0.0
  %2908 = vmatpush2.msra.mxu0 0.0
  %2909 = vmatprep.subr.mxu0 0.0
  %2910 = vmatpush2.msra.mxu0 0.0
  %2911 = vmatprep.subr.mxu0 0.0
  %2912 = vmatpush2.msra.mxu0 0.0
  %2913 = vmatprep.subr.mxu0 0.0
  %2914 = vmatpush2.msra.mxu0 0.0
  %2915 = vmatprep.subr.mxu0 0.0
  %2916 = vmatpush2.msra.mxu0 0.0
  %2917 = vmatprep.subr.mxu0 0.0
  %2918 = vmatpush2.msra.mxu0 0.0
  %2919 = vmatprep.mubr.f32.mxu0 0.0
  %2920 = vmatmul.mubr.f32.gmra.mxu0 %v2830
  %v2921 = vpop.f32.mrf.mxu0
  %v2922 = vadd.f32 0.0, %v2921
  %v2923 = vpop.f32.mrf.mxu0
  %2924 = vmatprep.mubr.f32.mxu0 0.0
  %2925 = vmatmul.mubr.f32.gmra.mxu0 %v2831
  %v2926 = vpop.f32.mrf.mxu0
  %v2927 = vadd.f32 0.0, %v2926
  %v2928 = vpop.f32.mrf.mxu0
  %2929 = vmatprep.mubr.f32.mxu0 0.0
  %2930 = vmatmul.mubr.f32.gmra.mxu0 %v2832
  %v2931 = vpop.f32.mrf.mxu0
  %v2932 = vadd.f32 0.0, %v2931
  %v2933 = vpop.f32.mrf.mxu0
  %2934 = vmatprep.mubr.f32.mxu0 0.0
  %2935 = vmatmul.mubr.f32.gmra.mxu0 %v2833
  %v2936 = vpop.f32.mrf.mxu0
  %v2937 = vadd.f32 0.0, %v2936
  %v2938 = vpop.f32.mrf.mxu0
  %2939 = vmatprep.mubr.f32.mxu0 0.0
  %2940 = vmatmul.mubr.f32.gmra.mxu0 %v2834
  %v2941 = vpop.f32.mrf.mxu0
  %v2942 = vadd.f32 0.0, %v2941
  %v2943 = vpop.f32.mrf.mxu0
  %2944 = vmatprep.mubr.f32.mxu0 0.0
  %2945 = vmatmul.mubr.f32.gmra.mxu0 %v2835
  %v2946 = vpop.f32.mrf.mxu0
  %v2947 = vadd.f32 0.0, %v2946
  %v2948 = vpop.f32.mrf.mxu0
  %2949 = vmatprep.mubr.f32.mxu0 0.0
  %2950 = vmatmul.mubr.f32.gmra.mxu0 %v2836
  %v2951 = vpop.f32.mrf.mxu0
  %v2952 = vadd.f32 0.0, %v2951
  %v2953 = vpop.f32.mrf.mxu0
  %2954 = vmatprep.mubr.f32.mxu0 0.0
  %2955 = vmatmul.mubr.f32.gmra.mxu0 %v2837
  %v2956 = vpop.f32.mrf.mxu0
  %v2957 = vadd.f32 0.0, %v2956
  %v2958 = vpop.f32.mrf.mxu0
  %2959 = vmatprep.mubr.f32.mxu0 0.0
  %2960 = vmatmul.mubr.f32.gmra.mxu0 %v2838
  %v2961 = vpop.f32.mrf.mxu0
  %v2962 = vadd.f32 0.0, %v2961
  %v2963 = vpop.f32.mrf.mxu0
  %2964 = vmatprep.mubr.f32.mxu0 0.0
  %2965 = vmatmul.mubr.f32.gmra.mxu0 %v2839
  %v2966 = vpop.f32.mrf.mxu0
  %v2967 = vadd.f32 0.0, %v2966
  %v2968 = vpop.f32.mrf.mxu0
  %2969 = vmatprep.mubr.f32.mxu0 0.0
  %2970 = vmatmul.mubr.f32.gmra.mxu0 %v2840
  %v2971 = vpop.f32.mrf.mxu0
  %v2972 = vadd.f32 0.0, %v2971
  %v2973 = vpop.f32.mrf.mxu0
  %2974 = vmatprep.mubr.f32.mxu0 0.0
  %2975 = vmatmul.mubr.f32.gmra.mxu0 %v2841
  %v2976 = vpop.f32.mrf.mxu0
  %v2977 = vadd.f32 0.0, %v2976
  %v2978 = vpop.f32.mrf.mxu0
  %2979 = vmatprep.mubr.f32.mxu0 0.0
  %2980 = vmatmul.mubr.f32.gmra.mxu0 %v2842
  %v2981 = vpop.f32.mrf.mxu0
  %v2982 = vadd.f32 0.0, %v2981
  %v2983 = vpop.f32.mrf.mxu0
  %2984 = vmatprep.mubr.f32.mxu0 0.0
  %2985 = vmatmul.mubr.f32.gmra.mxu0 %v2843
  %v2986 = vpop.f32.mrf.mxu0
  %v2987 = vadd.f32 0.0, %v2986
  %v2988 = vpop.f32.mrf.mxu0
  %2989 = vmatprep.mubr.f32.mxu0 0.0
  %2990 = vmatmul.mubr.f32.gmra.mxu0 %v2844
  %v2991 = vpop.f32.mrf.mxu0
  %v2992 = vadd.f32 0.0, %v2991
  %v2993 = vpop.f32.mrf.mxu0
  %2994 = vmatprep.mubr.f32.mxu0 0.0
  %2995 = vmatmul.mubr.f32.gmra.mxu0 %v2845
  %v2996 = vpop.f32.mrf.mxu0
  %v2997 = vadd.f32 0.0, %v2996
  %v2998 = vpop.f32.mrf.mxu0
  %2999 = vmatprep.mubr.f32.mxu0 0.0
  %3000 = vmatmul.mubr.f32.gmra.mxu0 %v2846
  %v3001 = vpop.f32.mrf.mxu0
  %v3002 = vadd.f32 0.0, %v3001
  %v3003 = vpop.f32.mrf.mxu0
  %3004 = vmatprep.mubr.f32.mxu0 0.0
  %3005 = vmatmul.mubr.f32.gmra.mxu0 %v2847
  %v3006 = vpop.f32.mrf.mxu0
  %v3007 = vadd.f32 0.0, %v3006
  %v3008 = vpop.f32.mrf.mxu0
  %3009 = vmatprep.mubr.f32.mxu0 0.0
  %3010 = vmatmul.mubr.f32.gmra.mxu0 %v2848
  %v3011 = vpop.f32.mrf.mxu0
  %v3012 = vadd.f32 0.0, %v3011
  %v3013 = vpop.f32.mrf.mxu0
  %3014 = vmatprep.mubr.f32.mxu0 0.0
  %3015 = vmatmul.mubr.f32.gmra.mxu0 %v2849
  %v3016 = vpop.f32.mrf.mxu0
  %v3017 = vadd.f32 0.0, %v3016
  %v3018 = vpop.f32.mrf.mxu0
  %3019 = vmatprep.mubr.f32.mxu0 0.0
  %3020 = vmatmul.mubr.f32.gmra.mxu0 %v2850
  %v3021 = vpop.f32.mrf.mxu0
  %v3022 = vadd.f32 0.0, %v3021
  %v3023 = vpop.f32.mrf.mxu0
  %3024 = vmatprep.mubr.f32.mxu0 0.0
  %3025 = vmatmul.mubr.f32.gmra.mxu0 %v2851
  %v3026 = vpop.f32.mrf.mxu0
  %v3027 = vadd.f32 0.0, %v3026
  %v3028 = vpop.f32.mrf.mxu0
  %3029 = vmatprep.mubr.f32.mxu0 0.0
  %3030 = vmatmul.mubr.f32.gmra.mxu0 %v2852
  %v3031 = vpop.f32.mrf.mxu0
  %v3032 = vadd.f32 0.0, %v3031
  %v3033 = vpop.f32.mrf.mxu0
  %3034 = vmatprep.mubr.f32.mxu0 0.0
  %3035 = vmatmul.mubr.f32.gmra.mxu0 %v2853
  %v3036 = vpop.f32.mrf.mxu0
  %v3037 = vadd.f32 0.0, %v3036
  %v3038 = vpop.f32.mrf.mxu0
  %3039 = vmatprep.mubr.f32.mxu0 0.0
  %3040 = vmatmul.mubr.f32.gmra.mxu0 %v2854
  %v3041 = vpop.f32.mrf.mxu0
  %v3042 = vadd.f32 0.0, %v3041
  %v3043 = vpop.f32.mrf.mxu0
  %3044 = vdwg.mxu0
  %vm3052 = vcmask 1045504
  %v3053 = vrot.slane %v2952, 2
  %v3054 = vrot.slane %v2957, 2
  %v3055 = vsel %vm3052, %v3053, %v3054
  %v3056 = vrot.slane %v2962, 2
  %v3057 = vsel %vm3052, %v3054, %v3056
  %v3058 = vrot.slane %v2967, 2
  %v3059 = vsel %vm3052, %v3056, %v3058
  %v3060 = vrot.slane %v2972, 2
  %v3061 = vsel %vm3052, %v3058, %v3060
  %v3062 = vrot.slane %v2977, 2
  %v3063 = vsel %vm3052, %v3060, %v3062
  %v3064 = vrot.slane %v2982, 2
  %v3065 = vsel %vm3052, %v3062, %v3064
  %3066 = vrot.lane.b32.xlu0 %v3055, 16
  %v3067 = vpop.permute.xlu0 %3066
  %3068 = vrot.lane.b32.xlu0 %v3057, 16
  %v3069 = vpop.permute.xlu0 %3068
  %3070 = vrot.lane.b32.xlu0 %v3059, 16
  %v3071 = vpop.permute.xlu0 %3070
  %3072 = vrot.lane.b32.xlu0 %v3061, 16
  %v3073 = vpop.permute.xlu0 %3072
  %3074 = vrot.lane.b32.xlu0 %v3063, 16
  %v3075 = vpop.permute.xlu0 %3074
  %3076 = vrot.lane.b32.xlu0 %v3065, 16
  %v3077 = vpop.permute.xlu0 %3076
  %3078 = vrot.lane.b32.xlu0 %v3064, 16
  %v3079 = vpop.permute.xlu0 %3078
  %v3093 = vrot.slane %v2982, 4
  %v3094 = vrot.slane %v2987, 4
  %v3095 = vsel %vm303, %v3093, %v3094
  %v3096 = vrot.slane %v2992, 4
  %v3097 = vsel %vm303, %v3094, %v3096
  %v3098 = vrot.slane %v2997, 4
  %v3099 = vsel %vm303, %v3096, %v3098
  %v3100 = vrot.slane %v3002, 4
  %v3101 = vsel %vm303, %v3098, %v3100
  %v3102 = vrot.slane %v3007, 4
  %v3103 = vsel %vm303, %v3100, %v3102
  %v3104 = vrot.slane %v3012, 4
  %v3105 = vsel %vm303, %v3102, %v3104
  %3106 = vrot.lane.b32.xlu0 %v3095, 32
  %v3107 = vpop.permute.xlu0 %3106
  %3108 = vrot.lane.b32.xlu0 %v3097, 32
  %v3109 = vpop.permute.xlu0 %3108
  %3110 = vrot.lane.b32.xlu0 %v3099, 32
  %v3111 = vpop.permute.xlu0 %3110
  %3112 = vrot.lane.b32.xlu0 %v3101, 32
  %v3113 = vpop.permute.xlu0 %3112
  %3114 = vrot.lane.b32.xlu0 %v3103, 32
  %v3115 = vpop.permute.xlu0 %3114
  %3116 = vrot.lane.b32.xlu0 %v3105, 32
  %v3117 = vpop.permute.xlu0 %3116
  %3118 = vrot.lane.b32.xlu0 %v3104, 32
  %v3119 = vpop.permute.xlu0 %3118
  %v3133 = vrot.slane %v3012, 6
  %v3134 = vrot.slane %v3017, 6
  %v3135 = vsel %vm1405, %v3133, %v3134
  %v3136 = vrot.slane %v3022, 6
  %v3137 = vsel %vm1405, %v3134, %v3136
  %v3138 = vrot.slane %v3027, 6
  %v3139 = vsel %vm1405, %v3136, %v3138
  %v3140 = vrot.slane %v3032, 6
  %v3141 = vsel %vm1405, %v3138, %v3140
  %v3142 = vrot.slane %v3037, 6
  %v3143 = vsel %vm1405, %v3140, %v3142
  %v3144 = vrot.slane %v3042, 6
  %v3145 = vsel %vm1405, %v3142, %v3144
  %3146 = vrot.lane.b32.xlu0 %v3135, 48
  %v3147 = vpop.permute.xlu0 %3146
  %3148 = vrot.lane.b32.xlu0 %v3137, 48
  %v3149 = vpop.permute.xlu0 %3148
  %3150 = vrot.lane.b32.xlu0 %v3139, 48
  %v3151 = vpop.permute.xlu0 %3150
  %3152 = vrot.lane.b32.xlu0 %v3141, 48
  %v3153 = vpop.permute.xlu0 %3152
  %3154 = vrot.lane.b32.xlu0 %v3143, 48
  %v3155 = vpop.permute.xlu0 %3154
  %3156 = vrot.lane.b32.xlu0 %v3145, 48
  %v3157 = vpop.permute.xlu0 %3156
  %3158 = vrot.lane.b32.xlu0 %v3144, 48
  %v3159 = vpop.permute.xlu0 %3158
  %v3167 = vsel %vm2388, %v2922, %v3067
  %v3168 = vsel %vm2388, %v2927, %v3069
  %v3169 = vsel %vm2388, %v2932, %v3071
  %v3170 = vsel %vm2388, %v2937, %v3073
  %v3171 = vsel %vm2388, %v2942, %v3075
  %v3172 = vsel %vm2388, %v2947, %v3077
  %v3173 = vsel %vm2388, %v2952, %v3079
  %v3174 = vsel %vm2426, %v3167, %v3107
  %v3175 = vsel %vm2426, %v3168, %v3109
  %v3176 = vsel %vm2426, %v3169, %v3111
  %v3177 = vsel %vm2426, %v3170, %v3113
  %v3178 = vsel %vm2426, %v3171, %v3115
  %v3179 = vsel %vm2426, %v3172, %v3117
  %v3180 = vsel %vm2426, %v3173, %v3119
  %vm3181 = vcmask 392192
  %v3182 = vsel %vm3181, %v3174, %v3147
  %v3183 = vsel %vm3181, %v3175, %v3149
  %v3184 = vsel %vm3181, %v3176, %v3151
  %v3185 = vsel %vm3181, %v3177, %v3153
  %v3186 = vsel %vm3181, %v3178, %v3155
  %v3187 = vsel %vm3181, %v3179, %v3157
  %v3188 = vsel %vm3181, %v3180, %v3159
  %v3189 = vld [vmem:[%s5] sm:$0xff]
  %v3190 = vld [vmem:[%s5 + $0x8] sm:$0xff]
  %v3191 = vld [vmem:[%s5 + $0x10] sm:$0xff]
  %v3192 = vld [vmem:[%s5 + $0x18] sm:$0xff]
  %v3193 = vld [vmem:[%s5 + $0x20] sm:$0xff]
  %v3194 = vld [vmem:[%s5 + $0x28] sm:$0xff]
  %v3195 = vld [vmem:[%s5 + $0x30] sm:$0xff]
  %v3196 = vld [vmem:[%s5 + $0x38] sm:$0xff]
  %vm3197 = vcmask 523264
  %v3199 = vsel %vm3197, %v3182, 0
  %v3202 = vsel %vm3197, %v3183, 0
  %v3205 = vsel %vm3197, %v3184, 0
  %v3208 = vsel %vm3197, %v3185, 0
  %v3211 = vsel %vm3197, %v3186, 0
  %v3214 = vsel %vm3197, %v3187, 0
  %v3217 = vsel %vm3197, %v3188, 0
  %3219 = vmatprep.subr.mxu0 0.0
  %3220 = vmatpush1.msra.mxu0 0.0
  %3221 = vmatprep.subr.mxu0 0.0
  %3222 = vmatpush1.msra.mxu0 0.0
  %3223 = vmatprep.subr.mxu0 0.0
  %3224 = vmatpush1.msra.mxu0 0.0
  %3225 = vmatprep.subr.mxu0 0.0
  %3226 = vmatpush1.msra.mxu0 0.0
  %3227 = vmatprep.subr.mxu0 0.0
  %3228 = vmatpush1.msra.mxu0 0.0
  %3229 = vmatprep.subr.mxu0 0.0
  %3230 = vmatpush1.msra.mxu0 0.0
  %3231 = vmatprep.subr.mxu0 0.0
  %3232 = vmatpush1.msra.mxu0 0.0
  %3233 = vmatprep.subr.mxu0 0.0
  %3234 = vmatpush1.msra.mxu0 0.0
  %3235 = vmatprep.subr.mxu0 0.0
  %3236 = vmatpush1.msra.mxu0 %v3196
  %3237 = vmatprep.subr.mxu0 0.0
  %3238 = vmatpush1.msra.mxu0 %v3195
  %3239 = vmatprep.subr.mxu0 0.0
  %3240 = vmatpush1.msra.mxu0 %v3194
  %3241 = vmatprep.subr.mxu0 0.0
  %3242 = vmatpush1.msra.mxu0 %v3193
  %3243 = vmatprep.subr.mxu0 0.0
  %3244 = vmatpush1.msra.mxu0 %v3192
  %3245 = vmatprep.subr.mxu0 0.0
  %3246 = vmatpush1.msra.mxu0 %v3191
  %3247 = vmatprep.subr.mxu0 0.0
  %3248 = vmatpush1.msra.mxu0 %v3190
  %3249 = vmatprep.subr.mxu0 0.0
  %3250 = vmatpush1.msra.mxu0 %v3189
  %3251 = vmatprep.subr.mxu0 0.0
  %3252 = vmatpush2.msra.mxu0 0.0
  %3253 = vmatprep.subr.mxu0 0.0
  %3254 = vmatpush2.msra.mxu0 0.0
  %3255 = vmatprep.subr.mxu0 0.0
  %3256 = vmatpush2.msra.mxu0 0.0
  %3257 = vmatprep.subr.mxu0 0.0
  %3258 = vmatpush2.msra.mxu0 0.0
  %3259 = vmatprep.subr.mxu0 0.0
  %3260 = vmatpush2.msra.mxu0 0.0
  %3261 = vmatprep.subr.mxu0 0.0
  %3262 = vmatpush2.msra.mxu0 0.0
  %3263 = vmatprep.subr.mxu0 0.0
  %3264 = vmatpush2.msra.mxu0 0.0
  %3265 = vmatprep.subr.mxu0 0.0
  %3266 = vmatpush2.msra.mxu0 0.0
  %3267 = vmatprep.subr.mxu0 0.0
  %3268 = vmatpush2.msra.mxu0 0.0
  %3269 = vmatprep.subr.mxu0 0.0
  %3270 = vmatpush2.msra.mxu0 0.0
  %3271 = vmatprep.subr.mxu0 0.0
  %3272 = vmatpush2.msra.mxu0 0.0
  %3273 = vmatprep.subr.mxu0 0.0
  %3274 = vmatpush2.msra.mxu0 0.0
  %3275 = vmatprep.subr.mxu0 0.0
  %3276 = vmatpush2.msra.mxu0 0.0
  %3277 = vmatprep.subr.mxu0 0.0
  %3278 = vmatpush2.msra.mxu0 0.0
  %3279 = vmatprep.subr.mxu0 0.0
  %3280 = vmatpush2.msra.mxu0 0.0
  %3281 = vmatprep.subr.mxu0 0.0
  %3282 = vmatpush2.msra.mxu0 0.0
  %3283 = vmatprep.mubr.f32.mxu0 0.0
  %3284 = vmatmul.mubr.f32.gmra.mxu0 %v3199
  %v3285 = vpop.f32.mrf.mxu0
  %v3286 = vadd.f32 0.0, %v3285
  %v3287 = vpop.f32.mrf.mxu0
  %3288 = vmatprep.mubr.f32.mxu0 0.0
  %3289 = vmatmul.mubr.f32.gmra.mxu0 %v3202
  %v3290 = vpop.f32.mrf.mxu0
  %v3291 = vadd.f32 0.0, %v3290
  %v3292 = vpop.f32.mrf.mxu0
  %3293 = vmatprep.mubr.f32.mxu0 0.0
  %3294 = vmatmul.mubr.f32.gmra.mxu0 %v3205
  %v3295 = vpop.f32.mrf.mxu0
  %v3296 = vadd.f32 0.0, %v3295
  %v3297 = vpop.f32.mrf.mxu0
  %3298 = vmatprep.mubr.f32.mxu0 0.0
  %3299 = vmatmul.mubr.f32.gmra.mxu0 %v3208
  %v3300 = vpop.f32.mrf.mxu0
  %v3301 = vadd.f32 0.0, %v3300
  %v3302 = vpop.f32.mrf.mxu0
  %3303 = vmatprep.mubr.f32.mxu0 0.0
  %3304 = vmatmul.mubr.f32.gmra.mxu0 %v3211
  %v3305 = vpop.f32.mrf.mxu0
  %v3306 = vadd.f32 0.0, %v3305
  %v3307 = vpop.f32.mrf.mxu0
  %3308 = vmatprep.mubr.f32.mxu0 0.0
  %3309 = vmatmul.mubr.f32.gmra.mxu0 %v3214
  %v3310 = vpop.f32.mrf.mxu0
  %v3311 = vadd.f32 0.0, %v3310
  %v3312 = vpop.f32.mrf.mxu0
  %3313 = vmatprep.mubr.f32.mxu0 0.0
  %3314 = vmatmul.mubr.f32.gmra.mxu0 %v3217
  %v3315 = vpop.f32.mrf.mxu0
  %v3316 = vadd.f32 0.0, %v3315
  %v3317 = vpop.f32.mrf.mxu0
  %3318 = vdwg.mxu0
  %v3319 = vld [vmem:[%s6] sm:$0x1]
  %v3320 = vld [vmem:[%s6 + $0x1] sm:$0x1]
  %v3321 = vsel %vm2426, %v3286, 0.0
  %v3322 = vsel %vm2426, %v3291, 0.0
  %v3323 = vadd.f32 %v3321, %v3322
  %v3324 = vsel %vm2426, %v3296, 0.0
  %v3325 = vadd.f32 %v3323, %v3324
  %v3326 = vsel %vm2426, %v3301, 0.0
  %v3327 = vadd.f32 %v3325, %v3326
  %v3328 = vsel %vm2426, %v3306, 0.0
  %v3329 = vadd.f32 %v3327, %v3328
  %v3330 = vsel %vm2426, %v3311, 0.0
  %v3331 = vadd.f32 %v3329, %v3330
  %vm3332 = vcmask 254976
  %v3333 = vsel %vm3332, %v3316, 0.0
  %v3334 = vadd.f32 %v3331, %v3333
  %v3335 = vrot.slane %v3334, 4
  %v3336 = vadd.f32 %v3334, %v3335
  %v3337 = vrot.slane %v3336, 2
  %v3338 = vadd.f32 %v3336, %v3337
  %v3339 = vrot.slane %v3338, 1
  %v3340 = vadd.f32 %v3338, %v3339
  %v3341 = vrcp.pop 50.0
  %v3342 = vmul.f32 %v3340, %v3341
  %v3343 = vsub.f32 %v3286, %v3342
  %v3344 = vsub.f32 %v3291, %v3342
  %v3345 = vsub.f32 %v3296, %v3342
  %v3346 = vsub.f32 %v3301, %v3342
  %v3347 = vsub.f32 %v3306, %v3342
  %v3348 = vsub.f32 %v3311, %v3342
  %v3349 = vsub.f32 %v3316, %v3342
  %v3350 = vmul.f32 %v3343, %v3343
  %v3351 = vmul.f32 %v3344, %v3344
  %v3352 = vmul.f32 %v3345, %v3345
  %v3353 = vmul.f32 %v3346, %v3346
  %v3354 = vmul.f32 %v3347, %v3347
  %v3355 = vmul.f32 %v3348, %v3348
  %v3356 = vmul.f32 %v3349, %v3349
  %v3357 = vsel %vm2426, %v3350, 0.0
  %v3358 = vsel %vm2426, %v3351, 0.0
  %v3359 = vadd.f32 %v3357, %v3358
  %v3360 = vsel %vm2426, %v3352, 0.0
  %v3361 = vadd.f32 %v3359, %v3360
  %v3362 = vsel %vm2426, %v3353, 0.0
  %v3363 = vadd.f32 %v3361, %v3362
  %v3364 = vsel %vm2426, %v3354, 0.0
  %v3365 = vadd.f32 %v3363, %v3364
  %v3366 = vsel %vm2426, %v3355, 0.0
  %v3367 = vadd.f32 %v3365, %v3366
  %v3368 = vsel %vm3332, %v3356, 0.0
  %v3369 = vadd.f32 %v3367, %v3368
  %v3370 = vrot.slane %v3369, 4
  %v3371 = vadd.f32 %v3369, %v3370
  %v3372 = vrot.slane %v3371, 2
  %v3373 = vadd.f32 %v3371, %v3372
  %v3374 = vrot.slane %v3373, 1
  %v3375 = vadd.f32 %v3373, %v3374
  %v3376 = vmul.f32 %v3375, %v3341
  %v3377 = vadd.f32 %v3376, 1e-05
  %v3378 = vrsqrt.pop %v3377
  %v3379 = vmul.f32 %v3343, %v3378
  %v3380 = vmul.f32 %v3344, %v3378
  %v3381 = vmul.f32 %v3345, %v3378
  %v3382 = vmul.f32 %v3346, %v3378
  %v3383 = vmul.f32 %v3347, %v3378
  %v3384 = vmul.f32 %v3348, %v3378
  %v3385 = vlaneseq
  %v3386 = vshrl.u32 %v3385, 7
  %v3387 = vsub.s32 0, %v3386
  %v3388 = vrot.slane %v3319, %v3387
  %v3389 = vmul.f32 %v3379, %v3388
  %v3390 = vmul.f32 %v3380, %v3388
  %v3391 = vmul.f32 %v3381, %v3388
  %v3392 = vmul.f32 %v3382, %v3388
  %v3393 = vmul.f32 %v3383, %v3388
  %v3394 = vmul.f32 %v3384, %v3388
  %v3395 = vlaneseq
  %v3396 = vshrl.u32 %v3395, 7
  %v3397 = vsub.s32 0, %v3396
  %v3398 = vrot.slane %v3320, %v3397
  %v3399 = vadd.f32 %v3389, %v3398
  %v3400 = vadd.f32 %v3390, %v3398
  %v3401 = vadd.f32 %v3391, %v3398
  %v3402 = vadd.f32 %v3392, %v3398
  %v3403 = vadd.f32 %v3393, %v3398
  %v3404 = vadd.f32 %v3394, %v3398
  %v3405 = vmax.f32 %v3399, 0.0
  %v3406 = vmax.f32 %v3400, 0.0
  %v3407 = vmax.f32 %v3401, 0.0
  %v3408 = vmax.f32 %v3402, 0.0
  %v3409 = vmax.f32 %v3403, 0.0
  %v3410 = vmax.f32 %v3404, 0.0
  %v3412 = vrot.slane %v3405, 1
  %3413 = vrot.lane.b32.xlu0 %v3412, 32
  %v3414 = vpop.permute.xlu0 %3413
  %v3416 = vrot.slane %v3405, 2
  %3417 = vrot.lane.b32.xlu0 %v3416, 64
  %v3418 = vpop.permute.xlu0 %3417
  %v3420 = vrot.slane %v3405, 3
  %3421 = vrot.lane.b32.xlu0 %v3420, 96
  %v3422 = vpop.permute.xlu0 %3421
  %v3424 = vrot.slane %v3405, 5
  %v3426 = vrot.slane %v3405, 6
  %3427 = vrot.lane.b32.xlu0 %v3426, 32
  %v3428 = vpop.permute.xlu0 %3427
  %v3430 = vrot.slane %v3405, 7
  %3431 = vrot.lane.b32.xlu0 %v3430, 64
  %v3432 = vpop.permute.xlu0 %3431
  %3435 = vrot.lane.b32.xlu0 %v3406, 96
  %v3436 = vpop.permute.xlu0 %3435
  %v3438 = vrot.slane %v3406, 2
  %v3440 = vrot.slane %v3406, 3
  %3441 = vrot.lane.b32.xlu0 %v3440, 32
  %v3442 = vpop.permute.xlu0 %3441
  %v3444 = vrot.slane %v3406, 4
  %3445 = vrot.lane.b32.xlu0 %v3444, 64
  %v3446 = vpop.permute.xlu0 %3445
  %v3448 = vrot.slane %v3406, 5
  %3449 = vrot.lane.b32.xlu0 %v3448, 96
  %v3450 = vpop.permute.xlu0 %3449
  %v3452 = vrot.slane %v3406, 7
  %3455 = vrot.lane.b32.xlu0 %v3407, 32
  %v3456 = vpop.permute.xlu0 %3455
  %v3458 = vrot.slane %v3407, 1
  %3459 = vrot.lane.b32.xlu0 %v3458, 64
  %v3460 = vpop.permute.xlu0 %3459
  %v3462 = vrot.slane %v3407, 2
  %3463 = vrot.lane.b32.xlu0 %v3462, 96
  %v3464 = vpop.permute.xlu0 %3463
  %v3466 = vsel %vm2426, %v3405, %v3414
  %v3467 = vsel %vm3197, %v3466, %v3418
  %vm3468 = vcmask 785408
  %v3469 = vsel %vm3468, %v3467, %v3422
  %v3470 = vsel %vm2426, %v3424, %v3428
  %v3471 = vsel %vm3197, %v3470, %v3432
  %v3472 = vsel %vm3468, %v3471, %v3436
  %v3473 = vsel %vm2426, %v3438, %v3442
  %v3474 = vsel %vm3197, %v3473, %v3446
  %v3475 = vsel %vm3468, %v3474, %v3450
  %v3476 = vsel %vm2426, %v3452, %v3456
  %v3477 = vsel %vm3197, %v3476, %v3460
  %v3478 = vsel %vm3468, %v3477, %v3464
  %v3480 = vrot.slane %v3408, 1
  %3481 = vrot.lane.b32.xlu0 %v3480, 32
  %v3482 = vpop.permute.xlu0 %3481
  %v3484 = vrot.slane %v3408, 2
  %3485 = vrot.lane.b32.xlu0 %v3484, 64
  %v3486 = vpop.permute.xlu0 %3485
  %v3488 = vrot.slane %v3408, 3
  %3489 = vrot.lane.b32.xlu0 %v3488, 96
  %v3490 = vpop.permute.xlu0 %3489
  %v3492 = vrot.slane %v3408, 5
  %v3494 = vrot.slane %v3408, 6
  %3495 = vrot.lane.b32.xlu0 %v3494, 32
  %v3496 = vpop.permute.xlu0 %3495
  %v3499 = vrot.slane %v3409, 7
  %3500 = vrot.lane.b32.xlu0 %v3499, 64
  %v3501 = vpop.permute.xlu0 %3500
  %3503 = vrot.lane.b32.xlu0 %v3409, 96
  %v3504 = vpop.permute.xlu0 %3503
  %v3506 = vrot.slane %v3409, 2
  %v3508 = vrot.slane %v3409, 3
  %3509 = vrot.lane.b32.xlu0 %v3508, 32
  %v3510 = vpop.permute.xlu0 %3509
  %v3512 = vrot.slane %v3409, 4
  %3513 = vrot.lane.b32.xlu0 %v3512, 64
  %v3514 = vpop.permute.xlu0 %3513
  %v3516 = vrot.slane %v3409, 5
  %3517 = vrot.lane.b32.xlu0 %v3516, 96
  %v3518 = vpop.permute.xlu0 %3517
  %v3521 = vrot.slane %v3410, 7
  %3523 = vrot.lane.b32.xlu0 %v3410, 32
  %v3524 = vpop.permute.xlu0 %3523
  %v3526 = vrot.slane %v3410, 1
  %3527 = vrot.lane.b32.xlu0 %v3526, 64
  %v3528 = vpop.permute.xlu0 %3527
  %v3530 = vrot.slane %v3410, 2
  %3531 = vrot.lane.b32.xlu0 %v3530, 96
  %v3532 = vpop.permute.xlu0 %3531
  %v3534 = vsel %vm2426, %v3408, %v3482
  %v3535 = vsel %vm3197, %v3534, %v3486
  %v3536 = vsel %vm3468, %v3535, %v3490
  %v3537 = vsel %vm2426, %v3492, %v3496
  %v3538 = vsel %vm3197, %v3537, %v3501
  %v3539 = vsel %vm3468, %v3538, %v3504
  %v3540 = vsel %vm2426, %v3506, %v3510
  %v3541 = vsel %vm3197, %v3540, %v3514
  %v3542 = vsel %vm3468, %v3541, %v3518
  %v3543 = vsel %vm2426, %v3521, %v3524
  %v3544 = vsel %vm3197, %v3543, %v3528
  %v3545 = vsel %vm3468, %v3544, %v3532
  %vm3546 = vcmask 1040384
  %v3547 = vsel %vm3546, %v3469, %v3536
  %v3548 = vsel %vm3546, %v3472, %v3539
  %v3549 = vsel %vm3546, %v3475, %v3542
  %v3550 = vsel %vm3546, %v3478, %v3545
  %v3551 = vld [vmem:[%s7] sm:$0xff]
  %v3552 = vld [vmem:[%s7 + $0x8] sm:$0xff]
  %v3553 = vld [vmem:[%s7 + $0x10] sm:$0xff]
  %v3554 = vld [vmem:[%s7 + $0x18] sm:$0xff]
  %v3555 = vld [vmem:[%s7 + $0x20] sm:$0xff]
  %v3556 = vld [vmem:[%s7 + $0x28] sm:$0xff]
  %v3557 = vld [vmem:[%s7 + $0x30] sm:$0xff]
  %v3558 = vld [vmem:[%s7 + $0x38] sm:$0xff]
  %v3559 = vld [vmem:[%s7 + $0x40] sm:$0xff]
  %v3560 = vld [vmem:[%s7 + $0x48] sm:$0xff]
  %v3561 = vld [vmem:[%s7 + $0x50] sm:$0xff]
  %v3562 = vld [vmem:[%s7 + $0x58] sm:$0xff]
  %v3563 = vld [vmem:[%s7 + $0x60] sm:$0xff]
  %v3564 = vld [vmem:[%s7 + $0x68] sm:$0xff]
  %v3565 = vld [vmem:[%s7 + $0x70] sm:$0xff]
  %v3566 = vld [vmem:[%s7 + $0x78] sm:$0xff]
  %v3567 = vld [vmem:[%s7 + $0x80] sm:$0xff]
  %v3568 = vld [vmem:[%s7 + $0x88] sm:$0xff]
  %v3569 = vld [vmem:[%s7 + $0x90] sm:$0xff]
  %v3570 = vld [vmem:[%s7 + $0x98] sm:$0xff]
  %v3571 = vld [vmem:[%s7 + $0xa0] sm:$0xff]
  %v3572 = vld [vmem:[%s7 + $0xa8] sm:$0xff]
  %v3573 = vld [vmem:[%s7 + $0xb0] sm:$0xff]
  %v3574 = vld [vmem:[%s7 + $0xb8] sm:$0xff]
  %v3575 = vld [vmem:[%s7 + $0xc0] sm:$0xff]
  %v3576 = vld [vmem:[%s7 + $0xc8] sm:$0xff]
  %v3577 = vld [vmem:[%s7 + $0xd0] sm:$0xff]
  %v3578 = vld [vmem:[%s7 + $0xd8] sm:$0xff]
  %v3579 = vld [vmem:[%s7 + $0xe0] sm:$0xff]
  %v3580 = vld [vmem:[%s7 + $0xe8] sm:$0xff]
  %v3581 = vld [vmem:[%s7 + $0xf0] sm:$0xff]
  %v3582 = vld [vmem:[%s7 + $0xf8] sm:$0xff]
  %v3583 = vld [vmem:[%s7 + $0x100] sm:$0xff]
  %v3584 = vld [vmem:[%s7 + $0x108] sm:$0xff]
  %v3585 = vld [vmem:[%s7 + $0x110] sm:$0xff]
  %v3586 = vld [vmem:[%s7 + $0x118] sm:$0xff]
  %v3587 = vld [vmem:[%s7 + $0x120] sm:$0xff]
  %v3588 = vld [vmem:[%s7 + $0x128] sm:$0xff]
  %v3589 = vld [vmem:[%s7 + $0x130] sm:$0xff]
  %v3590 = vld [vmem:[%s7 + $0x138] sm:$0xff]
  %v3591 = vld [vmem:[%s7 + $0x140] sm:$0xff]
  %v3592 = vld [vmem:[%s7 + $0x148] sm:$0xff]
  %v3593 = vld [vmem:[%s7 + $0x150] sm:$0xff]
  %v3594 = vld [vmem:[%s7 + $0x158] sm:$0xff]
  %v3595 = vld [vmem:[%s7 + $0x160] sm:$0xff]
  %v3596 = vld [vmem:[%s7 + $0x168] sm:$0xff]
  %v3597 = vld [vmem:[%s7 + $0x170] sm:$0xff]
  %v3598 = vld [vmem:[%s7 + $0x178] sm:$0xff]
  %v3599 = vld [vmem:[%s7 + $0x180] sm:$0xff]
  %v3600 = vld [vmem:[%s7 + $0x188] sm:$0xff]
  %v3601 = vld [vmem:[%s7 + $0x190] sm:$0xff]
  %v3602 = vld [vmem:[%s7 + $0x198] sm:$0xff]
  %v3603 = vld [vmem:[%s7 + $0x1a0] sm:$0xff]
  %v3604 = vld [vmem:[%s7 + $0x1a8] sm:$0xff]
  %v3605 = vld [vmem:[%s7 + $0x1b0] sm:$0xff]
  %v3606 = vld [vmem:[%s7 + $0x1b8] sm:$0xff]
  %v3607 = vld [vmem:[%s7 + $0x1c0] sm:$0xff]
  %v3608 = vld [vmem:[%s7 + $0x1c8] sm:$0xff]
  %v3609 = vld [vmem:[%s7 + $0x1d0] sm:$0xff]
  %v3610 = vld [vmem:[%s7 + $0x1d8] sm:$0xff]
  %v3611 = vld [vmem:[%s7 + $0x1e0] sm:$0xff]
  %v3612 = vld [vmem:[%s7 + $0x1e8] sm:$0xff]
  %v3613 = vld [vmem:[%s7 + $0x1f0] sm:$0xff]
  %v3614 = vld [vmem:[%s7 + $0x1f8] sm:$0xff]
  %3615 = vmatprep.subr.mxu0 0.0
  %3616 = vmatpush1.msra.mxu0 %v3566
  %3617 = vmatprep.subr.mxu0 0.0
  %3618 = vmatpush1.msra.mxu0 %v3565
  %3619 = vmatprep.subr.mxu0 0.0
  %3620 = vmatpush1.msra.mxu0 %v3564
  %3621 = vmatprep.subr.mxu0 0.0
  %3622 = vmatpush1.msra.mxu0 %v3563
  %3623 = vmatprep.subr.mxu0 0.0
  %3624 = vmatpush1.msra.mxu0 %v3562
  %3625 = vmatprep.subr.mxu0 0.0
  %3626 = vmatpush1.msra.mxu0 %v3561
  %3627 = vmatprep.subr.mxu0 0.0
  %3628 = vmatpush1.msra.mxu0 %v3560
  %3629 = vmatprep.subr.mxu0 0.0
  %3630 = vmatpush1.msra.mxu0 %v3559
  %3631 = vmatprep.subr.mxu0 0.0
  %3632 = vmatpush1.msra.mxu0 %v3558
  %3633 = vmatprep.subr.mxu0 0.0
  %3634 = vmatpush1.msra.mxu0 %v3557
  %3635 = vmatprep.subr.mxu0 0.0
  %3636 = vmatpush1.msra.mxu0 %v3556
  %3637 = vmatprep.subr.mxu0 0.0
  %3638 = vmatpush1.msra.mxu0 %v3555
  %3639 = vmatprep.subr.mxu0 0.0
  %3640 = vmatpush1.msra.mxu0 %v3554
  %3641 = vmatprep.subr.mxu0 0.0
  %3642 = vmatpush1.msra.mxu0 %v3553
  %3643 = vmatprep.subr.mxu0 0.0
  %3644 = vmatpush1.msra.mxu0 %v3552
  %3645 = vmatprep.subr.mxu0 0.0
  %3646 = vmatpush1.msra.mxu0 %v3551
  %3647 = vmatprep.subr.mxu0 0.0
  %3648 = vmatpush2.msra.mxu0 %v3582
  %3649 = vmatprep.subr.mxu0 0.0
  %3650 = vmatpush2.msra.mxu0 %v3581
  %3651 = vmatprep.subr.mxu0 0.0
  %3652 = vmatpush2.msra.mxu0 %v3580
  %3653 = vmatprep.subr.mxu0 0.0
  %3654 = vmatpush2.msra.mxu0 %v3579
  %3655 = vmatprep.subr.mxu0 0.0
  %3656 = vmatpush2.msra.mxu0 %v3578
  %3657 = vmatprep.subr.mxu0 0.0
  %3658 = vmatpush2.msra.mxu0 %v3577
  %3659 = vmatprep.subr.mxu0 0.0
  %3660 = vmatpush2.msra.mxu0 %v3576
  %3661 = vmatprep.subr.mxu0 0.0
  %3662 = vmatpush2.msra.mxu0 %v3575
  %3663 = vmatprep.subr.mxu0 0.0
  %3664 = vmatpush2.msra.mxu0 %v3574
  %3665 = vmatprep.subr.mxu0 0.0
  %3666 = vmatpush2.msra.mxu0 %v3573
  %3667 = vmatprep.subr.mxu0 0.0
  %3668 = vmatpush2.msra.mxu0 %v3572
  %3669 = vmatprep.subr.mxu0 0.0
  %3670 = vmatpush2.msra.mxu0 %v3571
  %3671 = vmatprep.subr.mxu0 0.0
  %3672 = vmatpush2.msra.mxu0 %v3570
  %3673 = vmatprep.subr.mxu0 0.0
  %3674 = vmatpush2.msra.mxu0 %v3569
  %3675 = vmatprep.subr.mxu0 0.0
  %3676 = vmatpush2.msra.mxu0 %v3568
  %3677 = vmatprep.subr.mxu0 0.0
  %3678 = vmatpush2.msra.mxu0 %v3567
  %3679 = vmatprep.mubr.f32.mxu0 %v3548
  %3680 = vmatmul.mubr.f32.gmra.mxu0 %v3547
  %v3681 = vpop.f32.mrf.mxu0
  %v3682 = vadd.f32 0.0, %v3681
  %v3683 = vpop.f32.mrf.mxu0
  %3684 = vdwg.mxu0
  %3685 = vmatprep.subr.mxu0 0.0
  %3686 = vmatpush1.msra.mxu0 %v3598
  %3687 = vmatprep.subr.mxu0 0.0
  %3688 = vmatpush1.msra.mxu0 %v3597
  %3689 = vmatprep.subr.mxu0 0.0
  %3690 = vmatpush1.msra.mxu0 %v3596
  %3691 = vmatprep.subr.mxu0 0.0
  %3692 = vmatpush1.msra.mxu0 %v3595
  %3693 = vmatprep.subr.mxu0 0.0
  %3694 = vmatpush1.msra.mxu0 %v3594
  %3695 = vmatprep.subr.mxu0 0.0
  %3696 = vmatpush1.msra.mxu0 %v3593
  %3697 = vmatprep.subr.mxu0 0.0
  %3698 = vmatpush1.msra.mxu0 %v3592
  %3699 = vmatprep.subr.mxu0 0.0
  %3700 = vmatpush1.msra.mxu0 %v3591
  %3701 = vmatprep.subr.mxu0 0.0
  %3702 = vmatpush1.msra.mxu0 %v3590
  %3703 = vmatprep.subr.mxu0 0.0
  %3704 = vmatpush1.msra.mxu0 %v3589
  %3705 = vmatprep.subr.mxu0 0.0
  %3706 = vmatpush1.msra.mxu0 %v3588
  %3707 = vmatprep.subr.mxu0 0.0
  %3708 = vmatpush1.msra.mxu0 %v3587
  %3709 = vmatprep.subr.mxu0 0.0
  %3710 = vmatpush1.msra.mxu0 %v3586
  %3711 = vmatprep.subr.mxu0 0.0
  %3712 = vmatpush1.msra.mxu0 %v3585
  %3713 = vmatprep.subr.mxu0 0.0
  %3714 = vmatpush1.msra.mxu0 %v3584
  %3715 = vmatprep.subr.mxu0 0.0
  %3716 = vmatpush1.msra.mxu0 %v3583
  %3717 = vmatprep.subr.mxu0 0.0
  %3718 = vmatpush2.msra.mxu0 %v3614
  %3719 = vmatprep.subr.mxu0 0.0
  %3720 = vmatpush2.msra.mxu0 %v3613
  %3721 = vmatprep.subr.mxu0 0.0
  %3722 = vmatpush2.msra.mxu0 %v3612
  %3723 = vmatprep.subr.mxu0 0.0
  %3724 = vmatpush2.msra.mxu0 %v3611
  %3725 = vmatprep.subr.mxu0 0.0
  %3726 = vmatpush2.msra.mxu0 %v3610
  %3727 = vmatprep.subr.mxu0 0.0
  %3728 = vmatpush2.msra.mxu0 %v3609
  %3729 = vmatprep.subr.mxu0 0.0
  %3730 = vmatpush2.msra.mxu0 %v3608
  %3731 = vmatprep.subr.mxu0 0.0
  %3732 = vmatpush2.msra.mxu0 %v3607
  %3733 = vmatprep.subr.mxu0 0.0
  %3734 = vmatpush2.msra.mxu0 %v3606
  %3735 = vmatprep.subr.mxu0 0.0
  %3736 = vmatpush2.msra.mxu0 %v3605
  %3737 = vmatprep.subr.mxu0 0.0
  %3738 = vmatpush2.msra.mxu0 %v3604
  %3739 = vmatprep.subr.mxu0 0.0
  %3740 = vmatpush2.msra.mxu0 %v3603
  %3741 = vmatprep.subr.mxu0 0.0
  %3742 = vmatpush2.msra.mxu0 %v3602
  %3743 = vmatprep.subr.mxu0 0.0
  %3744 = vmatpush2.msra.mxu0 %v3601
  %3745 = vmatprep.subr.mxu0 0.0
  %3746 = vmatpush2.msra.mxu0 %v3600
  %3747 = vmatprep.subr.mxu0 0.0
  %3748 = vmatpush2.msra.mxu0 %v3599
  %3749 = vmatprep.mubr.f32.mxu0 %v3550
  %3750 = vmatmul.mubr.f32.gmra.mxu0 %v3549
  %v3751 = vpop.f32.mrf.mxu0
  %v3752 = vadd.f32 %v3682, %v3751
  %v3753 = vpop.f32.mrf.mxu0
  %3754 = vdwg.mxu0
  %v3755 = vld [vmem:[%s8] sm:$0xff]
  %v3756 = vld [vmem:[%s8 + $0x8] sm:$0xff]
  %v3757 = vld [vmem:[%s8 + $0x10] sm:$0xff]
  %v3758 = vld [vmem:[%s8 + $0x18] sm:$0xff]
  %v3759 = vld [vmem:[%s8 + $0x20] sm:$0xff]
  %v3760 = vld [vmem:[%s8 + $0x28] sm:$0xff]
  %v3761 = vld [vmem:[%s8 + $0x30] sm:$0xff]
  %v3762 = vld [vmem:[%s8 + $0x38] sm:$0xff]
  %v3763 = vld [vmem:[%s9] sm:$0x1]
  %v3765 = vlaneseq
  %v3766 = vshrl.u32 %v3765, 7
  %v3767 = vsub.s32 0, %v3766
  %v3768 = vrot.slane %v3763, %v3767
  %v3771 = vsel %vm3197, %v3752, 0
  %3773 = vmatprep.subr.mxu0 0.0
  %3774 = vmatpush1.msra.mxu0 0.0
  %3775 = vmatprep.subr.mxu0 0.0
  %3776 = vmatpush1.msra.mxu0 0.0
  %3777 = vmatprep.subr.mxu0 0.0
  %3778 = vmatpush1.msra.mxu0 0.0
  %3779 = vmatprep.subr.mxu0 0.0
  %3780 = vmatpush1.msra.mxu0 0.0
  %3781 = vmatprep.subr.mxu0 0.0
  %3782 = vmatpush1.msra.mxu0 0.0
  %3783 = vmatprep.subr.mxu0 0.0
  %3784 = vmatpush1.msra.mxu0 0.0
  %3785 = vmatprep.subr.mxu0 0.0
  %3786 = vmatpush1.msra.mxu0 0.0
  %3787 = vmatprep.subr.mxu0 0.0
  %3788 = vmatpush1.msra.mxu0 0.0
  %3789 = vmatprep.subr.mxu0 0.0
  %3790 = vmatpush1.msra.mxu0 %v3762
  %3791 = vmatprep.subr.mxu0 0.0
  %3792 = vmatpush1.msra.mxu0 %v3761
  %3793 = vmatprep.subr.mxu0 0.0
  %3794 = vmatpush1.msra.mxu0 %v3760
  %3795 = vmatprep.subr.mxu0 0.0
  %3796 = vmatpush1.msra.mxu0 %v3759
  %3797 = vmatprep.subr.mxu0 0.0
  %3798 = vmatpush1.msra.mxu0 %v3758
  %3799 = vmatprep.subr.mxu0 0.0
  %3800 = vmatpush1.msra.mxu0 %v3757
  %3801 = vmatprep.subr.mxu0 0.0
  %3802 = vmatpush1.msra.mxu0 %v3756
  %3803 = vmatprep.subr.mxu0 0.0
  %3804 = vmatpush1.msra.mxu0 %v3755
  %3805 = vmatprep.subr.mxu0 0.0
  %3806 = vmatpush2.msra.mxu0 0.0
  %3807 = vmatprep.subr.mxu0 0.0
  %3808 = vmatpush2.msra.mxu0 0.0
  %3809 = vmatprep.subr.mxu0 0.0
  %3810 = vmatpush2.msra.mxu0 0.0
  %3811 = vmatprep.subr.mxu0 0.0
  %3812 = vmatpush2.msra.mxu0 0.0
  %3813 = vmatprep.subr.mxu0 0.0
  %3814 = vmatpush2.msra.mxu0 0.0
  %3815 = vmatprep.subr.mxu0 0.0
  %3816 = vmatpush2.msra.mxu0 0.0
  %3817 = vmatprep.subr.mxu0 0.0
  %3818 = vmatpush2.msra.mxu0 0.0
  %3819 = vmatprep.subr.mxu0 0.0
  %3820 = vmatpush2.msra.mxu0 0.0
  %3821 = vmatprep.subr.mxu0 0.0
  %3822 = vmatpush2.msra.mxu0 0.0
  %3823 = vmatprep.subr.mxu0 0.0
  %3824 = vmatpush2.msra.mxu0 0.0
  %3825 = vmatprep.subr.mxu0 0.0
  %3826 = vmatpush2.msra.mxu0 0.0
  %3827 = vmatprep.subr.mxu0 0.0
  %3828 = vmatpush2.msra.mxu0 0.0
  %3829 = vmatprep.subr.mxu0 0.0
  %3830 = vmatpush2.msra.mxu0 0.0
  %3831 = vmatprep.subr.mxu0 0.0
  %3832 = vmatpush2.msra.mxu0 0.0
  %3833 = vmatprep.subr.mxu0 0.0
  %3834 = vmatpush2.msra.mxu0 0.0
  %3835 = vmatprep.subr.mxu0 0.0
  %3836 = vmatpush2.msra.mxu0 0.0
  %3837 = vmatprep.mubr.f32.mxu0 0.0
  %3838 = vmatmul.mubr.f32.gmra.mxu0 %v3771
  %v3839 = vpop.f32.mrf.mxu0
  %v3840 = vadd.f32 %v3768, %v3839
  %v3841 = vpop.f32.mrf.mxu0
  %3842 = vdwg.mxu0
  %vm3843 = vcmask 156672
  %3844 = vst.msk [vmem:[%s23] sm:$0x3] %vm3843, %v3840
  %v3845 = vmul.f32 %v3840, 0.5
  %v3846 = vmul.f32 %v3845, 1.442695
  %v3847 = vpow.pop %v3846
  %v3848 = vld [vmem:[%s1] sm:$0x3]
  %3850 = vrot.lane.b32.xlu0 %v3848, 10
  %v3851 = vpop.permute.xlu0 %3850
  %v3853 = vmul.f32 %v3847, %v3851
  %3855 = vrot.lane.b32.xlu0 %v3853, 118
  %v3856 = vpop.permute.xlu0 %3855
  %v3858 = vadd.f32 %v3840, %v3856
  %v3859 = vld [vmem:[%s10] sm:$0xff]
  %v3860 = vld [vmem:[%s10 + $0x8] sm:$0xff]
  %v3861 = vld [vmem:[%s10 + $0x10] sm:$0xff]
  %v3862 = vld [vmem:[%s10 + $0x18] sm:$0xff]
  %v3863 = vld [vmem:[%s10 + $0x20] sm:$0x3]
  %v3864 = vld [vmem:[%s10 + $0x28] sm:$0x3]
  %v3865 = vld [vmem:[%s10 + $0x30] sm:$0x3]
  %v3866 = vld [vmem:[%s10 + $0x38] sm:$0x3]
  %vm3867 = vcmask 80896
  %v3869 = vsel %vm3867, %v3858, 0
  %v3872 = vsel %vm1405, %v3863, 0
  %v3875 = vsel %vm1405, %v3864, 0
  %v3878 = vsel %vm1405, %v3865, 0
  %v3881 = vsel %vm1405, %v3866, 0
  %3883 = vmatprep.subr.mxu0 0.0
  %3884 = vmatpush1.msra.mxu0 0.0
  %3885 = vmatprep.subr.mxu0 0.0
  %3886 = vmatpush1.msra.mxu0 0.0
  %3887 = vmatprep.subr.mxu0 0.0
  %3888 = vmatpush1.msra.mxu0 0.0
  %3889 = vmatprep.subr.mxu0 0.0
  %3890 = vmatpush1.msra.mxu0 0.0
  %3891 = vmatprep.subr.mxu0 0.0
  %3892 = vmatpush1.msra.mxu0 0.0
  %3893 = vmatprep.subr.mxu0 0.0
  %3894 = vmatpush1.msra.mxu0 0.0
  %3895 = vmatprep.subr.mxu0 0.0
  %3896 = vmatpush1.msra.mxu0 0.0
  %3897 = vmatprep.subr.mxu0 0.0
  %3898 = vmatpush1.msra.mxu0 0.0
  %3899 = vmatprep.subr.mxu0 0.0
  %3900 = vmatpush1.msra.mxu0 0.0
  %3901 = vmatprep.subr.mxu0 0.0
  %3902 = vmatpush1.msra.mxu0 0.0
  %3903 = vmatprep.subr.mxu0 0.0
  %3904 = vmatpush1.msra.mxu0 0.0
  %3905 = vmatprep.subr.mxu0 0.0
  %3906 = vmatpush1.msra.mxu0 0.0
  %3907 = vmatprep.subr.mxu0 0.0
  %3908 = vmatpush1.msra.mxu0 0.0
  %3909 = vmatprep.subr.mxu0 0.0
  %3910 = vmatpush1.msra.mxu0 0.0
  %3911 = vmatprep.subr.mxu0 %v3875
  %3912 = vmatpush1.msra.mxu0 %v3872
  %3913 = vmatprep.subr.mxu0 %v3860
  %3914 = vmatpush1.msra.mxu0 %v3859
  %3915 = vmatprep.subr.mxu0 0.0
  %3916 = vmatpush2.msra.mxu0 0.0
  %3917 = vmatprep.subr.mxu0 0.0
  %3918 = vmatpush2.msra.mxu0 0.0
  %3919 = vmatprep.subr.mxu0 0.0
  %3920 = vmatpush2.msra.mxu0 0.0
  %3921 = vmatprep.subr.mxu0 0.0
  %3922 = vmatpush2.msra.mxu0 0.0
  %3923 = vmatprep.subr.mxu0 0.0
  %3924 = vmatpush2.msra.mxu0 0.0
  %3925 = vmatprep.subr.mxu0 0.0
  %3926 = vmatpush2.msra.mxu0 0.0
  %3927 = vmatprep.subr.mxu0 0.0
  %3928 = vmatpush2.msra.mxu0 0.0
  %3929 = vmatprep.subr.mxu0 0.0
  %3930 = vmatpush2.msra.mxu0 0.0
  %3931 = vmatprep.subr.mxu0 0.0
  %3932 = vmatpush2.msra.mxu0 0.0
  %3933 = vmatprep.subr.mxu0 0.0
  %3934 = vmatpush2.msra.mxu0 0.0
  %3935 = vmatprep.subr.mxu0 0.0
  %3936 = vmatpush2.msra.mxu0 0.0
  %3937 = vmatprep.subr.mxu0 0.0
  %3938 = vmatpush2.msra.mxu0 0.0
  %3939 = vmatprep.subr.mxu0 0.0
  %3940 = vmatpush2.msra.mxu0 0.0
  %3941 = vmatprep.subr.mxu0 0.0
  %3942 = vmatpush2.msra.mxu0 0.0
  %3943 = vmatprep.subr.mxu0 0.0
  %3944 = vmatpush2.msra.mxu0 0.0
  %3945 = vmatprep.subr.mxu0 0.0
  %3946 = vmatpush2.msra.mxu0 0.0
  %3947 = vmatprep.mubr.f32.mxu0 0.0
  %3948 = vmatmul.mubr.f32.gmra.mxu0 %v3869
  %v3949 = vpop.f32.mrf.mxu0
  %v3950 = vadd.f32 0.0, %v3949
  %v3951 = vpop.f32.mrf.mxu0
  %v3952 = vadd.f32 0.0, %v3951
  %3953 = vdwg.mxu0
  %3954 = vmatprep.subr.mxu0 0.0
  %3955 = vmatpush1.msra.mxu0 0.0
  %3956 = vmatprep.subr.mxu0 0.0
  %3957 = vmatpush1.msra.mxu0 0.0
  %3958 = vmatprep.subr.mxu0 0.0
  %3959 = vmatpush1.msra.mxu0 0.0
  %3960 = vmatprep.subr.mxu0 0.0
  %3961 = vmatpush1.msra.mxu0 0.0
  %3962 = vmatprep.subr.mxu0 0.0
  %3963 = vmatpush1.msra.mxu0 0.0
  %3964 = vmatprep.subr.mxu0 0.0
  %3965 = vmatpush1.msra.mxu0 0.0
  %3966 = vmatprep.subr.mxu0 0.0
  %3967 = vmatpush1.msra.mxu0 0.0
  %3968 = vmatprep.subr.mxu0 0.0
  %3969 = vmatpush1.msra.mxu0 0.0
  %3970 = vmatprep.subr.mxu0 0.0
  %3971 = vmatpush1.msra.mxu0 0.0
  %3972 = vmatprep.subr.mxu0 0.0
  %3973 = vmatpush1.msra.mxu0 0.0
  %3974 = vmatprep.subr.mxu0 0.0
  %3975 = vmatpush1.msra.mxu0 0.0
  %3976 = vmatprep.subr.mxu0 0.0
  %3977 = vmatpush1.msra.mxu0 0.0
  %3978 = vmatprep.subr.mxu0 0.0
  %3979 = vmatpush1.msra.mxu0 0.0
  %3980 = vmatprep.subr.mxu0 0.0
  %3981 = vmatpush1.msra.mxu0 0.0
  %3982 = vmatprep.subr.mxu0 %v3881
  %3983 = vmatpush1.msra.mxu0 %v3878
  %3984 = vmatprep.subr.mxu0 %v3862
  %3985 = vmatpush1.msra.mxu0 %v3861
  %3986 = vmatprep.subr.mxu0 0.0
  %3987 = vmatpush2.msra.mxu0 0.0
  %3988 = vmatprep.subr.mxu0 0.0
  %3989 = vmatpush2.msra.mxu0 0.0
  %3990 = vmatprep.subr.mxu0 0.0
  %3991 = vmatpush2.msra.mxu0 0.0
  %3992 = vmatprep.subr.mxu0 0.0
  %3993 = vmatpush2.msra.mxu0 0.0
  %3994 = vmatprep.subr.mxu0 0.0
  %3995 = vmatpush2.msra.mxu0 0.0
  %3996 = vmatprep.subr.mxu0 0.0
  %3997 = vmatpush2.msra.mxu0 0.0
  %3998 = vmatprep.subr.mxu0 0.0
  %3999 = vmatpush2.msra.mxu0 0.0
  %4000 = vmatprep.subr.mxu0 0.0
  %4001 = vmatpush2.msra.mxu0 0.0
  %4002 = vmatprep.subr.mxu0 0.0
  %4003 = vmatpush2.msra.mxu0 0.0
  %4004 = vmatprep.subr.mxu0 0.0
  %4005 = vmatpush2.msra.mxu0 0.0
  %4006 = vmatprep.subr.mxu0 0.0
  %4007 = vmatpush2.msra.mxu0 0.0
  %4008 = vmatprep.subr.mxu0 0.0
  %4009 = vmatpush2.msra.mxu0 0.0
  %4010 = vmatprep.subr.mxu0 0.0
  %4011 = vmatpush2.msra.mxu0 0.0
  %4012 = vmatprep.subr.mxu0 0.0
  %4013 = vmatpush2.msra.mxu0 0.0
  %4014 = vmatprep.subr.mxu0 0.0
  %4015 = vmatpush2.msra.mxu0 0.0
  %4016 = vmatprep.subr.mxu0 0.0
  %4017 = vmatpush2.msra.mxu0 0.0
  %4018 = vmatprep.mubr.f32.mxu0 0.0
  %4019 = vmatmul.mubr.f32.gmra.mxu0 %v3869
  %v4020 = vpop.f32.mrf.mxu0
  %v4021 = vadd.f32 0.0, %v4020
  %v4022 = vpop.f32.mrf.mxu0
  %v4023 = vadd.f32 0.0, %v4022
  %4024 = vdwg.mxu0
  %vm4025 = vcmp.gt.f32.partialorder %v3950, 0.0
  %vm4026 = vcmp.gt.f32.partialorder %v3952, 0.0
  %vm4027 = vcmp.gt.f32.partialorder %v4021, 0.0
  %vm4028 = vcmp.gt.f32.partialorder %v4023, 0.0
  %v4029 = vmul.f32 %v3950, 0.2
  %v4030 = vmul.f32 %v3952, 0.2
  %v4031 = vmul.f32 %v4021, 0.2
  %v4032 = vmul.f32 %v4023, 0.2
  %v4033 = vsel %vm4025, %v3950, %v4029
  %v4034 = vsel %vm4026, %v3952, %v4030
  %v4035 = vsel %vm4027, %v4021, %v4031
  %v4036 = vsel %vm4028, %v4023, %v4032
  %v4038 = vrot.slane %v4033, 7
  %4039 = vrot.lane.b32.xlu0 %v4038, 96
  %v4040 = vpop.permute.xlu0 %4039
  %v4042 = vrot.slane %v4033, 6
  %4043 = vrot.lane.b32.xlu0 %v4042, 64
  %v4044 = vpop.permute.xlu0 %4043
  %v4046 = vrot.slane %v4033, 5
  %4047 = vrot.lane.b32.xlu0 %v4046, 32
  %v4048 = vpop.permute.xlu0 %4047
  %v4051 = vrot.slane %v4034, 4
  %v4053 = vrot.slane %v4034, 3
  %4054 = vrot.lane.b32.xlu0 %v4053, 96
  %v4055 = vpop.permute.xlu0 %4054
  %v4057 = vrot.slane %v4034, 2
  %4058 = vrot.lane.b32.xlu0 %v4057, 64
  %v4059 = vpop.permute.xlu0 %4058
  %v4061 = vrot.slane %v4034, 1
  %4062 = vrot.lane.b32.xlu0 %v4061, 32
  %v4063 = vpop.permute.xlu0 %4062
  %v4066 = vrot.slane %v4035, 7
  %4067 = vrot.lane.b32.xlu0 %v4066, 96
  %v4068 = vpop.permute.xlu0 %4067
  %v4070 = vrot.slane %v4035, 6
  %4071 = vrot.lane.b32.xlu0 %v4070, 64
  %v4072 = vpop.permute.xlu0 %4071
  %v4074 = vrot.slane %v4035, 5
  %4075 = vrot.lane.b32.xlu0 %v4074, 32
  %v4076 = vpop.permute.xlu0 %4075
  %v4079 = vrot.slane %v4036, 4
  %v4081 = vrot.slane %v4036, 3
  %4082 = vrot.lane.b32.xlu0 %v4081, 96
  %v4083 = vpop.permute.xlu0 %4082
  %v4085 = vrot.slane %v4036, 2
  %4086 = vrot.lane.b32.xlu0 %v4085, 64
  %v4087 = vpop.permute.xlu0 %4086
  %v4089 = vrot.slane %v4036, 1
  %4090 = vrot.lane.b32.xlu0 %v4089, 32
  %v4091 = vpop.permute.xlu0 %4090
  %v4093 = vsel %vm3546, %v4033, %v4040
  %v4094 = vsel %vm1405, %v4093, %v4044
  %vm4095 = vcmask 1042432
  %v4096 = vsel %vm4095, %v4094, %v4048
  %v4097 = vsel %vm303, %v4096, %v4051
  %vm4098 = vcmask 1044480
  %v4099 = vsel %vm4098, %v4097, %v4055
  %v4100 = vsel %vm3052, %v4099, %v4059
  %vm4101 = vcmask 1046528
  %v4102 = vsel %vm4101, %v4100, %v4063
  %v4103 = vsel %vm3546, %v4035, %v4068
  %v4104 = vsel %vm1405, %v4103, %v4072
  %v4105 = vsel %vm4095, %v4104, %v4076
  %v4106 = vsel %vm303, %v4105, %v4079
  %v4107 = vsel %vm4098, %v4106, %v4083
  %v4108 = vsel %vm3052, %v4107, %v4087
  %v4109 = vsel %vm4101, %v4108, %v4091
  %v4110 = vrot.slane %v4033, 1
  %4112 = vrot.lane.b32.xlu0 %v4033, 96
  %v4113 = vpop.permute.xlu0 %4112
  %4115 = vrot.lane.b32.xlu0 %v4038, 64
  %v4116 = vpop.permute.xlu0 %4115
  %4118 = vrot.lane.b32.xlu0 %v4042, 32
  %v4119 = vpop.permute.xlu0 %4118
  %v4121 = vrot.slane %v4034, 5
  %4123 = vrot.lane.b32.xlu0 %v4051, 96
  %v4124 = vpop.permute.xlu0 %4123
  %4126 = vrot.lane.b32.xlu0 %v4053, 64
  %v4127 = vpop.permute.xlu0 %4126
  %4129 = vrot.lane.b32.xlu0 %v4057, 32
  %v4130 = vpop.permute.xlu0 %4129
  %v4132 = vrot.slane %v4035, 1
  %4134 = vrot.lane.b32.xlu0 %v4035, 96
  %v4135 = vpop.permute.xlu0 %4134
  %4137 = vrot.lane.b32.xlu0 %v4066, 64
  %v4138 = vpop.permute.xlu0 %4137
  %4140 = vrot.lane.b32.xlu0 %v4070, 32
  %v4141 = vpop.permute.xlu0 %4140
  %v4143 = vrot.slane %v4036, 5
  %4145 = vrot.lane.b32.xlu0 %v4079, 96
  %v4146 = vpop.permute.xlu0 %4145
  %4148 = vrot.lane.b32.xlu0 %v4081, 64
  %v4149 = vpop.permute.xlu0 %4148
  %4151 = vrot.lane.b32.xlu0 %v4085, 32
  %v4152 = vpop.permute.xlu0 %4151
  %v4154 = vsel %vm3546, %v4110, %v4113
  %v4155 = vsel %vm1405, %v4154, %v4116
  %v4156 = vsel %vm4095, %v4155, %v4119
  %v4157 = vsel %vm303, %v4156, %v4121
  %v4158 = vsel %vm4098, %v4157, %v4124
  %v4159 = vsel %vm3052, %v4158, %v4127
  %v4160 = vsel %vm4101, %v4159, %v4130
  %v4161 = vsel %vm3546, %v4132, %v4135
  %v4162 = vsel %vm1405, %v4161, %v4138
  %v4163 = vsel %vm4095, %v4162, %v4141
  %v4164 = vsel %vm303, %v4163, %v4143
  %v4165 = vsel %vm4098, %v4164, %v4146
  %v4166 = vsel %vm3052, %v4165, %v4149
  %v4167 = vsel %vm4101, %v4166, %v4152
  %v4168 = vld [vmem:[%s11] sm:$0xff]
  %v4169 = vld [vmem:[%s11 + $0x8] sm:$0xff]
  %v4170 = vld [vmem:[%s11 + $0x10] sm:$0xff]
  %v4171 = vld [vmem:[%s11 + $0x18] sm:$0xff]
  %v4173 = vsel %vm2426, %v4102, 0
  %v4176 = vsel %vm2426, %v4109, 0
  %v4179 = vsel %vm2426, %v4160, 0
  %v4182 = vsel %vm2426, %v4167, 0
  %4184 = vmatprep.subr.mxu0 0.0
  %4185 = vmatpush1.msra.mxu0 0.0
  %4186 = vmatprep.subr.mxu0 0.0
  %4187 = vmatpush1.msra.mxu0 0.0
  %4188 = vmatprep.subr.mxu0 0.0
  %4189 = vmatpush1.msra.mxu0 0.0
  %4190 = vmatprep.subr.mxu0 0.0
  %4191 = vmatpush1.msra.mxu0 0.0
  %4192 = vmatprep.subr.mxu0 0.0
  %4193 = vmatpush1.msra.mxu0 0.0
  %4194 = vmatprep.subr.mxu0 0.0
  %4195 = vmatpush1.msra.mxu0 0.0
  %4196 = vmatprep.subr.mxu0 0.0
  %4197 = vmatpush1.msra.mxu0 0.0
  %4198 = vmatprep.subr.mxu0 0.0
  %4199 = vmatpush1.msra.mxu0 0.0
  %4200 = vmatprep.subr.mxu0 0.0
  %4201 = vmatpush1.msra.mxu0 0.0
  %4202 = vmatprep.subr.mxu0 0.0
  %4203 = vmatpush1.msra.mxu0 0.0
  %4204 = vmatprep.subr.mxu0 0.0
  %4205 = vmatpush1.msra.mxu0 0.0
  %4206 = vmatprep.subr.mxu0 0.0
  %4207 = vmatpush1.msra.mxu0 0.0
  %4208 = vmatprep.subr.mxu0 0.0
  %4209 = vmatpush1.msra.mxu0 %v4171
  %4210 = vmatprep.subr.mxu0 0.0
  %4211 = vmatpush1.msra.mxu0 %v4170
  %4212 = vmatprep.subr.mxu0 0.0
  %4213 = vmatpush1.msra.mxu0 %v4169
  %4214 = vmatprep.subr.mxu0 0.0
  %4215 = vmatpush1.msra.mxu0 %v4168
  %4216 = vmatprep.subr.mxu0 0.0
  %4217 = vmatpush2.msra.mxu0 0.0
  %4218 = vmatprep.subr.mxu0 0.0
  %4219 = vmatpush2.msra.mxu0 0.0
  %4220 = vmatprep.subr.mxu0 0.0
  %4221 = vmatpush2.msra.mxu0 0.0
  %4222 = vmatprep.subr.mxu0 0.0
  %4223 = vmatpush2.msra.mxu0 0.0
  %4224 = vmatprep.subr.mxu0 0.0
  %4225 = vmatpush2.msra.mxu0 0.0
  %4226 = vmatprep.subr.mxu0 0.0
  %4227 = vmatpush2.msra.mxu0 0.0
  %4228 = vmatprep.subr.mxu0 0.0
  %4229 = vmatpush2.msra.mxu0 0.0
  %4230 = vmatprep.subr.mxu0 0.0
  %4231 = vmatpush2.msra.mxu0 0.0
  %4232 = vmatprep.subr.mxu0 0.0
  %4233 = vmatpush2.msra.mxu0 0.0
  %4234 = vmatprep.subr.mxu0 0.0
  %4235 = vmatpush2.msra.mxu0 0.0
  %4236 = vmatprep.subr.mxu0 0.0
  %4237 = vmatpush2.msra.mxu0 0.0
  %4238 = vmatprep.subr.mxu0 0.0
  %4239 = vmatpush2.msra.mxu0 0.0
  %4240 = vmatprep.subr.mxu0 0.0
  %4241 = vmatpush2.msra.mxu0 0.0
  %4242 = vmatprep.subr.mxu0 0.0
  %4243 = vmatpush2.msra.mxu0 0.0
  %4244 = vmatprep.subr.mxu0 0.0
  %4245 = vmatpush2.msra.mxu0 0.0
  %4246 = vmatprep.subr.mxu0 0.0
  %4247 = vmatpush2.msra.mxu0 0.0
  %4248 = vmatprep.mubr.f32.mxu0 0.0
  %4249 = vmatmul.mubr.f32.gmra.mxu0 %v4173
  %v4250 = vpop.f32.mrf.mxu0
  %v4251 = vadd.f32 0.0, %v4250
  %v4252 = vpop.f32.mrf.mxu0
  %4253 = vmatprep.mubr.f32.mxu0 0.0
  %4254 = vmatmul.mubr.f32.gmra.mxu0 %v4176
  %v4255 = vpop.f32.mrf.mxu0
  %v4256 = vadd.f32 0.0, %v4255
  %v4257 = vpop.f32.mrf.mxu0
  %4258 = vmatprep.mubr.f32.mxu0 0.0
  %4259 = vmatmul.mubr.f32.gmra.mxu0 %v4179
  %v4260 = vpop.f32.mrf.mxu0
  %v4261 = vadd.f32 0.0, %v4260
  %v4262 = vpop.f32.mrf.mxu0
  %4263 = vmatprep.mubr.f32.mxu0 0.0
  %4264 = vmatmul.mubr.f32.gmra.mxu0 %v4182
  %v4265 = vpop.f32.mrf.mxu0
  %v4266 = vadd.f32 0.0, %v4265
  %v4267 = vpop.f32.mrf.mxu0
  %4268 = vdwg.mxu0
  %v4269 = vld [vmem:[%s18] sm:$0xf]
  %v4270 = vld [vmem:[%s18 + $0x4] sm:$0xf]
  %v4271 = vld [vmem:[%s18 + $0x8] sm:$0xf]
  %v4272 = vld [vmem:[%s18 + $0xc] sm:$0xf]
  %v4273 = vld [vmem:[%s18 + $0x10] sm:$0xf]
  %v4274 = vld [vmem:[%s18 + $0x14] sm:$0xf]
  %v4275 = vld [vmem:[%s18 + $0x18] sm:$0xf]
  %v4276 = vld [vmem:[%s18 + $0x1c] sm:$0xf]
  %v4277 = vld [vmem:[%s18 + $0x20] sm:$0xf]
  %v4278 = vld [vmem:[%s18 + $0x24] sm:$0xf]
  %v4279 = vld [vmem:[%s18 + $0x28] sm:$0xf]
  %v4280 = vld [vmem:[%s18 + $0x2c] sm:$0xf]
  %v4281 = vld [vmem:[%s18 + $0x30] sm:$0xf]
  %v4282 = vld [vmem:[%s18 + $0x34] sm:$0xf]
  %v4283 = vld [vmem:[%s18 + $0x38] sm:$0xf]
  %v4284 = vld [vmem:[%s18 + $0x3c] sm:$0xf]
  %v4285 = vld [vmem:[%s18 + $0x40] sm:$0xf]
  %v4286 = vld [vmem:[%s18 + $0x44] sm:$0xf]
  %v4287 = vld [vmem:[%s18 + $0x48] sm:$0xf]
  %v4288 = vld [vmem:[%s18 + $0x4c] sm:$0xf]
  %v4289 = vld [vmem:[%s18 + $0x50] sm:$0xf]
  %v4290 = vld [vmem:[%s18 + $0x54] sm:$0xf]
  %v4291 = vld [vmem:[%s18 + $0x58] sm:$0xf]
  %v4292 = vld [vmem:[%s18 + $0x5c] sm:$0xf]
  %v4293 = vld [vmem:[%s18 + $0x60] sm:$0xf]
  %v4294 = vld [vmem:[%s18 + $0x64] sm:$0xf]
  %v4295 = vld [vmem:[%s18 + $0x68] sm:$0xf]
  %v4296 = vld [vmem:[%s18 + $0x6c] sm:$0xf]
  %v4297 = vld [vmem:[%s18 + $0x70] sm:$0xf]
  %v4298 = vld [vmem:[%s18 + $0x74] sm:$0xf]
  %v4299 = vld [vmem:[%s18 + $0x78] sm:$0xf]
  %v4300 = vld [vmem:[%s18 + $0x7c] sm:$0xf]
  %v4301 = vld [vmem:[%s18 + $0x80] sm:$0xf]
  %v4302 = vld [vmem:[%s18 + $0x84] sm:$0xf]
  %v4303 = vld [vmem:[%s18 + $0x88] sm:$0xf]
  %v4304 = vld [vmem:[%s18 + $0x8c] sm:$0xf]
  %v4305 = vunpack.c.l.bf16 %v4269
  %v4306 = vunpack.c.l.bf16 %v4270
  %v4307 = vunpack.c.l.bf16 %v4271
  %v4308 = vunpack.c.l.bf16 %v4272
  %v4309 = vunpack.c.l.bf16 %v4273
  %v4310 = vunpack.c.l.bf16 %v4274
  %v4311 = vunpack.c.l.bf16 %v4275
  %v4312 = vunpack.c.l.bf16 %v4276
  %v4313 = vunpack.c.l.bf16 %v4277
  %v4314 = vunpack.c.l.bf16 %v4278
  %v4315 = vunpack.c.l.bf16 %v4279
  %v4316 = vunpack.c.l.bf16 %v4280
  %v4317 = vunpack.c.l.bf16 %v4281
  %v4318 = vunpack.c.l.bf16 %v4282
  %v4319 = vunpack.c.l.bf16 %v4283
  %v4320 = vunpack.c.l.bf16 %v4284
  %v4321 = vunpack.c.l.bf16 %v4285
  %v4322 = vunpack.c.l.bf16 %v4286
  %v4323 = vunpack.c.l.bf16 %v4287
  %v4324 = vunpack.c.l.bf16 %v4288
  %v4325 = vunpack.c.l.bf16 %v4289
  %v4326 = vunpack.c.l.bf16 %v4290
  %v4327 = vunpack.c.l.bf16 %v4291
  %v4328 = vunpack.c.l.bf16 %v4292
  %v4329 = vunpack.c.l.bf16 %v4293
  %v4330 = vunpack.c.l.bf16 %v4294
  %v4331 = vunpack.c.l.bf16 %v4295
  %v4332 = vunpack.c.l.bf16 %v4296
  %v4333 = vunpack.c.l.bf16 %v4297
  %v4334 = vunpack.c.l.bf16 %v4298
  %v4335 = vunpack.c.l.bf16 %v4299
  %v4336 = vunpack.c.l.bf16 %v4300
  %v4337 = vunpack.c.l.bf16 %v4301
  %v4338 = vunpack.c.l.bf16 %v4302
  %v4339 = vunpack.c.l.bf16 %v4303
  %v4340 = vunpack.c.l.bf16 %v4304
  %4345 = vrot.lane.b32.xlu0 %v4251, 112
  %v4346 = vpop.permute.xlu0 %4345
  %4347 = vrot.lane.b32.xlu0 %v4256, 112
  %v4348 = vpop.permute.xlu0 %4347
  %4349 = vrot.lane.b32.xlu0 %v4261, 112
  %v4350 = vpop.permute.xlu0 %4349
  %4351 = vrot.lane.b32.xlu0 %v4266, 112
  %v4352 = vpop.permute.xlu0 %4351
  %v4358 = vsel %vm2426, %v4314, 0
  %v4361 = vsel %vm2426, %v4315, 0
  %v4364 = vsel %vm2426, %v4316, 0
  %v4367 = vsel %vm2426, %v4317, 0
  %v4370 = vsel %vm2426, %v4318, 0
  %v4373 = vsel %vm2426, %v4319, 0
  %v4376 = vsel %vm2426, %v4320, 0
  %v4379 = vsel %vm2426, %v4321, 0
  %v4382 = vsel %vm2426, %v4322, 0
  %4384 = vmatprep.subr.mxu0 0.0
  %4385 = vmatpush1.msra.mxu0 0.0
  %4386 = vmatprep.subr.mxu0 0.0
  %4387 = vmatpush1.msra.mxu0 0.0
  %4388 = vmatprep.subr.mxu0 0.0
  %4389 = vmatpush1.msra.mxu0 0.0
  %4390 = vmatprep.subr.mxu0 0.0
  %4391 = vmatpush1.msra.mxu0 0.0
  %4392 = vmatprep.subr.mxu0 0.0
  %4393 = vmatpush1.msra.mxu0 0.0
  %4394 = vmatprep.subr.mxu0 0.0
  %4395 = vmatpush1.msra.mxu0 0.0
  %4396 = vmatprep.subr.mxu0 0.0
  %4397 = vmatpush1.msra.mxu0 0.0
  %4398 = vmatprep.subr.mxu0 0.0
  %4399 = vmatpush1.msra.mxu0 0.0
  %4400 = vmatprep.subr.mxu0 0.0
  %4401 = vmatpush1.msra.mxu0 0.0
  %4402 = vmatprep.subr.mxu0 0.0
  %4403 = vmatpush1.msra.mxu0 0.0
  %4404 = vmatprep.subr.mxu0 0.0
  %4405 = vmatpush1.msra.mxu0 0.0
  %4406 = vmatprep.subr.mxu0 0.0
  %4407 = vmatpush1.msra.mxu0 0.0
  %4408 = vmatprep.subr.mxu0 0.0
  %4409 = vmatpush1.msra.mxu0 %v4352
  %4410 = vmatprep.subr.mxu0 0.0
  %4411 = vmatpush1.msra.mxu0 %v4350
  %4412 = vmatprep.subr.mxu0 0.0
  %4413 = vmatpush1.msra.mxu0 %v4348
  %4414 = vmatprep.subr.mxu0 0.0
  %4415 = vmatpush1.msra.mxu0 %v4346
  %4416 = vmatprep.subr.mxu0 0.0
  %4417 = vmatpush2.msra.mxu0 0.0
  %4418 = vmatprep.subr.mxu0 0.0
  %4419 = vmatpush2.msra.mxu0 0.0
  %4420 = vmatprep.subr.mxu0 0.0
  %4421 = vmatpush2.msra.mxu0 0.0
  %4422 = vmatprep.subr.mxu0 0.0
  %4423 = vmatpush2.msra.mxu0 0.0
  %4424 = vmatprep.subr.mxu0 0.0
  %4425 = vmatpush2.msra.mxu0 0.0
  %4426 = vmatprep.subr.mxu0 0.0
  %4427 = vmatpush2.msra.mxu0 0.0
  %4428 = vmatprep.subr.mxu0 0.0
  %4429 = vmatpush2.msra.mxu0 0.0
  %4430 = vmatprep.subr.mxu0 0.0
  %4431 = vmatpush2.msra.mxu0 0.0
  %4432 = vmatprep.subr.mxu0 0.0
  %4433 = vmatpush2.msra.mxu0 0.0
  %4434 = vmatprep.subr.mxu0 0.0
  %4435 = vmatpush2.msra.mxu0 0.0
  %4436 = vmatprep.subr.mxu0 0.0
  %4437 = vmatpush2.msra.mxu0 0.0
  %4438 = vmatprep.subr.mxu0 0.0
  %4439 = vmatpush2.msra.mxu0 0.0
  %4440 = vmatprep.subr.mxu0 0.0
  %4441 = vmatpush2.msra.mxu0 0.0
  %4442 = vmatprep.subr.mxu0 0.0
  %4443 = vmatpush2.msra.mxu0 0.0
  %4444 = vmatprep.subr.mxu0 0.0
  %4445 = vmatpush2.msra.mxu0 0.0
  %4446 = vmatprep.subr.mxu0 0.0
  %4447 = vmatpush2.msra.mxu0 0.0
  %4448 = vmatprep.mubr.f32.mxu0 0.0
  %4449 = vmatmul.mubr.f32.gmra.mxu0 %v4358
  %v4450 = vpop.f32.mrf.mxu0
  %v4451 = vadd.f32 0.0, %v4450
  %v4452 = vpop.f32.mrf.mxu0
  %4453 = vmatprep.mubr.f32.mxu0 0.0
  %4454 = vmatmul.mubr.f32.gmra.mxu0 %v4361
  %v4455 = vpop.f32.mrf.mxu0
  %v4456 = vadd.f32 0.0, %v4455
  %v4457 = vpop.f32.mrf.mxu0
  %4458 = vmatprep.mubr.f32.mxu0 0.0
  %4459 = vmatmul.mubr.f32.gmra.mxu0 %v4364
  %v4460 = vpop.f32.mrf.mxu0
  %v4461 = vadd.f32 0.0, %v4460
  %v4462 = vpop.f32.mrf.mxu0
  %4463 = vmatprep.mubr.f32.mxu0 0.0
  %4464 = vmatmul.mubr.f32.gmra.mxu0 %v4367
  %v4465 = vpop.f32.mrf.mxu0
  %v4466 = vadd.f32 0.0, %v4465
  %v4467 = vpop.f32.mrf.mxu0
  %4468 = vmatprep.mubr.f32.mxu0 0.0
  %4469 = vmatmul.mubr.f32.gmra.mxu0 %v4370
  %v4470 = vpop.f32.mrf.mxu0
  %v4471 = vadd.f32 0.0, %v4470
  %v4472 = vpop.f32.mrf.mxu0
  %4473 = vmatprep.mubr.f32.mxu0 0.0
  %4474 = vmatmul.mubr.f32.gmra.mxu0 %v4373
  %v4475 = vpop.f32.mrf.mxu0
  %v4476 = vadd.f32 0.0, %v4475
  %v4477 = vpop.f32.mrf.mxu0
  %4478 = vmatprep.mubr.f32.mxu0 0.0
  %4479 = vmatmul.mubr.f32.gmra.mxu0 %v4376
  %v4480 = vpop.f32.mrf.mxu0
  %v4481 = vadd.f32 0.0, %v4480
  %v4482 = vpop.f32.mrf.mxu0
  %4483 = vmatprep.mubr.f32.mxu0 0.0
  %4484 = vmatmul.mubr.f32.gmra.mxu0 %v4379
  %v4485 = vpop.f32.mrf.mxu0
  %v4486 = vadd.f32 0.0, %v4485
  %v4487 = vpop.f32.mrf.mxu0
  %4488 = vmatprep.mubr.f32.mxu0 0.0
  %4489 = vmatmul.mubr.f32.gmra.mxu0 %v4382
  %v4490 = vpop.f32.mrf.mxu0
  %v4491 = vadd.f32 0.0, %v4490
  %v4492 = vpop.f32.mrf.mxu0
  %4493 = vdwg.mxu0
  %v4495 = vsel %vm2426, %v4305, 0
  %v4498 = vsel %vm2426, %v4306, 0
  %v4501 = vsel %vm2426, %v4307, 0
  %v4504 = vsel %vm2426, %v4308, 0
  %v4507 = vsel %vm2426, %v4309, 0
  %v4510 = vsel %vm2426, %v4310, 0
  %v4513 = vsel %vm2426, %v4311, 0
  %v4516 = vsel %vm2426, %v4312, 0
  %v4519 = vsel %vm2426, %v4313, 0
  %4521 = vmatprep.subr.mxu0 0.0
  %4522 = vmatpush1.msra.mxu0 0.0
  %4523 = vmatprep.subr.mxu0 0.0
  %4524 = vmatpush1.msra.mxu0 0.0
  %4525 = vmatprep.subr.mxu0 0.0
  %4526 = vmatpush1.msra.mxu0 0.0
  %4527 = vmatprep.subr.mxu0 0.0
  %4528 = vmatpush1.msra.mxu0 0.0
  %4529 = vmatprep.subr.mxu0 0.0
  %4530 = vmatpush1.msra.mxu0 0.0
  %4531 = vmatprep.subr.mxu0 0.0
  %4532 = vmatpush1.msra.mxu0 0.0
  %4533 = vmatprep.subr.mxu0 0.0
  %4534 = vmatpush1.msra.mxu0 0.0
  %4535 = vmatprep.subr.mxu0 0.0
  %4536 = vmatpush1.msra.mxu0 0.0
  %4537 = vmatprep.subr.mxu0 0.0
  %4538 = vmatpush1.msra.mxu0 0.0
  %4539 = vmatprep.subr.mxu0 0.0
  %4540 = vmatpush1.msra.mxu0 0.0
  %4541 = vmatprep.subr.mxu0 0.0
  %4542 = vmatpush1.msra.mxu0 0.0
  %4543 = vmatprep.subr.mxu0 0.0
  %4544 = vmatpush1.msra.mxu0 0.0
  %4545 = vmatprep.subr.mxu0 0.0
  %4546 = vmatpush1.msra.mxu0 %v4266
  %4547 = vmatprep.subr.mxu0 0.0
  %4548 = vmatpush1.msra.mxu0 %v4261
  %4549 = vmatprep.subr.mxu0 0.0
  %4550 = vmatpush1.msra.mxu0 %v4256
  %4551 = vmatprep.subr.mxu0 0.0
  %4552 = vmatpush1.msra.mxu0 %v4251
  %4553 = vmatprep.subr.mxu0 0.0
  %4554 = vmatpush2.msra.mxu0 0.0
  %4555 = vmatprep.subr.mxu0 0.0
  %4556 = vmatpush2.msra.mxu0 0.0
  %4557 = vmatprep.subr.mxu0 0.0
  %4558 = vmatpush2.msra.mxu0 0.0
  %4559 = vmatprep.subr.mxu0 0.0
  %4560 = vmatpush2.msra.mxu0 0.0
  %4561 = vmatprep.subr.mxu0 0.0
  %4562 = vmatpush2.msra.mxu0 0.0
  %4563 = vmatprep.subr.mxu0 0.0
  %4564 = vmatpush2.msra.mxu0 0.0
  %4565 = vmatprep.subr.mxu0 0.0
  %4566 = vmatpush2.msra.mxu0 0.0
  %4567 = vmatprep.subr.mxu0 0.0
  %4568 = vmatpush2.msra.mxu0 0.0
  %4569 = vmatprep.subr.mxu0 0.0
  %4570 = vmatpush2.msra.mxu0 0.0
  %4571 = vmatprep.subr.mxu0 0.0
  %4572 = vmatpush2.msra.mxu0 0.0
  %4573 = vmatprep.subr.mxu0 0.0
  %4574 = vmatpush2.msra.mxu0 0.0
  %4575 = vmatprep.subr.mxu0 0.0
  %4576 = vmatpush2.msra.mxu0 0.0
  %4577 = vmatprep.subr.mxu0 0.0
  %4578 = vmatpush2.msra.mxu0 0.0
  %4579 = vmatprep.subr.mxu0 0.0
  %4580 = vmatpush2.msra.mxu0 0.0
  %4581 = vmatprep.subr.mxu0 0.0
  %4582 = vmatpush2.msra.mxu0 0.0
  %4583 = vmatprep.subr.mxu0 0.0
  %4584 = vmatpush2.msra.mxu0 0.0
  %4585 = vmatprep.mubr.f32.mxu0 0.0
  %4586 = vmatmul.mubr.f32.gmra.mxu0 %v4495
  %v4587 = vpop.f32.mrf.mxu0
  %v4588 = vadd.f32 %v4451, %v4587
  %v4589 = vpop.f32.mrf.mxu0
  %4590 = vmatprep.mubr.f32.mxu0 0.0
  %4591 = vmatmul.mubr.f32.gmra.mxu0 %v4498
  %v4592 = vpop.f32.mrf.mxu0
  %v4593 = vadd.f32 %v4456, %v4592
  %v4594 = vpop.f32.mrf.mxu0
  %4595 = vmatprep.mubr.f32.mxu0 0.0
  %4596 = vmatmul.mubr.f32.gmra.mxu0 %v4501
  %v4597 = vpop.f32.mrf.mxu0
  %v4598 = vadd.f32 %v4461, %v4597
  %v4599 = vpop.f32.mrf.mxu0
  %4600 = vmatprep.mubr.f32.mxu0 0.0
  %4601 = vmatmul.mubr.f32.gmra.mxu0 %v4504
  %v4602 = vpop.f32.mrf.mxu0
  %v4603 = vadd.f32 %v4466, %v4602
  %v4604 = vpop.f32.mrf.mxu0
  %4605 = vmatprep.mubr.f32.mxu0 0.0
  %4606 = vmatmul.mubr.f32.gmra.mxu0 %v4507
  %v4607 = vpop.f32.mrf.mxu0
  %v4608 = vadd.f32 %v4471, %v4607
  %v4609 = vpop.f32.mrf.mxu0
  %4610 = vmatprep.mubr.f32.mxu0 0.0
  %4611 = vmatmul.mubr.f32.gmra.mxu0 %v4510
  %v4612 = vpop.f32.mrf.mxu0
  %v4613 = vadd.f32 %v4476, %v4612
  %v4614 = vpop.f32.mrf.mxu0
  %4615 = vmatprep.mubr.f32.mxu0 0.0
  %4616 = vmatmul.mubr.f32.gmra.mxu0 %v4513
  %v4617 = vpop.f32.mrf.mxu0
  %v4618 = vadd.f32 %v4481, %v4617
  %v4619 = vpop.f32.mrf.mxu0
  %4620 = vmatprep.mubr.f32.mxu0 0.0
  %4621 = vmatmul.mubr.f32.gmra.mxu0 %v4516
  %v4622 = vpop.f32.mrf.mxu0
  %v4623 = vadd.f32 %v4486, %v4622
  %v4624 = vpop.f32.mrf.mxu0
  %4625 = vmatprep.mubr.f32.mxu0 0.0
  %4626 = vmatmul.mubr.f32.gmra.mxu0 %v4519
  %v4627 = vpop.f32.mrf.mxu0
  %v4628 = vadd.f32 %v4491, %v4627
  %v4629 = vpop.f32.mrf.mxu0
  %4630 = vdwg.mxu0
  %4631 = vrot.lane.b32.xlu0 %v4251, 96
  %v4632 = vpop.permute.xlu0 %4631
  %4633 = vrot.lane.b32.xlu0 %v4256, 96
  %v4634 = vpop.permute.xlu0 %4633
  %4635 = vrot.lane.b32.xlu0 %v4261, 96
  %v4636 = vpop.permute.xlu0 %4635
  %4637 = vrot.lane.b32.xlu0 %v4266, 96
  %v4638 = vpop.permute.xlu0 %4637
  %v4644 = vsel %vm2426, %v4323, 0
  %v4647 = vsel %vm2426, %v4324, 0
  %v4650 = vsel %vm2426, %v4325, 0
  %v4653 = vsel %vm2426, %v4326, 0
  %v4656 = vsel %vm2426, %v4327, 0
  %v4659 = vsel %vm2426, %v4328, 0
  %v4662 = vsel %vm2426, %v4329, 0
  %v4665 = vsel %vm2426, %v4330, 0
  %v4668 = vsel %vm2426, %v4331, 0
  %4670 = vmatprep.subr.mxu0 0.0
  %4671 = vmatpush1.msra.mxu0 0.0
  %4672 = vmatprep.subr.mxu0 0.0
  %4673 = vmatpush1.msra.mxu0 0.0
  %4674 = vmatprep.subr.mxu0 0.0
  %4675 = vmatpush1.msra.mxu0 0.0
  %4676 = vmatprep.subr.mxu0 0.0
  %4677 = vmatpush1.msra.mxu0 0.0
  %4678 = vmatprep.subr.mxu0 0.0
  %4679 = vmatpush1.msra.mxu0 0.0
  %4680 = vmatprep.subr.mxu0 0.0
  %4681 = vmatpush1.msra.mxu0 0.0
  %4682 = vmatprep.subr.mxu0 0.0
  %4683 = vmatpush1.msra.mxu0 0.0
  %4684 = vmatprep.subr.mxu0 0.0
  %4685 = vmatpush1.msra.mxu0 0.0
  %4686 = vmatprep.subr.mxu0 0.0
  %4687 = vmatpush1.msra.mxu0 0.0
  %4688 = vmatprep.subr.mxu0 0.0
  %4689 = vmatpush1.msra.mxu0 0.0
  %4690 = vmatprep.subr.mxu0 0.0
  %4691 = vmatpush1.msra.mxu0 0.0
  %4692 = vmatprep.subr.mxu0 0.0
  %4693 = vmatpush1.msra.mxu0 0.0
  %4694 = vmatprep.subr.mxu0 0.0
  %4695 = vmatpush1.msra.mxu0 %v4638
  %4696 = vmatprep.subr.mxu0 0.0
  %4697 = vmatpush1.msra.mxu0 %v4636
  %4698 = vmatprep.subr.mxu0 0.0
  %4699 = vmatpush1.msra.mxu0 %v4634
  %4700 = vmatprep.subr.mxu0 0.0
  %4701 = vmatpush1.msra.mxu0 %v4632
  %4702 = vmatprep.subr.mxu0 0.0
  %4703 = vmatpush2.msra.mxu0 0.0
  %4704 = vmatprep.subr.mxu0 0.0
  %4705 = vmatpush2.msra.mxu0 0.0
  %4706 = vmatprep.subr.mxu0 0.0
  %4707 = vmatpush2.msra.mxu0 0.0
  %4708 = vmatprep.subr.mxu0 0.0
  %4709 = vmatpush2.msra.mxu0 0.0
  %4710 = vmatprep.subr.mxu0 0.0
  %4711 = vmatpush2.msra.mxu0 0.0
  %4712 = vmatprep.subr.mxu0 0.0
  %4713 = vmatpush2.msra.mxu0 0.0
  %4714 = vmatprep.subr.mxu0 0.0
  %4715 = vmatpush2.msra.mxu0 0.0
  %4716 = vmatprep.subr.mxu0 0.0
  %4717 = vmatpush2.msra.mxu0 0.0
  %4718 = vmatprep.subr.mxu0 0.0
  %4719 = vmatpush2.msra.mxu0 0.0
  %4720 = vmatprep.subr.mxu0 0.0
  %4721 = vmatpush2.msra.mxu0 0.0
  %4722 = vmatprep.subr.mxu0 0.0
  %4723 = vmatpush2.msra.mxu0 0.0
  %4724 = vmatprep.subr.mxu0 0.0
  %4725 = vmatpush2.msra.mxu0 0.0
  %4726 = vmatprep.subr.mxu0 0.0
  %4727 = vmatpush2.msra.mxu0 0.0
  %4728 = vmatprep.subr.mxu0 0.0
  %4729 = vmatpush2.msra.mxu0 0.0
  %4730 = vmatprep.subr.mxu0 0.0
  %4731 = vmatpush2.msra.mxu0 0.0
  %4732 = vmatprep.subr.mxu0 0.0
  %4733 = vmatpush2.msra.mxu0 0.0
  %4734 = vmatprep.mubr.f32.mxu0 0.0
  %4735 = vmatmul.mubr.f32.gmra.mxu0 %v4644
  %v4736 = vpop.f32.mrf.mxu0
  %v4737 = vadd.f32 0.0, %v4736
  %v4738 = vpop.f32.mrf.mxu0
  %4739 = vmatprep.mubr.f32.mxu0 0.0
  %4740 = vmatmul.mubr.f32.gmra.mxu0 %v4647
  %v4741 = vpop.f32.mrf.mxu0
  %v4742 = vadd.f32 0.0, %v4741
  %v4743 = vpop.f32.mrf.mxu0
  %4744 = vmatprep.mubr.f32.mxu0 0.0
  %4745 = vmatmul.mubr.f32.gmra.mxu0 %v4650
  %v4746 = vpop.f32.mrf.mxu0
  %v4747 = vadd.f32 0.0, %v4746
  %v4748 = vpop.f32.mrf.mxu0
  %4749 = vmatprep.mubr.f32.mxu0 0.0
  %4750 = vmatmul.mubr.f32.gmra.mxu0 %v4653
  %v4751 = vpop.f32.mrf.mxu0
  %v4752 = vadd.f32 0.0, %v4751
  %v4753 = vpop.f32.mrf.mxu0
  %4754 = vmatprep.mubr.f32.mxu0 0.0
  %4755 = vmatmul.mubr.f32.gmra.mxu0 %v4656
  %v4756 = vpop.f32.mrf.mxu0
  %v4757 = vadd.f32 0.0, %v4756
  %v4758 = vpop.f32.mrf.mxu0
  %4759 = vmatprep.mubr.f32.mxu0 0.0
  %4760 = vmatmul.mubr.f32.gmra.mxu0 %v4659
  %v4761 = vpop.f32.mrf.mxu0
  %v4762 = vadd.f32 0.0, %v4761
  %v4763 = vpop.f32.mrf.mxu0
  %4764 = vmatprep.mubr.f32.mxu0 0.0
  %4765 = vmatmul.mubr.f32.gmra.mxu0 %v4662
  %v4766 = vpop.f32.mrf.mxu0
  %v4767 = vadd.f32 0.0, %v4766
  %v4768 = vpop.f32.mrf.mxu0
  %4769 = vmatprep.mubr.f32.mxu0 0.0
  %4770 = vmatmul.mubr.f32.gmra.mxu0 %v4665
  %v4771 = vpop.f32.mrf.mxu0
  %v4772 = vadd.f32 0.0, %v4771
  %v4773 = vpop.f32.mrf.mxu0
  %4774 = vmatprep.mubr.f32.mxu0 0.0
  %4775 = vmatmul.mubr.f32.gmra.mxu0 %v4668
  %v4776 = vpop.f32.mrf.mxu0
  %v4777 = vadd.f32 0.0, %v4776
  %v4778 = vpop.f32.mrf.mxu0
  %4779 = vdwg.mxu0
  %v4780 = vadd.f32 %v4588, %v4737
  %v4781 = vadd.f32 %v4593, %v4742
  %v4782 = vadd.f32 %v4598, %v4747
  %v4783 = vadd.f32 %v4603, %v4752
  %v4784 = vadd.f32 %v4608, %v4757
  %v4785 = vadd.f32 %v4613, %v4762
  %v4786 = vadd.f32 %v4618, %v4767
  %v4787 = vadd.f32 %v4623, %v4772
  %v4788 = vadd.f32 %v4628, %v4777
  %4789 = vrot.lane.b32.xlu0 %v4251, 80
  %v4790 = vpop.permute.xlu0 %4789
  %4791 = vrot.lane.b32.xlu0 %v4256, 80
  %v4792 = vpop.permute.xlu0 %4791
  %4793 = vrot.lane.b32.xlu0 %v4261, 80
  %v4794 = vpop.permute.xlu0 %4793
  %4795 = vrot.lane.b32.xlu0 %v4266, 80
  %v4796 = vpop.permute.xlu0 %4795
  %v4802 = vsel %vm2426, %v4332, 0
  %v4805 = vsel %vm2426, %v4333, 0
  %v4808 = vsel %vm2426, %v4334, 0
  %v4811 = vsel %vm2426, %v4335, 0
  %v4814 = vsel %vm2426, %v4336, 0
  %v4817 = vsel %vm2426, %v4337, 0
  %v4820 = vsel %vm2426, %v4338, 0
  %v4823 = vsel %vm2426, %v4339, 0
  %v4826 = vsel %vm2426, %v4340, 0
  %4828 = vmatprep.subr.mxu0 0.0
  %4829 = vmatpush1.msra.mxu0 0.0
  %4830 = vmatprep.subr.mxu0 0.0
  %4831 = vmatpush1.msra.mxu0 0.0
  %4832 = vmatprep.subr.mxu0 0.0
  %4833 = vmatpush1.msra.mxu0 0.0
  %4834 = vmatprep.subr.mxu0 0.0
  %4835 = vmatpush1.msra.mxu0 0.0
  %4836 = vmatprep.subr.mxu0 0.0
  %4837 = vmatpush1.msra.mxu0 0.0
  %4838 = vmatprep.subr.mxu0 0.0
  %4839 = vmatpush1.msra.mxu0 0.0
  %4840 = vmatprep.subr.mxu0 0.0
  %4841 = vmatpush1.msra.mxu0 0.0
  %4842 = vmatprep.subr.mxu0 0.0
  %4843 = vmatpush1.msra.mxu0 0.0
  %4844 = vmatprep.subr.mxu0 0.0
  %4845 = vmatpush1.msra.mxu0 0.0
  %4846 = vmatprep.subr.mxu0 0.0
  %4847 = vmatpush1.msra.mxu0 0.0
  %4848 = vmatprep.subr.mxu0 0.0
  %4849 = vmatpush1.msra.mxu0 0.0
  %4850 = vmatprep.subr.mxu0 0.0
  %4851 = vmatpush1.msra.mxu0 0.0
  %4852 = vmatprep.subr.mxu0 0.0
  %4853 = vmatpush1.msra.mxu0 %v4796
  %4854 = vmatprep.subr.mxu0 0.0
  %4855 = vmatpush1.msra.mxu0 %v4794
  %4856 = vmatprep.subr.mxu0 0.0
  %4857 = vmatpush1.msra.mxu0 %v4792
  %4858 = vmatprep.subr.mxu0 0.0
  %4859 = vmatpush1.msra.mxu0 %v4790
  %4860 = vmatprep.subr.mxu0 0.0
  %4861 = vmatpush2.msra.mxu0 0.0
  %4862 = vmatprep.subr.mxu0 0.0
  %4863 = vmatpush2.msra.mxu0 0.0
  %4864 = vmatprep.subr.mxu0 0.0
  %4865 = vmatpush2.msra.mxu0 0.0
  %4866 = vmatprep.subr.mxu0 0.0
  %4867 = vmatpush2.msra.mxu0 0.0
  %4868 = vmatprep.subr.mxu0 0.0
  %4869 = vmatpush2.msra.mxu0 0.0
  %4870 = vmatprep.subr.mxu0 0.0
  %4871 = vmatpush2.msra.mxu0 0.0
  %4872 = vmatprep.subr.mxu0 0.0
  %4873 = vmatpush2.msra.mxu0 0.0
  %4874 = vmatprep.subr.mxu0 0.0
  %4875 = vmatpush2.msra.mxu0 0.0
  %4876 = vmatprep.subr.mxu0 0.0
  %4877 = vmatpush2.msra.mxu0 0.0
  %4878 = vmatprep.subr.mxu0 0.0
  %4879 = vmatpush2.msra.mxu0 0.0
  %4880 = vmatprep.subr.mxu0 0.0
  %4881 = vmatpush2.msra.mxu0 0.0
  %4882 = vmatprep.subr.mxu0 0.0
  %4883 = vmatpush2.msra.mxu0 0.0
  %4884 = vmatprep.subr.mxu0 0.0
  %4885 = vmatpush2.msra.mxu0 0.0
  %4886 = vmatprep.subr.mxu0 0.0
  %4887 = vmatpush2.msra.mxu0 0.0
  %4888 = vmatprep.subr.mxu0 0.0
  %4889 = vmatpush2.msra.mxu0 0.0
  %4890 = vmatprep.subr.mxu0 0.0
  %4891 = vmatpush2.msra.mxu0 0.0
  %4892 = vmatprep.mubr.f32.mxu0 0.0
  %4893 = vmatmul.mubr.f32.gmra.mxu0 %v4802
  %v4894 = vpop.f32.mrf.mxu0
  %v4895 = vadd.f32 0.0, %v4894
  %v4896 = vpop.f32.mrf.mxu0
  %4897 = vmatprep.mubr.f32.mxu0 0.0
  %4898 = vmatmul.mubr.f32.gmra.mxu0 %v4805
  %v4899 = vpop.f32.mrf.mxu0
  %v4900 = vadd.f32 0.0, %v4899
  %v4901 = vpop.f32.mrf.mxu0
  %4902 = vmatprep.mubr.f32.mxu0 0.0
  %4903 = vmatmul.mubr.f32.gmra.mxu0 %v4808
  %v4904 = vpop.f32.mrf.mxu0
  %v4905 = vadd.f32 0.0, %v4904
  %v4906 = vpop.f32.mrf.mxu0
  %4907 = vmatprep.mubr.f32.mxu0 0.0
  %4908 = vmatmul.mubr.f32.gmra.mxu0 %v4811
  %v4909 = vpop.f32.mrf.mxu0
  %v4910 = vadd.f32 0.0, %v4909
  %v4911 = vpop.f32.mrf.mxu0
  %4912 = vmatprep.mubr.f32.mxu0 0.0
  %4913 = vmatmul.mubr.f32.gmra.mxu0 %v4814
  %v4914 = vpop.f32.mrf.mxu0
  %v4915 = vadd.f32 0.0, %v4914
  %v4916 = vpop.f32.mrf.mxu0
  %4917 = vmatprep.mubr.f32.mxu0 0.0
  %4918 = vmatmul.mubr.f32.gmra.mxu0 %v4817
  %v4919 = vpop.f32.mrf.mxu0
  %v4920 = vadd.f32 0.0, %v4919
  %v4921 = vpop.f32.mrf.mxu0
  %4922 = vmatprep.mubr.f32.mxu0 0.0
  %4923 = vmatmul.mubr.f32.gmra.mxu0 %v4820
  %v4924 = vpop.f32.mrf.mxu0
  %v4925 = vadd.f32 0.0, %v4924
  %v4926 = vpop.f32.mrf.mxu0
  %4927 = vmatprep.mubr.f32.mxu0 0.0
  %4928 = vmatmul.mubr.f32.gmra.mxu0 %v4823
  %v4929 = vpop.f32.mrf.mxu0
  %v4930 = vadd.f32 0.0, %v4929
  %v4931 = vpop.f32.mrf.mxu0
  %4932 = vmatprep.mubr.f32.mxu0 0.0
  %4933 = vmatmul.mubr.f32.gmra.mxu0 %v4826
  %v4934 = vpop.f32.mrf.mxu0
  %v4935 = vadd.f32 0.0, %v4934
  %v4936 = vpop.f32.mrf.mxu0
  %4937 = vdwg.mxu0
  %v4938 = vadd.f32 %v4780, %v4895
  %v4939 = vadd.f32 %v4781, %v4900
  %v4940 = vadd.f32 %v4782, %v4905
  %v4941 = vadd.f32 %v4783, %v4910
  %v4942 = vadd.f32 %v4784, %v4915
  %v4943 = vadd.f32 %v4785, %v4920
  %v4944 = vadd.f32 %v4786, %v4925
  %v4945 = vadd.f32 %v4787, %v4930
  %v4946 = vadd.f32 %v4788, %v4935
  %v4947 = vld [vmem:[%s12] sm:$0x1]
  %v4948 = vld [vmem:[%s12 + $0x1] sm:$0x1]
  %v4949 = vsel %vm2388, %v4938, 0.0
  %v4950 = vsel %vm2388, %v4939, 0.0
  %v4951 = vadd.f32 %v4949, %v4950
  %v4952 = vsel %vm2388, %v4940, 0.0
  %v4953 = vadd.f32 %v4951, %v4952
  %v4954 = vsel %vm2388, %v4941, 0.0
  %v4955 = vadd.f32 %v4953, %v4954
  %v4956 = vsel %vm2388, %v4942, 0.0
  %v4957 = vadd.f32 %v4955, %v4956
  %v4958 = vsel %vm2388, %v4943, 0.0
  %v4959 = vadd.f32 %v4957, %v4958
  %v4960 = vsel %vm2388, %v4944, 0.0
  %v4961 = vadd.f32 %v4959, %v4960
  %v4962 = vsel %vm2388, %v4945, 0.0
  %v4963 = vadd.f32 %v4961, %v4962
  %v4964 = vsel %vm2388, %v4946, 0.0
  %v4965 = vadd.f32 %v4963, %v4964
  %v4966 = vrot.slane %v4965, 4
  %v4967 = vadd.f32 %v4965, %v4966
  %v4968 = vrot.slane %v4967, 2
  %v4969 = vadd.f32 %v4967, %v4968
  %v4970 = vrot.slane %v4969, 1
  %v4971 = vadd.f32 %v4969, %v4970
  %v4972 = vrcp.pop 72.0
  %v4973 = vmul.f32 %v4971, %v4972
  %v4974 = vsub.f32 %v4938, %v4973
  %v4975 = vsub.f32 %v4939, %v4973
  %v4976 = vsub.f32 %v4940, %v4973
  %v4977 = vsub.f32 %v4941, %v4973
  %v4978 = vsub.f32 %v4942, %v4973
  %v4979 = vsub.f32 %v4943, %v4973
  %v4980 = vsub.f32 %v4944, %v4973
  %v4981 = vsub.f32 %v4945, %v4973
  %v4982 = vsub.f32 %v4946, %v4973
  %v4983 = vmul.f32 %v4974, %v4974
  %v4984 = vmul.f32 %v4975, %v4975
  %v4985 = vmul.f32 %v4976, %v4976
  %v4986 = vmul.f32 %v4977, %v4977
  %v4987 = vmul.f32 %v4978, %v4978
  %v4988 = vmul.f32 %v4979, %v4979
  %v4989 = vmul.f32 %v4980, %v4980
  %v4990 = vmul.f32 %v4981, %v4981
  %v4991 = vmul.f32 %v4982, %v4982
  %v4992 = vsel %vm2388, %v4983, 0.0
  %v4993 = vsel %vm2388, %v4984, 0.0
  %v4994 = vadd.f32 %v4992, %v4993
  %v4995 = vsel %vm2388, %v4985, 0.0
  %v4996 = vadd.f32 %v4994, %v4995
  %v4997 = vsel %vm2388, %v4986, 0.0
  %v4998 = vadd.f32 %v4996, %v4997
  %v4999 = vsel %vm2388, %v4987, 0.0
  %v5000 = vadd.f32 %v4998, %v4999
  %v5001 = vsel %vm2388, %v4988, 0.0
  %v5002 = vadd.f32 %v5000, %v5001
  %v5003 = vsel %vm2388, %v4989, 0.0
  %v5004 = vadd.f32 %v5002, %v5003
  %v5005 = vsel %vm2388, %v4990, 0.0
  %v5006 = vadd.f32 %v5004, %v5005
  %v5007 = vsel %vm2388, %v4991, 0.0
  %v5008 = vadd.f32 %v5006, %v5007
  %v5009 = vrot.slane %v5008, 4
  %v5010 = vadd.f32 %v5008, %v5009
  %v5011 = vrot.slane %v5010, 2
  %v5012 = vadd.f32 %v5010, %v5011
  %v5013 = vrot.slane %v5012, 1
  %v5014 = vadd.f32 %v5012, %v5013
  %v5015 = vmul.f32 %v5014, %v4972
  %v5016 = vadd.f32 %v5015, 1e-05
  %v5017 = vrsqrt.pop %v5016
  %v5018 = vmul.f32 %v4974, %v5017
  %v5019 = vmul.f32 %v4975, %v5017
  %v5020 = vmul.f32 %v4976, %v5017
  %v5021 = vmul.f32 %v4977, %v5017
  %v5022 = vmul.f32 %v4978, %v5017
  %v5023 = vmul.f32 %v4979, %v5017
  %v5024 = vmul.f32 %v4980, %v5017
  %v5025 = vmul.f32 %v4981, %v5017
  %v5026 = vmul.f32 %v4982, %v5017
  %v5027 = vlaneseq
  %v5028 = vshrl.u32 %v5027, 7
  %v5029 = vsub.s32 0, %v5028
  %v5030 = vrot.slane %v4947, %v5029
  %v5031 = vmul.f32 %v5018, %v5030
  %v5032 = vmul.f32 %v5019, %v5030
  %v5033 = vmul.f32 %v5020, %v5030
  %v5034 = vmul.f32 %v5021, %v5030
  %v5035 = vmul.f32 %v5022, %v5030
  %v5036 = vmul.f32 %v5023, %v5030
  %v5037 = vmul.f32 %v5024, %v5030
  %v5038 = vmul.f32 %v5025, %v5030
  %v5039 = vmul.f32 %v5026, %v5030
  %v5040 = vlaneseq
  %v5041 = vshrl.u32 %v5040, 7
  %v5042 = vsub.s32 0, %v5041
  %v5043 = vrot.slane %v4948, %v5042
  %v5044 = vadd.f32 %v5031, %v5043
  %v5045 = vadd.f32 %v5032, %v5043
  %v5046 = vadd.f32 %v5033, %v5043
  %v5047 = vadd.f32 %v5034, %v5043
  %v5048 = vadd.f32 %v5035, %v5043
  %v5049 = vadd.f32 %v5036, %v5043
  %v5050 = vadd.f32 %v5037, %v5043
  %v5051 = vadd.f32 %v5038, %v5043
  %v5052 = vadd.f32 %v5039, %v5043
  %v5053 = vmax.f32 %v5044, 0.0
  %v5054 = vmax.f32 %v5045, 0.0
  %v5055 = vmax.f32 %v5046, 0.0
  %v5056 = vmax.f32 %v5047, 0.0
  %v5057 = vmax.f32 %v5048, 0.0
  %v5058 = vmax.f32 %v5049, 0.0
  %v5059 = vmax.f32 %v5050, 0.0
  %v5060 = vmax.f32 %v5051, 0.0
  %v5061 = vmax.f32 %v5052, 0.0
  %v5062 = vld [vmem:[%s13] sm:$0xff]
  %v5063 = vld [vmem:[%s13 + $0x8] sm:$0xff]
  %v5065 = vsel %vm2388, %v5053, 0
  %v5068 = vsel %vm2388, %v5054, 0
  %v5071 = vsel %vm2388, %v5055, 0
  %v5074 = vsel %vm2388, %v5056, 0
  %v5077 = vsel %vm2388, %v5057, 0
  %v5080 = vsel %vm2388, %v5058, 0
  %v5083 = vsel %vm2388, %v5059, 0
  %v5086 = vsel %vm2388, %v5060, 0
  %v5089 = vsel %vm2388, %v5061, 0
  %5091 = vmatprep.subr.mxu0 0.0
  %5092 = vmatpush1.msra.mxu0 0.0
  %5093 = vmatprep.subr.mxu0 0.0
  %5094 = vmatpush1.msra.mxu0 0.0
  %5095 = vmatprep.subr.mxu0 0.0
  %5096 = vmatpush1.msra.mxu0 0.0
  %5097 = vmatprep.subr.mxu0 0.0
  %5098 = vmatpush1.msra.mxu0 0.0
  %5099 = vmatprep.subr.mxu0 0.0
  %5100 = vmatpush1.msra.mxu0 0.0
  %5101 = vmatprep.subr.mxu0 0.0
  %5102 = vmatpush1.msra.mxu0 0.0
  %5103 = vmatprep.subr.mxu0 0.0
  %5104 = vmatpush1.msra.mxu0 0.0
  %5105 = vmatprep.subr.mxu0 0.0
  %5106 = vmatpush1.msra.mxu0 0.0
  %5107 = vmatprep.subr.mxu0 0.0
  %5108 = vmatpush1.msra.mxu0 0.0
  %5109 = vmatprep.subr.mxu0 0.0
  %5110 = vmatpush1.msra.mxu0 0.0
  %5111 = vmatprep.subr.mxu0 0.0
  %5112 = vmatpush1.msra.mxu0 0.0
  %5113 = vmatprep.subr.mxu0 0.0
  %5114 = vmatpush1.msra.mxu0 0.0
  %5115 = vmatprep.subr.mxu0 0.0
  %5116 = vmatpush1.msra.mxu0 0.0
  %5117 = vmatprep.subr.mxu0 0.0
  %5118 = vmatpush1.msra.mxu0 0.0
  %5119 = vmatprep.subr.mxu0 0.0
  %5120 = vmatpush1.msra.mxu0 %v5063
  %5121 = vmatprep.subr.mxu0 0.0
  %5122 = vmatpush1.msra.mxu0 %v5062
  %5123 = vmatprep.subr.mxu0 0.0
  %5124 = vmatpush2.msra.mxu0 0.0
  %5125 = vmatprep.subr.mxu0 0.0
  %5126 = vmatpush2.msra.mxu0 0.0
  %5127 = vmatprep.subr.mxu0 0.0
  %5128 = vmatpush2.msra.mxu0 0.0
  %5129 = vmatprep.subr.mxu0 0.0
  %5130 = vmatpush2.msra.mxu0 0.0
  %5131 = vmatprep.subr.mxu0 0.0
  %5132 = vmatpush2.msra.mxu0 0.0
  %5133 = vmatprep.subr.mxu0 0.0
  %5134 = vmatpush2.msra.mxu0 0.0
  %5135 = vmatprep.subr.mxu0 0.0
  %5136 = vmatpush2.msra.mxu0 0.0
  %5137 = vmatprep.subr.mxu0 0.0
  %5138 = vmatpush2.msra.mxu0 0.0
  %5139 = vmatprep.subr.mxu0 0.0
  %5140 = vmatpush2.msra.mxu0 0.0
  %5141 = vmatprep.subr.mxu0 0.0
  %5142 = vmatpush2.msra.mxu0 0.0
  %5143 = vmatprep.subr.mxu0 0.0
  %5144 = vmatpush2.msra.mxu0 0.0
  %5145 = vmatprep.subr.mxu0 0.0
  %5146 = vmatpush2.msra.mxu0 0.0
  %5147 = vmatprep.subr.mxu0 0.0
  %5148 = vmatpush2.msra.mxu0 0.0
  %5149 = vmatprep.subr.mxu0 0.0
  %5150 = vmatpush2.msra.mxu0 0.0
  %5151 = vmatprep.subr.mxu0 0.0
  %5152 = vmatpush2.msra.mxu0 0.0
  %5153 = vmatprep.subr.mxu0 0.0
  %5154 = vmatpush2.msra.mxu0 0.0
  %5155 = vmatprep.mubr.f32.mxu0 0.0
  %5156 = vmatmul.mubr.f32.gmra.mxu0 %v5065
  %v5157 = vpop.f32.mrf.mxu0
  %v5158 = vadd.f32 0.0, %v5157
  %v5159 = vpop.f32.mrf.mxu0
  %5160 = vmatprep.mubr.f32.mxu0 0.0
  %5161 = vmatmul.mubr.f32.gmra.mxu0 %v5068
  %v5162 = vpop.f32.mrf.mxu0
  %v5163 = vadd.f32 0.0, %v5162
  %v5164 = vpop.f32.mrf.mxu0
  %5165 = vmatprep.mubr.f32.mxu0 0.0
  %5166 = vmatmul.mubr.f32.gmra.mxu0 %v5071
  %v5167 = vpop.f32.mrf.mxu0
  %v5168 = vadd.f32 0.0, %v5167
  %v5169 = vpop.f32.mrf.mxu0
  %5170 = vmatprep.mubr.f32.mxu0 0.0
  %5171 = vmatmul.mubr.f32.gmra.mxu0 %v5074
  %v5172 = vpop.f32.mrf.mxu0
  %v5173 = vadd.f32 0.0, %v5172
  %v5174 = vpop.f32.mrf.mxu0
  %5175 = vmatprep.mubr.f32.mxu0 0.0
  %5176 = vmatmul.mubr.f32.gmra.mxu0 %v5077
  %v5177 = vpop.f32.mrf.mxu0
  %v5178 = vadd.f32 0.0, %v5177
  %v5179 = vpop.f32.mrf.mxu0
  %5180 = vmatprep.mubr.f32.mxu0 0.0
  %5181 = vmatmul.mubr.f32.gmra.mxu0 %v5080
  %v5182 = vpop.f32.mrf.mxu0
  %v5183 = vadd.f32 0.0, %v5182
  %v5184 = vpop.f32.mrf.mxu0
  %5185 = vmatprep.mubr.f32.mxu0 0.0
  %5186 = vmatmul.mubr.f32.gmra.mxu0 %v5083
  %v5187 = vpop.f32.mrf.mxu0
  %v5188 = vadd.f32 0.0, %v5187
  %v5189 = vpop.f32.mrf.mxu0
  %5190 = vmatprep.mubr.f32.mxu0 0.0
  %5191 = vmatmul.mubr.f32.gmra.mxu0 %v5086
  %v5192 = vpop.f32.mrf.mxu0
  %v5193 = vadd.f32 0.0, %v5192
  %v5194 = vpop.f32.mrf.mxu0
  %5195 = vmatprep.mubr.f32.mxu0 0.0
  %5196 = vmatmul.mubr.f32.gmra.mxu0 %v5089
  %v5197 = vpop.f32.mrf.mxu0
  %v5198 = vadd.f32 0.0, %v5197
  %v5199 = vpop.f32.mrf.mxu0
  %5200 = vdwg.mxu0
  %v5201 = vld [vmem:[%s19] sm:$0xf]
  %v5202 = vld [vmem:[%s19 + $0x4] sm:$0xf]
  %v5203 = vld [vmem:[%s19 + $0x8] sm:$0xf]
  %v5204 = vld [vmem:[%s19 + $0xc] sm:$0xf]
  %v5205 = vld [vmem:[%s19 + $0x10] sm:$0xf]
  %v5206 = vld [vmem:[%s19 + $0x14] sm:$0xf]
  %v5207 = vld [vmem:[%s19 + $0x18] sm:$0xf]
  %v5208 = vld [vmem:[%s19 + $0x1c] sm:$0xf]
  %v5209 = vld [vmem:[%s19 + $0x20] sm:$0xf]
  %v5210 = vld [vmem:[%s19 + $0x24] sm:$0xf]
  %v5211 = vld [vmem:[%s19 + $0x28] sm:$0xf]
  %v5212 = vld [vmem:[%s19 + $0x2c] sm:$0xf]
  %v5213 = vld [vmem:[%s19 + $0x30] sm:$0xf]
  %v5214 = vld [vmem:[%s19 + $0x34] sm:$0xf]
  %v5215 = vld [vmem:[%s19 + $0x38] sm:$0xf]
  %v5216 = vld [vmem:[%s19 + $0x3c] sm:$0xf]
  %v5217 = vld [vmem:[%s19 + $0x40] sm:$0xf]
  %v5218 = vld [vmem:[%s19 + $0x44] sm:$0xf]
  %v5219 = vld [vmem:[%s19 + $0x48] sm:$0xf]
  %v5220 = vld [vmem:[%s19 + $0x4c] sm:$0xf]
  %v5221 = vld [vmem:[%s19 + $0x50] sm:$0xf]
  %v5222 = vld [vmem:[%s19 + $0x54] sm:$0xf]
  %v5223 = vld [vmem:[%s19 + $0x58] sm:$0xf]
  %v5224 = vld [vmem:[%s19 + $0x5c] sm:$0xf]
  %v5225 = vld [vmem:[%s19 + $0x60] sm:$0xf]
  %v5226 = vld [vmem:[%s19 + $0x64] sm:$0xf]
  %v5227 = vld [vmem:[%s19 + $0x68] sm:$0xf]
  %v5228 = vld [vmem:[%s19 + $0x6c] sm:$0xf]
  %v5229 = vld [vmem:[%s19 + $0x70] sm:$0xf]
  %v5230 = vld [vmem:[%s19 + $0x74] sm:$0xf]
  %v5231 = vld [vmem:[%s19 + $0x78] sm:$0xf]
  %v5232 = vld [vmem:[%s19 + $0x7c] sm:$0xf]
  %v5233 = vld [vmem:[%s19 + $0x80] sm:$0xf]
  %v5234 = vld [vmem:[%s19 + $0x84] sm:$0xf]
  %v5235 = vld [vmem:[%s19 + $0x88] sm:$0xf]
  %v5236 = vld [vmem:[%s19 + $0x8c] sm:$0xf]
  %v5237 = vld [vmem:[%s19 + $0x90] sm:$0xf]
  %v5238 = vld [vmem:[%s19 + $0x94] sm:$0xf]
  %v5239 = vld [vmem:[%s19 + $0x98] sm:$0xf]
  %v5240 = vld [vmem:[%s19 + $0x9c] sm:$0xf]
  %v5241 = vld [vmem:[%s19 + $0xa0] sm:$0xf]
  %v5242 = vld [vmem:[%s19 + $0xa4] sm:$0xf]
  %v5243 = vld [vmem:[%s19 + $0xa8] sm:$0xf]
  %v5244 = vld [vmem:[%s19 + $0xac] sm:$0xf]
  %v5245 = vld [vmem:[%s19 + $0xb0] sm:$0xf]
  %v5246 = vld [vmem:[%s19 + $0xb4] sm:$0xf]
  %v5247 = vld [vmem:[%s19 + $0xb8] sm:$0xf]
  %v5248 = vld [vmem:[%s19 + $0xbc] sm:$0xf]
  %v5249 = vld [vmem:[%s19 + $0xc0] sm:$0xf]
  %v5250 = vld [vmem:[%s19 + $0xc4] sm:$0xf]
  %v5251 = vld [vmem:[%s19 + $0xc8] sm:$0xf]
  %v5252 = vld [vmem:[%s19 + $0xcc] sm:$0xf]
  %v5253 = vld [vmem:[%s19 + $0xd0] sm:$0xf]
  %v5254 = vld [vmem:[%s19 + $0xd4] sm:$0xf]
  %v5255 = vld [vmem:[%s19 + $0xd8] sm:$0xf]
  %v5256 = vld [vmem:[%s19 + $0xdc] sm:$0xf]
  %v5257 = vld [vmem:[%s19 + $0xe0] sm:$0xf]
  %v5258 = vld [vmem:[%s19 + $0xe4] sm:$0xf]
  %v5259 = vld [vmem:[%s19 + $0xe8] sm:$0xf]
  %v5260 = vld [vmem:[%s19 + $0xec] sm:$0xf]
  %v5261 = vld [vmem:[%s19 + $0xf0] sm:$0xf]
  %v5262 = vld [vmem:[%s19 + $0xf4] sm:$0xf]
  %v5263 = vld [vmem:[%s19 + $0xf8] sm:$0xf]
  %v5264 = vld [vmem:[%s19 + $0xfc] sm:$0xf]
  %v5265 = vld [vmem:[%s19 + $0x100] sm:$0xf]
  %v5266 = vld [vmem:[%s19 + $0x104] sm:$0xf]
  %v5267 = vld [vmem:[%s19 + $0x108] sm:$0xf]
  %v5268 = vld [vmem:[%s19 + $0x10c] sm:$0xf]
  %v5269 = vld [vmem:[%s19 + $0x110] sm:$0xf]
  %v5270 = vld [vmem:[%s19 + $0x114] sm:$0xf]
  %v5271 = vld [vmem:[%s19 + $0x118] sm:$0xf]
  %v5272 = vld [vmem:[%s19 + $0x11c] sm:$0xf]
  %v5273 = vld [vmem:[%s19 + $0x120] sm:$0xf]
  %v5274 = vld [vmem:[%s19 + $0x124] sm:$0xf]
  %v5275 = vld [vmem:[%s19 + $0x128] sm:$0xf]
  %v5276 = vld [vmem:[%s19 + $0x12c] sm:$0xf]
  %v5277 = vld [vmem:[%s19 + $0x130] sm:$0xf]
  %v5278 = vld [vmem:[%s19 + $0x134] sm:$0xf]
  %v5279 = vld [vmem:[%s19 + $0x138] sm:$0xf]
  %v5280 = vld [vmem:[%s19 + $0x13c] sm:$0xf]
  %v5281 = vld [vmem:[%s19 + $0x140] sm:$0xf]
  %v5282 = vld [vmem:[%s19 + $0x144] sm:$0xf]
  %v5283 = vld [vmem:[%s19 + $0x148] sm:$0xf]
  %v5284 = vld [vmem:[%s19 + $0x14c] sm:$0xf]
  %v5285 = vld [vmem:[%s19 + $0x150] sm:$0xf]
  %v5286 = vld [vmem:[%s19 + $0x154] sm:$0xf]
  %v5287 = vld [vmem:[%s19 + $0x158] sm:$0xf]
  %v5288 = vld [vmem:[%s19 + $0x15c] sm:$0xf]
  %v5289 = vld [vmem:[%s19 + $0x160] sm:$0xf]
  %v5290 = vld [vmem:[%s19 + $0x164] sm:$0xf]
  %v5291 = vld [vmem:[%s19 + $0x168] sm:$0xf]
  %v5292 = vld [vmem:[%s19 + $0x16c] sm:$0xf]
  %v5293 = vld [vmem:[%s19 + $0x170] sm:$0xf]
  %v5294 = vld [vmem:[%s19 + $0x174] sm:$0xf]
  %v5295 = vld [vmem:[%s19 + $0x178] sm:$0xf]
  %v5296 = vld [vmem:[%s19 + $0x17c] sm:$0xf]
  %v5297 = vld [vmem:[%s19 + $0x180] sm:$0xf]
  %v5298 = vld [vmem:[%s19 + $0x184] sm:$0xf]
  %v5299 = vld [vmem:[%s19 + $0x188] sm:$0xf]
  %v5300 = vld [vmem:[%s19 + $0x18c] sm:$0xf]
  %v5301 = vunpack.c.l.bf16 %v5201
  %v5302 = vunpack.c.l.bf16 %v5202
  %v5303 = vunpack.c.l.bf16 %v5203
  %v5304 = vunpack.c.l.bf16 %v5204
  %v5305 = vunpack.c.l.bf16 %v5205
  %v5306 = vunpack.c.l.bf16 %v5206
  %v5307 = vunpack.c.l.bf16 %v5207
  %v5308 = vunpack.c.l.bf16 %v5208
  %v5309 = vunpack.c.l.bf16 %v5209
  %v5310 = vunpack.c.l.bf16 %v5210
  %v5311 = vunpack.c.l.bf16 %v5211
  %v5312 = vunpack.c.l.bf16 %v5212
  %v5313 = vunpack.c.l.bf16 %v5213
  %v5314 = vunpack.c.l.bf16 %v5214
  %v5315 = vunpack.c.l.bf16 %v5215
  %v5316 = vunpack.c.l.bf16 %v5216
  %v5317 = vunpack.c.l.bf16 %v5217
  %v5318 = vunpack.c.l.bf16 %v5218
  %v5319 = vunpack.c.l.bf16 %v5219
  %v5320 = vunpack.c.l.bf16 %v5220
  %v5321 = vunpack.c.l.bf16 %v5221
  %v5322 = vunpack.c.l.bf16 %v5222
  %v5323 = vunpack.c.l.bf16 %v5223
  %v5324 = vunpack.c.l.bf16 %v5224
  %v5325 = vunpack.c.l.bf16 %v5225
  %v5326 = vunpack.c.l.bf16 %v5226
  %v5327 = vunpack.c.l.bf16 %v5227
  %v5328 = vunpack.c.l.bf16 %v5228
  %v5329 = vunpack.c.l.bf16 %v5229
  %v5330 = vunpack.c.l.bf16 %v5230
  %v5331 = vunpack.c.l.bf16 %v5231
  %v5332 = vunpack.c.l.bf16 %v5232
  %v5333 = vunpack.c.l.bf16 %v5233
  %v5334 = vunpack.c.l.bf16 %v5234
  %v5335 = vunpack.c.l.bf16 %v5235
  %v5336 = vunpack.c.l.bf16 %v5236
  %v5337 = vunpack.c.l.bf16 %v5237
  %v5338 = vunpack.c.l.bf16 %v5238
  %v5339 = vunpack.c.l.bf16 %v5239
  %v5340 = vunpack.c.l.bf16 %v5240
  %v5341 = vunpack.c.l.bf16 %v5241
  %v5342 = vunpack.c.l.bf16 %v5242
  %v5343 = vunpack.c.l.bf16 %v5243
  %v5344 = vunpack.c.l.bf16 %v5244
  %v5345 = vunpack.c.l.bf16 %v5245
  %v5346 = vunpack.c.l.bf16 %v5246
  %v5347 = vunpack.c.l.bf16 %v5247
  %v5348 = vunpack.c.l.bf16 %v5248
  %v5349 = vunpack.c.l.bf16 %v5249
  %v5350 = vunpack.c.l.bf16 %v5250
  %v5351 = vunpack.c.l.bf16 %v5251
  %v5352 = vunpack.c.l.bf16 %v5252
  %v5353 = vunpack.c.l.bf16 %v5253
  %v5354 = vunpack.c.l.bf16 %v5254
  %v5355 = vunpack.c.l.bf16 %v5255
  %v5356 = vunpack.c.l.bf16 %v5256
  %v5357 = vunpack.c.l.bf16 %v5257
  %v5358 = vunpack.c.l.bf16 %v5258
  %v5359 = vunpack.c.l.bf16 %v5259
  %v5360 = vunpack.c.l.bf16 %v5260
  %v5361 = vunpack.c.l.bf16 %v5261
  %v5362 = vunpack.c.l.bf16 %v5262
  %v5363 = vunpack.c.l.bf16 %v5263
  %v5364 = vunpack.c.l.bf16 %v5264
  %v5365 = vunpack.c.l.bf16 %v5265
  %v5366 = vunpack.c.l.bf16 %v5266
  %v5367 = vunpack.c.l.bf16 %v5267
  %v5368 = vunpack.c.l.bf16 %v5268
  %v5369 = vunpack.c.l.bf16 %v5269
  %v5370 = vunpack.c.l.bf16 %v5270
  %v5371 = vunpack.c.l.bf16 %v5271
  %v5372 = vunpack.c.l.bf16 %v5272
  %v5373 = vunpack.c.l.bf16 %v5273
  %v5374 = vunpack.c.l.bf16 %v5274
  %v5375 = vunpack.c.l.bf16 %v5275
  %v5376 = vunpack.c.l.bf16 %v5276
  %v5377 = vunpack.c.l.bf16 %v5277
  %v5378 = vunpack.c.l.bf16 %v5278
  %v5379 = vunpack.c.l.bf16 %v5279
  %v5380 = vunpack.c.l.bf16 %v5280
  %v5381 = vunpack.c.l.bf16 %v5281
  %v5382 = vunpack.c.l.bf16 %v5282
  %v5383 = vunpack.c.l.bf16 %v5283
  %v5384 = vunpack.c.l.bf16 %v5284
  %v5385 = vunpack.c.l.bf16 %v5285
  %v5386 = vunpack.c.l.bf16 %v5286
  %v5387 = vunpack.c.l.bf16 %v5287
  %v5388 = vunpack.c.l.bf16 %v5288
  %v5389 = vunpack.c.l.bf16 %v5289
  %v5390 = vunpack.c.l.bf16 %v5290
  %v5391 = vunpack.c.l.bf16 %v5291
  %v5392 = vunpack.c.l.bf16 %v5292
  %v5393 = vunpack.c.l.bf16 %v5293
  %v5394 = vunpack.c.l.bf16 %v5294
  %v5395 = vunpack.c.l.bf16 %v5295
  %v5396 = vunpack.c.l.bf16 %v5296
  %v5397 = vunpack.c.l.bf16 %v5297
  %v5398 = vunpack.c.l.bf16 %v5298
  %v5399 = vunpack.c.l.bf16 %v5299
  %v5400 = vunpack.c.l.bf16 %v5300
  %5410 = vrot.lane.b32.xlu0 %v5158, 120
  %v5411 = vpop.permute.xlu0 %5410
  %5412 = vrot.lane.b32.xlu0 %v5163, 120
  %v5413 = vpop.permute.xlu0 %5412
  %5414 = vrot.lane.b32.xlu0 %v5168, 120
  %v5415 = vpop.permute.xlu0 %5414
  %5416 = vrot.lane.b32.xlu0 %v5173, 120
  %v5417 = vpop.permute.xlu0 %5416
  %5418 = vrot.lane.b32.xlu0 %v5178, 120
  %v5419 = vpop.permute.xlu0 %5418
  %5420 = vrot.lane.b32.xlu0 %v5183, 120
  %v5421 = vpop.permute.xlu0 %5420
  %5422 = vrot.lane.b32.xlu0 %v5188, 120
  %v5423 = vpop.permute.xlu0 %5422
  %5424 = vrot.lane.b32.xlu0 %v5193, 120
  %v5425 = vpop.permute.xlu0 %5424
  %5426 = vrot.lane.b32.xlu0 %v5198, 120
  %v5427 = vpop.permute.xlu0 %5426
  %vm5437 = vcmask 588800
  %v5439 = vsel %vm5437, %v5326, 0
  %v5442 = vsel %vm5437, %v5327, 0
  %v5445 = vsel %vm5437, %v5328, 0
  %v5448 = vsel %vm5437, %v5329, 0
  %v5451 = vsel %vm5437, %v5330, 0
  %v5454 = vsel %vm5437, %v5331, 0
  %v5457 = vsel %vm5437, %v5332, 0
  %v5460 = vsel %vm5437, %v5333, 0
  %v5463 = vsel %vm5437, %v5334, 0
  %v5466 = vsel %vm5437, %v5335, 0
  %v5469 = vsel %vm5437, %v5336, 0
  %v5472 = vsel %vm5437, %v5337, 0
  %v5475 = vsel %vm5437, %v5338, 0
  %v5478 = vsel %vm5437, %v5339, 0
  %v5481 = vsel %vm5437, %v5340, 0
  %v5484 = vsel %vm5437, %v5341, 0
  %v5487 = vsel %vm5437, %v5342, 0
  %v5490 = vsel %vm5437, %v5343, 0
  %v5493 = vsel %vm5437, %v5344, 0
  %v5496 = vsel %vm5437, %v5345, 0
  %v5499 = vsel %vm5437, %v5346, 0
  %v5502 = vsel %vm5437, %v5347, 0
  %v5505 = vsel %vm5437, %v5348, 0
  %v5508 = vsel %vm5437, %v5349, 0
  %v5511 = vsel %vm5437, %v5350, 0
  %5513 = vmatprep.subr.mxu0 0.0
  %5514 = vmatpush1.msra.mxu0 0.0
  %5515 = vmatprep.subr.mxu0 0.0
  %5516 = vmatpush1.msra.mxu0 0.0
  %5517 = vmatprep.subr.mxu0 0.0
  %5518 = vmatpush1.msra.mxu0 0.0
  %5519 = vmatprep.subr.mxu0 0.0
  %5520 = vmatpush1.msra.mxu0 0.0
  %5521 = vmatprep.subr.mxu0 0.0
  %5522 = vmatpush1.msra.mxu0 0.0
  %5523 = vmatprep.subr.mxu0 0.0
  %5524 = vmatpush1.msra.mxu0 0.0
  %5525 = vmatprep.subr.mxu0 0.0
  %5526 = vmatpush1.msra.mxu0 0.0
  %5527 = vmatprep.subr.mxu0 0.0
  %5528 = vmatpush1.msra.mxu0 %v5427
  %5529 = vmatprep.subr.mxu0 0.0
  %5530 = vmatpush1.msra.mxu0 %v5425
  %5531 = vmatprep.subr.mxu0 0.0
  %5532 = vmatpush1.msra.mxu0 %v5423
  %5533 = vmatprep.subr.mxu0 0.0
  %5534 = vmatpush1.msra.mxu0 %v5421
  %5535 = vmatprep.subr.mxu0 0.0
  %5536 = vmatpush1.msra.mxu0 %v5419
  %5537 = vmatprep.subr.mxu0 0.0
  %5538 = vmatpush1.msra.mxu0 %v5417
  %5539 = vmatprep.subr.mxu0 0.0
  %5540 = vmatpush1.msra.mxu0 %v5415
  %5541 = vmatprep.subr.mxu0 0.0
  %5542 = vmatpush1.msra.mxu0 %v5413
  %5543 = vmatprep.subr.mxu0 0.0
  %5544 = vmatpush1.msra.mxu0 %v5411
  %5545 = vmatprep.subr.mxu0 0.0
  %5546 = vmatpush2.msra.mxu0 0.0
  %5547 = vmatprep.subr.mxu0 0.0
  %5548 = vmatpush2.msra.mxu0 0.0
  %5549 = vmatprep.subr.mxu0 0.0
  %5550 = vmatpush2.msra.mxu0 0.0
  %5551 = vmatprep.subr.mxu0 0.0
  %5552 = vmatpush2.msra.mxu0 0.0
  %5553 = vmatprep.subr.mxu0 0.0
  %5554 = vmatpush2.msra.mxu0 0.0
  %5555 = vmatprep.subr.mxu0 0.0
  %5556 = vmatpush2.msra.mxu0 0.0
  %5557 = vmatprep.subr.mxu0 0.0
  %5558 = vmatpush2.msra.mxu0 0.0
  %5559 = vmatprep.subr.mxu0 0.0
  %5560 = vmatpush2.msra.mxu0 0.0
  %5561 = vmatprep.subr.mxu0 0.0
  %5562 = vmatpush2.msra.mxu0 0.0
  %5563 = vmatprep.subr.mxu0 0.0
  %5564 = vmatpush2.msra.mxu0 0.0
  %5565 = vmatprep.subr.mxu0 0.0
  %5566 = vmatpush2.msra.mxu0 0.0
  %5567 = vmatprep.subr.mxu0 0.0
  %5568 = vmatpush2.msra.mxu0 0.0
  %5569 = vmatprep.subr.mxu0 0.0
  %5570 = vmatpush2.msra.mxu0 0.0
  %5571 = vmatprep.subr.mxu0 0.0
  %5572 = vmatpush2.msra.mxu0 0.0
  %5573 = vmatprep.subr.mxu0 0.0
  %5574 = vmatpush2.msra.mxu0 0.0
  %5575 = vmatprep.subr.mxu0 0.0
  %5576 = vmatpush2.msra.mxu0 0.0
  %5577 = vmatprep.mubr.f32.mxu0 0.0
  %5578 = vmatmul.mubr.f32.gmra.mxu0 %v5439
  %v5579 = vpop.f32.mrf.mxu0
  %v5580 = vadd.f32 0.0, %v5579
  %v5581 = vpop.f32.mrf.mxu0
  %5582 = vmatprep.mubr.f32.mxu0 0.0
  %5583 = vmatmul.mubr.f32.gmra.mxu0 %v5442
  %v5584 = vpop.f32.mrf.mxu0
  %v5585 = vadd.f32 0.0, %v5584
  %v5586 = vpop.f32.mrf.mxu0
  %5587 = vmatprep.mubr.f32.mxu0 0.0
  %5588 = vmatmul.mubr.f32.gmra.mxu0 %v5445
  %v5589 = vpop.f32.mrf.mxu0
  %v5590 = vadd.f32 0.0, %v5589
  %v5591 = vpop.f32.mrf.mxu0
  %5592 = vmatprep.mubr.f32.mxu0 0.0
  %5593 = vmatmul.mubr.f32.gmra.mxu0 %v5448
  %v5594 = vpop.f32.mrf.mxu0
  %v5595 = vadd.f32 0.0, %v5594
  %v5596 = vpop.f32.mrf.mxu0
  %5597 = vmatprep.mubr.f32.mxu0 0.0
  %5598 = vmatmul.mubr.f32.gmra.mxu0 %v5451
  %v5599 = vpop.f32.mrf.mxu0
  %v5600 = vadd.f32 0.0, %v5599
  %v5601 = vpop.f32.mrf.mxu0
  %5602 = vmatprep.mubr.f32.mxu0 0.0
  %5603 = vmatmul.mubr.f32.gmra.mxu0 %v5454
  %v5604 = vpop.f32.mrf.mxu0
  %v5605 = vadd.f32 0.0, %v5604
  %v5606 = vpop.f32.mrf.mxu0
  %5607 = vmatprep.mubr.f32.mxu0 0.0
  %5608 = vmatmul.mubr.f32.gmra.mxu0 %v5457
  %v5609 = vpop.f32.mrf.mxu0
  %v5610 = vadd.f32 0.0, %v5609
  %v5611 = vpop.f32.mrf.mxu0
  %5612 = vmatprep.mubr.f32.mxu0 0.0
  %5613 = vmatmul.mubr.f32.gmra.mxu0 %v5460
  %v5614 = vpop.f32.mrf.mxu0
  %v5615 = vadd.f32 0.0, %v5614
  %v5616 = vpop.f32.mrf.mxu0
  %5617 = vmatprep.mubr.f32.mxu0 0.0
  %5618 = vmatmul.mubr.f32.gmra.mxu0 %v5463
  %v5619 = vpop.f32.mrf.mxu0
  %v5620 = vadd.f32 0.0, %v5619
  %v5621 = vpop.f32.mrf.mxu0
  %5622 = vmatprep.mubr.f32.mxu0 0.0
  %5623 = vmatmul.mubr.f32.gmra.mxu0 %v5466
  %v5624 = vpop.f32.mrf.mxu0
  %v5625 = vadd.f32 0.0, %v5624
  %v5626 = vpop.f32.mrf.mxu0
  %5627 = vmatprep.mubr.f32.mxu0 0.0
  %5628 = vmatmul.mubr.f32.gmra.mxu0 %v5469
  %v5629 = vpop.f32.mrf.mxu0
  %v5630 = vadd.f32 0.0, %v5629
  %v5631 = vpop.f32.mrf.mxu0
  %5632 = vmatprep.mubr.f32.mxu0 0.0
  %5633 = vmatmul.mubr.f32.gmra.mxu0 %v5472
  %v5634 = vpop.f32.mrf.mxu0
  %v5635 = vadd.f32 0.0, %v5634
  %v5636 = vpop.f32.mrf.mxu0
  %5637 = vmatprep.mubr.f32.mxu0 0.0
  %5638 = vmatmul.mubr.f32.gmra.mxu0 %v5475
  %v5639 = vpop.f32.mrf.mxu0
  %v5640 = vadd.f32 0.0, %v5639
  %v5641 = vpop.f32.mrf.mxu0
  %5642 = vmatprep.mubr.f32.mxu0 0.0
  %5643 = vmatmul.mubr.f32.gmra.mxu0 %v5478
  %v5644 = vpop.f32.mrf.mxu0
  %v5645 = vadd.f32 0.0, %v5644
  %v5646 = vpop.f32.mrf.mxu0
  %5647 = vmatprep.mubr.f32.mxu0 0.0
  %5648 = vmatmul.mubr.f32.gmra.mxu0 %v5481
  %v5649 = vpop.f32.mrf.mxu0
  %v5650 = vadd.f32 0.0, %v5649
  %v5651 = vpop.f32.mrf.mxu0
  %5652 = vmatprep.mubr.f32.mxu0 0.0
  %5653 = vmatmul.mubr.f32.gmra.mxu0 %v5484
  %v5654 = vpop.f32.mrf.mxu0
  %v5655 = vadd.f32 0.0, %v5654
  %v5656 = vpop.f32.mrf.mxu0
  %5657 = vmatprep.mubr.f32.mxu0 0.0
  %5658 = vmatmul.mubr.f32.gmra.mxu0 %v5487
  %v5659 = vpop.f32.mrf.mxu0
  %v5660 = vadd.f32 0.0, %v5659
  %v5661 = vpop.f32.mrf.mxu0
  %5662 = vmatprep.mubr.f32.mxu0 0.0
  %5663 = vmatmul.mubr.f32.gmra.mxu0 %v5490
  %v5664 = vpop.f32.mrf.mxu0
  %v5665 = vadd.f32 0.0, %v5664
  %v5666 = vpop.f32.mrf.mxu0
  %5667 = vmatprep.mubr.f32.mxu0 0.0
  %5668 = vmatmul.mubr.f32.gmra.mxu0 %v5493
  %v5669 = vpop.f32.mrf.mxu0
  %v5670 = vadd.f32 0.0, %v5669
  %v5671 = vpop.f32.mrf.mxu0
  %5672 = vmatprep.mubr.f32.mxu0 0.0
  %5673 = vmatmul.mubr.f32.gmra.mxu0 %v5496
  %v5674 = vpop.f32.mrf.mxu0
  %v5675 = vadd.f32 0.0, %v5674
  %v5676 = vpop.f32.mrf.mxu0
  %5677 = vmatprep.mubr.f32.mxu0 0.0
  %5678 = vmatmul.mubr.f32.gmra.mxu0 %v5499
  %v5679 = vpop.f32.mrf.mxu0
  %v5680 = vadd.f32 0.0, %v5679
  %v5681 = vpop.f32.mrf.mxu0
  %5682 = vmatprep.mubr.f32.mxu0 0.0
  %5683 = vmatmul.mubr.f32.gmra.mxu0 %v5502
  %v5684 = vpop.f32.mrf.mxu0
  %v5685 = vadd.f32 0.0, %v5684
  %v5686 = vpop.f32.mrf.mxu0
  %5687 = vmatprep.mubr.f32.mxu0 0.0
  %5688 = vmatmul.mubr.f32.gmra.mxu0 %v5505
  %v5689 = vpop.f32.mrf.mxu0
  %v5690 = vadd.f32 0.0, %v5689
  %v5691 = vpop.f32.mrf.mxu0
  %5692 = vmatprep.mubr.f32.mxu0 0.0
  %5693 = vmatmul.mubr.f32.gmra.mxu0 %v5508
  %v5694 = vpop.f32.mrf.mxu0
  %v5695 = vadd.f32 0.0, %v5694
  %v5696 = vpop.f32.mrf.mxu0
  %5697 = vmatprep.mubr.f32.mxu0 0.0
  %5698 = vmatmul.mubr.f32.gmra.mxu0 %v5511
  %v5699 = vpop.f32.mrf.mxu0
  %v5700 = vadd.f32 0.0, %v5699
  %v5701 = vpop.f32.mrf.mxu0
  %5702 = vdwg.mxu0
  %v5704 = vsel %vm5437, %v5301, 0
  %v5707 = vsel %vm5437, %v5302, 0
  %v5710 = vsel %vm5437, %v5303, 0
  %v5713 = vsel %vm5437, %v5304, 0
  %v5716 = vsel %vm5437, %v5305, 0
  %v5719 = vsel %vm5437, %v5306, 0
  %v5722 = vsel %vm5437, %v5307, 0
  %v5725 = vsel %vm5437, %v5308, 0
  %v5728 = vsel %vm5437, %v5309, 0
  %v5731 = vsel %vm5437, %v5310, 0
  %v5734 = vsel %vm5437, %v5311, 0
  %v5737 = vsel %vm5437, %v5312, 0
  %v5740 = vsel %vm5437, %v5313, 0
  %v5743 = vsel %vm5437, %v5314, 0
  %v5746 = vsel %vm5437, %v5315, 0
  %v5749 = vsel %vm5437, %v5316, 0
  %v5752 = vsel %vm5437, %v5317, 0
  %v5755 = vsel %vm5437, %v5318, 0
  %v5758 = vsel %vm5437, %v5319, 0
  %v5761 = vsel %vm5437, %v5320, 0
  %v5764 = vsel %vm5437, %v5321, 0
  %v5767 = vsel %vm5437, %v5322, 0
  %v5770 = vsel %vm5437, %v5323, 0
  %v5773 = vsel %vm5437, %v5324, 0
  %v5776 = vsel %vm5437, %v5325, 0
  %5778 = vmatprep.subr.mxu0 0.0
  %5779 = vmatpush1.msra.mxu0 0.0
  %5780 = vmatprep.subr.mxu0 0.0
  %5781 = vmatpush1.msra.mxu0 0.0
  %5782 = vmatprep.subr.mxu0 0.0
  %5783 = vmatpush1.msra.mxu0 0.0
  %5784 = vmatprep.subr.mxu0 0.0
  %5785 = vmatpush1.msra.mxu0 0.0
  %5786 = vmatprep.subr.mxu0 0.0
  %5787 = vmatpush1.msra.mxu0 0.0
  %5788 = vmatprep.subr.mxu0 0.0
  %5789 = vmatpush1.msra.mxu0 0.0
  %5790 = vmatprep.subr.mxu0 0.0
  %5791 = vmatpush1.msra.mxu0 0.0
  %5792 = vmatprep.subr.mxu0 0.0
  %5793 = vmatpush1.msra.mxu0 %v5198
  %5794 = vmatprep.subr.mxu0 0.0
  %5795 = vmatpush1.msra.mxu0 %v5193
  %5796 = vmatprep.subr.mxu0 0.0
  %5797 = vmatpush1.msra.mxu0 %v5188
  %5798 = vmatprep.subr.mxu0 0.0
  %5799 = vmatpush1.msra.mxu0 %v5183
  %5800 = vmatprep.subr.mxu0 0.0
  %5801 = vmatpush1.msra.mxu0 %v5178
  %5802 = vmatprep.subr.mxu0 0.0
  %5803 = vmatpush1.msra.mxu0 %v5173
  %5804 = vmatprep.subr.mxu0 0.0
  %5805 = vmatpush1.msra.mxu0 %v5168
  %5806 = vmatprep.subr.mxu0 0.0
  %5807 = vmatpush1.msra.mxu0 %v5163
  %5808 = vmatprep.subr.mxu0 0.0
  %5809 = vmatpush1.msra.mxu0 %v5158
  %5810 = vmatprep.subr.mxu0 0.0
  %5811 = vmatpush2.msra.mxu0 0.0
  %5812 = vmatprep.subr.mxu0 0.0
  %5813 = vmatpush2.msra.mxu0 0.0
  %5814 = vmatprep.subr.mxu0 0.0
  %5815 = vmatpush2.msra.mxu0 0.0
  %5816 = vmatprep.subr.mxu0 0.0
  %5817 = vmatpush2.msra.mxu0 0.0
  %5818 = vmatprep.subr.mxu0 0.0
  %5819 = vmatpush2.msra.mxu0 0.0
  %5820 = vmatprep.subr.mxu0 0.0
  %5821 = vmatpush2.msra.mxu0 0.0
  %5822 = vmatprep.subr.mxu0 0.0
  %5823 = vmatpush2.msra.mxu0 0.0
  %5824 = vmatprep.subr.mxu0 0.0
  %5825 = vmatpush2.msra.mxu0 0.0
  %5826 = vmatprep.subr.mxu0 0.0
  %5827 = vmatpush2.msra.mxu0 0.0
  %5828 = vmatprep.subr.mxu0 0.0
  %5829 = vmatpush2.msra.mxu0 0.0
  %5830 = vmatprep.subr.mxu0 0.0
  %5831 = vmatpush2.msra.mxu0 0.0
  %5832 = vmatprep.subr.mxu0 0.0
  %5833 = vmatpush2.msra.mxu0 0.0
  %5834 = vmatprep.subr.mxu0 0.0
  %5835 = vmatpush2.msra.mxu0 0.0
  %5836 = vmatprep.subr.mxu0 0.0
  %5837 = vmatpush2.msra.mxu0 0.0
  %5838 = vmatprep.subr.mxu0 0.0
  %5839 = vmatpush2.msra.mxu0 0.0
  %5840 = vmatprep.subr.mxu0 0.0
  %5841 = vmatpush2.msra.mxu0 0.0
  %5842 = vmatprep.mubr.f32.mxu0 0.0
  %5843 = vmatmul.mubr.f32.gmra.mxu0 %v5704
  %v5844 = vpop.f32.mrf.mxu0
  %v5845 = vadd.f32 %v5580, %v5844
  %v5846 = vpop.f32.mrf.mxu0
  %5847 = vmatprep.mubr.f32.mxu0 0.0
  %5848 = vmatmul.mubr.f32.gmra.mxu0 %v5707
  %v5849 = vpop.f32.mrf.mxu0
  %v5850 = vadd.f32 %v5585, %v5849
  %v5851 = vpop.f32.mrf.mxu0
  %5852 = vmatprep.mubr.f32.mxu0 0.0
  %5853 = vmatmul.mubr.f32.gmra.mxu0 %v5710
  %v5854 = vpop.f32.mrf.mxu0
  %v5855 = vadd.f32 %v5590, %v5854
  %v5856 = vpop.f32.mrf.mxu0
  %5857 = vmatprep.mubr.f32.mxu0 0.0
  %5858 = vmatmul.mubr.f32.gmra.mxu0 %v5713
  %v5859 = vpop.f32.mrf.mxu0
  %v5860 = vadd.f32 %v5595, %v5859
  %v5861 = vpop.f32.mrf.mxu0
  %5862 = vmatprep.mubr.f32.mxu0 0.0
  %5863 = vmatmul.mubr.f32.gmra.mxu0 %v5716
  %v5864 = vpop.f32.mrf.mxu0
  %v5865 = vadd.f32 %v5600, %v5864
  %v5866 = vpop.f32.mrf.mxu0
  %5867 = vmatprep.mubr.f32.mxu0 0.0
  %5868 = vmatmul.mubr.f32.gmra.mxu0 %v5719
  %v5869 = vpop.f32.mrf.mxu0
  %v5870 = vadd.f32 %v5605, %v5869
  %v5871 = vpop.f32.mrf.mxu0
  %5872 = vmatprep.mubr.f32.mxu0 0.0
  %5873 = vmatmul.mubr.f32.gmra.mxu0 %v5722
  %v5874 = vpop.f32.mrf.mxu0
  %v5875 = vadd.f32 %v5610, %v5874
  %v5876 = vpop.f32.mrf.mxu0
  %5877 = vmatprep.mubr.f32.mxu0 0.0
  %5878 = vmatmul.mubr.f32.gmra.mxu0 %v5725
  %v5879 = vpop.f32.mrf.mxu0
  %v5880 = vadd.f32 %v5615, %v5879
  %v5881 = vpop.f32.mrf.mxu0
  %5882 = vmatprep.mubr.f32.mxu0 0.0
  %5883 = vmatmul.mubr.f32.gmra.mxu0 %v5728
  %v5884 = vpop.f32.mrf.mxu0
  %v5885 = vadd.f32 %v5620, %v5884
  %v5886 = vpop.f32.mrf.mxu0
  %5887 = vmatprep.mubr.f32.mxu0 0.0
  %5888 = vmatmul.mubr.f32.gmra.mxu0 %v5731
  %v5889 = vpop.f32.mrf.mxu0
  %v5890 = vadd.f32 %v5625, %v5889
  %v5891 = vpop.f32.mrf.mxu0
  %5892 = vmatprep.mubr.f32.mxu0 0.0
  %5893 = vmatmul.mubr.f32.gmra.mxu0 %v5734
  %v5894 = vpop.f32.mrf.mxu0
  %v5895 = vadd.f32 %v5630, %v5894
  %v5896 = vpop.f32.mrf.mxu0
  %5897 = vmatprep.mubr.f32.mxu0 0.0
  %5898 = vmatmul.mubr.f32.gmra.mxu0 %v5737
  %v5899 = vpop.f32.mrf.mxu0
  %v5900 = vadd.f32 %v5635, %v5899
  %v5901 = vpop.f32.mrf.mxu0
  %5902 = vmatprep.mubr.f32.mxu0 0.0
  %5903 = vmatmul.mubr.f32.gmra.mxu0 %v5740
  %v5904 = vpop.f32.mrf.mxu0
  %v5905 = vadd.f32 %v5640, %v5904
  %v5906 = vpop.f32.mrf.mxu0
  %5907 = vmatprep.mubr.f32.mxu0 0.0
  %5908 = vmatmul.mubr.f32.gmra.mxu0 %v5743
  %v5909 = vpop.f32.mrf.mxu0
  %v5910 = vadd.f32 %v5645, %v5909
  %v5911 = vpop.f32.mrf.mxu0
  %5912 = vmatprep.mubr.f32.mxu0 0.0
  %5913 = vmatmul.mubr.f32.gmra.mxu0 %v5746
  %v5914 = vpop.f32.mrf.mxu0
  %v5915 = vadd.f32 %v5650, %v5914
  %v5916 = vpop.f32.mrf.mxu0
  %5917 = vmatprep.mubr.f32.mxu0 0.0
  %5918 = vmatmul.mubr.f32.gmra.mxu0 %v5749
  %v5919 = vpop.f32.mrf.mxu0
  %v5920 = vadd.f32 %v5655, %v5919
  %v5921 = vpop.f32.mrf.mxu0
  %5922 = vmatprep.mubr.f32.mxu0 0.0
  %5923 = vmatmul.mubr.f32.gmra.mxu0 %v5752
  %v5924 = vpop.f32.mrf.mxu0
  %v5925 = vadd.f32 %v5660, %v5924
  %v5926 = vpop.f32.mrf.mxu0
  %5927 = vmatprep.mubr.f32.mxu0 0.0
  %5928 = vmatmul.mubr.f32.gmra.mxu0 %v5755
  %v5929 = vpop.f32.mrf.mxu0
  %v5930 = vadd.f32 %v5665, %v5929
  %v5931 = vpop.f32.mrf.mxu0
  %5932 = vmatprep.mubr.f32.mxu0 0.0
  %5933 = vmatmul.mubr.f32.gmra.mxu0 %v5758
  %v5934 = vpop.f32.mrf.mxu0
  %v5935 = vadd.f32 %v5670, %v5934
  %v5936 = vpop.f32.mrf.mxu0
  %5937 = vmatprep.mubr.f32.mxu0 0.0
  %5938 = vmatmul.mubr.f32.gmra.mxu0 %v5761
  %v5939 = vpop.f32.mrf.mxu0
  %v5940 = vadd.f32 %v5675, %v5939
  %v5941 = vpop.f32.mrf.mxu0
  %5942 = vmatprep.mubr.f32.mxu0 0.0
  %5943 = vmatmul.mubr.f32.gmra.mxu0 %v5764
  %v5944 = vpop.f32.mrf.mxu0
  %v5945 = vadd.f32 %v5680, %v5944
  %v5946 = vpop.f32.mrf.mxu0
  %5947 = vmatprep.mubr.f32.mxu0 0.0
  %5948 = vmatmul.mubr.f32.gmra.mxu0 %v5767
  %v5949 = vpop.f32.mrf.mxu0
  %v5950 = vadd.f32 %v5685, %v5949
  %v5951 = vpop.f32.mrf.mxu0
  %5952 = vmatprep.mubr.f32.mxu0 0.0
  %5953 = vmatmul.mubr.f32.gmra.mxu0 %v5770
  %v5954 = vpop.f32.mrf.mxu0
  %v5955 = vadd.f32 %v5690, %v5954
  %v5956 = vpop.f32.mrf.mxu0
  %5957 = vmatprep.mubr.f32.mxu0 0.0
  %5958 = vmatmul.mubr.f32.gmra.mxu0 %v5773
  %v5959 = vpop.f32.mrf.mxu0
  %v5960 = vadd.f32 %v5695, %v5959
  %v5961 = vpop.f32.mrf.mxu0
  %5962 = vmatprep.mubr.f32.mxu0 0.0
  %5963 = vmatmul.mubr.f32.gmra.mxu0 %v5776
  %v5964 = vpop.f32.mrf.mxu0
  %v5965 = vadd.f32 %v5700, %v5964
  %v5966 = vpop.f32.mrf.mxu0
  %5967 = vdwg.mxu0
  %5968 = vrot.lane.b32.xlu0 %v5158, 112
  %v5969 = vpop.permute.xlu0 %5968
  %5970 = vrot.lane.b32.xlu0 %v5163, 112
  %v5971 = vpop.permute.xlu0 %5970
  %5972 = vrot.lane.b32.xlu0 %v5168, 112
  %v5973 = vpop.permute.xlu0 %5972
  %5974 = vrot.lane.b32.xlu0 %v5173, 112
  %v5975 = vpop.permute.xlu0 %5974
  %5976 = vrot.lane.b32.xlu0 %v5178, 112
  %v5977 = vpop.permute.xlu0 %5976
  %5978 = vrot.lane.b32.xlu0 %v5183, 112
  %v5979 = vpop.permute.xlu0 %5978
  %5980 = vrot.lane.b32.xlu0 %v5188, 112
  %v5981 = vpop.permute.xlu0 %5980
  %5982 = vrot.lane.b32.xlu0 %v5193, 112
  %v5983 = vpop.permute.xlu0 %5982
  %5984 = vrot.lane.b32.xlu0 %v5198, 112
  %v5985 = vpop.permute.xlu0 %5984
  %v5996 = vsel %vm5437, %v5351, 0
  %v5999 = vsel %vm5437, %v5352, 0
  %v6002 = vsel %vm5437, %v5353, 0
  %v6005 = vsel %vm5437, %v5354, 0
  %v6008 = vsel %vm5437, %v5355, 0
  %v6011 = vsel %vm5437, %v5356, 0
  %v6014 = vsel %vm5437, %v5357, 0
  %v6017 = vsel %vm5437, %v5358, 0
  %v6020 = vsel %vm5437, %v5359, 0
  %v6023 = vsel %vm5437, %v5360, 0
  %v6026 = vsel %vm5437, %v5361, 0
  %v6029 = vsel %vm5437, %v5362, 0
  %v6032 = vsel %vm5437, %v5363, 0
  %v6035 = vsel %vm5437, %v5364, 0
  %v6038 = vsel %vm5437, %v5365, 0
  %v6041 = vsel %vm5437, %v5366, 0
  %v6044 = vsel %vm5437, %v5367, 0
  %v6047 = vsel %vm5437, %v5368, 0
  %v6050 = vsel %vm5437, %v5369, 0
  %v6053 = vsel %vm5437, %v5370, 0
  %v6056 = vsel %vm5437, %v5371, 0
  %v6059 = vsel %vm5437, %v5372, 0
  %v6062 = vsel %vm5437, %v5373, 0
  %v6065 = vsel %vm5437, %v5374, 0
  %v6068 = vsel %vm5437, %v5375, 0
  %6070 = vmatprep.subr.mxu0 0.0
  %6071 = vmatpush1.msra.mxu0 0.0
  %6072 = vmatprep.subr.mxu0 0.0
  %6073 = vmatpush1.msra.mxu0 0.0
  %6074 = vmatprep.subr.mxu0 0.0
  %6075 = vmatpush1.msra.mxu0 0.0
  %6076 = vmatprep.subr.mxu0 0.0
  %6077 = vmatpush1.msra.mxu0 0.0
  %6078 = vmatprep.subr.mxu0 0.0
  %6079 = vmatpush1.msra.mxu0 0.0
  %6080 = vmatprep.subr.mxu0 0.0
  %6081 = vmatpush1.msra.mxu0 0.0
  %6082 = vmatprep.subr.mxu0 0.0
  %6083 = vmatpush1.msra.mxu0 0.0
  %6084 = vmatprep.subr.mxu0 0.0
  %6085 = vmatpush1.msra.mxu0 %v5985
  %6086 = vmatprep.subr.mxu0 0.0
  %6087 = vmatpush1.msra.mxu0 %v5983
  %6088 = vmatprep.subr.mxu0 0.0
  %6089 = vmatpush1.msra.mxu0 %v5981
  %6090 = vmatprep.subr.mxu0 0.0
  %6091 = vmatpush1.msra.mxu0 %v5979
  %6092 = vmatprep.subr.mxu0 0.0
  %6093 = vmatpush1.msra.mxu0 %v5977
  %6094 = vmatprep.subr.mxu0 0.0
  %6095 = vmatpush1.msra.mxu0 %v5975
  %6096 = vmatprep.subr.mxu0 0.0
  %6097 = vmatpush1.msra.mxu0 %v5973
  %6098 = vmatprep.subr.mxu0 0.0
  %6099 = vmatpush1.msra.mxu0 %v5971
  %6100 = vmatprep.subr.mxu0 0.0
  %6101 = vmatpush1.msra.mxu0 %v5969
  %6102 = vmatprep.subr.mxu0 0.0
  %6103 = vmatpush2.msra.mxu0 0.0
  %6104 = vmatprep.subr.mxu0 0.0
  %6105 = vmatpush2.msra.mxu0 0.0
  %6106 = vmatprep.subr.mxu0 0.0
  %6107 = vmatpush2.msra.mxu0 0.0
  %6108 = vmatprep.subr.mxu0 0.0
  %6109 = vmatpush2.msra.mxu0 0.0
  %6110 = vmatprep.subr.mxu0 0.0
  %6111 = vmatpush2.msra.mxu0 0.0
  %6112 = vmatprep.subr.mxu0 0.0
  %6113 = vmatpush2.msra.mxu0 0.0
  %6114 = vmatprep.subr.mxu0 0.0
  %6115 = vmatpush2.msra.mxu0 0.0
  %6116 = vmatprep.subr.mxu0 0.0
  %6117 = vmatpush2.msra.mxu0 0.0
  %6118 = vmatprep.subr.mxu0 0.0
  %6119 = vmatpush2.msra.mxu0 0.0
  %6120 = vmatprep.subr.mxu0 0.0
  %6121 = vmatpush2.msra.mxu0 0.0
  %6122 = vmatprep.subr.mxu0 0.0
  %6123 = vmatpush2.msra.mxu0 0.0
  %6124 = vmatprep.subr.mxu0 0.0
  %6125 = vmatpush2.msra.mxu0 0.0
  %6126 = vmatprep.subr.mxu0 0.0
  %6127 = vmatpush2.msra.mxu0 0.0
  %6128 = vmatprep.subr.mxu0 0.0
  %6129 = vmatpush2.msra.mxu0 0.0
  %6130 = vmatprep.subr.mxu0 0.0
  %6131 = vmatpush2.msra.mxu0 0.0
  %6132 = vmatprep.subr.mxu0 0.0
  %6133 = vmatpush2.msra.mxu0 0.0
  %6134 = vmatprep.mubr.f32.mxu0 0.0
  %6135 = vmatmul.mubr.f32.gmra.mxu0 %v5996
  %v6136 = vpop.f32.mrf.mxu0
  %v6137 = vadd.f32 0.0, %v6136
  %v6138 = vpop.f32.mrf.mxu0
  %6139 = vmatprep.mubr.f32.mxu0 0.0
  %6140 = vmatmul.mubr.f32.gmra.mxu0 %v5999
  %v6141 = vpop.f32.mrf.mxu0
  %v6142 = vadd.f32 0.0, %v6141
  %v6143 = vpop.f32.mrf.mxu0
  %6144 = vmatprep.mubr.f32.mxu0 0.0
  %6145 = vmatmul.mubr.f32.gmra.mxu0 %v6002
  %v6146 = vpop.f32.mrf.mxu0
  %v6147 = vadd.f32 0.0, %v6146
  %v6148 = vpop.f32.mrf.mxu0
  %6149 = vmatprep.mubr.f32.mxu0 0.0
  %6150 = vmatmul.mubr.f32.gmra.mxu0 %v6005
  %v6151 = vpop.f32.mrf.mxu0
  %v6152 = vadd.f32 0.0, %v6151
  %v6153 = vpop.f32.mrf.mxu0
  %6154 = vmatprep.mubr.f32.mxu0 0.0
  %6155 = vmatmul.mubr.f32.gmra.mxu0 %v6008
  %v6156 = vpop.f32.mrf.mxu0
  %v6157 = vadd.f32 0.0, %v6156
  %v6158 = vpop.f32.mrf.mxu0
  %6159 = vmatprep.mubr.f32.mxu0 0.0
  %6160 = vmatmul.mubr.f32.gmra.mxu0 %v6011
  %v6161 = vpop.f32.mrf.mxu0
  %v6162 = vadd.f32 0.0, %v6161
  %v6163 = vpop.f32.mrf.mxu0
  %6164 = vmatprep.mubr.f32.mxu0 0.0
  %6165 = vmatmul.mubr.f32.gmra.mxu0 %v6014
  %v6166 = vpop.f32.mrf.mxu0
  %v6167 = vadd.f32 0.0, %v6166
  %v6168 = vpop.f32.mrf.mxu0
  %6169 = vmatprep.mubr.f32.mxu0 0.0
  %6170 = vmatmul.mubr.f32.gmra.mxu0 %v6017
  %v6171 = vpop.f32.mrf.mxu0
  %v6172 = vadd.f32 0.0, %v6171
  %v6173 = vpop.f32.mrf.mxu0
  %6174 = vmatprep.mubr.f32.mxu0 0.0
  %6175 = vmatmul.mubr.f32.gmra.mxu0 %v6020
  %v6176 = vpop.f32.mrf.mxu0
  %v6177 = vadd.f32 0.0, %v6176
  %v6178 = vpop.f32.mrf.mxu0
  %6179 = vmatprep.mubr.f32.mxu0 0.0
  %6180 = vmatmul.mubr.f32.gmra.mxu0 %v6023
  %v6181 = vpop.f32.mrf.mxu0
  %v6182 = vadd.f32 0.0, %v6181
  %v6183 = vpop.f32.mrf.mxu0
  %6184 = vmatprep.mubr.f32.mxu0 0.0
  %6185 = vmatmul.mubr.f32.gmra.mxu0 %v6026
  %v6186 = vpop.f32.mrf.mxu0
  %v6187 = vadd.f32 0.0, %v6186
  %v6188 = vpop.f32.mrf.mxu0
  %6189 = vmatprep.mubr.f32.mxu0 0.0
  %6190 = vmatmul.mubr.f32.gmra.mxu0 %v6029
  %v6191 = vpop.f32.mrf.mxu0
  %v6192 = vadd.f32 0.0, %v6191
  %v6193 = vpop.f32.mrf.mxu0
  %6194 = vmatprep.mubr.f32.mxu0 0.0
  %6195 = vmatmul.mubr.f32.gmra.mxu0 %v6032
  %v6196 = vpop.f32.mrf.mxu0
  %v6197 = vadd.f32 0.0, %v6196
  %v6198 = vpop.f32.mrf.mxu0
  %6199 = vmatprep.mubr.f32.mxu0 0.0
  %6200 = vmatmul.mubr.f32.gmra.mxu0 %v6035
  %v6201 = vpop.f32.mrf.mxu0
  %v6202 = vadd.f32 0.0, %v6201
  %v6203 = vpop.f32.mrf.mxu0
  %6204 = vmatprep.mubr.f32.mxu0 0.0
  %6205 = vmatmul.mubr.f32.gmra.mxu0 %v6038
  %v6206 = vpop.f32.mrf.mxu0
  %v6207 = vadd.f32 0.0, %v6206
  %v6208 = vpop.f32.mrf.mxu0
  %6209 = vmatprep.mubr.f32.mxu0 0.0
  %6210 = vmatmul.mubr.f32.gmra.mxu0 %v6041
  %v6211 = vpop.f32.mrf.mxu0
  %v6212 = vadd.f32 0.0, %v6211
  %v6213 = vpop.f32.mrf.mxu0
  %6214 = vmatprep.mubr.f32.mxu0 0.0
  %6215 = vmatmul.mubr.f32.gmra.mxu0 %v6044
  %v6216 = vpop.f32.mrf.mxu0
  %v6217 = vadd.f32 0.0, %v6216
  %v6218 = vpop.f32.mrf.mxu0
  %6219 = vmatprep.mubr.f32.mxu0 0.0
  %6220 = vmatmul.mubr.f32.gmra.mxu0 %v6047
  %v6221 = vpop.f32.mrf.mxu0
  %v6222 = vadd.f32 0.0, %v6221
  %v6223 = vpop.f32.mrf.mxu0
  %6224 = vmatprep.mubr.f32.mxu0 0.0
  %6225 = vmatmul.mubr.f32.gmra.mxu0 %v6050
  %v6226 = vpop.f32.mrf.mxu0
  %v6227 = vadd.f32 0.0, %v6226
  %v6228 = vpop.f32.mrf.mxu0
  %6229 = vmatprep.mubr.f32.mxu0 0.0
  %6230 = vmatmul.mubr.f32.gmra.mxu0 %v6053
  %v6231 = vpop.f32.mrf.mxu0
  %v6232 = vadd.f32 0.0, %v6231
  %v6233 = vpop.f32.mrf.mxu0
  %6234 = vmatprep.mubr.f32.mxu0 0.0
  %6235 = vmatmul.mubr.f32.gmra.mxu0 %v6056
  %v6236 = vpop.f32.mrf.mxu0
  %v6237 = vadd.f32 0.0, %v6236
  %v6238 = vpop.f32.mrf.mxu0
  %6239 = vmatprep.mubr.f32.mxu0 0.0
  %6240 = vmatmul.mubr.f32.gmra.mxu0 %v6059
  %v6241 = vpop.f32.mrf.mxu0
  %v6242 = vadd.f32 0.0, %v6241
  %v6243 = vpop.f32.mrf.mxu0
  %6244 = vmatprep.mubr.f32.mxu0 0.0
  %6245 = vmatmul.mubr.f32.gmra.mxu0 %v6062
  %v6246 = vpop.f32.mrf.mxu0
  %v6247 = vadd.f32 0.0, %v6246
  %v6248 = vpop.f32.mrf.mxu0
  %6249 = vmatprep.mubr.f32.mxu0 0.0
  %6250 = vmatmul.mubr.f32.gmra.mxu0 %v6065
  %v6251 = vpop.f32.mrf.mxu0
  %v6252 = vadd.f32 0.0, %v6251
  %v6253 = vpop.f32.mrf.mxu0
  %6254 = vmatprep.mubr.f32.mxu0 0.0
  %6255 = vmatmul.mubr.f32.gmra.mxu0 %v6068
  %v6256 = vpop.f32.mrf.mxu0
  %v6257 = vadd.f32 0.0, %v6256
  %v6258 = vpop.f32.mrf.mxu0
  %6259 = vdwg.mxu0
  %v6260 = vadd.f32 %v5845, %v6137
  %v6261 = vadd.f32 %v5850, %v6142
  %v6262 = vadd.f32 %v5855, %v6147
  %v6263 = vadd.f32 %v5860, %v6152
  %v6264 = vadd.f32 %v5865, %v6157
  %v6265 = vadd.f32 %v5870, %v6162
  %v6266 = vadd.f32 %v5875, %v6167
  %v6267 = vadd.f32 %v5880, %v6172
  %v6268 = vadd.f32 %v5885, %v6177
  %v6269 = vadd.f32 %v5890, %v6182
  %v6270 = vadd.f32 %v5895, %v6187
  %v6271 = vadd.f32 %v5900, %v6192
  %v6272 = vadd.f32 %v5905, %v6197
  %v6273 = vadd.f32 %v5910, %v6202
  %v6274 = vadd.f32 %v5915, %v6207
  %v6275 = vadd.f32 %v5920, %v6212
  %v6276 = vadd.f32 %v5925, %v6217
  %v6277 = vadd.f32 %v5930, %v6222
  %v6278 = vadd.f32 %v5935, %v6227
  %v6279 = vadd.f32 %v5940, %v6232
  %v6280 = vadd.f32 %v5945, %v6237
  %v6281 = vadd.f32 %v5950, %v6242
  %v6282 = vadd.f32 %v5955, %v6247
  %v6283 = vadd.f32 %v5960, %v6252
  %v6284 = vadd.f32 %v5965, %v6257
  %6285 = vrot.lane.b32.xlu0 %v5158, 104
  %v6286 = vpop.permute.xlu0 %6285
  %6287 = vrot.lane.b32.xlu0 %v5163, 104
  %v6288 = vpop.permute.xlu0 %6287
  %6289 = vrot.lane.b32.xlu0 %v5168, 104
  %v6290 = vpop.permute.xlu0 %6289
  %6291 = vrot.lane.b32.xlu0 %v5173, 104
  %v6292 = vpop.permute.xlu0 %6291
  %6293 = vrot.lane.b32.xlu0 %v5178, 104
  %v6294 = vpop.permute.xlu0 %6293
  %6295 = vrot.lane.b32.xlu0 %v5183, 104
  %v6296 = vpop.permute.xlu0 %6295
  %6297 = vrot.lane.b32.xlu0 %v5188, 104
  %v6298 = vpop.permute.xlu0 %6297
  %6299 = vrot.lane.b32.xlu0 %v5193, 104
  %v6300 = vpop.permute.xlu0 %6299
  %6301 = vrot.lane.b32.xlu0 %v5198, 104
  %v6302 = vpop.permute.xlu0 %6301
  %v6313 = vsel %vm5437, %v5376, 0
  %v6316 = vsel %vm5437, %v5377, 0
  %v6319 = vsel %vm5437, %v5378, 0
  %v6322 = vsel %vm5437, %v5379, 0
  %v6325 = vsel %vm5437, %v5380, 0
  %v6328 = vsel %vm5437, %v5381, 0
  %v6331 = vsel %vm5437, %v5382, 0
  %v6334 = vsel %vm5437, %v5383, 0
  %v6337 = vsel %vm5437, %v5384, 0
  %v6340 = vsel %vm5437, %v5385, 0
  %v6343 = vsel %vm5437, %v5386, 0
  %v6346 = vsel %vm5437, %v5387, 0
  %v6349 = vsel %vm5437, %v5388, 0
  %v6352 = vsel %vm5437, %v5389, 0
  %v6355 = vsel %vm5437, %v5390, 0
  %v6358 = vsel %vm5437, %v5391, 0
  %v6361 = vsel %vm5437, %v5392, 0
  %v6364 = vsel %vm5437, %v5393, 0
  %v6367 = vsel %vm5437, %v5394, 0
  %v6370 = vsel %vm5437, %v5395, 0
  %v6373 = vsel %vm5437, %v5396, 0
  %v6376 = vsel %vm5437, %v5397, 0
  %v6379 = vsel %vm5437, %v5398, 0
  %v6382 = vsel %vm5437, %v5399, 0
  %v6385 = vsel %vm5437, %v5400, 0
  %6387 = vmatprep.subr.mxu0 0.0
  %6388 = vmatpush1.msra.mxu0 0.0
  %6389 = vmatprep.subr.mxu0 0.0
  %6390 = vmatpush1.msra.mxu0 0.0
  %6391 = vmatprep.subr.mxu0 0.0
  %6392 = vmatpush1.msra.mxu0 0.0
  %6393 = vmatprep.subr.mxu0 0.0
  %6394 = vmatpush1.msra.mxu0 0.0
  %6395 = vmatprep.subr.mxu0 0.0
  %6396 = vmatpush1.msra.mxu0 0.0
  %6397 = vmatprep.subr.mxu0 0.0
  %6398 = vmatpush1.msra.mxu0 0.0
  %6399 = vmatprep.subr.mxu0 0.0
  %6400 = vmatpush1.msra.mxu0 0.0
  %6401 = vmatprep.subr.mxu0 0.0
  %6402 = vmatpush1.msra.mxu0 %v6302
  %6403 = vmatprep.subr.mxu0 0.0
  %6404 = vmatpush1.msra.mxu0 %v6300
  %6405 = vmatprep.subr.mxu0 0.0
  %6406 = vmatpush1.msra.mxu0 %v6298
  %6407 = vmatprep.subr.mxu0 0.0
  %6408 = vmatpush1.msra.mxu0 %v6296
  %6409 = vmatprep.subr.mxu0 0.0
  %6410 = vmatpush1.msra.mxu0 %v6294
  %6411 = vmatprep.subr.mxu0 0.0
  %6412 = vmatpush1.msra.mxu0 %v6292
  %6413 = vmatprep.subr.mxu0 0.0
  %6414 = vmatpush1.msra.mxu0 %v6290
  %6415 = vmatprep.subr.mxu0 0.0
  %6416 = vmatpush1.msra.mxu0 %v6288
  %6417 = vmatprep.subr.mxu0 0.0
  %6418 = vmatpush1.msra.mxu0 %v6286
  %6419 = vmatprep.subr.mxu0 0.0
  %6420 = vmatpush2.msra.mxu0 0.0
  %6421 = vmatprep.subr.mxu0 0.0
  %6422 = vmatpush2.msra.mxu0 0.0
  %6423 = vmatprep.subr.mxu0 0.0
  %6424 = vmatpush2.msra.mxu0 0.0
  %6425 = vmatprep.subr.mxu0 0.0
  %6426 = vmatpush2.msra.mxu0 0.0
  %6427 = vmatprep.subr.mxu0 0.0
  %6428 = vmatpush2.msra.mxu0 0.0
  %6429 = vmatprep.subr.mxu0 0.0
  %6430 = vmatpush2.msra.mxu0 0.0
  %6431 = vmatprep.subr.mxu0 0.0
  %6432 = vmatpush2.msra.mxu0 0.0
  %6433 = vmatprep.subr.mxu0 0.0
  %6434 = vmatpush2.msra.mxu0 0.0
  %6435 = vmatprep.subr.mxu0 0.0
  %6436 = vmatpush2.msra.mxu0 0.0
  %6437 = vmatprep.subr.mxu0 0.0
  %6438 = vmatpush2.msra.mxu0 0.0
  %6439 = vmatprep.subr.mxu0 0.0
  %6440 = vmatpush2.msra.mxu0 0.0
  %6441 = vmatprep.subr.mxu0 0.0
  %6442 = vmatpush2.msra.mxu0 0.0
  %6443 = vmatprep.subr.mxu0 0.0
  %6444 = vmatpush2.msra.mxu0 0.0
  %6445 = vmatprep.subr.mxu0 0.0
  %6446 = vmatpush2.msra.mxu0 0.0
  %6447 = vmatprep.subr.mxu0 0.0
  %6448 = vmatpush2.msra.mxu0 0.0
  %6449 = vmatprep.subr.mxu0 0.0
  %6450 = vmatpush2.msra.mxu0 0.0
  %6451 = vmatprep.mubr.f32.mxu0 0.0
  %6452 = vmatmul.mubr.f32.gmra.mxu0 %v6313
  %v6453 = vpop.f32.mrf.mxu0
  %v6454 = vadd.f32 0.0, %v6453
  %v6455 = vpop.f32.mrf.mxu0
  %6456 = vmatprep.mubr.f32.mxu0 0.0
  %6457 = vmatmul.mubr.f32.gmra.mxu0 %v6316
  %v6458 = vpop.f32.mrf.mxu0
  %v6459 = vadd.f32 0.0, %v6458
  %v6460 = vpop.f32.mrf.mxu0
  %6461 = vmatprep.mubr.f32.mxu0 0.0
  %6462 = vmatmul.mubr.f32.gmra.mxu0 %v6319
  %v6463 = vpop.f32.mrf.mxu0
  %v6464 = vadd.f32 0.0, %v6463
  %v6465 = vpop.f32.mrf.mxu0
  %6466 = vmatprep.mubr.f32.mxu0 0.0
  %6467 = vmatmul.mubr.f32.gmra.mxu0 %v6322
  %v6468 = vpop.f32.mrf.mxu0
  %v6469 = vadd.f32 0.0, %v6468
  %v6470 = vpop.f32.mrf.mxu0
  %6471 = vmatprep.mubr.f32.mxu0 0.0
  %6472 = vmatmul.mubr.f32.gmra.mxu0 %v6325
  %v6473 = vpop.f32.mrf.mxu0
  %v6474 = vadd.f32 0.0, %v6473
  %v6475 = vpop.f32.mrf.mxu0
  %6476 = vmatprep.mubr.f32.mxu0 0.0
  %6477 = vmatmul.mubr.f32.gmra.mxu0 %v6328
  %v6478 = vpop.f32.mrf.mxu0
  %v6479 = vadd.f32 0.0, %v6478
  %v6480 = vpop.f32.mrf.mxu0
  %6481 = vmatprep.mubr.f32.mxu0 0.0
  %6482 = vmatmul.mubr.f32.gmra.mxu0 %v6331
  %v6483 = vpop.f32.mrf.mxu0
  %v6484 = vadd.f32 0.0, %v6483
  %v6485 = vpop.f32.mrf.mxu0
  %6486 = vmatprep.mubr.f32.mxu0 0.0
  %6487 = vmatmul.mubr.f32.gmra.mxu0 %v6334
  %v6488 = vpop.f32.mrf.mxu0
  %v6489 = vadd.f32 0.0, %v6488
  %v6490 = vpop.f32.mrf.mxu0
  %6491 = vmatprep.mubr.f32.mxu0 0.0
  %6492 = vmatmul.mubr.f32.gmra.mxu0 %v6337
  %v6493 = vpop.f32.mrf.mxu0
  %v6494 = vadd.f32 0.0, %v6493
  %v6495 = vpop.f32.mrf.mxu0
  %6496 = vmatprep.mubr.f32.mxu0 0.0
  %6497 = vmatmul.mubr.f32.gmra.mxu0 %v6340
  %v6498 = vpop.f32.mrf.mxu0
  %v6499 = vadd.f32 0.0, %v6498
  %v6500 = vpop.f32.mrf.mxu0
  %6501 = vmatprep.mubr.f32.mxu0 0.0
  %6502 = vmatmul.mubr.f32.gmra.mxu0 %v6343
  %v6503 = vpop.f32.mrf.mxu0
  %v6504 = vadd.f32 0.0, %v6503
  %v6505 = vpop.f32.mrf.mxu0
  %6506 = vmatprep.mubr.f32.mxu0 0.0
  %6507 = vmatmul.mubr.f32.gmra.mxu0 %v6346
  %v6508 = vpop.f32.mrf.mxu0
  %v6509 = vadd.f32 0.0, %v6508
  %v6510 = vpop.f32.mrf.mxu0
  %6511 = vmatprep.mubr.f32.mxu0 0.0
  %6512 = vmatmul.mubr.f32.gmra.mxu0 %v6349
  %v6513 = vpop.f32.mrf.mxu0
  %v6514 = vadd.f32 0.0, %v6513
  %v6515 = vpop.f32.mrf.mxu0
  %6516 = vmatprep.mubr.f32.mxu0 0.0
  %6517 = vmatmul.mubr.f32.gmra.mxu0 %v6352
  %v6518 = vpop.f32.mrf.mxu0
  %v6519 = vadd.f32 0.0, %v6518
  %v6520 = vpop.f32.mrf.mxu0
  %6521 = vmatprep.mubr.f32.mxu0 0.0
  %6522 = vmatmul.mubr.f32.gmra.mxu0 %v6355
  %v6523 = vpop.f32.mrf.mxu0
  %v6524 = vadd.f32 0.0, %v6523
  %v6525 = vpop.f32.mrf.mxu0
  %6526 = vmatprep.mubr.f32.mxu0 0.0
  %6527 = vmatmul.mubr.f32.gmra.mxu0 %v6358
  %v6528 = vpop.f32.mrf.mxu0
  %v6529 = vadd.f32 0.0, %v6528
  %v6530 = vpop.f32.mrf.mxu0
  %6531 = vmatprep.mubr.f32.mxu0 0.0
  %6532 = vmatmul.mubr.f32.gmra.mxu0 %v6361
  %v6533 = vpop.f32.mrf.mxu0
  %v6534 = vadd.f32 0.0, %v6533
  %v6535 = vpop.f32.mrf.mxu0
  %6536 = vmatprep.mubr.f32.mxu0 0.0
  %6537 = vmatmul.mubr.f32.gmra.mxu0 %v6364
  %v6538 = vpop.f32.mrf.mxu0
  %v6539 = vadd.f32 0.0, %v6538
  %v6540 = vpop.f32.mrf.mxu0
  %6541 = vmatprep.mubr.f32.mxu0 0.0
  %6542 = vmatmul.mubr.f32.gmra.mxu0 %v6367
  %v6543 = vpop.f32.mrf.mxu0
  %v6544 = vadd.f32 0.0, %v6543
  %v6545 = vpop.f32.mrf.mxu0
  %6546 = vmatprep.mubr.f32.mxu0 0.0
  %6547 = vmatmul.mubr.f32.gmra.mxu0 %v6370
  %v6548 = vpop.f32.mrf.mxu0
  %v6549 = vadd.f32 0.0, %v6548
  %v6550 = vpop.f32.mrf.mxu0
  %6551 = vmatprep.mubr.f32.mxu0 0.0
  %6552 = vmatmul.mubr.f32.gmra.mxu0 %v6373
  %v6553 = vpop.f32.mrf.mxu0
  %v6554 = vadd.f32 0.0, %v6553
  %v6555 = vpop.f32.mrf.mxu0
  %6556 = vmatprep.mubr.f32.mxu0 0.0
  %6557 = vmatmul.mubr.f32.gmra.mxu0 %v6376
  %v6558 = vpop.f32.mrf.mxu0
  %v6559 = vadd.f32 0.0, %v6558
  %v6560 = vpop.f32.mrf.mxu0
  %6561 = vmatprep.mubr.f32.mxu0 0.0
  %6562 = vmatmul.mubr.f32.gmra.mxu0 %v6379
  %v6563 = vpop.f32.mrf.mxu0
  %v6564 = vadd.f32 0.0, %v6563
  %v6565 = vpop.f32.mrf.mxu0
  %6566 = vmatprep.mubr.f32.mxu0 0.0
  %6567 = vmatmul.mubr.f32.gmra.mxu0 %v6382
  %v6568 = vpop.f32.mrf.mxu0
  %v6569 = vadd.f32 0.0, %v6568
  %v6570 = vpop.f32.mrf.mxu0
  %6571 = vmatprep.mubr.f32.mxu0 0.0
  %6572 = vmatmul.mubr.f32.gmra.mxu0 %v6385
  %v6573 = vpop.f32.mrf.mxu0
  %v6574 = vadd.f32 0.0, %v6573
  %v6575 = vpop.f32.mrf.mxu0
  %6576 = vdwg.mxu0
  %v6577 = vadd.f32 %v6260, %v6454
  %v6578 = vadd.f32 %v6261, %v6459
  %v6579 = vadd.f32 %v6262, %v6464
  %v6580 = vadd.f32 %v6263, %v6469
  %v6581 = vadd.f32 %v6264, %v6474
  %v6582 = vadd.f32 %v6265, %v6479
  %v6583 = vadd.f32 %v6266, %v6484
  %v6584 = vadd.f32 %v6267, %v6489
  %v6585 = vadd.f32 %v6268, %v6494
  %v6586 = vadd.f32 %v6269, %v6499
  %v6587 = vadd.f32 %v6270, %v6504
  %v6588 = vadd.f32 %v6271, %v6509
  %v6589 = vadd.f32 %v6272, %v6514
  %v6590 = vadd.f32 %v6273, %v6519
  %v6591 = vadd.f32 %v6274, %v6524
  %v6592 = vadd.f32 %v6275, %v6529
  %v6593 = vadd.f32 %v6276, %v6534
  %v6594 = vadd.f32 %v6277, %v6539
  %v6595 = vadd.f32 %v6278, %v6544
  %v6596 = vadd.f32 %v6279, %v6549
  %v6597 = vadd.f32 %v6280, %v6554
  %v6598 = vadd.f32 %v6281, %v6559
  %v6599 = vadd.f32 %v6282, %v6564
  %v6600 = vadd.f32 %v6283, %v6569
  %v6601 = vadd.f32 %v6284, %v6574
  %v6602 = vld [vmem:[%s14] sm:$0x1]
  %v6603 = vld [vmem:[%s14 + $0x1] sm:$0x1]
  %v6604 = vsel %vm2371, %v6577, 0.0
  %v6605 = vsel %vm2371, %v6578, 0.0
  %v6606 = vadd.f32 %v6604, %v6605
  %v6607 = vsel %vm2371, %v6579, 0.0
  %v6608 = vadd.f32 %v6606, %v6607
  %v6609 = vsel %vm2371, %v6580, 0.0
  %v6610 = vadd.f32 %v6608, %v6609
  %v6611 = vsel %vm2371, %v6581, 0.0
  %v6612 = vadd.f32 %v6610, %v6611
  %v6613 = vsel %vm2371, %v6582, 0.0
  %v6614 = vadd.f32 %v6612, %v6613
  %v6615 = vsel %vm2371, %v6583, 0.0
  %v6616 = vadd.f32 %v6614, %v6615
  %v6617 = vsel %vm2371, %v6584, 0.0
  %v6618 = vadd.f32 %v6616, %v6617
  %v6619 = vsel %vm2371, %v6585, 0.0
  %v6620 = vadd.f32 %v6618, %v6619
  %v6621 = vsel %vm2371, %v6586, 0.0
  %v6622 = vadd.f32 %v6620, %v6621
  %v6623 = vsel %vm2371, %v6587, 0.0
  %v6624 = vadd.f32 %v6622, %v6623
  %v6625 = vsel %vm2371, %v6588, 0.0
  %v6626 = vadd.f32 %v6624, %v6625
  %v6627 = vsel %vm2371, %v6589, 0.0
  %v6628 = vadd.f32 %v6626, %v6627
  %v6629 = vsel %vm2371, %v6590, 0.0
  %v6630 = vadd.f32 %v6628, %v6629
  %v6631 = vsel %vm2371, %v6591, 0.0
  %v6632 = vadd.f32 %v6630, %v6631
  %v6633 = vsel %vm2371, %v6592, 0.0
  %v6634 = vadd.f32 %v6632, %v6633
  %v6635 = vsel %vm2371, %v6593, 0.0
  %v6636 = vadd.f32 %v6634, %v6635
  %v6637 = vsel %vm2371, %v6594, 0.0
  %v6638 = vadd.f32 %v6636, %v6637
  %v6639 = vsel %vm2371, %v6595, 0.0
  %v6640 = vadd.f32 %v6638, %v6639
  %v6641 = vsel %vm2371, %v6596, 0.0
  %v6642 = vadd.f32 %v6640, %v6641
  %v6643 = vsel %vm2371, %v6597, 0.0
  %v6644 = vadd.f32 %v6642, %v6643
  %v6645 = vsel %vm2371, %v6598, 0.0
  %v6646 = vadd.f32 %v6644, %v6645
  %v6647 = vsel %vm2371, %v6599, 0.0
  %v6648 = vadd.f32 %v6646, %v6647
  %v6649 = vsel %vm2371, %v6600, 0.0
  %v6650 = vadd.f32 %v6648, %v6649
  %v6651 = vsel %vm2371, %v6601, 0.0
  %v6652 = vadd.f32 %v6650, %v6651
  %v6653 = vrot.slane %v6652, 4
  %v6654 = vadd.f32 %v6652, %v6653
  %v6655 = vrot.slane %v6654, 2
  %v6656 = vadd.f32 %v6654, %v6655
  %v6657 = vrot.slane %v6656, 1
  %v6658 = vadd.f32 %v6656, %v6657
  %v6659 = vrcp.pop 200.0
  %v6660 = vmul.f32 %v6658, %v6659
  %v6661 = vsub.f32 %v6577, %v6660
  %v6662 = vsub.f32 %v6578, %v6660
  %v6663 = vsub.f32 %v6579, %v6660
  %v6664 = vsub.f32 %v6580, %v6660
  %v6665 = vsub.f32 %v6581, %v6660
  %v6666 = vsub.f32 %v6582, %v6660
  %v6667 = vsub.f32 %v6583, %v6660
  %v6668 = vsub.f32 %v6584, %v6660
  %v6669 = vsub.f32 %v6585, %v6660
  %v6670 = vsub.f32 %v6586, %v6660
  %v6671 = vsub.f32 %v6587, %v6660
  %v6672 = vsub.f32 %v6588, %v6660
  %v6673 = vsub.f32 %v6589, %v6660
  %v6674 = vsub.f32 %v6590, %v6660
  %v6675 = vsub.f32 %v6591, %v6660
  %v6676 = vsub.f32 %v6592, %v6660
  %v6677 = vsub.f32 %v6593, %v6660
  %v6678 = vsub.f32 %v6594, %v6660
  %v6679 = vsub.f32 %v6595, %v6660
  %v6680 = vsub.f32 %v6596, %v6660
  %v6681 = vsub.f32 %v6597, %v6660
  %v6682 = vsub.f32 %v6598, %v6660
  %v6683 = vsub.f32 %v6599, %v6660
  %v6684 = vsub.f32 %v6600, %v6660
  %v6685 = vsub.f32 %v6601, %v6660
  %v6686 = vmul.f32 %v6661, %v6661
  %v6687 = vmul.f32 %v6662, %v6662
  %v6688 = vmul.f32 %v6663, %v6663
  %v6689 = vmul.f32 %v6664, %v6664
  %v6690 = vmul.f32 %v6665, %v6665
  %v6691 = vmul.f32 %v6666, %v6666
  %v6692 = vmul.f32 %v6667, %v6667
  %v6693 = vmul.f32 %v6668, %v6668
  %v6694 = vmul.f32 %v6669, %v6669
  %v6695 = vmul.f32 %v6670, %v6670
  %v6696 = vmul.f32 %v6671, %v6671
  %v6697 = vmul.f32 %v6672, %v6672
  %v6698 = vmul.f32 %v6673, %v6673
  %v6699 = vmul.f32 %v6674, %v6674
  %v6700 = vmul.f32 %v6675, %v6675
  %v6701 = vmul.f32 %v6676, %v6676
  %v6702 = vmul.f32 %v6677, %v6677
  %v6703 = vmul.f32 %v6678, %v6678
  %v6704 = vmul.f32 %v6679, %v6679
  %v6705 = vmul.f32 %v6680, %v6680
  %v6706 = vmul.f32 %v6681, %v6681
  %v6707 = vmul.f32 %v6682, %v6682
  %v6708 = vmul.f32 %v6683, %v6683
  %v6709 = vmul.f32 %v6684, %v6684
  %v6710 = vmul.f32 %v6685, %v6685
  %v6711 = vsel %vm2371, %v6686, 0.0
  %v6712 = vsel %vm2371, %v6687, 0.0
  %v6713 = vadd.f32 %v6711, %v6712
  %v6714 = vsel %vm2371, %v6688, 0.0
  %v6715 = vadd.f32 %v6713, %v6714
  %v6716 = vsel %vm2371, %v6689, 0.0
  %v6717 = vadd.f32 %v6715, %v6716
  %v6718 = vsel %vm2371, %v6690, 0.0
  %v6719 = vadd.f32 %v6717, %v6718
  %v6720 = vsel %vm2371, %v6691, 0.0
  %v6721 = vadd.f32 %v6719, %v6720
  %v6722 = vsel %vm2371, %v6692, 0.0
  %v6723 = vadd.f32 %v6721, %v6722
  %v6724 = vsel %vm2371, %v6693, 0.0
  %v6725 = vadd.f32 %v6723, %v6724
  %v6726 = vsel %vm2371, %v6694, 0.0
  %v6727 = vadd.f32 %v6725, %v6726
  %v6728 = vsel %vm2371, %v6695, 0.0
  %v6729 = vadd.f32 %v6727, %v6728
  %v6730 = vsel %vm2371, %v6696, 0.0
  %v6731 = vadd.f32 %v6729, %v6730
  %v6732 = vsel %vm2371, %v6697, 0.0
  %v6733 = vadd.f32 %v6731, %v6732
  %v6734 = vsel %vm2371, %v6698, 0.0
  %v6735 = vadd.f32 %v6733, %v6734
  %v6736 = vsel %vm2371, %v6699, 0.0
  %v6737 = vadd.f32 %v6735, %v6736
  %v6738 = vsel %vm2371, %v6700, 0.0
  %v6739 = vadd.f32 %v6737, %v6738
  %v6740 = vsel %vm2371, %v6701, 0.0
  %v6741 = vadd.f32 %v6739, %v6740
  %v6742 = vsel %vm2371, %v6702, 0.0
  %v6743 = vadd.f32 %v6741, %v6742
  %v6744 = vsel %vm2371, %v6703, 0.0
  %v6745 = vadd.f32 %v6743, %v6744
  %v6746 = vsel %vm2371, %v6704, 0.0
  %v6747 = vadd.f32 %v6745, %v6746
  %v6748 = vsel %vm2371, %v6705, 0.0
  %v6749 = vadd.f32 %v6747, %v6748
  %v6750 = vsel %vm2371, %v6706, 0.0
  %v6751 = vadd.f32 %v6749, %v6750
  %v6752 = vsel %vm2371, %v6707, 0.0
  %v6753 = vadd.f32 %v6751, %v6752
  %v6754 = vsel %vm2371, %v6708, 0.0
  %v6755 = vadd.f32 %v6753, %v6754
  %v6756 = vsel %vm2371, %v6709, 0.0
  %v6757 = vadd.f32 %v6755, %v6756
  %v6758 = vsel %vm2371, %v6710, 0.0
  %v6759 = vadd.f32 %v6757, %v6758
  %v6760 = vrot.slane %v6759, 4
  %v6761 = vadd.f32 %v6759, %v6760
  %v6762 = vrot.slane %v6761, 2
  %v6763 = vadd.f32 %v6761, %v6762
  %v6764 = vrot.slane %v6763, 1
  %v6765 = vadd.f32 %v6763, %v6764
  %v6766 = vmul.f32 %v6765, %v6659
  %v6767 = vadd.f32 %v6766, 1e-05
  %v6768 = vrsqrt.pop %v6767
  %v6769 = vmul.f32 %v6661, %v6768
  %v6770 = vmul.f32 %v6662, %v6768
  %v6771 = vmul.f32 %v6663, %v6768
  %v6772 = vmul.f32 %v6664, %v6768
  %v6773 = vmul.f32 %v6665, %v6768
  %v6774 = vmul.f32 %v6666, %v6768
  %v6775 = vmul.f32 %v6667, %v6768
  %v6776 = vmul.f32 %v6668, %v6768
  %v6777 = vmul.f32 %v6669, %v6768
  %v6778 = vmul.f32 %v6670, %v6768
  %v6779 = vmul.f32 %v6671, %v6768
  %v6780 = vmul.f32 %v6672, %v6768
  %v6781 = vmul.f32 %v6673, %v6768
  %v6782 = vmul.f32 %v6674, %v6768
  %v6783 = vmul.f32 %v6675, %v6768
  %v6784 = vmul.f32 %v6676, %v6768
  %v6785 = vmul.f32 %v6677, %v6768
  %v6786 = vmul.f32 %v6678, %v6768
  %v6787 = vmul.f32 %v6679, %v6768
  %v6788 = vmul.f32 %v6680, %v6768
  %v6789 = vmul.f32 %v6681, %v6768
  %v6790 = vmul.f32 %v6682, %v6768
  %v6791 = vmul.f32 %v6683, %v6768
  %v6792 = vmul.f32 %v6684, %v6768
  %v6793 = vmul.f32 %v6685, %v6768
  %v6794 = vlaneseq
  %v6795 = vshrl.u32 %v6794, 7
  %v6796 = vsub.s32 0, %v6795
  %v6797 = vrot.slane %v6602, %v6796
  %v6798 = vmul.f32 %v6769, %v6797
  %v6799 = vmul.f32 %v6770, %v6797
  %v6800 = vmul.f32 %v6771, %v6797
  %v6801 = vmul.f32 %v6772, %v6797
  %v6802 = vmul.f32 %v6773, %v6797
  %v6803 = vmul.f32 %v6774, %v6797
  %v6804 = vmul.f32 %v6775, %v6797
  %v6805 = vmul.f32 %v6776, %v6797
  %v6806 = vmul.f32 %v6777, %v6797
  %v6807 = vmul.f32 %v6778, %v6797
  %v6808 = vmul.f32 %v6779, %v6797
  %v6809 = vmul.f32 %v6780, %v6797
  %v6810 = vmul.f32 %v6781, %v6797
  %v6811 = vmul.f32 %v6782, %v6797
  %v6812 = vmul.f32 %v6783, %v6797
  %v6813 = vmul.f32 %v6784, %v6797
  %v6814 = vmul.f32 %v6785, %v6797
  %v6815 = vmul.f32 %v6786, %v6797
  %v6816 = vmul.f32 %v6787, %v6797
  %v6817 = vmul.f32 %v6788, %v6797
  %v6818 = vmul.f32 %v6789, %v6797
  %v6819 = vmul.f32 %v6790, %v6797
  %v6820 = vmul.f32 %v6791, %v6797
  %v6821 = vmul.f32 %v6792, %v6797
  %v6822 = vmul.f32 %v6793, %v6797
  %v6823 = vlaneseq
  %v6824 = vshrl.u32 %v6823, 7
  %v6825 = vsub.s32 0, %v6824
  %v6826 = vrot.slane %v6603, %v6825
  %v6827 = vadd.f32 %v6798, %v6826
  %v6828 = vadd.f32 %v6799, %v6826
  %v6829 = vadd.f32 %v6800, %v6826
  %v6830 = vadd.f32 %v6801, %v6826
  %v6831 = vadd.f32 %v6802, %v6826
  %v6832 = vadd.f32 %v6803, %v6826
  %v6833 = vadd.f32 %v6804, %v6826
  %v6834 = vadd.f32 %v6805, %v6826
  %v6835 = vadd.f32 %v6806, %v6826
  %v6836 = vadd.f32 %v6807, %v6826
  %v6837 = vadd.f32 %v6808, %v6826
  %v6838 = vadd.f32 %v6809, %v6826
  %v6839 = vadd.f32 %v6810, %v6826
  %v6840 = vadd.f32 %v6811, %v6826
  %v6841 = vadd.f32 %v6812, %v6826
  %v6842 = vadd.f32 %v6813, %v6826
  %v6843 = vadd.f32 %v6814, %v6826
  %v6844 = vadd.f32 %v6815, %v6826
  %v6845 = vadd.f32 %v6816, %v6826
  %v6846 = vadd.f32 %v6817, %v6826
  %v6847 = vadd.f32 %v6818, %v6826
  %v6848 = vadd.f32 %v6819, %v6826
  %v6849 = vadd.f32 %v6820, %v6826
  %v6850 = vadd.f32 %v6821, %v6826
  %v6851 = vadd.f32 %v6822, %v6826
  %v6852 = vmax.f32 %v6827, 0.0
  %v6853 = vmax.f32 %v6828, 0.0
  %v6854 = vmax.f32 %v6829, 0.0
  %v6855 = vmax.f32 %v6830, 0.0
  %v6856 = vmax.f32 %v6831, 0.0
  %v6857 = vmax.f32 %v6832, 0.0
  %v6858 = vmax.f32 %v6833, 0.0
  %v6859 = vmax.f32 %v6834, 0.0
  %v6860 = vmax.f32 %v6835, 0.0
  %v6861 = vmax.f32 %v6836, 0.0
  %v6862 = vmax.f32 %v6837, 0.0
  %v6863 = vmax.f32 %v6838, 0.0
  %v6864 = vmax.f32 %v6839, 0.0
  %v6865 = vmax.f32 %v6840, 0.0
  %v6866 = vmax.f32 %v6841, 0.0
  %v6867 = vmax.f32 %v6842, 0.0
  %v6868 = vmax.f32 %v6843, 0.0
  %v6869 = vmax.f32 %v6844, 0.0
  %v6870 = vmax.f32 %v6845, 0.0
  %v6871 = vmax.f32 %v6846, 0.0
  %v6872 = vmax.f32 %v6847, 0.0
  %v6873 = vmax.f32 %v6848, 0.0
  %v6874 = vmax.f32 %v6849, 0.0
  %v6875 = vmax.f32 %v6850, 0.0
  %v6876 = vmax.f32 %v6851, 0.0
  %v6877 = vld [vmem:[%s15] sm:$0xff]
  %v6879 = vsel %vm2371, %v6852, 0
  %v6882 = vsel %vm2371, %v6853, 0
  %v6885 = vsel %vm2371, %v6854, 0
  %v6888 = vsel %vm2371, %v6855, 0
  %v6891 = vsel %vm2371, %v6856, 0
  %v6894 = vsel %vm2371, %v6857, 0
  %v6897 = vsel %vm2371, %v6858, 0
  %v6900 = vsel %vm2371, %v6859, 0
  %v6903 = vsel %vm2371, %v6860, 0
  %v6906 = vsel %vm2371, %v6861, 0
  %v6909 = vsel %vm2371, %v6862, 0
  %v6912 = vsel %vm2371, %v6863, 0
  %v6915 = vsel %vm2371, %v6864, 0
  %v6918 = vsel %vm2371, %v6865, 0
  %v6921 = vsel %vm2371, %v6866, 0
  %v6924 = vsel %vm2371, %v6867, 0
  %v6927 = vsel %vm2371, %v6868, 0
  %v6930 = vsel %vm2371, %v6869, 0
  %v6933 = vsel %vm2371, %v6870, 0
  %v6936 = vsel %vm2371, %v6871, 0
  %v6939 = vsel %vm2371, %v6872, 0
  %v6942 = vsel %vm2371, %v6873, 0
  %v6945 = vsel %vm2371, %v6874, 0
  %v6948 = vsel %vm2371, %v6875, 0
  %v6951 = vsel %vm2371, %v6876, 0
  %6953 = vmatprep.subr.mxu0 0.0
  %6954 = vmatpush1.msra.mxu0 0.0
  %6955 = vmatprep.subr.mxu0 0.0
  %6956 = vmatpush1.msra.mxu0 0.0
  %6957 = vmatprep.subr.mxu0 0.0
  %6958 = vmatpush1.msra.mxu0 0.0
  %6959 = vmatprep.subr.mxu0 0.0
  %6960 = vmatpush1.msra.mxu0 0.0
  %6961 = vmatprep.subr.mxu0 0.0
  %6962 = vmatpush1.msra.mxu0 0.0
  %6963 = vmatprep.subr.mxu0 0.0
  %6964 = vmatpush1.msra.mxu0 0.0
  %6965 = vmatprep.subr.mxu0 0.0
  %6966 = vmatpush1.msra.mxu0 0.0
  %6967 = vmatprep.subr.mxu0 0.0
  %6968 = vmatpush1.msra.mxu0 0.0
  %6969 = vmatprep.subr.mxu0 0.0
  %6970 = vmatpush1.msra.mxu0 0.0
  %6971 = vmatprep.subr.mxu0 0.0
  %6972 = vmatpush1.msra.mxu0 0.0
  %6973 = vmatprep.subr.mxu0 0.0
  %6974 = vmatpush1.msra.mxu0 0.0
  %6975 = vmatprep.subr.mxu0 0.0
  %6976 = vmatpush1.msra.mxu0 0.0
  %6977 = vmatprep.subr.mxu0 0.0
  %6978 = vmatpush1.msra.mxu0 0.0
  %6979 = vmatprep.subr.mxu0 0.0
  %6980 = vmatpush1.msra.mxu0 0.0
  %6981 = vmatprep.subr.mxu0 0.0
  %6982 = vmatpush1.msra.mxu0 0.0
  %6983 = vmatprep.subr.mxu0 0.0
  %6984 = vmatpush1.msra.mxu0 %v6877
  %6985 = vmatprep.subr.mxu0 0.0
  %6986 = vmatpush2.msra.mxu0 0.0
  %6987 = vmatprep.subr.mxu0 0.0
  %6988 = vmatpush2.msra.mxu0 0.0
  %6989 = vmatprep.subr.mxu0 0.0
  %6990 = vmatpush2.msra.mxu0 0.0
  %6991 = vmatprep.subr.mxu0 0.0
  %6992 = vmatpush2.msra.mxu0 0.0
  %6993 = vmatprep.subr.mxu0 0.0
  %6994 = vmatpush2.msra.mxu0 0.0
  %6995 = vmatprep.subr.mxu0 0.0
  %6996 = vmatpush2.msra.mxu0 0.0
  %6997 = vmatprep.subr.mxu0 0.0
  %6998 = vmatpush2.msra.mxu0 0.0
  %6999 = vmatprep.subr.mxu0 0.0
  %7000 = vmatpush2.msra.mxu0 0.0
  %7001 = vmatprep.subr.mxu0 0.0
  %7002 = vmatpush2.msra.mxu0 0.0
  %7003 = vmatprep.subr.mxu0 0.0
  %7004 = vmatpush2.msra.mxu0 0.0
  %7005 = vmatprep.subr.mxu0 0.0
  %7006 = vmatpush2.msra.mxu0 0.0
  %7007 = vmatprep.subr.mxu0 0.0
  %7008 = vmatpush2.msra.mxu0 0.0
  %7009 = vmatprep.subr.mxu0 0.0
  %7010 = vmatpush2.msra.mxu0 0.0
  %7011 = vmatprep.subr.mxu0 0.0
  %7012 = vmatpush2.msra.mxu0 0.0
  %7013 = vmatprep.subr.mxu0 0.0
  %7014 = vmatpush2.msra.mxu0 0.0
  %7015 = vmatprep.subr.mxu0 0.0
  %7016 = vmatpush2.msra.mxu0 0.0
  %7017 = vmatprep.mubr.f32.mxu0 0.0
  %7018 = vmatmul.mubr.f32.gmra.mxu0 %v6879
  %v7019 = vpop.f32.mrf.mxu0
  %v7020 = vadd.f32 0.0, %v7019
  %v7021 = vpop.f32.mrf.mxu0
  %7022 = vmatprep.mubr.f32.mxu0 0.0
  %7023 = vmatmul.mubr.f32.gmra.mxu0 %v6882
  %v7024 = vpop.f32.mrf.mxu0
  %v7025 = vadd.f32 0.0, %v7024
  %v7026 = vpop.f32.mrf.mxu0
  %7027 = vmatprep.mubr.f32.mxu0 0.0
  %7028 = vmatmul.mubr.f32.gmra.mxu0 %v6885
  %v7029 = vpop.f32.mrf.mxu0
  %v7030 = vadd.f32 0.0, %v7029
  %v7031 = vpop.f32.mrf.mxu0
  %7032 = vmatprep.mubr.f32.mxu0 0.0
  %7033 = vmatmul.mubr.f32.gmra.mxu0 %v6888
  %v7034 = vpop.f32.mrf.mxu0
  %v7035 = vadd.f32 0.0, %v7034
  %v7036 = vpop.f32.mrf.mxu0
  %7037 = vmatprep.mubr.f32.mxu0 0.0
  %7038 = vmatmul.mubr.f32.gmra.mxu0 %v6891
  %v7039 = vpop.f32.mrf.mxu0
  %v7040 = vadd.f32 0.0, %v7039
  %v7041 = vpop.f32.mrf.mxu0
  %7042 = vmatprep.mubr.f32.mxu0 0.0
  %7043 = vmatmul.mubr.f32.gmra.mxu0 %v6894
  %v7044 = vpop.f32.mrf.mxu0
  %v7045 = vadd.f32 0.0, %v7044
  %v7046 = vpop.f32.mrf.mxu0
  %7047 = vmatprep.mubr.f32.mxu0 0.0
  %7048 = vmatmul.mubr.f32.gmra.mxu0 %v6897
  %v7049 = vpop.f32.mrf.mxu0
  %v7050 = vadd.f32 0.0, %v7049
  %v7051 = vpop.f32.mrf.mxu0
  %7052 = vmatprep.mubr.f32.mxu0 0.0
  %7053 = vmatmul.mubr.f32.gmra.mxu0 %v6900
  %v7054 = vpop.f32.mrf.mxu0
  %v7055 = vadd.f32 0.0, %v7054
  %v7056 = vpop.f32.mrf.mxu0
  %7057 = vmatprep.mubr.f32.mxu0 0.0
  %7058 = vmatmul.mubr.f32.gmra.mxu0 %v6903
  %v7059 = vpop.f32.mrf.mxu0
  %v7060 = vadd.f32 0.0, %v7059
  %v7061 = vpop.f32.mrf.mxu0
  %7062 = vmatprep.mubr.f32.mxu0 0.0
  %7063 = vmatmul.mubr.f32.gmra.mxu0 %v6906
  %v7064 = vpop.f32.mrf.mxu0
  %v7065 = vadd.f32 0.0, %v7064
  %v7066 = vpop.f32.mrf.mxu0
  %7067 = vmatprep.mubr.f32.mxu0 0.0
  %7068 = vmatmul.mubr.f32.gmra.mxu0 %v6909
  %v7069 = vpop.f32.mrf.mxu0
  %v7070 = vadd.f32 0.0, %v7069
  %v7071 = vpop.f32.mrf.mxu0
  %7072 = vmatprep.mubr.f32.mxu0 0.0
  %7073 = vmatmul.mubr.f32.gmra.mxu0 %v6912
  %v7074 = vpop.f32.mrf.mxu0
  %v7075 = vadd.f32 0.0, %v7074
  %v7076 = vpop.f32.mrf.mxu0
  %7077 = vmatprep.mubr.f32.mxu0 0.0
  %7078 = vmatmul.mubr.f32.gmra.mxu0 %v6915
  %v7079 = vpop.f32.mrf.mxu0
  %v7080 = vadd.f32 0.0, %v7079
  %v7081 = vpop.f32.mrf.mxu0
  %7082 = vmatprep.mubr.f32.mxu0 0.0
  %7083 = vmatmul.mubr.f32.gmra.mxu0 %v6918
  %v7084 = vpop.f32.mrf.mxu0
  %v7085 = vadd.f32 0.0, %v7084
  %v7086 = vpop.f32.mrf.mxu0
  %7087 = vmatprep.mubr.f32.mxu0 0.0
  %7088 = vmatmul.mubr.f32.gmra.mxu0 %v6921
  %v7089 = vpop.f32.mrf.mxu0
  %v7090 = vadd.f32 0.0, %v7089
  %v7091 = vpop.f32.mrf.mxu0
  %7092 = vmatprep.mubr.f32.mxu0 0.0
  %7093 = vmatmul.mubr.f32.gmra.mxu0 %v6924
  %v7094 = vpop.f32.mrf.mxu0
  %v7095 = vadd.f32 0.0, %v7094
  %v7096 = vpop.f32.mrf.mxu0
  %7097 = vmatprep.mubr.f32.mxu0 0.0
  %7098 = vmatmul.mubr.f32.gmra.mxu0 %v6927
  %v7099 = vpop.f32.mrf.mxu0
  %v7100 = vadd.f32 0.0, %v7099
  %v7101 = vpop.f32.mrf.mxu0
  %7102 = vmatprep.mubr.f32.mxu0 0.0
  %7103 = vmatmul.mubr.f32.gmra.mxu0 %v6930
  %v7104 = vpop.f32.mrf.mxu0
  %v7105 = vadd.f32 0.0, %v7104
  %v7106 = vpop.f32.mrf.mxu0
  %7107 = vmatprep.mubr.f32.mxu0 0.0
  %7108 = vmatmul.mubr.f32.gmra.mxu0 %v6933
  %v7109 = vpop.f32.mrf.mxu0
  %v7110 = vadd.f32 0.0, %v7109
  %v7111 = vpop.f32.mrf.mxu0
  %7112 = vmatprep.mubr.f32.mxu0 0.0
  %7113 = vmatmul.mubr.f32.gmra.mxu0 %v6936
  %v7114 = vpop.f32.mrf.mxu0
  %v7115 = vadd.f32 0.0, %v7114
  %v7116 = vpop.f32.mrf.mxu0
  %7117 = vmatprep.mubr.f32.mxu0 0.0
  %7118 = vmatmul.mubr.f32.gmra.mxu0 %v6939
  %v7119 = vpop.f32.mrf.mxu0
  %v7120 = vadd.f32 0.0, %v7119
  %v7121 = vpop.f32.mrf.mxu0
  %7122 = vmatprep.mubr.f32.mxu0 0.0
  %7123 = vmatmul.mubr.f32.gmra.mxu0 %v6942
  %v7124 = vpop.f32.mrf.mxu0
  %v7125 = vadd.f32 0.0, %v7124
  %v7126 = vpop.f32.mrf.mxu0
  %7127 = vmatprep.mubr.f32.mxu0 0.0
  %7128 = vmatmul.mubr.f32.gmra.mxu0 %v6945
  %v7129 = vpop.f32.mrf.mxu0
  %v7130 = vadd.f32 0.0, %v7129
  %v7131 = vpop.f32.mrf.mxu0
  %7132 = vmatprep.mubr.f32.mxu0 0.0
  %7133 = vmatmul.mubr.f32.gmra.mxu0 %v6948
  %v7134 = vpop.f32.mrf.mxu0
  %v7135 = vadd.f32 0.0, %v7134
  %v7136 = vpop.f32.mrf.mxu0
  %7137 = vmatprep.mubr.f32.mxu0 0.0
  %7138 = vmatmul.mubr.f32.gmra.mxu0 %v6951
  %v7139 = vpop.f32.mrf.mxu0
  %v7140 = vadd.f32 0.0, %v7139
  %v7141 = vpop.f32.mrf.mxu0
  %7142 = vdwg.mxu0
  %v7143 = vld [vmem:[%s20] sm:$0xff]
  %v7144 = vld [vmem:[%s20 + $0x8] sm:$0xff]
  %v7145 = vld [vmem:[%s20 + $0x10] sm:$0xff]
  %v7146 = vld [vmem:[%s20 + $0x18] sm:$0xf]
  %v7147 = vld [vmem:[%s20 + $0x1c] sm:$0xff]
  %v7148 = vld [vmem:[%s20 + $0x24] sm:$0xff]
  %v7149 = vld [vmem:[%s20 + $0x2c] sm:$0xff]
  %v7150 = vld [vmem:[%s20 + $0x34] sm:$0xf]
  %v7151 = vld [vmem:[%s20 + $0x38] sm:$0xff]
  %v7152 = vld [vmem:[%s20 + $0x40] sm:$0xff]
  %v7153 = vld [vmem:[%s20 + $0x48] sm:$0xff]
  %v7154 = vld [vmem:[%s20 + $0x50] sm:$0xf]
  %v7155 = vld [vmem:[%s20 + $0x54] sm:$0xff]
  %v7156 = vld [vmem:[%s20 + $0x5c] sm:$0xff]
  %v7157 = vld [vmem:[%s20 + $0x64] sm:$0xff]
  %v7158 = vld [vmem:[%s20 + $0x6c] sm:$0xf]
  %v7159 = vld [vmem:[%s20 + $0x70] sm:$0xff]
  %v7160 = vld [vmem:[%s20 + $0x78] sm:$0xff]
  %v7161 = vld [vmem:[%s20 + $0x80] sm:$0xff]
  %v7162 = vld [vmem:[%s20 + $0x88] sm:$0xf]
  %v7163 = vld [vmem:[%s20 + $0x8c] sm:$0xff]
  %v7164 = vld [vmem:[%s20 + $0x94] sm:$0xff]
  %v7165 = vld [vmem:[%s20 + $0x9c] sm:$0xff]
  %v7166 = vld [vmem:[%s20 + $0xa4] sm:$0xf]
  %v7167 = vld [vmem:[%s20 + $0xa8] sm:$0xff]
  %v7168 = vld [vmem:[%s20 + $0xb0] sm:$0xff]
  %v7169 = vld [vmem:[%s20 + $0xb8] sm:$0xff]
  %v7170 = vld [vmem:[%s20 + $0xc0] sm:$0xf]
  %v7171 = vld [vmem:[%s20 + $0xc4] sm:$0xff]
  %v7172 = vld [vmem:[%s20 + $0xcc] sm:$0xff]
  %v7173 = vld [vmem:[%s20 + $0xd4] sm:$0xff]
  %v7174 = vld [vmem:[%s20 + $0xdc] sm:$0xf]
  %v7175 = vld [vmem:[%s20 + $0xe0] sm:$0xff]
  %v7176 = vld [vmem:[%s20 + $0xe8] sm:$0xff]
  %v7177 = vld [vmem:[%s20 + $0xf0] sm:$0xff]
  %v7178 = vld [vmem:[%s20 + $0xf8] sm:$0xf]
  %v7179 = vld [vmem:[%s20 + $0xfc] sm:$0xff]
  %v7180 = vld [vmem:[%s20 + $0x104] sm:$0xff]
  %v7181 = vld [vmem:[%s20 + $0x10c] sm:$0xff]
  %v7182 = vld [vmem:[%s20 + $0x114] sm:$0xf]
  %v7183 = vld [vmem:[%s20 + $0x118] sm:$0xff]
  %v7184 = vld [vmem:[%s20 + $0x120] sm:$0xff]
  %v7185 = vld [vmem:[%s20 + $0x128] sm:$0xff]
  %v7186 = vld [vmem:[%s20 + $0x130] sm:$0xf]
  %v7187 = vld [vmem:[%s20 + $0x134] sm:$0xff]
  %v7188 = vld [vmem:[%s20 + $0x13c] sm:$0xff]
  %v7189 = vld [vmem:[%s20 + $0x144] sm:$0xff]
  %v7190 = vld [vmem:[%s20 + $0x14c] sm:$0xf]
  %v7191 = vld [vmem:[%s20 + $0x150] sm:$0xff]
  %v7192 = vld [vmem:[%s20 + $0x158] sm:$0xff]
  %v7193 = vld [vmem:[%s20 + $0x160] sm:$0xff]
  %v7194 = vld [vmem:[%s20 + $0x168] sm:$0xf]
  %v7195 = vld [vmem:[%s20 + $0x16c] sm:$0xff]
  %v7196 = vld [vmem:[%s20 + $0x174] sm:$0xff]
  %v7197 = vld [vmem:[%s20 + $0x17c] sm:$0xff]
  %v7198 = vld [vmem:[%s20 + $0x184] sm:$0xf]
  %v7199 = vld [vmem:[%s20 + $0x188] sm:$0xff]
  %v7200 = vld [vmem:[%s20 + $0x190] sm:$0xff]
  %v7201 = vld [vmem:[%s20 + $0x198] sm:$0xff]
  %v7202 = vld [vmem:[%s20 + $0x1a0] sm:$0xf]
  %v7203 = vld [vmem:[%s20 + $0x1a4] sm:$0xff]
  %v7204 = vld [vmem:[%s20 + $0x1ac] sm:$0xff]
  %v7205 = vld [vmem:[%s20 + $0x1b4] sm:$0xff]
  %v7206 = vld [vmem:[%s20 + $0x1bc] sm:$0xf]
  %v7207 = vld [vmem:[%s20 + $0x1c0] sm:$0xff]
  %v7208 = vld [vmem:[%s20 + $0x1c8] sm:$0xff]
  %v7209 = vld [vmem:[%s20 + $0x1d0] sm:$0xff]
  %v7210 = vld [vmem:[%s20 + $0x1d8] sm:$0xf]
  %v7211 = vld [vmem:[%s20 + $0x1dc] sm:$0xff]
  %v7212 = vld [vmem:[%s20 + $0x1e4] sm:$0xff]
  %v7213 = vld [vmem:[%s20 + $0x1ec] sm:$0xff]
  %v7214 = vld [vmem:[%s20 + $0x1f4] sm:$0xf]
  %v7215 = vld [vmem:[%s20 + $0x1f8] sm:$0xff]
  %v7216 = vld [vmem:[%s20 + $0x200] sm:$0xff]
  %v7217 = vld [vmem:[%s20 + $0x208] sm:$0xff]
  %v7218 = vld [vmem:[%s20 + $0x210] sm:$0xf]
  %v7219 = vld [vmem:[%s20 + $0x214] sm:$0xff]
  %v7220 = vld [vmem:[%s20 + $0x21c] sm:$0xff]
  %v7221 = vld [vmem:[%s20 + $0x224] sm:$0xff]
  %v7222 = vld [vmem:[%s20 + $0x22c] sm:$0xf]
  %v7223 = vld [vmem:[%s20 + $0x230] sm:$0xff]
  %v7224 = vld [vmem:[%s20 + $0x238] sm:$0xff]
  %v7225 = vld [vmem:[%s20 + $0x240] sm:$0xff]
  %v7226 = vld [vmem:[%s20 + $0x248] sm:$0xf]
  %v7227 = vld [vmem:[%s20 + $0x24c] sm:$0xff]
  %v7228 = vld [vmem:[%s20 + $0x254] sm:$0xff]
  %v7229 = vld [vmem:[%s20 + $0x25c] sm:$0xff]
  %v7230 = vld [vmem:[%s20 + $0x264] sm:$0xf]
  %v7231 = vld [vmem:[%s20 + $0x268] sm:$0xff]
  %v7232 = vld [vmem:[%s20 + $0x270] sm:$0xff]
  %v7233 = vld [vmem:[%s20 + $0x278] sm:$0xff]
  %v7234 = vld [vmem:[%s20 + $0x280] sm:$0xf]
  %v7235 = vld [vmem:[%s20 + $0x284] sm:$0xff]
  %v7236 = vld [vmem:[%s20 + $0x28c] sm:$0xff]
  %v7237 = vld [vmem:[%s20 + $0x294] sm:$0xff]
  %v7238 = vld [vmem:[%s20 + $0x29c] sm:$0xf]
  %v7239 = vld [vmem:[%s20 + $0x2a0] sm:$0xff]
  %v7240 = vld [vmem:[%s20 + $0x2a8] sm:$0xff]
  %v7241 = vld [vmem:[%s20 + $0x2b0] sm:$0xff]
  %v7242 = vld [vmem:[%s20 + $0x2b8] sm:$0xf]
  %v7243 = vunpack.c.l.bf16 %v7143
  %v7244 = vunpack.c.h.bf16 %v7143
  %v7245 = vunpack.c.l.bf16 %v7144
  %v7246 = vunpack.c.h.bf16 %v7144
  %v7247 = vunpack.c.l.bf16 %v7145
  %v7248 = vunpack.c.h.bf16 %v7145
  %v7249 = vunpack.c.l.bf16 %v7146
  %v7250 = vunpack.c.l.bf16 %v7147
  %v7251 = vunpack.c.h.bf16 %v7147
  %v7252 = vunpack.c.l.bf16 %v7148
  %v7253 = vunpack.c.h.bf16 %v7148
  %v7254 = vunpack.c.l.bf16 %v7149
  %v7255 = vunpack.c.h.bf16 %v7149
  %v7256 = vunpack.c.l.bf16 %v7150
  %v7257 = vunpack.c.l.bf16 %v7151
  %v7258 = vunpack.c.h.bf16 %v7151
  %v7259 = vunpack.c.l.bf16 %v7152
  %v7260 = vunpack.c.h.bf16 %v7152
  %v7261 = vunpack.c.l.bf16 %v7153
  %v7262 = vunpack.c.h.bf16 %v7153
  %v7263 = vunpack.c.l.bf16 %v7154
  %v7264 = vunpack.c.l.bf16 %v7155
  %v7265 = vunpack.c.h.bf16 %v7155
  %v7266 = vunpack.c.l.bf16 %v7156
  %v7267 = vunpack.c.h.bf16 %v7156
  %v7268 = vunpack.c.l.bf16 %v7157
  %v7269 = vunpack.c.h.bf16 %v7157
  %v7270 = vunpack.c.l.bf16 %v7158
  %v7271 = vunpack.c.l.bf16 %v7159
  %v7272 = vunpack.c.h.bf16 %v7159
  %v7273 = vunpack.c.l.bf16 %v7160
  %v7274 = vunpack.c.h.bf16 %v7160
  %v7275 = vunpack.c.l.bf16 %v7161
  %v7276 = vunpack.c.h.bf16 %v7161
  %v7277 = vunpack.c.l.bf16 %v7162
  %v7278 = vunpack.c.l.bf16 %v7163
  %v7279 = vunpack.c.h.bf16 %v7163
  %v7280 = vunpack.c.l.bf16 %v7164
  %v7281 = vunpack.c.h.bf16 %v7164
  %v7282 = vunpack.c.l.bf16 %v7165
  %v7283 = vunpack.c.h.bf16 %v7165
  %v7284 = vunpack.c.l.bf16 %v7166
  %v7285 = vunpack.c.l.bf16 %v7167
  %v7286 = vunpack.c.h.bf16 %v7167
  %v7287 = vunpack.c.l.bf16 %v7168
  %v7288 = vunpack.c.h.bf16 %v7168
  %v7289 = vunpack.c.l.bf16 %v7169
  %v7290 = vunpack.c.h.bf16 %v7169
  %v7291 = vunpack.c.l.bf16 %v7170
  %v7292 = vunpack.c.l.bf16 %v7171
  %v7293 = vunpack.c.h.bf16 %v7171
  %v7294 = vunpack.c.l.bf16 %v7172
  %v7295 = vunpack.c.h.bf16 %v7172
  %v7296 = vunpack.c.l.bf16 %v7173
  %v7297 = vunpack.c.h.bf16 %v7173
  %v7298 = vunpack.c.l.bf16 %v7174
  %v7299 = vunpack.c.l.bf16 %v7175
  %v7300 = vunpack.c.h.bf16 %v7175
  %v7301 = vunpack.c.l.bf16 %v7176
  %v7302 = vunpack.c.h.bf16 %v7176
  %v7303 = vunpack.c.l.bf16 %v7177
  %v7304 = vunpack.c.h.bf16 %v7177
  %v7305 = vunpack.c.l.bf16 %v7178
  %v7306 = vunpack.c.l.bf16 %v7179
  %v7307 = vunpack.c.h.bf16 %v7179
  %v7308 = vunpack.c.l.bf16 %v7180
  %v7309 = vunpack.c.h.bf16 %v7180
  %v7310 = vunpack.c.l.bf16 %v7181
  %v7311 = vunpack.c.h.bf16 %v7181
  %v7312 = vunpack.c.l.bf16 %v7182
  %v7313 = vunpack.c.l.bf16 %v7183
  %v7314 = vunpack.c.h.bf16 %v7183
  %v7315 = vunpack.c.l.bf16 %v7184
  %v7316 = vunpack.c.h.bf16 %v7184
  %v7317 = vunpack.c.l.bf16 %v7185
  %v7318 = vunpack.c.h.bf16 %v7185
  %v7319 = vunpack.c.l.bf16 %v7186
  %v7320 = vunpack.c.l.bf16 %v7187
  %v7321 = vunpack.c.h.bf16 %v7187
  %v7322 = vunpack.c.l.bf16 %v7188
  %v7323 = vunpack.c.h.bf16 %v7188
  %v7324 = vunpack.c.l.bf16 %v7189
  %v7325 = vunpack.c.h.bf16 %v7189
  %v7326 = vunpack.c.l.bf16 %v7190
  %v7327 = vunpack.c.l.bf16 %v7191
  %v7328 = vunpack.c.h.bf16 %v7191
  %v7329 = vunpack.c.l.bf16 %v7192
  %v7330 = vunpack.c.h.bf16 %v7192
  %v7331 = vunpack.c.l.bf16 %v7193
  %v7332 = vunpack.c.h.bf16 %v7193
  %v7333 = vunpack.c.l.bf16 %v7194
  %v7334 = vunpack.c.l.bf16 %v7195
  %v7335 = vunpack.c.h.bf16 %v7195
  %v7336 = vunpack.c.l.bf16 %v7196
  %v7337 = vunpack.c.h.bf16 %v7196
  %v7338 = vunpack.c.l.bf16 %v7197
  %v7339 = vunpack.c.h.bf16 %v7197
  %v7340 = vunpack.c.l.bf16 %v7198
  %v7341 = vunpack.c.l.bf16 %v7199
  %v7342 = vunpack.c.h.bf16 %v7199
  %v7343 = vunpack.c.l.bf16 %v7200
  %v7344 = vunpack.c.h.bf16 %v7200
  %v7345 = vunpack.c.l.bf16 %v7201
  %v7346 = vunpack.c.h.bf16 %v7201
  %v7347 = vunpack.c.l.bf16 %v7202
  %v7348 = vunpack.c.l.bf16 %v7203
  %v7349 = vunpack.c.h.bf16 %v7203
  %v7350 = vunpack.c.l.bf16 %v7204
  %v7351 = vunpack.c.h.bf16 %v7204
  %v7352 = vunpack.c.l.bf16 %v7205
  %v7353 = vunpack.c.h.bf16 %v7205
  %v7354 = vunpack.c.l.bf16 %v7206
  %v7355 = vunpack.c.l.bf16 %v7207
  %v7356 = vunpack.c.h.bf16 %v7207
  %v7357 = vunpack.c.l.bf16 %v7208
  %v7358 = vunpack.c.h.bf16 %v7208
  %v7359 = vunpack.c.l.bf16 %v7209
  %v7360 = vunpack.c.h.bf16 %v7209
  %v7361 = vunpack.c.l.bf16 %v7210
  %v7362 = vunpack.c.l.bf16 %v7211
  %v7363 = vunpack.c.h.bf16 %v7211
  %v7364 = vunpack.c.l.bf16 %v7212
  %v7365 = vunpack.c.h.bf16 %v7212
  %v7366 = vunpack.c.l.bf16 %v7213
  %v7367 = vunpack.c.h.bf16 %v7213
  %v7368 = vunpack.c.l.bf16 %v7214
  %v7369 = vunpack.c.l.bf16 %v7215
  %v7370 = vunpack.c.h.bf16 %v7215
  %v7371 = vunpack.c.l.bf16 %v7216
  %v7372 = vunpack.c.h.bf16 %v7216
  %v7373 = vunpack.c.l.bf16 %v7217
  %v7374 = vunpack.c.h.bf16 %v7217
  %v7375 = vunpack.c.l.bf16 %v7218
  %v7376 = vunpack.c.l.bf16 %v7219
  %v7377 = vunpack.c.h.bf16 %v7219
  %v7378 = vunpack.c.l.bf16 %v7220
  %v7379 = vunpack.c.h.bf16 %v7220
  %v7380 = vunpack.c.l.bf16 %v7221
  %v7381 = vunpack.c.h.bf16 %v7221
  %v7382 = vunpack.c.l.bf16 %v7222
  %v7383 = vunpack.c.l.bf16 %v7223
  %v7384 = vunpack.c.h.bf16 %v7223
  %v7385 = vunpack.c.l.bf16 %v7224
  %v7386 = vunpack.c.h.bf16 %v7224
  %v7387 = vunpack.c.l.bf16 %v7225
  %v7388 = vunpack.c.h.bf16 %v7225
  %v7389 = vunpack.c.l.bf16 %v7226
  %v7390 = vunpack.c.l.bf16 %v7227
  %v7391 = vunpack.c.h.bf16 %v7227
  %v7392 = vunpack.c.l.bf16 %v7228
  %v7393 = vunpack.c.h.bf16 %v7228
  %v7394 = vunpack.c.l.bf16 %v7229
  %v7395 = vunpack.c.h.bf16 %v7229
  %v7396 = vunpack.c.l.bf16 %v7230
  %v7397 = vunpack.c.l.bf16 %v7231
  %v7398 = vunpack.c.h.bf16 %v7231
  %v7399 = vunpack.c.l.bf16 %v7232
  %v7400 = vunpack.c.h.bf16 %v7232
  %v7401 = vunpack.c.l.bf16 %v7233
  %v7402 = vunpack.c.h.bf16 %v7233
  %v7403 = vunpack.c.l.bf16 %v7234
  %v7404 = vunpack.c.l.bf16 %v7235
  %v7405 = vunpack.c.h.bf16 %v7235
  %v7406 = vunpack.c.l.bf16 %v7236
  %v7407 = vunpack.c.h.bf16 %v7236
  %v7408 = vunpack.c.l.bf16 %v7237
  %v7409 = vunpack.c.h.bf16 %v7237
  %v7410 = vunpack.c.l.bf16 %v7238
  %v7411 = vunpack.c.l.bf16 %v7239
  %v7412 = vunpack.c.h.bf16 %v7239
  %v7413 = vunpack.c.l.bf16 %v7240
  %v7414 = vunpack.c.h.bf16 %v7240
  %v7415 = vunpack.c.l.bf16 %v7241
  %v7416 = vunpack.c.h.bf16 %v7241
  %v7417 = vunpack.c.l.bf16 %v7242
  %v7418 = vld [vmem:[%s21] sm:$0xf]
  %7420 = vset.pattern.permute.xlu0 0
  %7421 = vperm.xlu0 %7420, %v7020
  %v7422 = vpop.permute.xlu0 %7421
  %7425 = vset.pattern.permute.xlu0 0
  %7426 = vperm.xlu0 %7425, %v7025
  %v7427 = vpop.permute.xlu0 %7426
  %7430 = vset.pattern.permute.xlu0 0
  %7431 = vperm.xlu0 %7430, %v7030
  %v7432 = vpop.permute.xlu0 %7431
  %7435 = vset.pattern.permute.xlu0 0
  %7436 = vperm.xlu0 %7435, %v7035
  %v7437 = vpop.permute.xlu0 %7436
  %7440 = vset.pattern.permute.xlu0 0
  %7441 = vperm.xlu0 %7440, %v7040
  %v7442 = vpop.permute.xlu0 %7441
  %7445 = vset.pattern.permute.xlu0 0
  %7446 = vperm.xlu0 %7445, %v7045
  %v7447 = vpop.permute.xlu0 %7446
  %7450 = vset.pattern.permute.xlu0 0
  %7451 = vperm.xlu0 %7450, %v7050
  %v7452 = vpop.permute.xlu0 %7451
  %7455 = vset.pattern.permute.xlu0 0
  %7456 = vperm.xlu0 %7455, %v7055
  %v7457 = vpop.permute.xlu0 %7456
  %7460 = vset.pattern.permute.xlu0 0
  %7461 = vperm.xlu0 %7460, %v7060
  %v7462 = vpop.permute.xlu0 %7461
  %7465 = vset.pattern.permute.xlu0 0
  %7466 = vperm.xlu0 %7465, %v7065
  %v7467 = vpop.permute.xlu0 %7466
  %7470 = vset.pattern.permute.xlu0 0
  %7471 = vperm.xlu0 %7470, %v7070
  %v7472 = vpop.permute.xlu0 %7471
  %7475 = vset.pattern.permute.xlu0 0
  %7476 = vperm.xlu0 %7475, %v7075
  %v7477 = vpop.permute.xlu0 %7476
  %7480 = vset.pattern.permute.xlu0 0
  %7481 = vperm.xlu0 %7480, %v7080
  %v7482 = vpop.permute.xlu0 %7481
  %7485 = vset.pattern.permute.xlu0 0
  %7486 = vperm.xlu0 %7485, %v7085
  %v7487 = vpop.permute.xlu0 %7486
  %7490 = vset.pattern.permute.xlu0 0
  %7491 = vperm.xlu0 %7490, %v7090
  %v7492 = vpop.permute.xlu0 %7491
  %7495 = vset.pattern.permute.xlu0 0
  %7496 = vperm.xlu0 %7495, %v7095
  %v7497 = vpop.permute.xlu0 %7496
  %7500 = vset.pattern.permute.xlu0 0
  %7501 = vperm.xlu0 %7500, %v7100
  %v7502 = vpop.permute.xlu0 %7501
  %7505 = vset.pattern.permute.xlu0 0
  %7506 = vperm.xlu0 %7505, %v7105
  %v7507 = vpop.permute.xlu0 %7506
  %7510 = vset.pattern.permute.xlu0 0
  %7511 = vperm.xlu0 %7510, %v7110
  %v7512 = vpop.permute.xlu0 %7511
  %7515 = vset.pattern.permute.xlu0 0
  %7516 = vperm.xlu0 %7515, %v7115
  %v7517 = vpop.permute.xlu0 %7516
  %7520 = vset.pattern.permute.xlu0 0
  %7521 = vperm.xlu0 %7520, %v7120
  %v7522 = vpop.permute.xlu0 %7521
  %7525 = vset.pattern.permute.xlu0 0
  %7526 = vperm.xlu0 %7525, %v7125
  %v7527 = vpop.permute.xlu0 %7526
  %7530 = vset.pattern.permute.xlu0 0
  %7531 = vperm.xlu0 %7530, %v7130
  %v7532 = vpop.permute.xlu0 %7531
  %7535 = vset.pattern.permute.xlu0 0
  %7536 = vperm.xlu0 %7535, %v7135
  %v7537 = vpop.permute.xlu0 %7536
  %7540 = vset.pattern.permute.xlu0 0
  %7541 = vperm.xlu0 %7540, %v7140
  %v7542 = vpop.permute.xlu0 %7541
  %v7544 = vmul.f32 %v7422, %v7243
  %v7545 = vmul.f32 %v7422, %v7244
  %v7546 = vmul.f32 %v7422, %v7245
  %v7547 = vmul.f32 %v7422, %v7246
  %v7548 = vmul.f32 %v7422, %v7247
  %v7549 = vmul.f32 %v7422, %v7248
  %v7550 = vmul.f32 %v7422, %v7249
  %v7551 = vmul.f32 %v7427, %v7250
  %v7552 = vmul.f32 %v7427, %v7251
  %v7553 = vmul.f32 %v7427, %v7252
  %v7554 = vmul.f32 %v7427, %v7253
  %v7555 = vmul.f32 %v7427, %v7254
  %v7556 = vmul.f32 %v7427, %v7255
  %v7557 = vmul.f32 %v7427, %v7256
  %v7558 = vmul.f32 %v7432, %v7257
  %v7559 = vmul.f32 %v7432, %v7258
  %v7560 = vmul.f32 %v7432, %v7259
  %v7561 = vmul.f32 %v7432, %v7260
  %v7562 = vmul.f32 %v7432, %v7261
  %v7563 = vmul.f32 %v7432, %v7262
  %v7564 = vmul.f32 %v7432, %v7263
  %v7565 = vmul.f32 %v7437, %v7264
  %v7566 = vmul.f32 %v7437, %v7265
  %v7567 = vmul.f32 %v7437, %v7266
  %v7568 = vmul.f32 %v7437, %v7267
  %v7569 = vmul.f32 %v7437, %v7268
  %v7570 = vmul.f32 %v7437, %v7269
  %v7571 = vmul.f32 %v7437, %v7270
  %v7572 = vmul.f32 %v7442, %v7271
  %v7573 = vmul.f32 %v7442, %v7272
  %v7574 = vmul.f32 %v7442, %v7273
  %v7575 = vmul.f32 %v7442, %v7274
  %v7576 = vmul.f32 %v7442, %v7275
  %v7577 = vmul.f32 %v7442, %v7276
  %v7578 = vmul.f32 %v7442, %v7277
  %v7579 = vmul.f32 %v7447, %v7278
  %v7580 = vmul.f32 %v7447, %v7279
  %v7581 = vmul.f32 %v7447, %v7280
  %v7582 = vmul.f32 %v7447, %v7281
  %v7583 = vmul.f32 %v7447, %v7282
  %v7584 = vmul.f32 %v7447, %v7283
  %v7585 = vmul.f32 %v7447, %v7284
  %v7586 = vmul.f32 %v7452, %v7285
  %v7587 = vmul.f32 %v7452, %v7286
  %v7588 = vmul.f32 %v7452, %v7287
  %v7589 = vmul.f32 %v7452, %v7288
  %v7590 = vmul.f32 %v7452, %v7289
  %v7591 = vmul.f32 %v7452, %v7290
  %v7592 = vmul.f32 %v7452, %v7291
  %v7593 = vmul.f32 %v7457, %v7292
  %v7594 = vmul.f32 %v7457, %v7293
  %v7595 = vmul.f32 %v7457, %v7294
  %v7596 = vmul.f32 %v7457, %v7295
  %v7597 = vmul.f32 %v7457, %v7296
  %v7598 = vmul.f32 %v7457, %v7297
  %v7599 = vmul.f32 %v7457, %v7298
  %v7600 = vmul.f32 %v7462, %v7299
  %v7601 = vmul.f32 %v7462, %v7300
  %v7602 = vmul.f32 %v7462, %v7301
  %v7603 = vmul.f32 %v7462, %v7302
  %v7604 = vmul.f32 %v7462, %v7303
  %v7605 = vmul.f32 %v7462, %v7304
  %v7606 = vmul.f32 %v7462, %v7305
  %v7607 = vmul.f32 %v7467, %v7306
  %v7608 = vmul.f32 %v7467, %v7307
  %v7609 = vmul.f32 %v7467, %v7308
  %v7610 = vmul.f32 %v7467, %v7309
  %v7611 = vmul.f32 %v7467, %v7310
  %v7612 = vmul.f32 %v7467, %v7311
  %v7613 = vmul.f32 %v7467, %v7312
  %v7614 = vmul.f32 %v7472, %v7313
  %v7615 = vmul.f32 %v7472, %v7314
  %v7616 = vmul.f32 %v7472, %v7315
  %v7617 = vmul.f32 %v7472, %v7316
  %v7618 = vmul.f32 %v7472, %v7317
  %v7619 = vmul.f32 %v7472, %v7318
  %v7620 = vmul.f32 %v7472, %v7319
  %v7621 = vmul.f32 %v7477, %v7320
  %v7622 = vmul.f32 %v7477, %v7321
  %v7623 = vmul.f32 %v7477, %v7322
  %v7624 = vmul.f32 %v7477, %v7323
  %v7625 = vmul.f32 %v7477, %v7324
  %v7626 = vmul.f32 %v7477, %v7325
  %v7627 = vmul.f32 %v7477, %v7326
  %v7628 = vmul.f32 %v7482, %v7327
  %v7629 = vmul.f32 %v7482, %v7328
  %v7630 = vmul.f32 %v7482, %v7329
  %v7631 = vmul.f32 %v7482, %v7330
  %v7632 = vmul.f32 %v7482, %v7331
  %v7633 = vmul.f32 %v7482, %v7332
  %v7634 = vmul.f32 %v7482, %v7333
  %v7635 = vmul.f32 %v7487, %v7334
  %v7636 = vmul.f32 %v7487, %v7335
  %v7637 = vmul.f32 %v7487, %v7336
  %v7638 = vmul.f32 %v7487, %v7337
  %v7639 = vmul.f32 %v7487, %v7338
  %v7640 = vmul.f32 %v7487, %v7339
  %v7641 = vmul.f32 %v7487, %v7340
  %v7642 = vmul.f32 %v7492, %v7341
  %v7643 = vmul.f32 %v7492, %v7342
  %v7644 = vmul.f32 %v7492, %v7343
  %v7645 = vmul.f32 %v7492, %v7344
  %v7646 = vmul.f32 %v7492, %v7345
  %v7647 = vmul.f32 %v7492, %v7346
  %v7648 = vmul.f32 %v7492, %v7347
  %v7649 = vmul.f32 %v7497, %v7348
  %v7650 = vmul.f32 %v7497, %v7349
  %v7651 = vmul.f32 %v7497, %v7350
  %v7652 = vmul.f32 %v7497, %v7351
  %v7653 = vmul.f32 %v7497, %v7352
  %v7654 = vmul.f32 %v7497, %v7353
  %v7655 = vmul.f32 %v7497, %v7354
  %v7656 = vmul.f32 %v7502, %v7355
  %v7657 = vmul.f32 %v7502, %v7356
  %v7658 = vmul.f32 %v7502, %v7357
  %v7659 = vmul.f32 %v7502, %v7358
  %v7660 = vmul.f32 %v7502, %v7359
  %v7661 = vmul.f32 %v7502, %v7360
  %v7662 = vmul.f32 %v7502, %v7361
  %v7663 = vmul.f32 %v7507, %v7362
  %v7664 = vmul.f32 %v7507, %v7363
  %v7665 = vmul.f32 %v7507, %v7364
  %v7666 = vmul.f32 %v7507, %v7365
  %v7667 = vmul.f32 %v7507, %v7366
  %v7668 = vmul.f32 %v7507, %v7367
  %v7669 = vmul.f32 %v7507, %v7368
  %v7670 = vmul.f32 %v7512, %v7369
  %v7671 = vmul.f32 %v7512, %v7370
  %v7672 = vmul.f32 %v7512, %v7371
  %v7673 = vmul.f32 %v7512, %v7372
  %v7674 = vmul.f32 %v7512, %v7373
  %v7675 = vmul.f32 %v7512, %v7374
  %v7676 = vmul.f32 %v7512, %v7375
  %v7677 = vmul.f32 %v7517, %v7376
  %v7678 = vmul.f32 %v7517, %v7377
  %v7679 = vmul.f32 %v7517, %v7378
  %v7680 = vmul.f32 %v7517, %v7379
  %v7681 = vmul.f32 %v7517, %v7380
  %v7682 = vmul.f32 %v7517, %v7381
  %v7683 = vmul.f32 %v7517, %v7382
  %v7684 = vmul.f32 %v7522, %v7383
  %v7685 = vmul.f32 %v7522, %v7384
  %v7686 = vmul.f32 %v7522, %v7385
  %v7687 = vmul.f32 %v7522, %v7386
  %v7688 = vmul.f32 %v7522, %v7387
  %v7689 = vmul.f32 %v7522, %v7388
  %v7690 = vmul.f32 %v7522, %v7389
  %v7691 = vmul.f32 %v7527, %v7390
  %v7692 = vmul.f32 %v7527, %v7391
  %v7693 = vmul.f32 %v7527, %v7392
  %v7694 = vmul.f32 %v7527, %v7393
  %v7695 = vmul.f32 %v7527, %v7394
  %v7696 = vmul.f32 %v7527, %v7395
  %v7697 = vmul.f32 %v7527, %v7396
  %v7698 = vmul.f32 %v7532, %v7397
  %v7699 = vmul.f32 %v7532, %v7398
  %v7700 = vmul.f32 %v7532, %v7399
  %v7701 = vmul.f32 %v7532, %v7400
  %v7702 = vmul.f32 %v7532, %v7401
  %v7703 = vmul.f32 %v7532, %v7402
  %v7704 = vmul.f32 %v7532, %v7403
  %v7705 = vmul.f32 %v7537, %v7404
  %v7706 = vmul.f32 %v7537, %v7405
  %v7707 = vmul.f32 %v7537, %v7406
  %v7708 = vmul.f32 %v7537, %v7407
  %v7709 = vmul.f32 %v7537, %v7408
  %v7710 = vmul.f32 %v7537, %v7409
  %v7711 = vmul.f32 %v7537, %v7410
  %v7712 = vmul.f32 %v7542, %v7411
  %v7713 = vmul.f32 %v7542, %v7412
  %v7714 = vmul.f32 %v7542, %v7413
  %v7715 = vmul.f32 %v7542, %v7414
  %v7716 = vmul.f32 %v7542, %v7415
  %v7717 = vmul.f32 %v7542, %v7416
  %v7718 = vmul.f32 %v7542, %v7417
  %v7721 = vunpack.c.l.s4 1983009808
  %v7722 = vunpack.c.0.s8 %v7721
  %v7723 = vlaneseq
  %v7724 = vshrl.u32 %v7723, 7
  %v7725 = vsub.s32 %v7722, %v7724
  %v7726 = vrot.slane %v7418, %v7725
  %v7727 = vcombine.high %v7726, %v7726
  %v7729 = vsel %vm5437, %v7727, 0
  %7731 = vmatprep.subr.mxu0 %v7650
  %7732 = vmatpush1.msra.mxu0 %v7649
  %7733 = vmatprep.subr.mxu0 %v7643
  %7734 = vmatpush1.msra.mxu0 %v7642
  %7735 = vmatprep.subr.mxu0 %v7636
  %7736 = vmatpush1.msra.mxu0 %v7635
  %7737 = vmatprep.subr.mxu0 %v7629
  %7738 = vmatpush1.msra.mxu0 %v7628
  %7739 = vmatprep.subr.mxu0 %v7622
  %7740 = vmatpush1.msra.mxu0 %v7621
  %7741 = vmatprep.subr.mxu0 %v7615
  %7742 = vmatpush1.msra.mxu0 %v7614
  %7743 = vmatprep.subr.mxu0 %v7608
  %7744 = vmatpush1.msra.mxu0 %v7607
  %7745 = vmatprep.subr.mxu0 %v7601
  %7746 = vmatpush1.msra.mxu0 %v7600
  %7747 = vmatprep.subr.mxu0 %v7594
  %7748 = vmatpush1.msra.mxu0 %v7593
  %7749 = vmatprep.subr.mxu0 %v7587
  %7750 = vmatpush1.msra.mxu0 %v7586
  %7751 = vmatprep.subr.mxu0 %v7580
  %7752 = vmatpush1.msra.mxu0 %v7579
  %7753 = vmatprep.subr.mxu0 %v7573
  %7754 = vmatpush1.msra.mxu0 %v7572
  %7755 = vmatprep.subr.mxu0 %v7566
  %7756 = vmatpush1.msra.mxu0 %v7565
  %7757 = vmatprep.subr.mxu0 %v7559
  %7758 = vmatpush1.msra.mxu0 %v7558
  %7759 = vmatprep.subr.mxu0 %v7552
  %7760 = vmatpush1.msra.mxu0 %v7551
  %7761 = vmatprep.subr.mxu0 %v7545
  %7762 = vmatpush1.msra.mxu0 %v7544
  %7763 = vmatprep.subr.mxu0 0.0
  %7764 = vmatpush2.msra.mxu0 0.0
  %7765 = vmatprep.subr.mxu0 0.0
  %7766 = vmatpush2.msra.mxu0 0.0
  %7767 = vmatprep.subr.mxu0 0.0
  %7768 = vmatpush2.msra.mxu0 0.0
  %7769 = vmatprep.subr.mxu0 0.0
  %7770 = vmatpush2.msra.mxu0 0.0
  %7771 = vmatprep.subr.mxu0 0.0
  %7772 = vmatpush2.msra.mxu0 0.0
  %7773 = vmatprep.subr.mxu0 0.0
  %7774 = vmatpush2.msra.mxu0 0.0
  %7775 = vmatprep.subr.mxu0 0.0
  %7776 = vmatpush2.msra.mxu0 0.0
  %7777 = vmatprep.subr.mxu0 %v7713
  %7778 = vmatpush2.msra.mxu0 %v7712
  %7779 = vmatprep.subr.mxu0 %v7706
  %7780 = vmatpush2.msra.mxu0 %v7705
  %7781 = vmatprep.subr.mxu0 %v7699
  %7782 = vmatpush2.msra.mxu0 %v7698
  %7783 = vmatprep.subr.mxu0 %v7692
  %7784 = vmatpush2.msra.mxu0 %v7691
  %7785 = vmatprep.subr.mxu0 %v7685
  %7786 = vmatpush2.msra.mxu0 %v7684
  %7787 = vmatprep.subr.mxu0 %v7678
  %7788 = vmatpush2.msra.mxu0 %v7677
  %7789 = vmatprep.subr.mxu0 %v7671
  %7790 = vmatpush2.msra.mxu0 %v7670
  %7791 = vmatprep.subr.mxu0 %v7664
  %7792 = vmatpush2.msra.mxu0 %v7663
  %7793 = vmatprep.subr.mxu0 %v7657
  %7794 = vmatpush2.msra.mxu0 %v7656
  %7795 = vmatprep.mubr.f32.mxu0 %v7729
  %7796 = vmatmul.mubr.f32.gmra.mxu0 %v7726
  %v7797 = vpop.f32.mrf.mxu0
  %v7798 = vadd.f32 0.0, %v7797
  %v7799 = vpop.f32.mrf.mxu0
  %v7800 = vadd.f32 0.0, %v7799
  %7801 = vdwg.mxu0
  %7802 = vmatprep.subr.mxu0 %v7652
  %7803 = vmatpush1.msra.mxu0 %v7651
  %7804 = vmatprep.subr.mxu0 %v7645
  %7805 = vmatpush1.msra.mxu0 %v7644
  %7806 = vmatprep.subr.mxu0 %v7638
  %7807 = vmatpush1.msra.mxu0 %v7637
  %7808 = vmatprep.subr.mxu0 %v7631
  %7809 = vmatpush1.msra.mxu0 %v7630
  %7810 = vmatprep.subr.mxu0 %v7624
  %7811 = vmatpush1.msra.mxu0 %v7623
  %7812 = vmatprep.subr.mxu0 %v7617
  %7813 = vmatpush1.msra.mxu0 %v7616
  %7814 = vmatprep.subr.mxu0 %v7610
  %7815 = vmatpush1.msra.mxu0 %v7609
  %7816 = vmatprep.subr.mxu0 %v7603
  %7817 = vmatpush1.msra.mxu0 %v7602
  %7818 = vmatprep.subr.mxu0 %v7596
  %7819 = vmatpush1.msra.mxu0 %v7595
  %7820 = vmatprep.subr.mxu0 %v7589
  %7821 = vmatpush1.msra.mxu0 %v7588
  %7822 = vmatprep.subr.mxu0 %v7582
  %7823 = vmatpush1.msra.mxu0 %v7581
  %7824 = vmatprep.subr.mxu0 %v7575
  %7825 = vmatpush1.msra.mxu0 %v7574
  %7826 = vmatprep.subr.mxu0 %v7568
  %7827 = vmatpush1.msra.mxu0 %v7567
  %7828 = vmatprep.subr.mxu0 %v7561
  %7829 = vmatpush1.msra.mxu0 %v7560
  %7830 = vmatprep.subr.mxu0 %v7554
  %7831 = vmatpush1.msra.mxu0 %v7553
  %7832 = vmatprep.subr.mxu0 %v7547
  %7833 = vmatpush1.msra.mxu0 %v7546
  %7834 = vmatprep.subr.mxu0 0.0
  %7835 = vmatpush2.msra.mxu0 0.0
  %7836 = vmatprep.subr.mxu0 0.0
  %7837 = vmatpush2.msra.mxu0 0.0
  %7838 = vmatprep.subr.mxu0 0.0
  %7839 = vmatpush2.msra.mxu0 0.0
  %7840 = vmatprep.subr.mxu0 0.0
  %7841 = vmatpush2.msra.mxu0 0.0
  %7842 = vmatprep.subr.mxu0 0.0
  %7843 = vmatpush2.msra.mxu0 0.0
  %7844 = vmatprep.subr.mxu0 0.0
  %7845 = vmatpush2.msra.mxu0 0.0
  %7846 = vmatprep.subr.mxu0 0.0
  %7847 = vmatpush2.msra.mxu0 0.0
  %7848 = vmatprep.subr.mxu0 %v7715
  %7849 = vmatpush2.msra.mxu0 %v7714
  %7850 = vmatprep.subr.mxu0 %v7708
  %7851 = vmatpush2.msra.mxu0 %v7707
  %7852 = vmatprep.subr.mxu0 %v7701
  %7853 = vmatpush2.msra.mxu0 %v7700
  %7854 = vmatprep.subr.mxu0 %v7694
  %7855 = vmatpush2.msra.mxu0 %v7693
  %7856 = vmatprep.subr.mxu0 %v7687
  %7857 = vmatpush2.msra.mxu0 %v7686
  %7858 = vmatprep.subr.mxu0 %v7680
  %7859 = vmatpush2.msra.mxu0 %v7679
  %7860 = vmatprep.subr.mxu0 %v7673
  %7861 = vmatpush2.msra.mxu0 %v7672
  %7862 = vmatprep.subr.mxu0 %v7666
  %7863 = vmatpush2.msra.mxu0 %v7665
  %7864 = vmatprep.subr.mxu0 %v7659
  %7865 = vmatpush2.msra.mxu0 %v7658
  %7866 = vmatprep.mubr.f32.mxu0 %v7729
  %7867 = vmatmul.mubr.f32.gmra.mxu0 %v7726
  %v7868 = vpop.f32.mrf.mxu0
  %v7869 = vadd.f32 0.0, %v7868
  %v7870 = vpop.f32.mrf.mxu0
  %v7871 = vadd.f32 0.0, %v7870
  %7872 = vdwg.mxu0
  %7873 = vmatprep.subr.mxu0 %v7654
  %7874 = vmatpush1.msra.mxu0 %v7653
  %7875 = vmatprep.subr.mxu0 %v7647
  %7876 = vmatpush1.msra.mxu0 %v7646
  %7877 = vmatprep.subr.mxu0 %v7640
  %7878 = vmatpush1.msra.mxu0 %v7639
  %7879 = vmatprep.subr.mxu0 %v7633
  %7880 = vmatpush1.msra.mxu0 %v7632
  %7881 = vmatprep.subr.mxu0 %v7626
  %7882 = vmatpush1.msra.mxu0 %v7625
  %7883 = vmatprep.subr.mxu0 %v7619
  %7884 = vmatpush1.msra.mxu0 %v7618
  %7885 = vmatprep.subr.mxu0 %v7612
  %7886 = vmatpush1.msra.mxu0 %v7611
  %7887 = vmatprep.subr.mxu0 %v7605
  %7888 = vmatpush1.msra.mxu0 %v7604
  %7889 = vmatprep.subr.mxu0 %v7598
  %7890 = vmatpush1.msra.mxu0 %v7597
  %7891 = vmatprep.subr.mxu0 %v7591
  %7892 = vmatpush1.msra.mxu0 %v7590
  %7893 = vmatprep.subr.mxu0 %v7584
  %7894 = vmatpush1.msra.mxu0 %v7583
  %7895 = vmatprep.subr.mxu0 %v7577
  %7896 = vmatpush1.msra.mxu0 %v7576
  %7897 = vmatprep.subr.mxu0 %v7570
  %7898 = vmatpush1.msra.mxu0 %v7569
  %7899 = vmatprep.subr.mxu0 %v7563
  %7900 = vmatpush1.msra.mxu0 %v7562
  %7901 = vmatprep.subr.mxu0 %v7556
  %7902 = vmatpush1.msra.mxu0 %v7555
  %7903 = vmatprep.subr.mxu0 %v7549
  %7904 = vmatpush1.msra.mxu0 %v7548
  %7905 = vmatprep.subr.mxu0 0.0
  %7906 = vmatpush2.msra.mxu0 0.0
  %7907 = vmatprep.subr.mxu0 0.0
  %7908 = vmatpush2.msra.mxu0 0.0
  %7909 = vmatprep.subr.mxu0 0.0
  %7910 = vmatpush2.msra.mxu0 0.0
  %7911 = vmatprep.subr.mxu0 0.0
  %7912 = vmatpush2.msra.mxu0 0.0
  %7913 = vmatprep.subr.mxu0 0.0
  %7914 = vmatpush2.msra.mxu0 0.0
  %7915 = vmatprep.subr.mxu0 0.0
  %7916 = vmatpush2.msra.mxu0 0.0
  %7917 = vmatprep.subr.mxu0 0.0
  %7918 = vmatpush2.msra.mxu0 0.0
  %7919 = vmatprep.subr.mxu0 %v7717
  %7920 = vmatpush2.msra.mxu0 %v7716
  %7921 = vmatprep.subr.mxu0 %v7710
  %7922 = vmatpush2.msra.mxu0 %v7709
  %7923 = vmatprep.subr.mxu0 %v7703
  %7924 = vmatpush2.msra.mxu0 %v7702
  %7925 = vmatprep.subr.mxu0 %v7696
  %7926 = vmatpush2.msra.mxu0 %v7695
  %7927 = vmatprep.subr.mxu0 %v7689
  %7928 = vmatpush2.msra.mxu0 %v7688
  %7929 = vmatprep.subr.mxu0 %v7682
  %7930 = vmatpush2.msra.mxu0 %v7681
  %7931 = vmatprep.subr.mxu0 %v7675
  %7932 = vmatpush2.msra.mxu0 %v7674
  %7933 = vmatprep.subr.mxu0 %v7668
  %7934 = vmatpush2.msra.mxu0 %v7667
  %7935 = vmatprep.subr.mxu0 %v7661
  %7936 = vmatpush2.msra.mxu0 %v7660
  %7937 = vmatprep.mubr.f32.mxu0 %v7729
  %7938 = vmatmul.mubr.f32.gmra.mxu0 %v7726
  %v7939 = vpop.f32.mrf.mxu0
  %v7940 = vadd.f32 0.0, %v7939
  %v7941 = vpop.f32.mrf.mxu0
  %v7942 = vadd.f32 0.0, %v7941
  %7943 = vdwg.mxu0
  %7944 = vmatprep.subr.mxu0 0.0
  %7945 = vmatpush1.msra.mxu0 %v7655
  %7946 = vmatprep.subr.mxu0 0.0
  %7947 = vmatpush1.msra.mxu0 %v7648
  %7948 = vmatprep.subr.mxu0 0.0
  %7949 = vmatpush1.msra.mxu0 %v7641
  %7950 = vmatprep.subr.mxu0 0.0
  %7951 = vmatpush1.msra.mxu0 %v7634
  %7952 = vmatprep.subr.mxu0 0.0
  %7953 = vmatpush1.msra.mxu0 %v7627
  %7954 = vmatprep.subr.mxu0 0.0
  %7955 = vmatpush1.msra.mxu0 %v7620
  %7956 = vmatprep.subr.mxu0 0.0
  %7957 = vmatpush1.msra.mxu0 %v7613
  %7958 = vmatprep.subr.mxu0 0.0
  %7959 = vmatpush1.msra.mxu0 %v7606
  %7960 = vmatprep.subr.mxu0 0.0
  %7961 = vmatpush1.msra.mxu0 %v7599
  %7962 = vmatprep.subr.mxu0 0.0
  %7963 = vmatpush1.msra.mxu0 %v7592
  %7964 = vmatprep.subr.mxu0 0.0
  %7965 = vmatpush1.msra.mxu0 %v7585
  %7966 = vmatprep.subr.mxu0 0.0
  %7967 = vmatpush1.msra.mxu0 %v7578
  %7968 = vmatprep.subr.mxu0 0.0
  %7969 = vmatpush1.msra.mxu0 %v7571
  %7970 = vmatprep.subr.mxu0 0.0
  %7971 = vmatpush1.msra.mxu0 %v7564
  %7972 = vmatprep.subr.mxu0 0.0
  %7973 = vmatpush1.msra.mxu0 %v7557
  %7974 = vmatprep.subr.mxu0 0.0
  %7975 = vmatpush1.msra.mxu0 %v7550
  %7976 = vmatprep.subr.mxu0 0.0
  %7977 = vmatpush2.msra.mxu0 0.0
  %7978 = vmatprep.subr.mxu0 0.0
  %7979 = vmatpush2.msra.mxu0 0.0
  %7980 = vmatprep.subr.mxu0 0.0
  %7981 = vmatpush2.msra.mxu0 0.0
  %7982 = vmatprep.subr.mxu0 0.0
  %7983 = vmatpush2.msra.mxu0 0.0
  %7984 = vmatprep.subr.mxu0 0.0
  %7985 = vmatpush2.msra.mxu0 0.0
  %7986 = vmatprep.subr.mxu0 0.0
  %7987 = vmatpush2.msra.mxu0 0.0
  %7988 = vmatprep.subr.mxu0 0.0
  %7989 = vmatpush2.msra.mxu0 0.0
  %7990 = vmatprep.subr.mxu0 0.0
  %7991 = vmatpush2.msra.mxu0 %v7718
  %7992 = vmatprep.subr.mxu0 0.0
  %7993 = vmatpush2.msra.mxu0 %v7711
  %7994 = vmatprep.subr.mxu0 0.0
  %7995 = vmatpush2.msra.mxu0 %v7704
  %7996 = vmatprep.subr.mxu0 0.0
  %7997 = vmatpush2.msra.mxu0 %v7697
  %7998 = vmatprep.subr.mxu0 0.0
  %7999 = vmatpush2.msra.mxu0 %v7690
  %8000 = vmatprep.subr.mxu0 0.0
  %8001 = vmatpush2.msra.mxu0 %v7683
  %8002 = vmatprep.subr.mxu0 0.0
  %8003 = vmatpush2.msra.mxu0 %v7676
  %8004 = vmatprep.subr.mxu0 0.0
  %8005 = vmatpush2.msra.mxu0 %v7669
  %8006 = vmatprep.subr.mxu0 0.0
  %8007 = vmatpush2.msra.mxu0 %v7662
  %8008 = vmatprep.mubr.f32.mxu0 %v7729
  %8009 = vmatmul.mubr.f32.gmra.mxu0 %v7726
  %v8010 = vpop.f32.mrf.mxu0
  %v8011 = vadd.f32 0.0, %v8010
  %v8012 = vpop.f32.mrf.mxu0
  %8013 = vdwg.mxu0
  %v8021 = vcombine.low %v7798, %v7800
  %v8022 = vcombine.low %v7869, %v7871
  %v8024 = vunpack.c.l.s4 1983009808
  %v8025 = vunpack.c.0.s8 %v8024
  %v8026 = vlaneseq
  %v8027 = vshrl.u32 %v8026, 7
  %v8028 = vsub.s32 %v8025, %v8027
  %v8029 = vrot.slane %v8021, %v8028
  %v8031 = vunpack.c.l.s4 1983009808
  %v8032 = vunpack.c.0.s8 %v8031
  %v8033 = vlaneseq
  %v8034 = vshrl.u32 %v8033, 7
  %v8035 = vsub.s32 %v8032, %v8034
  %v8036 = vrot.slane %v8022, %v8035
  %v8037 = vcombine.low %v8029, %v8036
  %v8038 = vcombine.low %v7940, %v7942
  %v8040 = vunpack.c.l.s4 1983009808
  %v8041 = vunpack.c.0.s8 %v8040
  %v8042 = vlaneseq
  %v8043 = vshrl.u32 %v8042, 7
  %v8044 = vsub.s32 %v8041, %v8043
  %v8045 = vrot.slane %v8038, %v8044
  %v8047 = vunpack.c.l.s4 1983009808
  %v8048 = vunpack.c.0.s8 %v8047
  %v8049 = vlaneseq
  %v8050 = vshrl.u32 %v8049, 7
  %v8051 = vsub.s32 %v8048, %v8050
  %v8052 = vrot.slane %v8011, %v8051
  %v8053 = vcombine.low %v8045, %v8052
  %8056 = vst [vmem:[%s22] sm:$0xff] %v8037
  %vm8057 = vcmask 1043458
  %vm8058 = vmor %vm8057, %vm1405
  %vm8059 = vcmask 128004
  %vm8060 = vmor %vm8059, %vm8058
  %8061 = vst.msk [vmem:[%s22 + $0x8] sm:$0x3f] %vm8060, %v8053
  // Predicated region
  $region90: #{generator_forward.1} parent=0 // pred_check
    _
  $region91: #{generator_forward.1} parent=0 // pred_check_branch
    %8063 = sbr.rel (0) target = $region93
  $region92: #{generator_forward.1} parent=0 // pred_region
    _
  $region93: #{generator_forward.1} parent=0 // pred_fallthru
    _
  // Predicated region
  $region94: #{generator_forward.1} parent=0 // pred_check
    _
  $region95: #{generator_forward.1} parent=0 // pred_check_branch
    %8065 = sbr.rel (0) target = $region97
  $region96: #{generator_forward.1} parent=0 // pred_region
    _
  $region97: #{generator_forward.1} parent=0 // pred_fallthru
    _
  // Predicated region
  $region98: #{generator_forward.1} parent=0 // pred_check
    _
  $region99: #{generator_forward.1} parent=0 // pred_check_branch
    %8067 = sbr.rel (0) target = $region101
  $region100: #{generator_forward.1} parent=0 // pred_region
    _
  $region101: #{generator_forward.1} parent=0 // pred_fallthru
    _
  // Predicated region
  $region102: #{generator_forward.1} parent=0 // pred_check
    _
  $region103: #{generator_forward.1} parent=0 // pred_check_branch
    %8069 = sbr.rel (0) target = $region105
  $region104: #{generator_forward.1} parent=0 // pred_region
    _
  $region105: #{generator_forward.1} parent=0 // pred_fallthru
    _

</llo_original>
